<compile_context>
chip_gen: v7x
topology: tpu7x:2x2x1
jax: 0.10.0
libtpu: 0.0.40
codegen_flags: <defaults>
</compile_context>

<pallas_src>
import functools
import math

import numpy as np
import jax
import jax.numpy as jnp
from jax import lax
from jax.experimental import pallas as pl
from jax.experimental.pallas import tpu as pltpu

# ----------------------------- configuration --------------------------------
VOCAB = 128           # synthetic vocab size (one full lane width)
D_MODEL = 128         # hidden size (lane-dense vregs)
D_FF = 4 * D_MODEL    # MLP hidden size
FF_CHUNK = 256        # D_FF processed in chunks (keeps (M, chunk) f32 small)
S_MAX = 32            # padded sequence length (sublane aligned)
NB = 8                # sequences per grid step -> M = NB * S_MAX = 256

DENSE_BF16 = frozenset(['wte', 'wqkv', 'wo', 'w1', 'w2', 'wlm'])
PARAM_ORDER = ['wte', 'wpe', 'wqkv', 'wo', 'w1', 'b1', 'w2', 'b2',
               'ln1g', 'ln1b', 'ln2g', 'ln2b', 'lnfg', 'lnfb', 'wlm']


# ------------------------------ Pallas kernel --------------------------------
def _layer_norm(h, g, b):
    mu = jnp.mean(h, axis=-1, keepdims=True)
    var = jnp.mean((h - mu) ** 2, axis=-1, keepdims=True)
    return (h - mu) * lax.rsqrt(var + 1e-5) * g + b


def _gelu(x):
    # GPT-2 tanh-approximate GELU (f32 — v5e VPU has no bf16)
    return 0.5 * x * (1.0 + jnp.tanh(0.7978845608028654 *
                                     (x + 0.044715 * x * x * x)))


def lm_loss_kernel(ids_ref,            # VMEM (NB, S, 1) int32: token ids
                   nxt_ref,            # VMEM (NB, S, 1) int32: next-token ids
                   len_ref,            # VMEM (NB, 1, 1) int32: real lengths
                   wte_ref, wpe_ref,
                   wqkv_ref, wo_ref, w1_ref, b1_ref, w2_ref, b2_ref,
                   ln1g_ref, ln1b_ref, ln2g_ref, ln2b_ref, lnfg_ref, lnfb_ref,
                   wlm_ref,
                   loss_ref):          # VMEM (NB, 1, 128) f32: mean CE (lane splat)
    ids3 = ids_ref[...]                               # (NB, S, 1)
    nb, S, _ = ids3.shape
    M = nb * S
    D = D_MODEL

    # --- embedding: one_hot(ids) @ wte on the MXU, + positional -------------
    oh = (ids3 == lax.broadcasted_iota(jnp.int32, (nb, S, VOCAB), 2))
    oh = oh.astype(jnp.bfloat16).reshape(M, VOCAB)
    x = jnp.dot(oh, wte_ref[...], preferred_element_type=jnp.float32)   # (M, D) f32
    x = x + jnp.tile(wpe_ref[...], (nb, 1))

    # --- attention block (pre-LN, single head, causal), fused QKV matmul ----
    h1 = _layer_norm(x, ln1g_ref[...], ln1b_ref[...]).astype(jnp.bfloat16)
    qkv = jnp.dot(h1, wqkv_ref[...], preferred_element_type=jnp.float32)  # (M, 3D)
    q = qkv[:, :D].reshape(nb, S, D).astype(jnp.bfloat16)
    k = qkv[:, D:2 * D].reshape(nb, S, D).astype(jnp.bfloat16)
    v = qkv[:, 2 * D:].reshape(nb, S, D).astype(jnp.bfloat16)

    # batched q @ k^T — no transpose materialization
    scores = jnp.einsum('bqd,bkd->bqk', q, k,
                        preferred_element_type=jnp.float32) * (1.0 / math.sqrt(D))

    L3 = len_ref[...]                                  # (NB, 1, 1) int32
    qpos = lax.broadcasted_iota(jnp.int32, (nb, S, S), 1)
    kpos = lax.broadcasted_iota(jnp.int32, (nb, S, S), 2)
    mask = (kpos <= qpos) & (kpos < L3)                # causal + key-padding mask
    scores = jnp.where(mask, scores, -1e30)
    m = jnp.max(scores, axis=-1, keepdims=True)
    p = jnp.exp(scores - m)
    psum = jnp.sum(p, axis=-1, keepdims=True)          # (NB, S, 1)
    attn = jnp.einsum('bqk,bkd->bqd', p.astype(jnp.bfloat16), v,
                      preferred_element_type=jnp.float32)
    attn = attn / psum                                 # exact softmax normalization
    attn = attn.reshape(M, D).astype(jnp.bfloat16)
    attn = jnp.dot(attn, wo_ref[...], preferred_element_type=jnp.float32)
    x2 = x + attn

    # --- MLP block (D_FF chunked: keeps the (M, chunk) f32 intermediate small)
    h2 = _layer_norm(x2, ln2g_ref[...], ln2b_ref[...]).astype(jnp.bfloat16)
    mlp = jnp.zeros((M, D), jnp.float32)
    for c in range(D_FF // FF_CHUNK):                  # 2 static chunks
        c0 = c * FF_CHUNK
        hh = jnp.dot(h2, w1_ref[:, c0:c0 + FF_CHUNK],
                     preferred_element_type=jnp.float32) + b1_ref[:, c0:c0 + FF_CHUNK]
        hh = _gelu(hh)
        mlp = mlp + jnp.dot(hh.astype(jnp.bfloat16), w2_ref[c0:c0 + FF_CHUNK, :],
                            preferred_element_type=jnp.float32)
    x3 = x2 + mlp + b2_ref[...]

    # --- final LN + LM head --------------------------------------------------
    hf = _layer_norm(x3, lnfg_ref[...], lnfb_ref[...]).astype(jnp.bfloat16)
    logits = jnp.dot(hf, wlm_ref[...], preferred_element_type=jnp.float32)  # (M, V)

    # --- shifted cross-entropy (GPT-2 LM loss): position t predicts token t+1
    lmax = jnp.max(logits, axis=-1, keepdims=True)
    lse = lmax + jnp.log(jnp.sum(jnp.exp(logits - lmax), axis=-1, keepdims=True))
    tgt = nxt_ref[...].reshape(M, 1)                   # (M, 1) int32
    vcol = lax.broadcasted_iota(jnp.int32, (M, VOCAB), 1)
    logp = jnp.sum(jnp.where(vcol == tgt, logits, 0.0), axis=-1, keepdims=True)
    nll = (lse - logp).reshape(nb, S, 1)               # (NB, S, 1)

    spos = lax.broadcasted_iota(jnp.int32, (nb, S, 1), 1)
    # positions 0..L-2 predict tokens 1..L-1; the wrapped roll target at the
    # last real position is always excluded by this mask.
    valid = spos < (L3 - 1)
    total = jnp.sum(jnp.where(valid, nll, 0.0), axis=1, keepdims=True)   # (NB,1,1)
    denom = jnp.maximum(L3 - 1, 1).astype(jnp.float32)  # guard length-1 sequences
    loss = total / denom                               # (NB, 1, 1)
    # one lane-dense store for all NB sequences of this step
    loss_ref[...] = jnp.broadcast_to(loss, (nb, 1, VOCAB))


# ------------------------------- JAX wrappers ---------------------------------
def _lm_losses(ids, lengths, params):
    """Mean next-token CE loss for B padded sequences — ONE coarsened pallas_call."""
    B, S = ids.shape
    b_pad = -(-B // NB) * NB                           # pad batch to a multiple of NB
    pad = b_pad - B
    ids_p = jnp.pad(ids.astype(jnp.int32), ((0, pad), (0, 0)))
    lens_p = jnp.pad(lengths.astype(jnp.int32), ((0, pad),), constant_values=2)

    # tiny int32 glue inside the same jit (see TODO at top); no f32 activations
    # are materialized in HBM any more.
    nxt_p = jnp.roll(ids_p, -1, axis=1)
    ids3 = ids_p[..., None]                            # (B_pad, S, 1)
    nxt3 = nxt_p[..., None]                            # (B_pad, S, 1)
    lens3 = lens_p[:, None, None]                      # (B_pad, 1, 1)

    # dense weights -> bf16 (f32 accumulation in-kernel); LN/bias stay f32
    weights = [params[name].astype(jnp.bfloat16) if name in DENSE_BF16
               else params[name] for name in PARAM_ORDER]

    # Weights: full-array blocks with constant index maps -> fetched once and
    # resident in VMEM across the whole grid (total < ~1 MiB double-buffered).
    w_specs = [pl.BlockSpec(w.shape, lambda g: (0, 0)) for w in weights]

    out = pl.pallas_call(
        lm_loss_kernel,
        out_shape=jax.ShapeDtypeStruct((b_pad, 1, VOCAB), jnp.float32),
        grid=(b_pad // NB,),
        in_specs=[pl.BlockSpec((NB, S, 1), lambda g: (g, 0, 0)),   # ids
                  pl.BlockSpec((NB, S, 1), lambda g: (g, 0, 0)),   # next ids
                  pl.BlockSpec((NB, 1, 1), lambda g: (g, 0, 0))]   # lengths
                 + w_specs,
        out_specs=pl.BlockSpec((NB, 1, VOCAB), lambda g: (g, 0, 0)),
        compiler_params=pltpu.CompilerParams(
            dimension_semantics=("parallel",)),
    )(ids3, nxt3, lens3, *weights)
    return out[:B, 0, 0]                               # (B,)


_lm_losses_jit = jax.jit(_lm_losses)


@functools.partial(jax.jit, static_argnames=('n_pos',))
def _forward_device(ids, lengths, ratios, params, n_pos):
    """Everything on-device: batched LM losses + score diffs + double softmax."""
    losses = _lm_losses(ids, lengths, params)          # (2*P,) interleaved [full, base]
    loss_all = losses[0::2]
    loss_base = losses[1::2]
    scores = loss_all - loss_base * ratios             # per-prompt score (loss1 - scaled loss2)
    pos = jnp.sum(scores[:n_pos])
    neg = jnp.sum(scores[n_pos:])
    result = jax.nn.softmax(jnp.stack([1.0 - neg, 1.0 - pos]), axis=0)
    return result, jax.nn.softmax(result, axis=0)


def init_params(key):
    keys = jax.random.split(key, 7)

    def rn(k, shape, scale=0.02):
        return scale * jax.random.normal(k, shape, dtype=jnp.float32)

    return {
        'wte': rn(keys[0], (VOCAB, D_MODEL)),
        'wpe': rn(keys[1], (S_MAX, D_MODEL)),
        'wqkv': rn(keys[2], (D_MODEL, 3 * D_MODEL)),   # fused Q|K|V
        'wo': rn(keys[3], (D_MODEL, D_MODEL)),
        'w1': rn(keys[4], (D_MODEL, D_FF)),
        'b1': jnp.zeros((1, D_FF), jnp.float32),
        'w2': rn(keys[5], (D_FF, D_MODEL)),
        'b2': jnp.zeros((1, D_MODEL), jnp.float32),
        'ln1g': jnp.ones((1, D_MODEL), jnp.float32),
        'ln1b': jnp.zeros((1, D_MODEL), jnp.float32),
        'ln2g': jnp.ones((1, D_MODEL), jnp.float32),
        'ln2b': jnp.zeros((1, D_MODEL), jnp.float32),
        'lnfg': jnp.ones((1, D_MODEL), jnp.float32),
        'lnfb': jnp.zeros((1, D_MODEL), jnp.float32),
        'wlm': rn(keys[6], (D_MODEL, VOCAB)),
    }


def tokenize(text):
    """Deterministic stand-in for GPT2Tokenizer.encode (stable word hashing)."""
    ids = []
    for w in text.strip().split():
        h = 0
        for ch in w.encode('utf-8'):
            h = (h * 131 + ch) % 100003
        ids.append(h % VOCAB)
    return ids[:S_MAX]


def _pad(ids):
    a = np.zeros((S_MAX,), np.int32)
    a[:len(ids)] = np.asarray(ids, np.int32)
    return a


def score(prompt, sentence, params, causal=False):
    """Mirrors ClassificationModel.score (single prompt; batched B=2 call)."""
    if causal:
        base = tokenize(prompt)
        full = tokenize(prompt + ' ' + sentence)
    else:
        base = tokenize(sentence)
        full = tokenize(sentence + ' ' + prompt)
    ids = jnp.asarray(np.stack([_pad(full), _pad(base)]))
    lengths = jnp.asarray(np.array([len(full), len(base)], np.int32))
    losses = _lm_losses_jit(ids, lengths, params)
    return losses[0] - losses[1] * (len(base) / len(full))


def classification_forward(sentence, params, pos_prompts, neg_prompts, causal=False):
    """Mirrors ClassificationModel.forward — all prompts batched into one kernel."""
    prompts = list(pos_prompts) + list(neg_prompts)
    ids_list, lens, ratios = [], [], []
    for p in prompts:
        if causal:
            base = tokenize(p)
            full = tokenize(p + ' ' + sentence)
        else:
            base = tokenize(sentence)
            full = tokenize(sentence + ' ' + p)
        ids_list += [full, base]
        lens += [len(full), len(base)]
        ratios.append(len(base) / len(full))

    ids = jnp.asarray(np.stack([_pad(i) for i in ids_list]))
    lengths = jnp.asarray(np.array(lens, np.int32))
    ratios = jnp.asarray(np.array(ratios, np.float32))

    result, final = _forward_device(ids, lengths, ratios, params,
                                    n_pos=len(pos_prompts))

    # Single host sync, deferred to the very end (original syncs mid-forward).
    r = np.asarray(jax.block_until_ready(result))
    if abs(float(r[0]) + float(r[1]) - 1.0) >= 1e-6:
        print('detected something')
        final = jax.nn.softmax(jnp.array([1.0, 0.0], jnp.float32), axis=0)
    return final


# ---------------------------------- main --------------------------------------
if __name__ == "__main__":
    params = init_params(jax.random.PRNGKey(0))
    pos_prompts = [' : Positive']
    neg_prompts = [' : Negative']
    sentence = "this movie was a wonderful and delightful surprise"

    out = classification_forward(sentence, params, pos_prompts, neg_prompts,
                                 causal=False)
    out = jax.block_until_ready(out)
    assert out.shape == (2,)
    assert np.isfinite(np.asarray(out)).all()
    print("KERNEL_OK")
</pallas_src>

<mosaic_0001>
module attributes {stable_mosaic.version = 11 : i64} {
  func.func @lm_loss_kernel(%arg0: i32, %arg1: memref<8x32x1xi32, #tpu.memory_space<vmem>>, %arg2: memref<8x32x1xi32, #tpu.memory_space<vmem>>, %arg3: memref<8x1x1xi32, #tpu.memory_space<vmem>>, %arg4: memref<128x128xbf16, #tpu.memory_space<vmem>>, %arg5: memref<32x128xf32, #tpu.memory_space<vmem>>, %arg6: memref<128x384xbf16, #tpu.memory_space<vmem>>, %arg7: memref<128x128xbf16, #tpu.memory_space<vmem>>, %arg8: memref<128x512xbf16, #tpu.memory_space<vmem>>, %arg9: memref<1x512xf32, #tpu.memory_space<vmem>>, %arg10: memref<512x128xbf16, #tpu.memory_space<vmem>>, %arg11: memref<1x128xf32, #tpu.memory_space<vmem>>, %arg12: memref<1x128xf32, #tpu.memory_space<vmem>>, %arg13: memref<1x128xf32, #tpu.memory_space<vmem>>, %arg14: memref<1x128xf32, #tpu.memory_space<vmem>>, %arg15: memref<1x128xf32, #tpu.memory_space<vmem>>, %arg16: memref<1x128xf32, #tpu.memory_space<vmem>>, %arg17: memref<1x128xf32, #tpu.memory_space<vmem>>, %arg18: memref<128x128xbf16, #tpu.memory_space<vmem>>, %arg19: memref<8x1x128xf32, #tpu.memory_space<vmem>>) attributes {dimension_semantics = [#tpu.dimension_semantics<parallel>], iteration_bounds = array<i64: 1>, scalar_prefetch = 0 : i64, scratch_operands = 0 : i64, tpu.core_type = #tpu.core_type<tc>, window_params = [{transform_indices = @transform_0, window_bounds = array<i64: 8, 32, 1>}, {transform_indices = @transform_1, window_bounds = array<i64: 8, 32, 1>}, {transform_indices = @transform_2, window_bounds = array<i64: 8, 1, 1>}, {pipeline_mode = #tpu.pipeline_mode<synchronous>, transform_indices = @transform_3, window_bounds = array<i64: 128, 128>}, {pipeline_mode = #tpu.pipeline_mode<synchronous>, transform_indices = @transform_4, window_bounds = array<i64: 32, 128>}, {pipeline_mode = #tpu.pipeline_mode<synchronous>, transform_indices = @transform_5, window_bounds = array<i64: 128, 384>}, {pipeline_mode = #tpu.pipeline_mode<synchronous>, transform_indices = @transform_6, window_bounds = array<i64: 128, 128>}, {pipeline_mode = #tpu.pipeline_mode<synchronous>, transform_indices = @transform_7, window_bounds = array<i64: 128, 512>}, {pipeline_mode = #tpu.pipeline_mode<synchronous>, transform_indices = @transform_8, window_bounds = array<i64: 1, 512>}, {pipeline_mode = #tpu.pipeline_mode<synchronous>, transform_indices = @transform_9, window_bounds = array<i64: 512, 128>}, {pipeline_mode = #tpu.pipeline_mode<synchronous>, transform_indices = @transform_10, window_bounds = array<i64: 1, 128>}, {pipeline_mode = #tpu.pipeline_mode<synchronous>, transform_indices = @transform_11, window_bounds = array<i64: 1, 128>}, {pipeline_mode = #tpu.pipeline_mode<synchronous>, transform_indices = @transform_12, window_bounds = array<i64: 1, 128>}, {pipeline_mode = #tpu.pipeline_mode<synchronous>, transform_indices = @transform_13, window_bounds = array<i64: 1, 128>}, {pipeline_mode = #tpu.pipeline_mode<synchronous>, transform_indices = @transform_14, window_bounds = array<i64: 1, 128>}, {pipeline_mode = #tpu.pipeline_mode<synchronous>, transform_indices = @transform_15, window_bounds = array<i64: 1, 128>}, {pipeline_mode = #tpu.pipeline_mode<synchronous>, transform_indices = @transform_16, window_bounds = array<i64: 1, 128>}, {pipeline_mode = #tpu.pipeline_mode<synchronous>, transform_indices = @transform_17, window_bounds = array<i64: 128, 128>}, {transform_indices = @transform_18, window_bounds = array<i64: 8, 1, 128>}]} {
    %c0 = arith.constant 0 : index
    %c0_0 = arith.constant 0 : index
    %c0_1 = arith.constant 0 : index
    %0 = vector.load %arg1[%c0, %c0_0, %c0_1] : memref<8x32x1xi32, #tpu.memory_space<vmem>>, vector<8x32x1xi32>
    %1 = tpu.iota {dimensions = array<i32: 2>} : vector<8x32x128xi32>
    %2 = vector.broadcast %0 : vector<8x32x1xi32> to vector<8x32x128xi32>
    %3 = arith.cmpi eq, %2, %1 : vector<8x32x128xi32>
    %4 = arith.extui %3 : vector<8x32x128xi1> to vector<8x32x128xi32>
    %5 = arith.sitofp %4 : vector<8x32x128xi32> to vector<8x32x128xf32>
    %6 = arith.truncf %5 : vector<8x32x128xf32> to vector<8x32x128xbf16>
    %7 = vector.shape_cast %6 : vector<8x32x128xbf16> to vector<256x128xbf16>
    %c0_2 = arith.constant 0 : index
    %c0_3 = arith.constant 0 : index
    %8 = vector.load %arg4[%c0_2, %c0_3] : memref<128x128xbf16, #tpu.memory_space<vmem>>, vector<128x128xbf16>
    %cst = arith.constant dense<0.000000e+00> : vector<256x128xf32>
    %9 = tpu.matmul %7, %8, %cst {dimension_numbers = #tpu.dot_dimension_numbers<[1], [0], [0], [1], [0, 0, 1, 1], [], []>} : vector<256x128xbf16>, vector<128x128xbf16>, vector<256x128xf32> -> vector<256x128xf32>
    %c0_4 = arith.constant 0 : index
    %c0_5 = arith.constant 0 : index
    %10 = vector.load %arg5[%c0_4, %c0_5] : memref<32x128xf32, #tpu.memory_space<vmem>>, vector<32x128xf32>
    %11 = tpu.concatenate %10, %10, %10, %10, %10, %10, %10, %10 in 0 : vector<32x128xf32>, vector<32x128xf32>, vector<32x128xf32>, vector<32x128xf32>, vector<32x128xf32>, vector<32x128xf32>, vector<32x128xf32>, vector<32x128xf32> -> vector<256x128xf32>
    %12 = arith.addf %9, %11 : vector<256x128xf32>
    %c0_6 = arith.constant 0 : index
    %c0_7 = arith.constant 0 : index
    %13 = vector.load %arg12[%c0_6, %c0_7] : memref<1x128xf32, #tpu.memory_space<vmem>>, vector<1x128xf32>
    %c0_8 = arith.constant 0 : index
    %c0_9 = arith.constant 0 : index
    %14 = vector.load %arg13[%c0_8, %c0_9] : memref<1x128xf32, #tpu.memory_space<vmem>>, vector<1x128xf32>
    %cst_10 = arith.constant dense<0.000000e+00> : vector<256xf32>
    %15 = vector.multi_reduction <add>, %12, %cst_10 [1] : vector<256x128xf32> to vector<256xf32>
    %16 = vector.shape_cast %15 : vector<256xf32> to vector<256x1xf32>
    %cst_11 = arith.constant 1.280000e+02 : f32
    %17 = vector.broadcast %cst_11 : f32 to vector<256x1xf32>
    %18 = arith.divf %16, %17 : vector<256x1xf32>
    %19 = vector.broadcast %18 : vector<256x1xf32> to vector<256x128xf32>
    %20 = arith.subf %12, %19 : vector<256x128xf32>
    %21 = arith.mulf %20, %20 : vector<256x128xf32>
    %cst_12 = arith.constant dense<0.000000e+00> : vector<256xf32>
    %22 = vector.multi_reduction <add>, %21, %cst_12 [1] : vector<256x128xf32> to vector<256xf32>
    %23 = vector.shape_cast %22 : vector<256xf32> to vector<256x1xf32>
    %cst_13 = arith.constant 1.280000e+02 : f32
    %24 = vector.broadcast %cst_13 : f32 to vector<256x1xf32>
    %25 = arith.divf %23, %24 : vector<256x1xf32>
    %26 = vector.broadcast %18 : vector<256x1xf32> to vector<256x128xf32>
    %27 = arith.subf %12, %26 : vector<256x128xf32>
    %cst_14 = arith.constant 9.99999974E-6 : f32
    %28 = vector.broadcast %cst_14 : f32 to vector<256x1xf32>
    %29 = arith.addf %25, %28 : vector<256x1xf32>
    %30 = math.rsqrt %29 : vector<256x1xf32>
    %31 = vector.broadcast %30 : vector<256x1xf32> to vector<256x128xf32>
    %32 = arith.mulf %27, %31 : vector<256x128xf32>
    %33 = vector.broadcast %13 : vector<1x128xf32> to vector<256x128xf32>
    %34 = arith.mulf %32, %33 : vector<256x128xf32>
    %35 = vector.broadcast %14 : vector<1x128xf32> to vector<256x128xf32>
    %36 = arith.addf %34, %35 : vector<256x128xf32>
    %37 = arith.truncf %36 : vector<256x128xf32> to vector<256x128xbf16>
    %c0_15 = arith.constant 0 : index
    %c0_16 = arith.constant 0 : index
    %38 = vector.load %arg6[%c0_15, %c0_16] : memref<128x384xbf16, #tpu.memory_space<vmem>>, vector<128x384xbf16>
    %cst_17 = arith.constant dense<0.000000e+00> : vector<256x384xf32>
    %39 = tpu.matmul %37, %38, %cst_17 {dimension_numbers = #tpu.dot_dimension_numbers<[1], [0], [0], [1], [0, 0, 1, 1], [], []>} : vector<256x128xbf16>, vector<128x384xbf16>, vector<256x384xf32> -> vector<256x384xf32>
    %40 = vector.extract_strided_slice %39 {offsets = [0, 0], sizes = [256, 128], strides = [1, 1]} : vector<256x384xf32> to vector<256x128xf32>
    %41 = vector.shape_cast %40 : vector<256x128xf32> to vector<8x32x128xf32>
    %42 = arith.truncf %41 : vector<8x32x128xf32> to vector<8x32x128xbf16>
    %43 = vector.extract_strided_slice %39 {offsets = [0, 128], sizes = [256, 128], strides = [1, 1]} : vector<256x384xf32> to vector<256x128xf32>
    %44 = vector.shape_cast %43 : vector<256x128xf32> to vector<8x32x128xf32>
    %45 = arith.truncf %44 : vector<8x32x128xf32> to vector<8x32x128xbf16>
    %46 = vector.extract_strided_slice %39 {offsets = [0, 256], sizes = [256, 128], strides = [1, 1]} : vector<256x384xf32> to vector<256x128xf32>
    %47 = vector.shape_cast %46 : vector<256x128xf32> to vector<8x32x128xf32>
    %48 = arith.truncf %47 : vector<8x32x128xf32> to vector<8x32x128xbf16>
    "tpu.trace_start"() <{level = 10 : i32, message = "bqd,bkd->bqk"}> : () -> ()
    %cst_18 = arith.constant dense<0.000000e+00> : vector<8x32x32xf32>
    %49 = tpu.matmul %42, %45, %cst_18 {dimension_numbers = #tpu.dot_dimension_numbers<[2], [2], [1], [1], [0, 0, 0, 1, 1, 1], [0], [0]>} : vector<8x32x128xbf16>, vector<8x32x128xbf16>, vector<8x32x32xf32> -> vector<8x32x32xf32>
    "tpu.trace_stop"() : () -> ()
    %cst_19 = arith.constant 0.0883883461 : f32
    %50 = vector.broadcast %cst_19 : f32 to vector<8x32x32xf32>
    %51 = arith.mulf %49, %50 : vector<8x32x32xf32>
    %c0_20 = arith.constant 0 : index
    %c0_21 = arith.constant 0 : index
    %c0_22 = arith.constant 0 : index
    %52 = vector.load %arg3[%c0_20, %c0_21, %c0_22] : memref<8x1x1xi32, #tpu.memory_space<vmem>>, vector<8x1x1xi32>
    %53 = tpu.iota {dimensions = array<i32: 1>} : vector<8x32x32xi32>
    %54 = tpu.iota {dimensions = array<i32: 2>} : vector<8x32x32xi32>
    %55 = arith.cmpi sle, %54, %53 : vector<8x32x32xi32>
    %56 = vector.broadcast %52 : vector<8x1x1xi32> to vector<8x32x32xi32>
    %57 = arith.cmpi slt, %54, %56 : vector<8x32x32xi32>
    %58 = arith.andi %55, %57 : vector<8x32x32xi1>
    %cst_23 = arith.constant -1.000000e+30 : f32
    %59 = vector.broadcast %cst_23 : f32 to vector<8x32x32xf32>
    %60 = arith.select %58, %51, %59 : vector<8x32x32xi1>, vector<8x32x32xf32>
    %cst_24 = arith.constant dense<0xFF800000> : vector<8x32xf32>
    %61 = vector.multi_reduction <maximumf>, %60, %cst_24 [2] : vector<8x32x32xf32> to vector<8x32xf32>
    %62 = vector.shape_cast %61 : vector<8x32xf32> to vector<8x32x1xf32>
    %63 = vector.broadcast %62 : vector<8x32x1xf32> to vector<8x32x32xf32>
    %64 = arith.subf %60, %63 : vector<8x32x32xf32>
    %65 = math.exp %64 : vector<8x32x32xf32>
    %cst_25 = arith.constant dense<0.000000e+00> : vector<8x32xf32>
    %66 = vector.multi_reduction <add>, %65, %cst_25 [2] : vector<8x32x32xf32> to vector<8x32xf32>
    %67 = vector.shape_cast %66 : vector<8x32xf32> to vector<8x32x1xf32>
    %68 = arith.truncf %65 : vector<8x32x32xf32> to vector<8x32x32xbf16>
    "tpu.trace_start"() <{level = 10 : i32, message = "bqk,bkd->bqd"}> : () -> ()
    %cst_26 = arith.constant dense<0.000000e+00> : vector<8x32x128xf32>
    %69 = tpu.matmul %68, %48, %cst_26 {dimension_numbers = #tpu.dot_dimension_numbers<[2], [1], [1], [2], [0, 0, 0, 1, 1, 2], [0], [0]>} : vector<8x32x32xbf16>, vector<8x32x128xbf16>, vector<8x32x128xf32> -> vector<8x32x128xf32>
    "tpu.trace_stop"() : () -> ()
    %70 = vector.broadcast %67 : vector<8x32x1xf32> to vector<8x32x128xf32>
    %71 = arith.divf %69, %70 : vector<8x32x128xf32>
    %72 = vector.shape_cast %71 : vector<8x32x128xf32> to vector<256x128xf32>
    %73 = arith.truncf %72 : vector<256x128xf32> to vector<256x128xbf16>
    %c0_27 = arith.constant 0 : index
    %c0_28 = arith.constant 0 : index
    %74 = vector.load %arg7[%c0_27, %c0_28] : memref<128x128xbf16, #tpu.memory_space<vmem>>, vector<128x128xbf16>
    %cst_29 = arith.constant dense<0.000000e+00> : vector<256x128xf32>
    %75 = tpu.matmul %73, %74, %cst_29 {dimension_numbers = #tpu.dot_dimension_numbers<[1], [0], [0], [1], [0, 0, 1, 1], [], []>} : vector<256x128xbf16>, vector<128x128xbf16>, vector<256x128xf32> -> vector<256x128xf32>
    %76 = arith.addf %12, %75 : vector<256x128xf32>
    %c0_30 = arith.constant 0 : index
    %c0_31 = arith.constant 0 : index
    %77 = vector.load %arg14[%c0_30, %c0_31] : memref<1x128xf32, #tpu.memory_space<vmem>>, vector<1x128xf32>
    %c0_32 = arith.constant 0 : index
    %c0_33 = arith.constant 0 : index
    %78 = vector.load %arg15[%c0_32, %c0_33] : memref<1x128xf32, #tpu.memory_space<vmem>>, vector<1x128xf32>
    %cst_34 = arith.constant dense<0.000000e+00> : vector<256xf32>
    %79 = vector.multi_reduction <add>, %76, %cst_34 [1] : vector<256x128xf32> to vector<256xf32>
    %80 = vector.shape_cast %79 : vector<256xf32> to vector<256x1xf32>
    %cst_35 = arith.constant 1.280000e+02 : f32
    %81 = vector.broadcast %cst_35 : f32 to vector<256x1xf32>
    %82 = arith.divf %80, %81 : vector<256x1xf32>
    %83 = vector.broadcast %82 : vector<256x1xf32> to vector<256x128xf32>
    %84 = arith.subf %76, %83 : vector<256x128xf32>
    %85 = arith.mulf %84, %84 : vector<256x128xf32>
    %cst_36 = arith.constant dense<0.000000e+00> : vector<256xf32>
    %86 = vector.multi_reduction <add>, %85, %cst_36 [1] : vector<256x128xf32> to vector<256xf32>
    %87 = vector.shape_cast %86 : vector<256xf32> to vector<256x1xf32>
    %cst_37 = arith.constant 1.280000e+02 : f32
    %88 = vector.broadcast %cst_37 : f32 to vector<256x1xf32>
    %89 = arith.divf %87, %88 : vector<256x1xf32>
    %90 = vector.broadcast %82 : vector<256x1xf32> to vector<256x128xf32>
    %91 = arith.subf %76, %90 : vector<256x128xf32>
    %cst_38 = arith.constant 9.99999974E-6 : f32
    %92 = vector.broadcast %cst_38 : f32 to vector<256x1xf32>
    %93 = arith.addf %89, %92 : vector<256x1xf32>
    %94 = math.rsqrt %93 : vector<256x1xf32>
    %95 = vector.broadcast %94 : vector<256x1xf32> to vector<256x128xf32>
    %96 = arith.mulf %91, %95 : vector<256x128xf32>
    %97 = vector.broadcast %77 : vector<1x128xf32> to vector<256x128xf32>
    %98 = arith.mulf %96, %97 : vector<256x128xf32>
    %99 = vector.broadcast %78 : vector<1x128xf32> to vector<256x128xf32>
    %100 = arith.addf %98, %99 : vector<256x128xf32>
    %101 = arith.truncf %100 : vector<256x128xf32> to vector<256x128xbf16>
    %cst_39 = arith.constant 0.000000e+00 : f32
    %102 = vector.broadcast %cst_39 : f32 to vector<256x128xf32>
    %c0_40 = arith.constant 0 : index
    %c0_41 = arith.constant 0 : index
    %103 = vector.load %arg8[%c0_40, %c0_41] : memref<128x512xbf16, #tpu.memory_space<vmem>>, vector<128x256xbf16>
    %cst_42 = arith.constant dense<0.000000e+00> : vector<256x256xf32>
    %104 = tpu.matmul %101, %103, %cst_42 {dimension_numbers = #tpu.dot_dimension_numbers<[1], [0], [0], [1], [0, 0, 1, 1], [], []>} : vector<256x128xbf16>, vector<128x256xbf16>, vector<256x256xf32> -> vector<256x256xf32>
    %c0_43 = arith.constant 0 : index
    %c0_44 = arith.constant 0 : index
    %105 = vector.load %arg9[%c0_43, %c0_44] : memref<1x512xf32, #tpu.memory_space<vmem>>, vector<1x256xf32>
    %106 = vector.broadcast %105 : vector<1x256xf32> to vector<256x256xf32>
    %107 = arith.addf %104, %106 : vector<256x256xf32>
    %cst_45 = arith.constant 5.000000e-01 : f32
    %108 = vector.broadcast %cst_45 : f32 to vector<256x256xf32>
    %109 = arith.mulf %108, %107 : vector<256x256xf32>
    %cst_46 = arith.constant 4.471500e-02 : f32
    %110 = vector.broadcast %cst_46 : f32 to vector<256x256xf32>
    %111 = arith.mulf %110, %107 : vector<256x256xf32>
    %112 = arith.mulf %111, %107 : vector<256x256xf32>
    %113 = arith.mulf %112, %107 : vector<256x256xf32>
    %114 = arith.addf %107, %113 : vector<256x256xf32>
    %cst_47 = arith.constant 0.797884583 : f32
    %115 = vector.broadcast %cst_47 : f32 to vector<256x256xf32>
    %116 = arith.mulf %115, %114 : vector<256x256xf32>
    %117 = math.tanh %116 : vector<256x256xf32>
    %cst_48 = arith.constant 1.000000e+00 : f32
    %118 = vector.broadcast %cst_48 : f32 to vector<256x256xf32>
    %119 = arith.addf %118, %117 : vector<256x256xf32>
    %120 = arith.mulf %109, %119 : vector<256x256xf32>
    %121 = arith.truncf %120 : vector<256x256xf32> to vector<256x256xbf16>
    %c0_49 = arith.constant 0 : index
    %c0_50 = arith.constant 0 : index
    %122 = vector.load %arg10[%c0_49, %c0_50] : memref<512x128xbf16, #tpu.memory_space<vmem>>, vector<256x128xbf16>
    %cst_51 = arith.constant dense<0.000000e+00> : vector<256x128xf32>
    %123 = tpu.matmul %121, %122, %cst_51 {dimension_numbers = #tpu.dot_dimension_numbers<[1], [0], [0], [1], [0, 0, 1, 1], [], []>} : vector<256x256xbf16>, vector<256x128xbf16>, vector<256x128xf32> -> vector<256x128xf32>
    %124 = arith.addf %102, %123 : vector<256x128xf32>
    %c0_52 = arith.constant 0 : index
    %c256 = arith.constant 256 : index
    %125 = vector.load %arg8[%c0_52, %c256] : memref<128x512xbf16, #tpu.memory_space<vmem>>, vector<128x256xbf16>
    %cst_53 = arith.constant dense<0.000000e+00> : vector<256x256xf32>
    %126 = tpu.matmul %101, %125, %cst_53 {dimension_numbers = #tpu.dot_dimension_numbers<[1], [0], [0], [1], [0, 0, 1, 1], [], []>} : vector<256x128xbf16>, vector<128x256xbf16>, vector<256x256xf32> -> vector<256x256xf32>
    %c0_54 = arith.constant 0 : index
    %c256_55 = arith.constant 256 : index
    %127 = vector.load %arg9[%c0_54, %c256_55] : memref<1x512xf32, #tpu.memory_space<vmem>>, vector<1x256xf32>
    %128 = vector.broadcast %127 : vector<1x256xf32> to vector<256x256xf32>
    %129 = arith.addf %126, %128 : vector<256x256xf32>
    %cst_56 = arith.constant 5.000000e-01 : f32
    %130 = vector.broadcast %cst_56 : f32 to vector<256x256xf32>
    %131 = arith.mulf %130, %129 : vector<256x256xf32>
    %cst_57 = arith.constant 4.471500e-02 : f32
    %132 = vector.broadcast %cst_57 : f32 to vector<256x256xf32>
    %133 = arith.mulf %132, %129 : vector<256x256xf32>
    %134 = arith.mulf %133, %129 : vector<256x256xf32>
    %135 = arith.mulf %134, %129 : vector<256x256xf32>
    %136 = arith.addf %129, %135 : vector<256x256xf32>
    %cst_58 = arith.constant 0.797884583 : f32
    %137 = vector.broadcast %cst_58 : f32 to vector<256x256xf32>
    %138 = arith.mulf %137, %136 : vector<256x256xf32>
    %139 = math.tanh %138 : vector<256x256xf32>
    %cst_59 = arith.constant 1.000000e+00 : f32
    %140 = vector.broadcast %cst_59 : f32 to vector<256x256xf32>
    %141 = arith.addf %140, %139 : vector<256x256xf32>
    %142 = arith.mulf %131, %141 : vector<256x256xf32>
    %143 = arith.truncf %142 : vector<256x256xf32> to vector<256x256xbf16>
    %c256_60 = arith.constant 256 : index
    %c0_61 = arith.constant 0 : index
    %144 = vector.load %arg10[%c256_60, %c0_61] : memref<512x128xbf16, #tpu.memory_space<vmem>>, vector<256x128xbf16>
    %cst_62 = arith.constant dense<0.000000e+00> : vector<256x128xf32>
    %145 = tpu.matmul %143, %144, %cst_62 {dimension_numbers = #tpu.dot_dimension_numbers<[1], [0], [0], [1], [0, 0, 1, 1], [], []>} : vector<256x256xbf16>, vector<256x128xbf16>, vector<256x128xf32> -> vector<256x128xf32>
    %146 = arith.addf %124, %145 : vector<256x128xf32>
    %147 = arith.addf %76, %146 : vector<256x128xf32>
    %c0_63 = arith.constant 0 : index
    %c0_64 = arith.constant 0 : index
    %148 = vector.load %arg11[%c0_63, %c0_64] : memref<1x128xf32, #tpu.memory_space<vmem>>, vector<1x128xf32>
    %149 = vector.broadcast %148 : vector<1x128xf32> to vector<256x128xf32>
    %150 = arith.addf %147, %149 : vector<256x128xf32>
    %c0_65 = arith.constant 0 : index
    %c0_66 = arith.constant 0 : index
    %151 = vector.load %arg16[%c0_65, %c0_66] : memref<1x128xf32, #tpu.memory_space<vmem>>, vector<1x128xf32>
    %c0_67 = arith.constant 0 : index
    %c0_68 = arith.constant 0 : index
    %152 = vector.load %arg17[%c0_67, %c0_68] : memref<1x128xf32, #tpu.memory_space<vmem>>, vector<1x128xf32>
    %cst_69 = arith.constant dense<0.000000e+00> : vector<256xf32>
    %153 = vector.multi_reduction <add>, %150, %cst_69 [1] : vector<256x128xf32> to vector<256xf32>
    %154 = vector.shape_cast %153 : vector<256xf32> to vector<256x1xf32>
    %cst_70 = arith.constant 1.280000e+02 : f32
    %155 = vector.broadcast %cst_70 : f32 to vector<256x1xf32>
    %156 = arith.divf %154, %155 : vector<256x1xf32>
    %157 = vector.broadcast %156 : vector<256x1xf32> to vector<256x128xf32>
    %158 = arith.subf %150, %157 : vector<256x128xf32>
    %159 = arith.mulf %158, %158 : vector<256x128xf32>
    %cst_71 = arith.constant dense<0.000000e+00> : vector<256xf32>
    %160 = vector.multi_reduction <add>, %159, %cst_71 [1] : vector<256x128xf32> to vector<256xf32>
    %161 = vector.shape_cast %160 : vector<256xf32> to vector<256x1xf32>
    %cst_72 = arith.constant 1.280000e+02 : f32
    %162 = vector.broadcast %cst_72 : f32 to vector<256x1xf32>
    %163 = arith.divf %161, %162 : vector<256x1xf32>
    %164 = vector.broadcast %156 : vector<256x1xf32> to vector<256x128xf32>
    %165 = arith.subf %150, %164 : vector<256x128xf32>
    %cst_73 = arith.constant 9.99999974E-6 : f32
    %166 = vector.broadcast %cst_73 : f32 to vector<256x1xf32>
    %167 = arith.addf %163, %166 : vector<256x1xf32>
    %168 = math.rsqrt %167 : vector<256x1xf32>
    %169 = vector.broadcast %168 : vector<256x1xf32> to vector<256x128xf32>
    %170 = arith.mulf %165, %169 : vector<256x128xf32>
    %171 = vector.broadcast %151 : vector<1x128xf32> to vector<256x128xf32>
    %172 = arith.mulf %170, %171 : vector<256x128xf32>
    %173 = vector.broadcast %152 : vector<1x128xf32> to vector<256x128xf32>
    %174 = arith.addf %172, %173 : vector<256x128xf32>
    %175 = arith.truncf %174 : vector<256x128xf32> to vector<256x128xbf16>
    %c0_74 = arith.constant 0 : index
    %c0_75 = arith.constant 0 : index
    %176 = vector.load %arg18[%c0_74, %c0_75] : memref<128x128xbf16, #tpu.memory_space<vmem>>, vector<128x128xbf16>
    %cst_76 = arith.constant dense<0.000000e+00> : vector<256x128xf32>
    %177 = tpu.matmul %175, %176, %cst_76 {dimension_numbers = #tpu.dot_dimension_numbers<[1], [0], [0], [1], [0, 0, 1, 1], [], []>} : vector<256x128xbf16>, vector<128x128xbf16>, vector<256x128xf32> -> vector<256x128xf32>
    %cst_77 = arith.constant dense<0xFF800000> : vector<256xf32>
    %178 = vector.multi_reduction <maximumf>, %177, %cst_77 [1] : vector<256x128xf32> to vector<256xf32>
    %179 = vector.shape_cast %178 : vector<256xf32> to vector<256x1xf32>
    %180 = vector.broadcast %179 : vector<256x1xf32> to vector<256x128xf32>
    %181 = arith.subf %177, %180 : vector<256x128xf32>
    %182 = math.exp %181 : vector<256x128xf32>
    %cst_78 = arith.constant dense<0.000000e+00> : vector<256xf32>
    %183 = vector.multi_reduction <add>, %182, %cst_78 [1] : vector<256x128xf32> to vector<256xf32>
    %184 = vector.shape_cast %183 : vector<256xf32> to vector<256x1xf32>
    %185 = math.log %184 : vector<256x1xf32>
    %186 = arith.addf %179, %185 : vector<256x1xf32>
    %c0_79 = arith.constant 0 : index
    %c0_80 = arith.constant 0 : index
    %c0_81 = arith.constant 0 : index
    %187 = vector.load %arg2[%c0_79, %c0_80, %c0_81] : memref<8x32x1xi32, #tpu.memory_space<vmem>>, vector<8x32x1xi32>
    %188 = vector.shape_cast %187 : vector<8x32x1xi32> to vector<256x1xi32>
    %189 = tpu.iota {dimensions = array<i32: 1>} : vector<256x128xi32>
    %190 = vector.broadcast %188 : vector<256x1xi32> to vector<256x128xi32>
    %191 = arith.cmpi eq, %189, %190 : vector<256x128xi32>
    %cst_82 = arith.constant 0.000000e+00 : f32
    %192 = vector.broadcast %cst_82 : f32 to vector<256x128xf32>
    %193 = arith.select %191, %177, %192 : vector<256x128xi1>, vector<256x128xf32>
    %cst_83 = arith.constant dense<0.000000e+00> : vector<256xf32>
    %194 = vector.multi_reduction <add>, %193, %cst_83 [1] : vector<256x128xf32> to vector<256xf32>
    %195 = vector.shape_cast %194 : vector<256xf32> to vector<256x1xf32>
    %196 = arith.subf %186, %195 : vector<256x1xf32>
    %197 = vector.shape_cast %196 : vector<256x1xf32> to vector<8x32x1xf32>
    %198 = tpu.iota {dimensions = array<i32: 1>} : vector<8x32x1xi32>
    %c1_i32 = arith.constant 1 : i32
    %199 = vector.broadcast %c1_i32 : i32 to vector<8x1x1xi32>
    %200 = arith.subi %52, %199 : vector<8x1x1xi32>
    %201 = vector.broadcast %200 : vector<8x1x1xi32> to vector<8x32x1xi32>
    %202 = arith.cmpi slt, %198, %201 : vector<8x32x1xi32>
    %cst_84 = arith.constant 0.000000e+00 : f32
    %203 = vector.broadcast %cst_84 : f32 to vector<8x32x1xf32>
    %204 = arith.select %202, %197, %203 : vector<8x32x1xi1>, vector<8x32x1xf32>
    %cst_85 = arith.constant dense<0.000000e+00> : vector<8x1xf32>
    %205 = vector.multi_reduction <add>, %204, %cst_85 [1] : vector<8x32x1xf32> to vector<8x1xf32>
    %206 = vector.shape_cast %205 : vector<8x1xf32> to vector<8x1x1xf32>
    %c1_i32_86 = arith.constant 1 : i32
    %207 = vector.broadcast %c1_i32_86 : i32 to vector<8x1x1xi32>
    %208 = arith.subi %52, %207 : vector<8x1x1xi32>
    %c1_i32_87 = arith.constant 1 : i32
    %209 = vector.broadcast %c1_i32_87 : i32 to vector<8x1x1xi32>
    %210 = arith.maxsi %208, %209 : vector<8x1x1xi32>
    %211 = arith.sitofp %210 : vector<8x1x1xi32> to vector<8x1x1xf32>
    %212 = arith.divf %206, %211 : vector<8x1x1xf32>
    %213 = vector.shape_cast %212 : vector<8x1x1xf32> to vector<8x1x1xf32>
    %214 = vector.broadcast %213 : vector<8x1x1xf32> to vector<8x1x128xf32>
    %c0_88 = arith.constant 0 : index
    %c0_89 = arith.constant 0 : index
    %c0_90 = arith.constant 0 : index
    %215 = vector.load %arg19[%c0_88, %c0_89, %c0_90] : memref<8x1x128xf32, #tpu.memory_space<vmem>>, vector<8x1x128xf32>
    tpu.vector_store %arg19[%c0_88, %c0_89, %c0_90], %214 {strides = array<i32>} : memref<8x1x128xf32, #tpu.memory_space<vmem>>, vector<8x1x128xf32>,
    return
  }
  func.func @transform_0(%arg0: i32) -> (i32, i32, i32) {
    %c0_i32 = arith.constant 0 : i32
    %c0_i32_0 = arith.constant 0 : i32
    %c0_i32_1 = arith.constant 0 : i32
    return %arg0, %c0_i32, %c0_i32_0 : i32, i32, i32
  }
  func.func @transform_1(%arg0: i32) -> (i32, i32, i32) {
    %c0_i32 = arith.constant 0 : i32
    %c0_i32_0 = arith.constant 0 : i32
    %c0_i32_1 = arith.constant 0 : i32
    return %arg0, %c0_i32, %c0_i32_0 : i32, i32, i32
  }
  func.func @transform_2(%arg0: i32) -> (i32, i32, i32) {
    %c0_i32 = arith.constant 0 : i32
    %c0_i32_0 = arith.constant 0 : i32
    %c0_i32_1 = arith.constant 0 : i32
    return %arg0, %c0_i32, %c0_i32_0 : i32, i32, i32
  }
  func.func @transform_3(%arg0: i32) -> (i32, i32) {
    %c0_i32 = arith.constant 0 : i32
    %c0_i32_0 = arith.constant 0 : i32
    %c0_i32_1 = arith.constant 0 : i32
    return %c0_i32, %c0_i32_0 : i32, i32
  }
  func.func @transform_4(%arg0: i32) -> (i32, i32) {
    %c0_i32 = arith.constant 0 : i32
    %c0_i32_0 = arith.constant 0 : i32
    %c0_i32_1 = arith.constant 0 : i32
    return %c0_i32, %c0_i32_0 : i32, i32
  }
  func.func @transform_5(%arg0: i32) -> (i32, i32) {
    %c0_i32 = arith.constant 0 : i32
    %c0_i32_0 = arith.constant 0 : i32
    %c0_i32_1 = arith.constant 0 : i32
    return %c0_i32, %c0_i32_0 : i32, i32
  }
  func.func @transform_6(%arg0: i32) -> (i32, i32) {
    %c0_i32 = arith.constant 0 : i32
    %c0_i32_0 = arith.constant 0 : i32
    %c0_i32_1 = arith.constant 0 : i32
    return %c0_i32, %c0_i32_0 : i32, i32
  }
  func.func @transform_7(%arg0: i32) -> (i32, i32) {
    %c0_i32 = arith.constant 0 : i32
    %c0_i32_0 = arith.constant 0 : i32
    %c0_i32_1 = arith.constant 0 : i32
    return %c0_i32, %c0_i32_0 : i32, i32
  }
  func.func @transform_8(%arg0: i32) -> (i32, i32) {
    %c0_i32 = arith.constant 0 : i32
    %c0_i32_0 = arith.constant 0 : i32
    %c0_i32_1 = arith.constant 0 : i32
    return %c0_i32, %c0_i32_0 : i32, i32
  }
  func.func @transform_9(%arg0: i32) -> (i32, i32) {
    %c0_i32 = arith.constant 0 : i32
    %c0_i32_0 = arith.constant 0 : i32
    %c0_i32_1 = arith.constant 0 : i32
    return %c0_i32, %c0_i32_0 : i32, i32
  }
  func.func @transform_10(%arg0: i32) -> (i32, i32) {
    %c0_i32 = arith.constant 0 : i32
    %c0_i32_0 = arith.constant 0 : i32
    %c0_i32_1 = arith.constant 0 : i32
    return %c0_i32, %c0_i32_0 : i32, i32
  }
  func.func @transform_11(%arg0: i32) -> (i32, i32) {
    %c0_i32 = arith.constant 0 : i32
    %c0_i32_0 = arith.constant 0 : i32
    %c0_i32_1 = arith.constant 0 : i32
    return %c0_i32, %c0_i32_0 : i32, i32
  }
  func.func @transform_12(%arg0: i32) -> (i32, i32) {
    %c0_i32 = arith.constant 0 : i32
    %c0_i32_0 = arith.constant 0 : i32
    %c0_i32_1 = arith.constant 0 : i32
    return %c0_i32, %c0_i32_0 : i32, i32
  }
  func.func @transform_13(%arg0: i32) -> (i32, i32) {
    %c0_i32 = arith.constant 0 : i32
    %c0_i32_0 = arith.constant 0 : i32
    %c0_i32_1 = arith.constant 0 : i32
    return %c0_i32, %c0_i32_0 : i32, i32
  }
  func.func @transform_14(%arg0: i32) -> (i32, i32) {
    %c0_i32 = arith.constant 0 : i32
    %c0_i32_0 = arith.constant 0 : i32
    %c0_i32_1 = arith.constant 0 : i32
    return %c0_i32, %c0_i32_0 : i32, i32
  }
  func.func @transform_15(%arg0: i32) -> (i32, i32) {
    %c0_i32 = arith.constant 0 : i32
    %c0_i32_0 = arith.constant 0 : i32
    %c0_i32_1 = arith.constant 0 : i32
    return %c0_i32, %c0_i32_0 : i32, i32
  }
  func.func @transform_16(%arg0: i32) -> (i32, i32) {
    %c0_i32 = arith.constant 0 : i32
    %c0_i32_0 = arith.constant 0 : i32
    %c0_i32_1 = arith.constant 0 : i32
    return %c0_i32, %c0_i32_0 : i32, i32
  }
  func.func @transform_17(%arg0: i32) -> (i32, i32) {
    %c0_i32 = arith.constant 0 : i32
    %c0_i32_0 = arith.constant 0 : i32
    %c0_i32_1 = arith.constant 0 : i32
    return %c0_i32, %c0_i32_0 : i32, i32
  }
  func.func @transform_18(%arg0: i32) -> (i32, i32, i32) {
    %c0_i32 = arith.constant 0 : i32
    %c0_i32_0 = arith.constant 0 : i32
    %c0_i32_1 = arith.constant 0 : i32
    return %arg0, %c0_i32, %c0_i32_0 : i32, i32, i32
  }
}

</mosaic_0001>

<llo_original>
// kernel: _forward_device.1
$region0: #{_forward_device.1}
  #allocation0 [shape = 'u32[]', space=smem, size = 0x4, offset = 0x4, fixed_abs, tag = 'smem constant byte address 0x4 - core index']
  #allocation1 [shape = 'u32[144,128]{1,0:T(1,128)}', space=vmem, size = 0x12000, scoped, tag = 'internal scratch']
  %s0 = inlined_call_operand.vmem [shape: s32[8,32,1], index: 0, kind: input, shape index: {}]
  %s1 = inlined_call_operand.vmem [shape: s32[8,32,1], index: 1, kind: input, shape index: {}]
  %s2 = inlined_call_operand.vmem [shape: s32[8,1,1], index: 2, kind: input, shape index: {}]
  %s3 = inlined_call_operand.vmem [shape: bf16[128,128], index: 3, kind: input, shape index: {}]
  %s4 = inlined_call_operand.vmem [shape: f32[32,128], index: 4, kind: input, shape index: {}]
  %s5 = inlined_call_operand.vmem [shape: bf16[128,384], index: 5, kind: input, shape index: {}]
  %s6 = inlined_call_operand.vmem [shape: bf16[128,128], index: 6, kind: input, shape index: {}]
  %s7 = inlined_call_operand.vmem [shape: bf16[128,512], index: 7, kind: input, shape index: {}]
  %s8 = inlined_call_operand.vmem [shape: f32[1,512], index: 8, kind: input, shape index: {}]
  %s9 = inlined_call_operand.vmem [shape: bf16[512,128], index: 9, kind: input, shape index: {}]
  %s10 = inlined_call_operand.vmem [shape: f32[1,128], index: 10, kind: input, shape index: {}]
  %s11 = inlined_call_operand.vmem [shape: f32[1,128], index: 11, kind: input, shape index: {}]
  %s12 = inlined_call_operand.vmem [shape: f32[1,128], index: 12, kind: input, shape index: {}]
  %s13 = inlined_call_operand.vmem [shape: f32[1,128], index: 13, kind: input, shape index: {}]
  %s14 = inlined_call_operand.vmem [shape: f32[1,128], index: 14, kind: input, shape index: {}]
  %s15 = inlined_call_operand.vmem [shape: f32[1,128], index: 15, kind: input, shape index: {}]
  %s16 = inlined_call_operand.vmem [shape: f32[1,128], index: 16, kind: input, shape index: {}]
  %s17 = inlined_call_operand.vmem [shape: bf16[128,128], index: 17, kind: input, shape index: {}]
  %s18 = inlined_call_operand.vmem [shape: f32[8,1,128], index: 18, kind: output, shape index: {}]
  %s19 = sld [smem:[#allocation0]]
  $region82: #{_forward_device.1} parent=0
    _
  %s21 = ssub.s32 1, %s19
  %s22 = scalar_select 0, %s21, %s19
  // Predicated region
  $region2: #{_forward_device.1} parent=0 // pred_check
    _
  $region3: #{_forward_device.1} parent=0 // pred_check_branch
    %24 = sbr.rel (0) target = $region5
  $region4: #{_forward_device.1} parent=0 // pred_region
    _
  $region5: #{_forward_device.1} parent=0 // pred_fallthru
    _
  // Predicated region
  $region6: #{_forward_device.1} parent=0 // pred_check
    _
  $region7: #{_forward_device.1} parent=0 // pred_check_branch
    %26 = sbr.rel (0) target = $region9
  $region8: #{_forward_device.1} parent=0 // pred_region
    _
  $region9: #{_forward_device.1} parent=0 // pred_fallthru
    _
  // Predicated region
  $region10: #{_forward_device.1} parent=0 // pred_check
    _
  $region11: #{_forward_device.1} parent=0 // pred_check_branch
    %28 = sbr.rel (0) target = $region13
  $region12: #{_forward_device.1} parent=0 // pred_region
    _
  $region13: #{_forward_device.1} parent=0 // pred_fallthru
    _
  // Predicated region
  $region14: #{_forward_device.1} parent=0 // pred_check
    _
  $region15: #{_forward_device.1} parent=0 // pred_check_branch
    %30 = sbr.rel (0) target = $region17
  $region16: #{_forward_device.1} parent=0 // pred_region
    _
  $region17: #{_forward_device.1} parent=0 // pred_fallthru
    _
  // Predicated region
  $region18: #{_forward_device.1} parent=0 // pred_check
    _
  $region19: #{_forward_device.1} parent=0 // pred_check_branch
    %32 = sbr.rel (0) target = $region21
  $region20: #{_forward_device.1} parent=0 // pred_region
    _
  $region21: #{_forward_device.1} parent=0 // pred_fallthru
    _
  // Predicated region
  $region22: #{_forward_device.1} parent=0 // pred_check
    _
  $region23: #{_forward_device.1} parent=0 // pred_check_branch
    %34 = sbr.rel (0) target = $region25
  $region24: #{_forward_device.1} parent=0 // pred_region
    _
  $region25: #{_forward_device.1} parent=0 // pred_fallthru
    _
  // Predicated region
  $region26: #{_forward_device.1} parent=0 // pred_check
    _
  $region27: #{_forward_device.1} parent=0 // pred_check_branch
    %36 = sbr.rel (0) target = $region29
  $region28: #{_forward_device.1} parent=0 // pred_region
    _
  $region29: #{_forward_device.1} parent=0 // pred_fallthru
    _
  // Predicated region
  $region30: #{_forward_device.1} parent=0 // pred_check
    _
  $region31: #{_forward_device.1} parent=0 // pred_check_branch
    %38 = sbr.rel (0) target = $region33
  $region32: #{_forward_device.1} parent=0 // pred_region
    _
  $region33: #{_forward_device.1} parent=0 // pred_fallthru
    _
  // Predicated region
  $region34: #{_forward_device.1} parent=0 // pred_check
    _
  $region35: #{_forward_device.1} parent=0 // pred_check_branch
    %40 = sbr.rel (0) target = $region37
  $region36: #{_forward_device.1} parent=0 // pred_region
    _
  $region37: #{_forward_device.1} parent=0 // pred_fallthru
    _
  // Predicated region
  $region38: #{_forward_device.1} parent=0 // pred_check
    _
  $region39: #{_forward_device.1} parent=0 // pred_check_branch
    %42 = sbr.rel (0) target = $region41
  $region40: #{_forward_device.1} parent=0 // pred_region
    _
  $region41: #{_forward_device.1} parent=0 // pred_fallthru
    _
  // Predicated region
  $region42: #{_forward_device.1} parent=0 // pred_check
    _
  $region43: #{_forward_device.1} parent=0 // pred_check_branch
    %44 = sbr.rel (0) target = $region45
  $region44: #{_forward_device.1} parent=0 // pred_region
    _
  $region45: #{_forward_device.1} parent=0 // pred_fallthru
    _
  // Predicated region
  $region46: #{_forward_device.1} parent=0 // pred_check
    _
  $region47: #{_forward_device.1} parent=0 // pred_check_branch
    %46 = sbr.rel (0) target = $region49
  $region48: #{_forward_device.1} parent=0 // pred_region
    _
  $region49: #{_forward_device.1} parent=0 // pred_fallthru
    _
  // Predicated region
  $region50: #{_forward_device.1} parent=0 // pred_check
    _
  $region51: #{_forward_device.1} parent=0 // pred_check_branch
    %48 = sbr.rel (0) target = $region53
  $region52: #{_forward_device.1} parent=0 // pred_region
    _
  $region53: #{_forward_device.1} parent=0 // pred_fallthru
    _
  // Predicated region
  $region54: #{_forward_device.1} parent=0 // pred_check
    _
  $region55: #{_forward_device.1} parent=0 // pred_check_branch
    %50 = sbr.rel (0) target = $region57
  $region56: #{_forward_device.1} parent=0 // pred_region
    _
  $region57: #{_forward_device.1} parent=0 // pred_fallthru
    _
  // Predicated region
  $region58: #{_forward_device.1} parent=0 // pred_check
    _
  $region59: #{_forward_device.1} parent=0 // pred_check_branch
    %52 = sbr.rel (0) target = $region61
  $region60: #{_forward_device.1} parent=0 // pred_region
    _
  $region61: #{_forward_device.1} parent=0 // pred_fallthru
    _
  // Predicated region
  $region62: #{_forward_device.1} parent=0 // pred_check
    _
  $region63: #{_forward_device.1} parent=0 // pred_check_branch
    %54 = sbr.rel (0) target = $region65
  $region64: #{_forward_device.1} parent=0 // pred_region
    _
  $region65: #{_forward_device.1} parent=0 // pred_fallthru
    _
  // Predicated region
  $region66: #{_forward_device.1} parent=0 // pred_check
    _
  $region67: #{_forward_device.1} parent=0 // pred_check_branch
    %56 = sbr.rel (0) target = $region69
  $region68: #{_forward_device.1} parent=0 // pred_region
    _
  $region69: #{_forward_device.1} parent=0 // pred_fallthru
    _
  // Predicated region
  $region70: #{_forward_device.1} parent=0 // pred_check
    _
  $region71: #{_forward_device.1} parent=0 // pred_check_branch
    %58 = sbr.rel (0) target = $region73
  $region72: #{_forward_device.1} parent=0 // pred_region
    _
  $region73: #{_forward_device.1} parent=0 // pred_fallthru
    _
  %v60 = vld [vmem:[%s0] sm:$0xff]
  %v61 = vld [vmem:[%s0 + $0x8] sm:$0xff]
  %v62 = vld [vmem:[%s0 + $0x10] sm:$0xff]
  %v63 = vld [vmem:[%s0 + $0x18] sm:$0xff]
  %v64 = vld [vmem:[%s0 + $0x20] sm:$0xff]
  %v65 = vld [vmem:[%s0 + $0x28] sm:$0xff]
  %v66 = vld [vmem:[%s0 + $0x30] sm:$0xff]
  %v67 = vld [vmem:[%s0 + $0x38] sm:$0xff]
  %v68 = vld [vmem:[%s0 + $0x40] sm:$0xff]
  %v69 = vld [vmem:[%s0 + $0x48] sm:$0xff]
  %v70 = vld [vmem:[%s0 + $0x50] sm:$0xff]
  %v71 = vld [vmem:[%s0 + $0x58] sm:$0xff]
  %v72 = vld [vmem:[%s0 + $0x60] sm:$0xff]
  %v73 = vld [vmem:[%s0 + $0x68] sm:$0xff]
  %v74 = vld [vmem:[%s0 + $0x70] sm:$0xff]
  %v75 = vld [vmem:[%s0 + $0x78] sm:$0xff]
  %v76 = vld [vmem:[%s0 + $0x80] sm:$0xff]
  %v77 = vld [vmem:[%s0 + $0x88] sm:$0xff]
  %v78 = vld [vmem:[%s0 + $0x90] sm:$0xff]
  %v79 = vld [vmem:[%s0 + $0x98] sm:$0xff]
  %v80 = vld [vmem:[%s0 + $0xa0] sm:$0xff]
  %v81 = vld [vmem:[%s0 + $0xa8] sm:$0xff]
  %v82 = vld [vmem:[%s0 + $0xb0] sm:$0xff]
  %v83 = vld [vmem:[%s0 + $0xb8] sm:$0xff]
  %v84 = vld [vmem:[%s0 + $0xc0] sm:$0xff]
  %v85 = vld [vmem:[%s0 + $0xc8] sm:$0xff]
  %v86 = vld [vmem:[%s0 + $0xd0] sm:$0xff]
  %v87 = vld [vmem:[%s0 + $0xd8] sm:$0xff]
  %v88 = vld [vmem:[%s0 + $0xe0] sm:$0xff]
  %v89 = vld [vmem:[%s0 + $0xe8] sm:$0xff]
  %v90 = vld [vmem:[%s0 + $0xf0] sm:$0xff]
  %v91 = vld [vmem:[%s0 + $0xf8] sm:$0xff]
  %v92 = vlaneseq
  %v93 = vand.u32 %v92, 127
  %94 = vset.pattern.permute.xlu0 0
  %95 = vperm.xlu0 %94, %v60
  %v96 = vpop.permute.xlu0 %95
  %97 = vset.pattern.permute.xlu0 0
  %98 = vperm.xlu0 %97, %v61
  %v99 = vpop.permute.xlu0 %98
  %100 = vset.pattern.permute.xlu0 0
  %101 = vperm.xlu0 %100, %v62
  %v102 = vpop.permute.xlu0 %101
  %103 = vset.pattern.permute.xlu0 0
  %104 = vperm.xlu0 %103, %v63
  %v105 = vpop.permute.xlu0 %104
  %106 = vset.pattern.permute.xlu0 0
  %107 = vperm.xlu0 %106, %v64
  %v108 = vpop.permute.xlu0 %107
  %109 = vset.pattern.permute.xlu0 0
  %110 = vperm.xlu0 %109, %v65
  %v111 = vpop.permute.xlu0 %110
  %112 = vset.pattern.permute.xlu0 0
  %113 = vperm.xlu0 %112, %v66
  %v114 = vpop.permute.xlu0 %113
  %115 = vset.pattern.permute.xlu0 0
  %116 = vperm.xlu0 %115, %v67
  %v117 = vpop.permute.xlu0 %116
  %118 = vset.pattern.permute.xlu0 0
  %119 = vperm.xlu0 %118, %v68
  %v120 = vpop.permute.xlu0 %119
  %121 = vset.pattern.permute.xlu0 0
  %122 = vperm.xlu0 %121, %v69
  %v123 = vpop.permute.xlu0 %122
  %124 = vset.pattern.permute.xlu0 0
  %125 = vperm.xlu0 %124, %v70
  %v126 = vpop.permute.xlu0 %125
  %127 = vset.pattern.permute.xlu0 0
  %128 = vperm.xlu0 %127, %v71
  %v129 = vpop.permute.xlu0 %128
  %130 = vset.pattern.permute.xlu0 0
  %131 = vperm.xlu0 %130, %v72
  %v132 = vpop.permute.xlu0 %131
  %133 = vset.pattern.permute.xlu0 0
  %134 = vperm.xlu0 %133, %v73
  %v135 = vpop.permute.xlu0 %134
  %136 = vset.pattern.permute.xlu0 0
  %137 = vperm.xlu0 %136, %v74
  %v138 = vpop.permute.xlu0 %137
  %139 = vset.pattern.permute.xlu0 0
  %140 = vperm.xlu0 %139, %v75
  %v141 = vpop.permute.xlu0 %140
  %142 = vset.pattern.permute.xlu0 0
  %143 = vperm.xlu0 %142, %v76
  %v144 = vpop.permute.xlu0 %143
  %145 = vset.pattern.permute.xlu0 0
  %146 = vperm.xlu0 %145, %v77
  %v147 = vpop.permute.xlu0 %146
  %148 = vset.pattern.permute.xlu0 0
  %149 = vperm.xlu0 %148, %v78
  %v150 = vpop.permute.xlu0 %149
  %151 = vset.pattern.permute.xlu0 0
  %152 = vperm.xlu0 %151, %v79
  %v153 = vpop.permute.xlu0 %152
  %154 = vset.pattern.permute.xlu0 0
  %155 = vperm.xlu0 %154, %v80
  %v156 = vpop.permute.xlu0 %155
  %157 = vset.pattern.permute.xlu0 0
  %158 = vperm.xlu0 %157, %v81
  %v159 = vpop.permute.xlu0 %158
  %160 = vset.pattern.permute.xlu0 0
  %161 = vperm.xlu0 %160, %v82
  %v162 = vpop.permute.xlu0 %161
  %163 = vset.pattern.permute.xlu0 0
  %164 = vperm.xlu0 %163, %v83
  %v165 = vpop.permute.xlu0 %164
  %166 = vset.pattern.permute.xlu0 0
  %167 = vperm.xlu0 %166, %v84
  %v168 = vpop.permute.xlu0 %167
  %169 = vset.pattern.permute.xlu0 0
  %170 = vperm.xlu0 %169, %v85
  %v171 = vpop.permute.xlu0 %170
  %172 = vset.pattern.permute.xlu0 0
  %173 = vperm.xlu0 %172, %v86
  %v174 = vpop.permute.xlu0 %173
  %175 = vset.pattern.permute.xlu0 0
  %176 = vperm.xlu0 %175, %v87
  %v177 = vpop.permute.xlu0 %176
  %178 = vset.pattern.permute.xlu0 0
  %179 = vperm.xlu0 %178, %v88
  %v180 = vpop.permute.xlu0 %179
  %181 = vset.pattern.permute.xlu0 0
  %182 = vperm.xlu0 %181, %v89
  %v183 = vpop.permute.xlu0 %182
  %184 = vset.pattern.permute.xlu0 0
  %185 = vperm.xlu0 %184, %v90
  %v186 = vpop.permute.xlu0 %185
  %187 = vset.pattern.permute.xlu0 0
  %188 = vperm.xlu0 %187, %v91
  %v189 = vpop.permute.xlu0 %188
  %vm190 = vcmp.eq.s32.totalorder %v96, %v93
  %vm191 = vcmp.eq.s32.totalorder %v99, %v93
  %vm192 = vcmp.eq.s32.totalorder %v102, %v93
  %vm193 = vcmp.eq.s32.totalorder %v105, %v93
  %vm194 = vcmp.eq.s32.totalorder %v108, %v93
  %vm195 = vcmp.eq.s32.totalorder %v111, %v93
  %vm196 = vcmp.eq.s32.totalorder %v114, %v93
  %vm197 = vcmp.eq.s32.totalorder %v117, %v93
  %vm198 = vcmp.eq.s32.totalorder %v120, %v93
  %vm199 = vcmp.eq.s32.totalorder %v123, %v93
  %vm200 = vcmp.eq.s32.totalorder %v126, %v93
  %vm201 = vcmp.eq.s32.totalorder %v129, %v93
  %vm202 = vcmp.eq.s32.totalorder %v132, %v93
  %vm203 = vcmp.eq.s32.totalorder %v135, %v93
  %vm204 = vcmp.eq.s32.totalorder %v138, %v93
  %vm205 = vcmp.eq.s32.totalorder %v141, %v93
  %vm206 = vcmp.eq.s32.totalorder %v144, %v93
  %vm207 = vcmp.eq.s32.totalorder %v147, %v93
  %vm208 = vcmp.eq.s32.totalorder %v150, %v93
  %vm209 = vcmp.eq.s32.totalorder %v153, %v93
  %vm210 = vcmp.eq.s32.totalorder %v156, %v93
  %vm211 = vcmp.eq.s32.totalorder %v159, %v93
  %vm212 = vcmp.eq.s32.totalorder %v162, %v93
  %vm213 = vcmp.eq.s32.totalorder %v165, %v93
  %vm214 = vcmp.eq.s32.totalorder %v168, %v93
  %vm215 = vcmp.eq.s32.totalorder %v171, %v93
  %vm216 = vcmp.eq.s32.totalorder %v174, %v93
  %vm217 = vcmp.eq.s32.totalorder %v177, %v93
  %vm218 = vcmp.eq.s32.totalorder %v180, %v93
  %vm219 = vcmp.eq.s32.totalorder %v183, %v93
  %vm220 = vcmp.eq.s32.totalorder %v186, %v93
  %vm221 = vcmp.eq.s32.totalorder %v189, %v93
  %v222 = vsel %vm190, 1, 0
  %v223 = vsel %vm191, 1, 0
  %v224 = vsel %vm192, 1, 0
  %v225 = vsel %vm193, 1, 0
  %v226 = vsel %vm194, 1, 0
  %v227 = vsel %vm195, 1, 0
  %v228 = vsel %vm196, 1, 0
  %v229 = vsel %vm197, 1, 0
  %v230 = vsel %vm198, 1, 0
  %v231 = vsel %vm199, 1, 0
  %v232 = vsel %vm200, 1, 0
  %v233 = vsel %vm201, 1, 0
  %v234 = vsel %vm202, 1, 0
  %v235 = vsel %vm203, 1, 0
  %v236 = vsel %vm204, 1, 0
  %v237 = vsel %vm205, 1, 0
  %v238 = vsel %vm206, 1, 0
  %v239 = vsel %vm207, 1, 0
  %v240 = vsel %vm208, 1, 0
  %v241 = vsel %vm209, 1, 0
  %v242 = vsel %vm210, 1, 0
  %v243 = vsel %vm211, 1, 0
  %v244 = vsel %vm212, 1, 0
  %v245 = vsel %vm213, 1, 0
  %v246 = vsel %vm214, 1, 0
  %v247 = vsel %vm215, 1, 0
  %v248 = vsel %vm216, 1, 0
  %v249 = vsel %vm217, 1, 0
  %v250 = vsel %vm218, 1, 0
  %v251 = vsel %vm219, 1, 0
  %v252 = vsel %vm220, 1, 0
  %v253 = vsel %vm221, 1, 0
  %v254 = vcvt.s32.f32 %v222
  %v255 = vcvt.s32.f32 %v223
  %v256 = vcvt.s32.f32 %v224
  %v257 = vcvt.s32.f32 %v225
  %v258 = vcvt.s32.f32 %v226
  %v259 = vcvt.s32.f32 %v227
  %v260 = vcvt.s32.f32 %v228
  %v261 = vcvt.s32.f32 %v229
  %v262 = vcvt.s32.f32 %v230
  %v263 = vcvt.s32.f32 %v231
  %v264 = vcvt.s32.f32 %v232
  %v265 = vcvt.s32.f32 %v233
  %v266 = vcvt.s32.f32 %v234
  %v267 = vcvt.s32.f32 %v235
  %v268 = vcvt.s32.f32 %v236
  %v269 = vcvt.s32.f32 %v237
  %v270 = vcvt.s32.f32 %v238
  %v271 = vcvt.s32.f32 %v239
  %v272 = vcvt.s32.f32 %v240
  %v273 = vcvt.s32.f32 %v241
  %v274 = vcvt.s32.f32 %v242
  %v275 = vcvt.s32.f32 %v243
  %v276 = vcvt.s32.f32 %v244
  %v277 = vcvt.s32.f32 %v245
  %v278 = vcvt.s32.f32 %v246
  %v279 = vcvt.s32.f32 %v247
  %v280 = vcvt.s32.f32 %v248
  %v281 = vcvt.s32.f32 %v249
  %v282 = vcvt.s32.f32 %v250
  %v283 = vcvt.s32.f32 %v251
  %v284 = vcvt.s32.f32 %v252
  %v285 = vcvt.s32.f32 %v253
  %v286 = vpack.c.bf16 %v255, %v254
  %v287 = vpack.c.bf16 %v257, %v256
  %v288 = vpack.c.bf16 %v259, %v258
  %v289 = vpack.c.bf16 %v261, %v260
  %v290 = vpack.c.bf16 %v263, %v262
  %v291 = vpack.c.bf16 %v265, %v264
  %v292 = vpack.c.bf16 %v267, %v266
  %v293 = vpack.c.bf16 %v269, %v268
  %v294 = vpack.c.bf16 %v271, %v270
  %v295 = vpack.c.bf16 %v273, %v272
  %v296 = vpack.c.bf16 %v275, %v274
  %v297 = vpack.c.bf16 %v277, %v276
  %v298 = vpack.c.bf16 %v279, %v278
  %v299 = vpack.c.bf16 %v281, %v280
  %v300 = vpack.c.bf16 %v283, %v282
  %v301 = vpack.c.bf16 %v285, %v284
  %v302 = vld [vmem:[%s3] sm:$0xf]
  %v303 = vld [vmem:[%s3 + $0x4] sm:$0xf]
  %v304 = vld [vmem:[%s3 + $0x8] sm:$0xf]
  %v305 = vld [vmem:[%s3 + $0xc] sm:$0xf]
  %v306 = vld [vmem:[%s3 + $0x10] sm:$0xf]
  %v307 = vld [vmem:[%s3 + $0x14] sm:$0xf]
  %v308 = vld [vmem:[%s3 + $0x18] sm:$0xf]
  %v309 = vld [vmem:[%s3 + $0x1c] sm:$0xf]
  %v310 = vld [vmem:[%s3 + $0x20] sm:$0xf]
  %v311 = vld [vmem:[%s3 + $0x24] sm:$0xf]
  %v312 = vld [vmem:[%s3 + $0x28] sm:$0xf]
  %v313 = vld [vmem:[%s3 + $0x2c] sm:$0xf]
  %v314 = vld [vmem:[%s3 + $0x30] sm:$0xf]
  %v315 = vld [vmem:[%s3 + $0x34] sm:$0xf]
  %v316 = vld [vmem:[%s3 + $0x38] sm:$0xf]
  %v317 = vld [vmem:[%s3 + $0x3c] sm:$0xf]
  %v318 = vld [vmem:[%s4] sm:$0xff]
  %v319 = vld [vmem:[%s4 + $0x8] sm:$0xff]
  %v320 = vld [vmem:[%s4 + $0x10] sm:$0xff]
  %v321 = vld [vmem:[%s4 + $0x18] sm:$0xff]
  %v338 = vunpack.c.l.b16 %v302
  %v339 = vunpack.c.l.b16 %v303
  %v340 = vunpack.c.l.b16 %v304
  %v341 = vunpack.c.l.b16 %v305
  %v342 = vunpack.c.l.b16 %v306
  %v343 = vunpack.c.l.b16 %v307
  %v344 = vunpack.c.l.b16 %v308
  %v345 = vunpack.c.l.b16 %v309
  %v346 = vunpack.c.l.b16 %v310
  %v347 = vunpack.c.l.b16 %v311
  %v348 = vunpack.c.l.b16 %v312
  %v349 = vunpack.c.l.b16 %v313
  %v350 = vunpack.c.l.b16 %v314
  %v351 = vunpack.c.l.b16 %v315
  %v352 = vunpack.c.l.b16 %v316
  %v353 = vunpack.c.l.b16 %v317
  %v354 = vpack.c.b16 %v339, %v338
  %v355 = vpack.c.b16 %v341, %v340
  %v356 = vpack.c.b16 %v343, %v342
  %v357 = vpack.c.b16 %v345, %v344
  %v358 = vpack.c.b16 %v347, %v346
  %v359 = vpack.c.b16 %v349, %v348
  %v360 = vpack.c.b16 %v351, %v350
  %v361 = vpack.c.b16 %v353, %v352
  %370 = vmatprep.subr.bf16.mxu0 0
  %371 = vmatpush1.bf16.msra.mxu0 %v354
  %372 = vmatprep.subr.bf16.mxu0 0
  %373 = vmatpush1.bf16.msra.mxu0 %v355
  %374 = vmatprep.subr.bf16.mxu0 0
  %375 = vmatpush1.bf16.msra.mxu0 %v356
  %376 = vmatprep.subr.bf16.mxu0 0
  %377 = vmatpush1.bf16.msra.mxu0 %v357
  %378 = vmatprep.subr.bf16.mxu0 0
  %379 = vmatpush1.bf16.msra.mxu0 %v358
  %380 = vmatprep.subr.bf16.mxu0 0
  %381 = vmatpush1.bf16.msra.mxu0 %v359
  %382 = vmatprep.subr.bf16.mxu0 0
  %383 = vmatpush1.bf16.msra.mxu0 %v360
  %384 = vmatprep.subr.bf16.mxu0 0
  %385 = vmatpush1.bf16.msra.mxu0 %v361
  %386 = vmatprep.subr.bf16.mxu0 0
  %387 = vmatpush1.bf16.msra.mxu0 0
  %388 = vmatprep.subr.bf16.mxu0 0
  %389 = vmatpush1.bf16.msra.mxu0 0
  %390 = vmatprep.subr.bf16.mxu0 0
  %391 = vmatpush1.bf16.msra.mxu0 0
  %392 = vmatprep.subr.bf16.mxu0 0
  %393 = vmatpush1.bf16.msra.mxu0 0
  %394 = vmatprep.subr.bf16.mxu0 0
  %395 = vmatpush1.bf16.msra.mxu0 0
  %396 = vmatprep.subr.bf16.mxu0 0
  %397 = vmatpush1.bf16.msra.mxu0 0
  %398 = vmatprep.subr.bf16.mxu0 0
  %399 = vmatpush1.bf16.msra.mxu0 0
  %400 = vmatprep.subr.bf16.mxu0 0
  %401 = vmatpush1.bf16.msra.mxu0 0
  %402 = vmatprep.mubr.bf16.mxu0 0
  %403 = vmatmul.mubr.bf16.gmra.mrb[0].mxu0 %v286
  %v404 = vpop.f32.mrb[0].mxu0
  %v405 = vadd.f32 %v318, %v404
  %v406 = vpop.f32.mrb[0].mxu0
  %v407 = vpop.f32.mrb[0].mxu0
  %v408 = vadd.f32 %v319, %v407
  %v409 = vpop.f32.mrb[0].mxu0
  %410 = vmatprep.mubr.bf16.mxu0 0
  %411 = vmatmul.mubr.bf16.gmra.mrb[0].mxu0 %v287
  %v412 = vpop.f32.mrb[0].mxu0
  %v413 = vadd.f32 %v320, %v412
  %v414 = vpop.f32.mrb[0].mxu0
  %v415 = vpop.f32.mrb[0].mxu0
  %v416 = vadd.f32 %v321, %v415
  %v417 = vpop.f32.mrb[0].mxu0
  %418 = vmatprep.mubr.bf16.mxu0 0
  %419 = vmatmul.mubr.bf16.gmra.mrb[0].mxu0 %v288
  %v420 = vpop.f32.mrb[0].mxu0
  %v421 = vadd.f32 %v318, %v420
  %v422 = vpop.f32.mrb[0].mxu0
  %v423 = vpop.f32.mrb[0].mxu0
  %v424 = vadd.f32 %v319, %v423
  %v425 = vpop.f32.mrb[0].mxu0
  %426 = vmatprep.mubr.bf16.mxu0 0
  %427 = vmatmul.mubr.bf16.gmra.mrb[0].mxu0 %v289
  %v428 = vpop.f32.mrb[0].mxu0
  %v429 = vadd.f32 %v320, %v428
  %v430 = vpop.f32.mrb[0].mxu0
  %v431 = vpop.f32.mrb[0].mxu0
  %v432 = vadd.f32 %v321, %v431
  %v433 = vpop.f32.mrb[0].mxu0
  %434 = vmatprep.mubr.bf16.mxu0 0
  %435 = vmatmul.mubr.bf16.gmra.mrb[0].mxu0 %v290
  %v436 = vpop.f32.mrb[0].mxu0
  %v437 = vadd.f32 %v318, %v436
  %v438 = vpop.f32.mrb[0].mxu0
  %v439 = vpop.f32.mrb[0].mxu0
  %v440 = vadd.f32 %v319, %v439
  %v441 = vpop.f32.mrb[0].mxu0
  %442 = vmatprep.mubr.bf16.mxu0 0
  %443 = vmatmul.mubr.bf16.gmra.mrb[0].mxu0 %v291
  %v444 = vpop.f32.mrb[0].mxu0
  %v445 = vadd.f32 %v320, %v444
  %v446 = vpop.f32.mrb[0].mxu0
  %v447 = vpop.f32.mrb[0].mxu0
  %v448 = vadd.f32 %v321, %v447
  %v449 = vpop.f32.mrb[0].mxu0
  %450 = vmatprep.mubr.bf16.mxu0 0
  %451 = vmatmul.mubr.bf16.gmra.mrb[0].mxu0 %v292
  %v452 = vpop.f32.mrb[0].mxu0
  %v453 = vadd.f32 %v318, %v452
  %v454 = vpop.f32.mrb[0].mxu0
  %v455 = vpop.f32.mrb[0].mxu0
  %v456 = vadd.f32 %v319, %v455
  %v457 = vpop.f32.mrb[0].mxu0
  %458 = vmatprep.mubr.bf16.mxu0 0
  %459 = vmatmul.mubr.bf16.gmra.mrb[0].mxu0 %v293
  %v460 = vpop.f32.mrb[0].mxu0
  %v461 = vadd.f32 %v320, %v460
  %v462 = vpop.f32.mrb[0].mxu0
  %v463 = vpop.f32.mrb[0].mxu0
  %v464 = vadd.f32 %v321, %v463
  %v465 = vpop.f32.mrb[0].mxu0
  %466 = vmatprep.mubr.bf16.mxu0 0
  %467 = vmatmul.mubr.bf16.gmra.mrb[0].mxu0 %v294
  %v468 = vpop.f32.mrb[0].mxu0
  %v469 = vadd.f32 %v318, %v468
  %v470 = vpop.f32.mrb[0].mxu0
  %v471 = vpop.f32.mrb[0].mxu0
  %v472 = vadd.f32 %v319, %v471
  %v473 = vpop.f32.mrb[0].mxu0
  %474 = vmatprep.mubr.bf16.mxu0 0
  %475 = vmatmul.mubr.bf16.gmra.mrb[0].mxu0 %v295
  %v476 = vpop.f32.mrb[0].mxu0
  %v477 = vadd.f32 %v320, %v476
  %v478 = vpop.f32.mrb[0].mxu0
  %v479 = vpop.f32.mrb[0].mxu0
  %v480 = vadd.f32 %v321, %v479
  %v481 = vpop.f32.mrb[0].mxu0
  %482 = vmatprep.mubr.bf16.mxu0 0
  %483 = vmatmul.mubr.bf16.gmra.mrb[0].mxu0 %v296
  %v484 = vpop.f32.mrb[0].mxu0
  %v485 = vadd.f32 %v318, %v484
  %v486 = vpop.f32.mrb[0].mxu0
  %v487 = vpop.f32.mrb[0].mxu0
  %v488 = vadd.f32 %v319, %v487
  %v489 = vpop.f32.mrb[0].mxu0
  %490 = vmatprep.mubr.bf16.mxu0 0
  %491 = vmatmul.mubr.bf16.gmra.mrb[0].mxu0 %v297
  %v492 = vpop.f32.mrb[0].mxu0
  %v493 = vadd.f32 %v320, %v492
  %v494 = vpop.f32.mrb[0].mxu0
  %v495 = vpop.f32.mrb[0].mxu0
  %v496 = vadd.f32 %v321, %v495
  %v497 = vpop.f32.mrb[0].mxu0
  %498 = vmatprep.mubr.bf16.mxu0 0
  %499 = vmatmul.mubr.bf16.gmra.mrb[0].mxu0 %v298
  %v500 = vpop.f32.mrb[0].mxu0
  %v501 = vadd.f32 %v318, %v500
  %v502 = vpop.f32.mrb[0].mxu0
  %v503 = vpop.f32.mrb[0].mxu0
  %v504 = vadd.f32 %v319, %v503
  %v505 = vpop.f32.mrb[0].mxu0
  %506 = vmatprep.mubr.bf16.mxu0 0
  %507 = vmatmul.mubr.bf16.gmra.mrb[0].mxu0 %v299
  %v508 = vpop.f32.mrb[0].mxu0
  %v509 = vadd.f32 %v320, %v508
  %v510 = vpop.f32.mrb[0].mxu0
  %v511 = vpop.f32.mrb[0].mxu0
  %v512 = vadd.f32 %v321, %v511
  %v513 = vpop.f32.mrb[0].mxu0
  %514 = vmatprep.mubr.bf16.mxu0 0
  %515 = vmatmul.mubr.bf16.gmra.mrb[0].mxu0 %v300
  %v516 = vpop.f32.mrb[0].mxu0
  %v517 = vadd.f32 %v318, %v516
  %v518 = vpop.f32.mrb[0].mxu0
  %v519 = vpop.f32.mrb[0].mxu0
  %v520 = vadd.f32 %v319, %v519
  %v521 = vpop.f32.mrb[0].mxu0
  %522 = vmatprep.mubr.bf16.mxu0 0
  %523 = vmatmul.mubr.bf16.gmra.mrb[0].mxu0 %v301
  %v524 = vpop.f32.mrb[0].mxu0
  %v525 = vadd.f32 %v320, %v524
  %v526 = vpop.f32.mrb[0].mxu0
  %v527 = vpop.f32.mrb[0].mxu0
  %v528 = vadd.f32 %v321, %v527
  %v529 = vpop.f32.mrb[0].mxu0
  %530 = vdwg.mxu0
  %v531 = vld [vmem:[%s11] sm:$0x1]
  %v532 = vld [vmem:[%s12] sm:$0x1]
  %533 = vadd.xlane.f32.xlu0 %v405
  %v534 = vpop.xlane.xlu0 %533
  %535 = vadd.xlane.f32.xlu0 %v408
  %v536 = vpop.xlane.xlu0 %535
  %537 = vadd.xlane.f32.xlu0 %v413
  %v538 = vpop.xlane.xlu0 %537
  %539 = vadd.xlane.f32.xlu0 %v416
  %v540 = vpop.xlane.xlu0 %539
  %541 = vadd.xlane.f32.xlu0 %v421
  %v542 = vpop.xlane.xlu0 %541
  %543 = vadd.xlane.f32.xlu0 %v424
  %v544 = vpop.xlane.xlu0 %543
  %545 = vadd.xlane.f32.xlu0 %v429
  %v546 = vpop.xlane.xlu0 %545
  %547 = vadd.xlane.f32.xlu0 %v432
  %v548 = vpop.xlane.xlu0 %547
  %549 = vadd.xlane.f32.xlu0 %v437
  %v550 = vpop.xlane.xlu0 %549
  %551 = vadd.xlane.f32.xlu0 %v440
  %v552 = vpop.xlane.xlu0 %551
  %553 = vadd.xlane.f32.xlu0 %v445
  %v554 = vpop.xlane.xlu0 %553
  %555 = vadd.xlane.f32.xlu0 %v448
  %v556 = vpop.xlane.xlu0 %555
  %557 = vadd.xlane.f32.xlu0 %v453
  %v558 = vpop.xlane.xlu0 %557
  %559 = vadd.xlane.f32.xlu0 %v456
  %v560 = vpop.xlane.xlu0 %559
  %561 = vadd.xlane.f32.xlu0 %v461
  %v562 = vpop.xlane.xlu0 %561
  %563 = vadd.xlane.f32.xlu0 %v464
  %v564 = vpop.xlane.xlu0 %563
  %565 = vadd.xlane.f32.xlu0 %v469
  %v566 = vpop.xlane.xlu0 %565
  %567 = vadd.xlane.f32.xlu0 %v472
  %v568 = vpop.xlane.xlu0 %567
  %569 = vadd.xlane.f32.xlu0 %v477
  %v570 = vpop.xlane.xlu0 %569
  %571 = vadd.xlane.f32.xlu0 %v480
  %v572 = vpop.xlane.xlu0 %571
  %573 = vadd.xlane.f32.xlu0 %v485
  %v574 = vpop.xlane.xlu0 %573
  %575 = vadd.xlane.f32.xlu0 %v488
  %v576 = vpop.xlane.xlu0 %575
  %577 = vadd.xlane.f32.xlu0 %v493
  %v578 = vpop.xlane.xlu0 %577
  %579 = vadd.xlane.f32.xlu0 %v496
  %v580 = vpop.xlane.xlu0 %579
  %581 = vadd.xlane.f32.xlu0 %v501
  %v582 = vpop.xlane.xlu0 %581
  %583 = vadd.xlane.f32.xlu0 %v504
  %v584 = vpop.xlane.xlu0 %583
  %585 = vadd.xlane.f32.xlu0 %v509
  %v586 = vpop.xlane.xlu0 %585
  %587 = vadd.xlane.f32.xlu0 %v512
  %v588 = vpop.xlane.xlu0 %587
  %589 = vadd.xlane.f32.xlu0 %v517
  %v590 = vpop.xlane.xlu0 %589
  %591 = vadd.xlane.f32.xlu0 %v520
  %v592 = vpop.xlane.xlu0 %591
  %593 = vadd.xlane.f32.xlu0 %v525
  %v594 = vpop.xlane.xlu0 %593
  %595 = vadd.xlane.f32.xlu0 %v528
  %v596 = vpop.xlane.xlu0 %595
  %v597 = vrcp.pop 128.0
  %v598 = vmul.f32 %v534, %v597
  %v599 = vmul.f32 %v536, %v597
  %v600 = vmul.f32 %v538, %v597
  %v601 = vmul.f32 %v540, %v597
  %v602 = vmul.f32 %v542, %v597
  %v603 = vmul.f32 %v544, %v597
  %v604 = vmul.f32 %v546, %v597
  %v605 = vmul.f32 %v548, %v597
  %v606 = vmul.f32 %v550, %v597
  %v607 = vmul.f32 %v552, %v597
  %v608 = vmul.f32 %v554, %v597
  %v609 = vmul.f32 %v556, %v597
  %v610 = vmul.f32 %v558, %v597
  %v611 = vmul.f32 %v560, %v597
  %v612 = vmul.f32 %v562, %v597
  %v613 = vmul.f32 %v564, %v597
  %v614 = vmul.f32 %v566, %v597
  %v615 = vmul.f32 %v568, %v597
  %v616 = vmul.f32 %v570, %v597
  %v617 = vmul.f32 %v572, %v597
  %v618 = vmul.f32 %v574, %v597
  %v619 = vmul.f32 %v576, %v597
  %v620 = vmul.f32 %v578, %v597
  %v621 = vmul.f32 %v580, %v597
  %v622 = vmul.f32 %v582, %v597
  %v623 = vmul.f32 %v584, %v597
  %v624 = vmul.f32 %v586, %v597
  %v625 = vmul.f32 %v588, %v597
  %v626 = vmul.f32 %v590, %v597
  %v627 = vmul.f32 %v592, %v597
  %v628 = vmul.f32 %v594, %v597
  %v629 = vmul.f32 %v596, %v597
  %v630 = vsub.f32 %v405, %v598
  %v631 = vsub.f32 %v408, %v599
  %v632 = vsub.f32 %v413, %v600
  %v633 = vsub.f32 %v416, %v601
  %v634 = vsub.f32 %v421, %v602
  %v635 = vsub.f32 %v424, %v603
  %v636 = vsub.f32 %v429, %v604
  %v637 = vsub.f32 %v432, %v605
  %v638 = vsub.f32 %v437, %v606
  %v639 = vsub.f32 %v440, %v607
  %v640 = vsub.f32 %v445, %v608
  %v641 = vsub.f32 %v448, %v609
  %v642 = vsub.f32 %v453, %v610
  %v643 = vsub.f32 %v456, %v611
  %v644 = vsub.f32 %v461, %v612
  %v645 = vsub.f32 %v464, %v613
  %v646 = vsub.f32 %v469, %v614
  %v647 = vsub.f32 %v472, %v615
  %v648 = vsub.f32 %v477, %v616
  %v649 = vsub.f32 %v480, %v617
  %v650 = vsub.f32 %v485, %v618
  %v651 = vsub.f32 %v488, %v619
  %v652 = vsub.f32 %v493, %v620
  %v653 = vsub.f32 %v496, %v621
  %v654 = vsub.f32 %v501, %v622
  %v655 = vsub.f32 %v504, %v623
  %v656 = vsub.f32 %v509, %v624
  %v657 = vsub.f32 %v512, %v625
  %v658 = vsub.f32 %v517, %v626
  %v659 = vsub.f32 %v520, %v627
  %v660 = vsub.f32 %v525, %v628
  %v661 = vsub.f32 %v528, %v629
  %v662 = vmul.f32 %v630, %v630
  %v663 = vmul.f32 %v631, %v631
  %v664 = vmul.f32 %v632, %v632
  %v665 = vmul.f32 %v633, %v633
  %v666 = vmul.f32 %v634, %v634
  %v667 = vmul.f32 %v635, %v635
  %v668 = vmul.f32 %v636, %v636
  %v669 = vmul.f32 %v637, %v637
  %v670 = vmul.f32 %v638, %v638
  %v671 = vmul.f32 %v639, %v639
  %v672 = vmul.f32 %v640, %v640
  %v673 = vmul.f32 %v641, %v641
  %v674 = vmul.f32 %v642, %v642
  %v675 = vmul.f32 %v643, %v643
  %v676 = vmul.f32 %v644, %v644
  %v677 = vmul.f32 %v645, %v645
  %v678 = vmul.f32 %v646, %v646
  %v679 = vmul.f32 %v647, %v647
  %v680 = vmul.f32 %v648, %v648
  %v681 = vmul.f32 %v649, %v649
  %v682 = vmul.f32 %v650, %v650
  %v683 = vmul.f32 %v651, %v651
  %v684 = vmul.f32 %v652, %v652
  %v685 = vmul.f32 %v653, %v653
  %v686 = vmul.f32 %v654, %v654
  %v687 = vmul.f32 %v655, %v655
  %v688 = vmul.f32 %v656, %v656
  %v689 = vmul.f32 %v657, %v657
  %v690 = vmul.f32 %v658, %v658
  %v691 = vmul.f32 %v659, %v659
  %v692 = vmul.f32 %v660, %v660
  %v693 = vmul.f32 %v661, %v661
  %694 = vadd.xlane.f32.xlu0 %v662
  %v695 = vpop.xlane.xlu0 %694
  %696 = vadd.xlane.f32.xlu0 %v663
  %v697 = vpop.xlane.xlu0 %696
  %698 = vadd.xlane.f32.xlu0 %v664
  %v699 = vpop.xlane.xlu0 %698
  %700 = vadd.xlane.f32.xlu0 %v665
  %v701 = vpop.xlane.xlu0 %700
  %702 = vadd.xlane.f32.xlu0 %v666
  %v703 = vpop.xlane.xlu0 %702
  %704 = vadd.xlane.f32.xlu0 %v667
  %v705 = vpop.xlane.xlu0 %704
  %706 = vadd.xlane.f32.xlu0 %v668
  %v707 = vpop.xlane.xlu0 %706
  %708 = vadd.xlane.f32.xlu0 %v669
  %v709 = vpop.xlane.xlu0 %708
  %710 = vadd.xlane.f32.xlu0 %v670
  %v711 = vpop.xlane.xlu0 %710
  %712 = vadd.xlane.f32.xlu0 %v671
  %v713 = vpop.xlane.xlu0 %712
  %714 = vadd.xlane.f32.xlu0 %v672
  %v715 = vpop.xlane.xlu0 %714
  %716 = vadd.xlane.f32.xlu0 %v673
  %v717 = vpop.xlane.xlu0 %716
  %718 = vadd.xlane.f32.xlu0 %v674
  %v719 = vpop.xlane.xlu0 %718
  %720 = vadd.xlane.f32.xlu0 %v675
  %v721 = vpop.xlane.xlu0 %720
  %722 = vadd.xlane.f32.xlu0 %v676
  %v723 = vpop.xlane.xlu0 %722
  %724 = vadd.xlane.f32.xlu0 %v677
  %v725 = vpop.xlane.xlu0 %724
  %726 = vadd.xlane.f32.xlu0 %v678
  %v727 = vpop.xlane.xlu0 %726
  %728 = vadd.xlane.f32.xlu0 %v679
  %v729 = vpop.xlane.xlu0 %728
  %730 = vadd.xlane.f32.xlu0 %v680
  %v731 = vpop.xlane.xlu0 %730
  %732 = vadd.xlane.f32.xlu0 %v681
  %v733 = vpop.xlane.xlu0 %732
  %734 = vadd.xlane.f32.xlu0 %v682
  %v735 = vpop.xlane.xlu0 %734
  %736 = vadd.xlane.f32.xlu0 %v683
  %v737 = vpop.xlane.xlu0 %736
  %738 = vadd.xlane.f32.xlu0 %v684
  %v739 = vpop.xlane.xlu0 %738
  %740 = vadd.xlane.f32.xlu0 %v685
  %v741 = vpop.xlane.xlu0 %740
  %742 = vadd.xlane.f32.xlu0 %v686
  %v743 = vpop.xlane.xlu0 %742
  %744 = vadd.xlane.f32.xlu0 %v687
  %v745 = vpop.xlane.xlu0 %744
  %746 = vadd.xlane.f32.xlu0 %v688
  %v747 = vpop.xlane.xlu0 %746
  %748 = vadd.xlane.f32.xlu0 %v689
  %v749 = vpop.xlane.xlu0 %748
  %750 = vadd.xlane.f32.xlu0 %v690
  %v751 = vpop.xlane.xlu0 %750
  %752 = vadd.xlane.f32.xlu0 %v691
  %v753 = vpop.xlane.xlu0 %752
  %754 = vadd.xlane.f32.xlu0 %v692
  %v755 = vpop.xlane.xlu0 %754
  %756 = vadd.xlane.f32.xlu0 %v693
  %v757 = vpop.xlane.xlu0 %756
  %v758 = vmul.f32 %v695, %v597
  %v759 = vmul.f32 %v697, %v597
  %v760 = vmul.f32 %v699, %v597
  %v761 = vmul.f32 %v701, %v597
  %v762 = vmul.f32 %v703, %v597
  %v763 = vmul.f32 %v705, %v597
  %v764 = vmul.f32 %v707, %v597
  %v765 = vmul.f32 %v709, %v597
  %v766 = vmul.f32 %v711, %v597
  %v767 = vmul.f32 %v713, %v597
  %v768 = vmul.f32 %v715, %v597
  %v769 = vmul.f32 %v717, %v597
  %v770 = vmul.f32 %v719, %v597
  %v771 = vmul.f32 %v721, %v597
  %v772 = vmul.f32 %v723, %v597
  %v773 = vmul.f32 %v725, %v597
  %v774 = vmul.f32 %v727, %v597
  %v775 = vmul.f32 %v729, %v597
  %v776 = vmul.f32 %v731, %v597
  %v777 = vmul.f32 %v733, %v597
  %v778 = vmul.f32 %v735, %v597
  %v779 = vmul.f32 %v737, %v597
  %v780 = vmul.f32 %v739, %v597
  %v781 = vmul.f32 %v741, %v597
  %v782 = vmul.f32 %v743, %v597
  %v783 = vmul.f32 %v745, %v597
  %v784 = vmul.f32 %v747, %v597
  %v785 = vmul.f32 %v749, %v597
  %v786 = vmul.f32 %v751, %v597
  %v787 = vmul.f32 %v753, %v597
  %v788 = vmul.f32 %v755, %v597
  %v789 = vmul.f32 %v757, %v597
  %v790 = vadd.f32 %v758, 1e-05
  %v791 = vadd.f32 %v759, 1e-05
  %v792 = vadd.f32 %v760, 1e-05
  %v793 = vadd.f32 %v761, 1e-05
  %v794 = vadd.f32 %v762, 1e-05
  %v795 = vadd.f32 %v763, 1e-05
  %v796 = vadd.f32 %v764, 1e-05
  %v797 = vadd.f32 %v765, 1e-05
  %v798 = vadd.f32 %v766, 1e-05
  %v799 = vadd.f32 %v767, 1e-05
  %v800 = vadd.f32 %v768, 1e-05
  %v801 = vadd.f32 %v769, 1e-05
  %v802 = vadd.f32 %v770, 1e-05
  %v803 = vadd.f32 %v771, 1e-05
  %v804 = vadd.f32 %v772, 1e-05
  %v805 = vadd.f32 %v773, 1e-05
  %v806 = vadd.f32 %v774, 1e-05
  %v807 = vadd.f32 %v775, 1e-05
  %v808 = vadd.f32 %v776, 1e-05
  %v809 = vadd.f32 %v777, 1e-05
  %v810 = vadd.f32 %v778, 1e-05
  %v811 = vadd.f32 %v779, 1e-05
  %v812 = vadd.f32 %v780, 1e-05
  %v813 = vadd.f32 %v781, 1e-05
  %v814 = vadd.f32 %v782, 1e-05
  %v815 = vadd.f32 %v783, 1e-05
  %v816 = vadd.f32 %v784, 1e-05
  %v817 = vadd.f32 %v785, 1e-05
  %v818 = vadd.f32 %v786, 1e-05
  %v819 = vadd.f32 %v787, 1e-05
  %v820 = vadd.f32 %v788, 1e-05
  %v821 = vadd.f32 %v789, 1e-05
  %v822 = vrsqrt.pop %v790
  %v823 = vrsqrt.pop %v791
  %v824 = vrsqrt.pop %v792
  %v825 = vrsqrt.pop %v793
  %v826 = vrsqrt.pop %v794
  %v827 = vrsqrt.pop %v795
  %v828 = vrsqrt.pop %v796
  %v829 = vrsqrt.pop %v797
  %v830 = vrsqrt.pop %v798
  %v831 = vrsqrt.pop %v799
  %v832 = vrsqrt.pop %v800
  %v833 = vrsqrt.pop %v801
  %v834 = vrsqrt.pop %v802
  %v835 = vrsqrt.pop %v803
  %v836 = vrsqrt.pop %v804
  %v837 = vrsqrt.pop %v805
  %v838 = vrsqrt.pop %v806
  %v839 = vrsqrt.pop %v807
  %v840 = vrsqrt.pop %v808
  %v841 = vrsqrt.pop %v809
  %v842 = vrsqrt.pop %v810
  %v843 = vrsqrt.pop %v811
  %v844 = vrsqrt.pop %v812
  %v845 = vrsqrt.pop %v813
  %v846 = vrsqrt.pop %v814
  %v847 = vrsqrt.pop %v815
  %v848 = vrsqrt.pop %v816
  %v849 = vrsqrt.pop %v817
  %v850 = vrsqrt.pop %v818
  %v851 = vrsqrt.pop %v819
  %v852 = vrsqrt.pop %v820
  %v853 = vrsqrt.pop %v821
  %v854 = vmul.f32 %v630, %v822
  %v855 = vmul.f32 %v631, %v823
  %v856 = vmul.f32 %v632, %v824
  %v857 = vmul.f32 %v633, %v825
  %v858 = vmul.f32 %v634, %v826
  %v859 = vmul.f32 %v635, %v827
  %v860 = vmul.f32 %v636, %v828
  %v861 = vmul.f32 %v637, %v829
  %v862 = vmul.f32 %v638, %v830
  %v863 = vmul.f32 %v639, %v831
  %v864 = vmul.f32 %v640, %v832
  %v865 = vmul.f32 %v641, %v833
  %v866 = vmul.f32 %v642, %v834
  %v867 = vmul.f32 %v643, %v835
  %v868 = vmul.f32 %v644, %v836
  %v869 = vmul.f32 %v645, %v837
  %v870 = vmul.f32 %v646, %v838
  %v871 = vmul.f32 %v647, %v839
  %v872 = vmul.f32 %v648, %v840
  %v873 = vmul.f32 %v649, %v841
  %v874 = vmul.f32 %v650, %v842
  %v875 = vmul.f32 %v651, %v843
  %v876 = vmul.f32 %v652, %v844
  %v877 = vmul.f32 %v653, %v845
  %v878 = vmul.f32 %v654, %v846
  %v879 = vmul.f32 %v655, %v847
  %v880 = vmul.f32 %v656, %v848
  %v881 = vmul.f32 %v657, %v849
  %v882 = vmul.f32 %v658, %v850
  %v883 = vmul.f32 %v659, %v851
  %v884 = vmul.f32 %v660, %v852
  %v885 = vmul.f32 %v661, %v853
  %v887 = vlaneseq
  %v888 = vshrl.u32 %v887, 7
  %v889 = vsub.s32 0, %v888
  %v890 = vrot.slane %v531, %v889
  %v892 = vmul.f32 %v854, %v890
  %v893 = vmul.f32 %v855, %v890
  %v894 = vmul.f32 %v856, %v890
  %v895 = vmul.f32 %v857, %v890
  %v896 = vmul.f32 %v858, %v890
  %v897 = vmul.f32 %v859, %v890
  %v898 = vmul.f32 %v860, %v890
  %v899 = vmul.f32 %v861, %v890
  %v900 = vmul.f32 %v862, %v890
  %v901 = vmul.f32 %v863, %v890
  %v902 = vmul.f32 %v864, %v890
  %v903 = vmul.f32 %v865, %v890
  %v904 = vmul.f32 %v866, %v890
  %v905 = vmul.f32 %v867, %v890
  %v906 = vmul.f32 %v868, %v890
  %v907 = vmul.f32 %v869, %v890
  %v908 = vmul.f32 %v870, %v890
  %v909 = vmul.f32 %v871, %v890
  %v910 = vmul.f32 %v872, %v890
  %v911 = vmul.f32 %v873, %v890
  %v912 = vmul.f32 %v874, %v890
  %v913 = vmul.f32 %v875, %v890
  %v914 = vmul.f32 %v876, %v890
  %v915 = vmul.f32 %v877, %v890
  %v916 = vmul.f32 %v878, %v890
  %v917 = vmul.f32 %v879, %v890
  %v918 = vmul.f32 %v880, %v890
  %v919 = vmul.f32 %v881, %v890
  %v920 = vmul.f32 %v882, %v890
  %v921 = vmul.f32 %v883, %v890
  %v922 = vmul.f32 %v884, %v890
  %v923 = vmul.f32 %v885, %v890
  %v925 = vlaneseq
  %v926 = vshrl.u32 %v925, 7
  %v927 = vsub.s32 0, %v926
  %v928 = vrot.slane %v532, %v927
  %v930 = vadd.f32 %v892, %v928
  %v931 = vadd.f32 %v893, %v928
  %v932 = vadd.f32 %v894, %v928
  %v933 = vadd.f32 %v895, %v928
  %v934 = vadd.f32 %v896, %v928
  %v935 = vadd.f32 %v897, %v928
  %v936 = vadd.f32 %v898, %v928
  %v937 = vadd.f32 %v899, %v928
  %v938 = vadd.f32 %v900, %v928
  %v939 = vadd.f32 %v901, %v928
  %v940 = vadd.f32 %v902, %v928
  %v941 = vadd.f32 %v903, %v928
  %v942 = vadd.f32 %v904, %v928
  %v943 = vadd.f32 %v905, %v928
  %v944 = vadd.f32 %v906, %v928
  %v945 = vadd.f32 %v907, %v928
  %v946 = vadd.f32 %v908, %v928
  %v947 = vadd.f32 %v909, %v928
  %v948 = vadd.f32 %v910, %v928
  %v949 = vadd.f32 %v911, %v928
  %v950 = vadd.f32 %v912, %v928
  %v951 = vadd.f32 %v913, %v928
  %v952 = vadd.f32 %v914, %v928
  %v953 = vadd.f32 %v915, %v928
  %v954 = vadd.f32 %v916, %v928
  %v955 = vadd.f32 %v917, %v928
  %v956 = vadd.f32 %v918, %v928
  %v957 = vadd.f32 %v919, %v928
  %v958 = vadd.f32 %v920, %v928
  %v959 = vadd.f32 %v921, %v928
  %v960 = vadd.f32 %v922, %v928
  %v961 = vadd.f32 %v923, %v928
  %v962 = vpack.c.bf16 %v931, %v930
  %v963 = vpack.c.bf16 %v933, %v932
  %v964 = vpack.c.bf16 %v935, %v934
  %v965 = vpack.c.bf16 %v937, %v936
  %v966 = vpack.c.bf16 %v939, %v938
  %v967 = vpack.c.bf16 %v941, %v940
  %v968 = vpack.c.bf16 %v943, %v942
  %v969 = vpack.c.bf16 %v945, %v944
  %v970 = vpack.c.bf16 %v947, %v946
  %v971 = vpack.c.bf16 %v949, %v948
  %v972 = vpack.c.bf16 %v951, %v950
  %v973 = vpack.c.bf16 %v953, %v952
  %v974 = vpack.c.bf16 %v955, %v954
  %v975 = vpack.c.bf16 %v957, %v956
  %v976 = vpack.c.bf16 %v959, %v958
  %v977 = vpack.c.bf16 %v961, %v960
  %v978 = vld [vmem:[%s5] sm:$0xff]
  %v979 = vld [vmem:[%s5 + $0x8] sm:$0xf]
  %v980 = vld [vmem:[%s5 + $0xc] sm:$0xff]
  %v981 = vld [vmem:[%s5 + $0x14] sm:$0xf]
  %v982 = vld [vmem:[%s5 + $0x18] sm:$0xff]
  %v983 = vld [vmem:[%s5 + $0x20] sm:$0xf]
  %v984 = vld [vmem:[%s5 + $0x24] sm:$0xff]
  %v985 = vld [vmem:[%s5 + $0x2c] sm:$0xf]
  %v986 = vld [vmem:[%s5 + $0x30] sm:$0xff]
  %v987 = vld [vmem:[%s5 + $0x38] sm:$0xf]
  %v988 = vld [vmem:[%s5 + $0x3c] sm:$0xff]
  %v989 = vld [vmem:[%s5 + $0x44] sm:$0xf]
  %v990 = vld [vmem:[%s5 + $0x48] sm:$0xff]
  %v991 = vld [vmem:[%s5 + $0x50] sm:$0xf]
  %v992 = vld [vmem:[%s5 + $0x54] sm:$0xff]
  %v993 = vld [vmem:[%s5 + $0x5c] sm:$0xf]
  %v994 = vld [vmem:[%s5 + $0x60] sm:$0xff]
  %v995 = vld [vmem:[%s5 + $0x68] sm:$0xf]
  %v996 = vld [vmem:[%s5 + $0x6c] sm:$0xff]
  %v997 = vld [vmem:[%s5 + $0x74] sm:$0xf]
  %v998 = vld [vmem:[%s5 + $0x78] sm:$0xff]
  %v999 = vld [vmem:[%s5 + $0x80] sm:$0xf]
  %v1000 = vld [vmem:[%s5 + $0x84] sm:$0xff]
  %v1001 = vld [vmem:[%s5 + $0x8c] sm:$0xf]
  %v1002 = vld [vmem:[%s5 + $0x90] sm:$0xff]
  %v1003 = vld [vmem:[%s5 + $0x98] sm:$0xf]
  %v1004 = vld [vmem:[%s5 + $0x9c] sm:$0xff]
  %v1005 = vld [vmem:[%s5 + $0xa4] sm:$0xf]
  %v1006 = vld [vmem:[%s5 + $0xa8] sm:$0xff]
  %v1007 = vld [vmem:[%s5 + $0xb0] sm:$0xf]
  %v1008 = vld [vmem:[%s5 + $0xb4] sm:$0xff]
  %v1009 = vld [vmem:[%s5 + $0xbc] sm:$0xf]
  %v1042 = vunpack.c.l.b16 %v978
  %v1043 = vunpack.c.h.b16 %v978
  %v1044 = vunpack.c.l.b16 %v979
  %v1045 = vunpack.c.l.b16 %v980
  %v1046 = vunpack.c.h.b16 %v980
  %v1047 = vunpack.c.l.b16 %v981
  %v1048 = vunpack.c.l.b16 %v982
  %v1049 = vunpack.c.h.b16 %v982
  %v1050 = vunpack.c.l.b16 %v983
  %v1051 = vunpack.c.l.b16 %v984
  %v1052 = vunpack.c.h.b16 %v984
  %v1053 = vunpack.c.l.b16 %v985
  %v1054 = vunpack.c.l.b16 %v986
  %v1055 = vunpack.c.h.b16 %v986
  %v1056 = vunpack.c.l.b16 %v987
  %v1057 = vunpack.c.l.b16 %v988
  %v1058 = vunpack.c.h.b16 %v988
  %v1059 = vunpack.c.l.b16 %v989
  %v1060 = vunpack.c.l.b16 %v990
  %v1061 = vunpack.c.h.b16 %v990
  %v1062 = vunpack.c.l.b16 %v991
  %v1063 = vunpack.c.l.b16 %v992
  %v1064 = vunpack.c.h.b16 %v992
  %v1065 = vunpack.c.l.b16 %v993
  %v1066 = vunpack.c.l.b16 %v994
  %v1067 = vunpack.c.h.b16 %v994
  %v1068 = vunpack.c.l.b16 %v995
  %v1069 = vunpack.c.l.b16 %v996
  %v1070 = vunpack.c.h.b16 %v996
  %v1071 = vunpack.c.l.b16 %v997
  %v1072 = vunpack.c.l.b16 %v998
  %v1073 = vunpack.c.h.b16 %v998
  %v1074 = vunpack.c.l.b16 %v999
  %v1075 = vunpack.c.l.b16 %v1000
  %v1076 = vunpack.c.h.b16 %v1000
  %v1077 = vunpack.c.l.b16 %v1001
  %v1078 = vunpack.c.l.b16 %v1002
  %v1079 = vunpack.c.h.b16 %v1002
  %v1080 = vunpack.c.l.b16 %v1003
  %v1081 = vunpack.c.l.b16 %v1004
  %v1082 = vunpack.c.h.b16 %v1004
  %v1083 = vunpack.c.l.b16 %v1005
  %v1084 = vunpack.c.l.b16 %v1006
  %v1085 = vunpack.c.h.b16 %v1006
  %v1086 = vunpack.c.l.b16 %v1007
  %v1087 = vunpack.c.l.b16 %v1008
  %v1088 = vunpack.c.h.b16 %v1008
  %v1089 = vunpack.c.l.b16 %v1009
  %v1090 = vpack.c.b16 %v1045, %v1042
  %v1091 = vpack.c.b16 %v1046, %v1043
  %v1092 = vpack.c.b16 %v1047, %v1044
  %v1093 = vpack.c.b16 %v1051, %v1048
  %v1094 = vpack.c.b16 %v1052, %v1049
  %v1095 = vpack.c.b16 %v1053, %v1050
  %v1096 = vpack.c.b16 %v1057, %v1054
  %v1097 = vpack.c.b16 %v1058, %v1055
  %v1098 = vpack.c.b16 %v1059, %v1056
  %v1099 = vpack.c.b16 %v1063, %v1060
  %v1100 = vpack.c.b16 %v1064, %v1061
  %v1101 = vpack.c.b16 %v1065, %v1062
  %v1102 = vpack.c.b16 %v1069, %v1066
  %v1103 = vpack.c.b16 %v1070, %v1067
  %v1104 = vpack.c.b16 %v1071, %v1068
  %v1105 = vpack.c.b16 %v1075, %v1072
  %v1106 = vpack.c.b16 %v1076, %v1073
  %v1107 = vpack.c.b16 %v1077, %v1074
  %v1108 = vpack.c.b16 %v1081, %v1078
  %v1109 = vpack.c.b16 %v1082, %v1079
  %v1110 = vpack.c.b16 %v1083, %v1080
  %v1111 = vpack.c.b16 %v1087, %v1084
  %v1112 = vpack.c.b16 %v1088, %v1085
  %v1113 = vpack.c.b16 %v1089, %v1086
  %1138 = vmatprep.subr.bf16.mxu0 %v1091
  %1139 = vmatpush1.bf16.msra.mxu0 %v1090
  %1140 = vmatprep.subr.bf16.mxu0 %v1094
  %1141 = vmatpush1.bf16.msra.mxu0 %v1093
  %1142 = vmatprep.subr.bf16.mxu0 %v1097
  %1143 = vmatpush1.bf16.msra.mxu0 %v1096
  %1144 = vmatprep.subr.bf16.mxu0 %v1100
  %1145 = vmatpush1.bf16.msra.mxu0 %v1099
  %1146 = vmatprep.subr.bf16.mxu0 %v1103
  %1147 = vmatpush1.bf16.msra.mxu0 %v1102
  %1148 = vmatprep.subr.bf16.mxu0 %v1106
  %1149 = vmatpush1.bf16.msra.mxu0 %v1105
  %1150 = vmatprep.subr.bf16.mxu0 %v1109
  %1151 = vmatpush1.bf16.msra.mxu0 %v1108
  %1152 = vmatprep.subr.bf16.mxu0 %v1112
  %1153 = vmatpush1.bf16.msra.mxu0 %v1111
  %1154 = vmatprep.subr.bf16.mxu0 0
  %1155 = vmatpush1.bf16.msra.mxu0 0
  %1156 = vmatprep.subr.bf16.mxu0 0
  %1157 = vmatpush1.bf16.msra.mxu0 0
  %1158 = vmatprep.subr.bf16.mxu0 0
  %1159 = vmatpush1.bf16.msra.mxu0 0
  %1160 = vmatprep.subr.bf16.mxu0 0
  %1161 = vmatpush1.bf16.msra.mxu0 0
  %1162 = vmatprep.subr.bf16.mxu0 0
  %1163 = vmatpush1.bf16.msra.mxu0 0
  %1164 = vmatprep.subr.bf16.mxu0 0
  %1165 = vmatpush1.bf16.msra.mxu0 0
  %1166 = vmatprep.subr.bf16.mxu0 0
  %1167 = vmatpush1.bf16.msra.mxu0 0
  %1168 = vmatprep.subr.bf16.mxu0 0
  %1169 = vmatpush1.bf16.msra.mxu0 0
  %1170 = vmatprep.mubr.bf16.mxu0 0
  %1171 = vmatmul.mubr.bf16.gmra.mrb[0].mxu0 %v962
  %v1172 = vpop.f32.mrb[0].mxu0
  %v1173 = vadd.f32 0.0, %v1172
  %v1174 = vpop.f32.mrb[0].mxu0
  %v1175 = vadd.f32 0.0, %v1174
  %v1176 = vpop.f32.mrb[0].mxu0
  %v1177 = vadd.f32 0.0, %v1176
  %v1178 = vpop.f32.mrb[0].mxu0
  %v1179 = vadd.f32 0.0, %v1178
  %1180 = vmatprep.mubr.bf16.mxu0 0
  %1181 = vmatmul.mubr.bf16.gmra.mrb[0].mxu0 %v963
  %v1182 = vpop.f32.mrb[0].mxu0
  %v1183 = vadd.f32 0.0, %v1182
  %v1184 = vpop.f32.mrb[0].mxu0
  %v1185 = vadd.f32 0.0, %v1184
  %v1186 = vpop.f32.mrb[0].mxu0
  %v1187 = vadd.f32 0.0, %v1186
  %v1188 = vpop.f32.mrb[0].mxu0
  %v1189 = vadd.f32 0.0, %v1188
  %1190 = vmatprep.mubr.bf16.mxu0 0
  %1191 = vmatmul.mubr.bf16.gmra.mrb[0].mxu0 %v964
  %v1192 = vpop.f32.mrb[0].mxu0
  %v1193 = vadd.f32 0.0, %v1192
  %v1194 = vpop.f32.mrb[0].mxu0
  %v1195 = vadd.f32 0.0, %v1194
  %v1196 = vpop.f32.mrb[0].mxu0
  %v1197 = vadd.f32 0.0, %v1196
  %v1198 = vpop.f32.mrb[0].mxu0
  %v1199 = vadd.f32 0.0, %v1198
  %1200 = vmatprep.mubr.bf16.mxu0 0
  %1201 = vmatmul.mubr.bf16.gmra.mrb[0].mxu0 %v965
  %v1202 = vpop.f32.mrb[0].mxu0
  %v1203 = vadd.f32 0.0, %v1202
  %v1204 = vpop.f32.mrb[0].mxu0
  %v1205 = vadd.f32 0.0, %v1204
  %v1206 = vpop.f32.mrb[0].mxu0
  %v1207 = vadd.f32 0.0, %v1206
  %v1208 = vpop.f32.mrb[0].mxu0
  %v1209 = vadd.f32 0.0, %v1208
  %1210 = vmatprep.mubr.bf16.mxu0 0
  %1211 = vmatmul.mubr.bf16.gmra.mrb[0].mxu0 %v966
  %v1212 = vpop.f32.mrb[0].mxu0
  %v1213 = vadd.f32 0.0, %v1212
  %v1214 = vpop.f32.mrb[0].mxu0
  %v1215 = vadd.f32 0.0, %v1214
  %v1216 = vpop.f32.mrb[0].mxu0
  %v1217 = vadd.f32 0.0, %v1216
  %v1218 = vpop.f32.mrb[0].mxu0
  %v1219 = vadd.f32 0.0, %v1218
  %1220 = vmatprep.mubr.bf16.mxu0 0
  %1221 = vmatmul.mubr.bf16.gmra.mrb[0].mxu0 %v967
  %v1222 = vpop.f32.mrb[0].mxu0
  %v1223 = vadd.f32 0.0, %v1222
  %v1224 = vpop.f32.mrb[0].mxu0
  %v1225 = vadd.f32 0.0, %v1224
  %v1226 = vpop.f32.mrb[0].mxu0
  %v1227 = vadd.f32 0.0, %v1226
  %v1228 = vpop.f32.mrb[0].mxu0
  %v1229 = vadd.f32 0.0, %v1228
  %1230 = vmatprep.mubr.bf16.mxu0 0
  %1231 = vmatmul.mubr.bf16.gmra.mrb[0].mxu0 %v968
  %v1232 = vpop.f32.mrb[0].mxu0
  %v1233 = vadd.f32 0.0, %v1232
  %v1234 = vpop.f32.mrb[0].mxu0
  %v1235 = vadd.f32 0.0, %v1234
  %v1236 = vpop.f32.mrb[0].mxu0
  %v1237 = vadd.f32 0.0, %v1236
  %v1238 = vpop.f32.mrb[0].mxu0
  %v1239 = vadd.f32 0.0, %v1238
  %1240 = vmatprep.mubr.bf16.mxu0 0
  %1241 = vmatmul.mubr.bf16.gmra.mrb[0].mxu0 %v969
  %v1242 = vpop.f32.mrb[0].mxu0
  %v1243 = vadd.f32 0.0, %v1242
  %v1244 = vpop.f32.mrb[0].mxu0
  %v1245 = vadd.f32 0.0, %v1244
  %v1246 = vpop.f32.mrb[0].mxu0
  %v1247 = vadd.f32 0.0, %v1246
  %v1248 = vpop.f32.mrb[0].mxu0
  %v1249 = vadd.f32 0.0, %v1248
  %1250 = vmatprep.mubr.bf16.mxu0 0
  %1251 = vmatmul.mubr.bf16.gmra.mrb[0].mxu0 %v970
  %v1252 = vpop.f32.mrb[0].mxu0
  %v1253 = vadd.f32 0.0, %v1252
  %v1254 = vpop.f32.mrb[0].mxu0
  %v1255 = vadd.f32 0.0, %v1254
  %v1256 = vpop.f32.mrb[0].mxu0
  %v1257 = vadd.f32 0.0, %v1256
  %v1258 = vpop.f32.mrb[0].mxu0
  %v1259 = vadd.f32 0.0, %v1258
  %1260 = vmatprep.mubr.bf16.mxu0 0
  %1261 = vmatmul.mubr.bf16.gmra.mrb[0].mxu0 %v971
  %v1262 = vpop.f32.mrb[0].mxu0
  %v1263 = vadd.f32 0.0, %v1262
  %v1264 = vpop.f32.mrb[0].mxu0
  %v1265 = vadd.f32 0.0, %v1264
  %v1266 = vpop.f32.mrb[0].mxu0
  %v1267 = vadd.f32 0.0, %v1266
  %v1268 = vpop.f32.mrb[0].mxu0
  %v1269 = vadd.f32 0.0, %v1268
  %1270 = vmatprep.mubr.bf16.mxu0 0
  %1271 = vmatmul.mubr.bf16.gmra.mrb[0].mxu0 %v972
  %v1272 = vpop.f32.mrb[0].mxu0
  %v1273 = vadd.f32 0.0, %v1272
  %v1274 = vpop.f32.mrb[0].mxu0
  %v1275 = vadd.f32 0.0, %v1274
  %v1276 = vpop.f32.mrb[0].mxu0
  %v1277 = vadd.f32 0.0, %v1276
  %v1278 = vpop.f32.mrb[0].mxu0
  %v1279 = vadd.f32 0.0, %v1278
  %1280 = vmatprep.mubr.bf16.mxu0 0
  %1281 = vmatmul.mubr.bf16.gmra.mrb[0].mxu0 %v973
  %v1282 = vpop.f32.mrb[0].mxu0
  %v1283 = vadd.f32 0.0, %v1282
  %v1284 = vpop.f32.mrb[0].mxu0
  %v1285 = vadd.f32 0.0, %v1284
  %v1286 = vpop.f32.mrb[0].mxu0
  %v1287 = vadd.f32 0.0, %v1286
  %v1288 = vpop.f32.mrb[0].mxu0
  %v1289 = vadd.f32 0.0, %v1288
  %1290 = vmatprep.mubr.bf16.mxu0 0
  %1291 = vmatmul.mubr.bf16.gmra.mrb[0].mxu0 %v974
  %v1292 = vpop.f32.mrb[0].mxu0
  %v1293 = vadd.f32 0.0, %v1292
  %v1294 = vpop.f32.mrb[0].mxu0
  %v1295 = vadd.f32 0.0, %v1294
  %v1296 = vpop.f32.mrb[0].mxu0
  %v1297 = vadd.f32 0.0, %v1296
  %v1298 = vpop.f32.mrb[0].mxu0
  %v1299 = vadd.f32 0.0, %v1298
  %1300 = vmatprep.mubr.bf16.mxu0 0
  %1301 = vmatmul.mubr.bf16.gmra.mrb[0].mxu0 %v975
  %v1302 = vpop.f32.mrb[0].mxu0
  %v1303 = vadd.f32 0.0, %v1302
  %v1304 = vpop.f32.mrb[0].mxu0
  %v1305 = vadd.f32 0.0, %v1304
  %v1306 = vpop.f32.mrb[0].mxu0
  %v1307 = vadd.f32 0.0, %v1306
  %v1308 = vpop.f32.mrb[0].mxu0
  %v1309 = vadd.f32 0.0, %v1308
  %1310 = vmatprep.mubr.bf16.mxu0 0
  %1311 = vmatmul.mubr.bf16.gmra.mrb[0].mxu0 %v976
  %v1312 = vpop.f32.mrb[0].mxu0
  %v1313 = vadd.f32 0.0, %v1312
  %v1314 = vpop.f32.mrb[0].mxu0
  %v1315 = vadd.f32 0.0, %v1314
  %v1316 = vpop.f32.mrb[0].mxu0
  %v1317 = vadd.f32 0.0, %v1316
  %v1318 = vpop.f32.mrb[0].mxu0
  %v1319 = vadd.f32 0.0, %v1318
  %1320 = vmatprep.mubr.bf16.mxu0 0
  %1321 = vmatmul.mubr.bf16.gmra.mrb[0].mxu0 %v977
  %v1322 = vpop.f32.mrb[0].mxu0
  %v1323 = vadd.f32 0.0, %v1322
  %v1324 = vpop.f32.mrb[0].mxu0
  %v1325 = vadd.f32 0.0, %v1324
  %v1326 = vpop.f32.mrb[0].mxu0
  %v1327 = vadd.f32 0.0, %v1326
  %v1328 = vpop.f32.mrb[0].mxu0
  %v1329 = vadd.f32 0.0, %v1328
  %1330 = vdwg.mxu0
  %1331 = vmatprep.subr.bf16.mxu0 0
  %1332 = vmatpush1.bf16.msra.mxu0 %v1092
  %1333 = vmatprep.subr.bf16.mxu0 0
  %1334 = vmatpush1.bf16.msra.mxu0 %v1095
  %1335 = vmatprep.subr.bf16.mxu0 0
  %1336 = vmatpush1.bf16.msra.mxu0 %v1098
  %1337 = vmatprep.subr.bf16.mxu0 0
  %1338 = vmatpush1.bf16.msra.mxu0 %v1101
  %1339 = vmatprep.subr.bf16.mxu0 0
  %1340 = vmatpush1.bf16.msra.mxu0 %v1104
  %1341 = vmatprep.subr.bf16.mxu0 0
  %1342 = vmatpush1.bf16.msra.mxu0 %v1107
  %1343 = vmatprep.subr.bf16.mxu0 0
  %1344 = vmatpush1.bf16.msra.mxu0 %v1110
  %1345 = vmatprep.subr.bf16.mxu0 0
  %1346 = vmatpush1.bf16.msra.mxu0 %v1113
  %1347 = vmatprep.subr.bf16.mxu0 0
  %1348 = vmatpush1.bf16.msra.mxu0 0
  %1349 = vmatprep.subr.bf16.mxu0 0
  %1350 = vmatpush1.bf16.msra.mxu0 0
  %1351 = vmatprep.subr.bf16.mxu0 0
  %1352 = vmatpush1.bf16.msra.mxu0 0
  %1353 = vmatprep.subr.bf16.mxu0 0
  %1354 = vmatpush1.bf16.msra.mxu0 0
  %1355 = vmatprep.subr.bf16.mxu0 0
  %1356 = vmatpush1.bf16.msra.mxu0 0
  %1357 = vmatprep.subr.bf16.mxu0 0
  %1358 = vmatpush1.bf16.msra.mxu0 0
  %1359 = vmatprep.subr.bf16.mxu0 0
  %1360 = vmatpush1.bf16.msra.mxu0 0
  %1361 = vmatprep.subr.bf16.mxu0 0
  %1362 = vmatpush1.bf16.msra.mxu0 0
  %1363 = vmatprep.mubr.bf16.mxu0 0
  %1364 = vmatmul.mubr.bf16.gmra.mrb[0].mxu0 %v962
  %v1365 = vpop.f32.mrb[0].mxu0
  %v1366 = vadd.f32 0.0, %v1365
  %v1367 = vpop.f32.mrb[0].mxu0
  %v1368 = vpop.f32.mrb[0].mxu0
  %v1369 = vadd.f32 0.0, %v1368
  %v1370 = vpop.f32.mrb[0].mxu0
  %1371 = vmatprep.mubr.bf16.mxu0 0
  %1372 = vmatmul.mubr.bf16.gmra.mrb[0].mxu0 %v963
  %v1373 = vpop.f32.mrb[0].mxu0
  %v1374 = vadd.f32 0.0, %v1373
  %v1375 = vpop.f32.mrb[0].mxu0
  %v1376 = vpop.f32.mrb[0].mxu0
  %v1377 = vadd.f32 0.0, %v1376
  %v1378 = vpop.f32.mrb[0].mxu0
  %1379 = vmatprep.mubr.bf16.mxu0 0
  %1380 = vmatmul.mubr.bf16.gmra.mrb[0].mxu0 %v964
  %v1381 = vpop.f32.mrb[0].mxu0
  %v1382 = vadd.f32 0.0, %v1381
  %v1383 = vpop.f32.mrb[0].mxu0
  %v1384 = vpop.f32.mrb[0].mxu0
  %v1385 = vadd.f32 0.0, %v1384
  %v1386 = vpop.f32.mrb[0].mxu0
  %1387 = vmatprep.mubr.bf16.mxu0 0
  %1388 = vmatmul.mubr.bf16.gmra.mrb[0].mxu0 %v965
  %v1389 = vpop.f32.mrb[0].mxu0
  %v1390 = vadd.f32 0.0, %v1389
  %v1391 = vpop.f32.mrb[0].mxu0
  %v1392 = vpop.f32.mrb[0].mxu0
  %v1393 = vadd.f32 0.0, %v1392
  %v1394 = vpop.f32.mrb[0].mxu0
  %1395 = vmatprep.mubr.bf16.mxu0 0
  %1396 = vmatmul.mubr.bf16.gmra.mrb[0].mxu0 %v966
  %v1397 = vpop.f32.mrb[0].mxu0
  %v1398 = vadd.f32 0.0, %v1397
  %v1399 = vpop.f32.mrb[0].mxu0
  %v1400 = vpop.f32.mrb[0].mxu0
  %v1401 = vadd.f32 0.0, %v1400
  %v1402 = vpop.f32.mrb[0].mxu0
  %1403 = vmatprep.mubr.bf16.mxu0 0
  %1404 = vmatmul.mubr.bf16.gmra.mrb[0].mxu0 %v967
  %v1405 = vpop.f32.mrb[0].mxu0
  %v1406 = vadd.f32 0.0, %v1405
  %v1407 = vpop.f32.mrb[0].mxu0
  %v1408 = vpop.f32.mrb[0].mxu0
  %v1409 = vadd.f32 0.0, %v1408
  %v1410 = vpop.f32.mrb[0].mxu0
  %1411 = vmatprep.mubr.bf16.mxu0 0
  %1412 = vmatmul.mubr.bf16.gmra.mrb[0].mxu0 %v968
  %v1413 = vpop.f32.mrb[0].mxu0
  %v1414 = vadd.f32 0.0, %v1413
  %v1415 = vpop.f32.mrb[0].mxu0
  %v1416 = vpop.f32.mrb[0].mxu0
  %v1417 = vadd.f32 0.0, %v1416
  %v1418 = vpop.f32.mrb[0].mxu0
  %1419 = vmatprep.mubr.bf16.mxu0 0
  %1420 = vmatmul.mubr.bf16.gmra.mrb[0].mxu0 %v969
  %v1421 = vpop.f32.mrb[0].mxu0
  %v1422 = vadd.f32 0.0, %v1421
  %v1423 = vpop.f32.mrb[0].mxu0
  %v1424 = vpop.f32.mrb[0].mxu0
  %v1425 = vadd.f32 0.0, %v1424
  %v1426 = vpop.f32.mrb[0].mxu0
  %1427 = vmatprep.mubr.bf16.mxu0 0
  %1428 = vmatmul.mubr.bf16.gmra.mrb[0].mxu0 %v970
  %v1429 = vpop.f32.mrb[0].mxu0
  %v1430 = vadd.f32 0.0, %v1429
  %v1431 = vpop.f32.mrb[0].mxu0
  %v1432 = vpop.f32.mrb[0].mxu0
  %v1433 = vadd.f32 0.0, %v1432
  %v1434 = vpop.f32.mrb[0].mxu0
  %1435 = vmatprep.mubr.bf16.mxu0 0
  %1436 = vmatmul.mubr.bf16.gmra.mrb[0].mxu0 %v971
  %v1437 = vpop.f32.mrb[0].mxu0
  %v1438 = vadd.f32 0.0, %v1437
  %v1439 = vpop.f32.mrb[0].mxu0
  %v1440 = vpop.f32.mrb[0].mxu0
  %v1441 = vadd.f32 0.0, %v1440
  %v1442 = vpop.f32.mrb[0].mxu0
  %1443 = vmatprep.mubr.bf16.mxu0 0
  %1444 = vmatmul.mubr.bf16.gmra.mrb[0].mxu0 %v972
  %v1445 = vpop.f32.mrb[0].mxu0
  %v1446 = vadd.f32 0.0, %v1445
  %v1447 = vpop.f32.mrb[0].mxu0
  %v1448 = vpop.f32.mrb[0].mxu0
  %v1449 = vadd.f32 0.0, %v1448
  %v1450 = vpop.f32.mrb[0].mxu0
  %1451 = vmatprep.mubr.bf16.mxu0 0
  %1452 = vmatmul.mubr.bf16.gmra.mrb[0].mxu0 %v973
  %v1453 = vpop.f32.mrb[0].mxu0
  %v1454 = vadd.f32 0.0, %v1453
  %v1455 = vpop.f32.mrb[0].mxu0
  %v1456 = vpop.f32.mrb[0].mxu0
  %v1457 = vadd.f32 0.0, %v1456
  %v1458 = vpop.f32.mrb[0].mxu0
  %1459 = vmatprep.mubr.bf16.mxu0 0
  %1460 = vmatmul.mubr.bf16.gmra.mrb[0].mxu0 %v974
  %v1461 = vpop.f32.mrb[0].mxu0
  %v1462 = vadd.f32 0.0, %v1461
  %v1463 = vpop.f32.mrb[0].mxu0
  %v1464 = vpop.f32.mrb[0].mxu0
  %v1465 = vadd.f32 0.0, %v1464
  %v1466 = vpop.f32.mrb[0].mxu0
  %1467 = vmatprep.mubr.bf16.mxu0 0
  %1468 = vmatmul.mubr.bf16.gmra.mrb[0].mxu0 %v975
  %v1469 = vpop.f32.mrb[0].mxu0
  %v1470 = vadd.f32 0.0, %v1469
  %v1471 = vpop.f32.mrb[0].mxu0
  %v1472 = vpop.f32.mrb[0].mxu0
  %v1473 = vadd.f32 0.0, %v1472
  %v1474 = vpop.f32.mrb[0].mxu0
  %1475 = vmatprep.mubr.bf16.mxu0 0
  %1476 = vmatmul.mubr.bf16.gmra.mrb[0].mxu0 %v976
  %v1477 = vpop.f32.mrb[0].mxu0
  %v1478 = vadd.f32 0.0, %v1477
  %v1479 = vpop.f32.mrb[0].mxu0
  %v1480 = vpop.f32.mrb[0].mxu0
  %v1481 = vadd.f32 0.0, %v1480
  %v1482 = vpop.f32.mrb[0].mxu0
  %1483 = vmatprep.mubr.bf16.mxu0 0
  %1484 = vmatmul.mubr.bf16.gmra.mrb[0].mxu0 %v977
  %v1485 = vpop.f32.mrb[0].mxu0
  %v1486 = vadd.f32 0.0, %v1485
  %v1487 = vpop.f32.mrb[0].mxu0
  %v1488 = vpop.f32.mrb[0].mxu0
  %v1489 = vadd.f32 0.0, %v1488
  %v1490 = vpop.f32.mrb[0].mxu0
  %1491 = vdwg.mxu0
  %v1492 = vpack.c.bf16 %v1177, %v1173
  %v1493 = vpack.c.bf16 %v1187, %v1183
  %v1494 = vpack.c.bf16 %v1197, %v1193
  %v1495 = vpack.c.bf16 %v1207, %v1203
  %v1496 = vpack.c.bf16 %v1217, %v1213
  %v1497 = vpack.c.bf16 %v1227, %v1223
  %v1498 = vpack.c.bf16 %v1237, %v1233
  %v1499 = vpack.c.bf16 %v1247, %v1243
  %v1500 = vpack.c.bf16 %v1257, %v1253
  %v1501 = vpack.c.bf16 %v1267, %v1263
  %v1502 = vpack.c.bf16 %v1277, %v1273
  %v1503 = vpack.c.bf16 %v1287, %v1283
  %v1504 = vpack.c.bf16 %v1297, %v1293
  %v1505 = vpack.c.bf16 %v1307, %v1303
  %v1506 = vpack.c.bf16 %v1317, %v1313
  %v1507 = vpack.c.bf16 %v1327, %v1323
  %v1508 = vpack.c.bf16 %v1179, %v1175
  %v1509 = vpack.c.bf16 %v1189, %v1185
  %v1510 = vpack.c.bf16 %v1199, %v1195
  %v1511 = vpack.c.bf16 %v1209, %v1205
  %v1512 = vpack.c.bf16 %v1219, %v1215
  %v1513 = vpack.c.bf16 %v1229, %v1225
  %v1514 = vpack.c.bf16 %v1239, %v1235
  %v1515 = vpack.c.bf16 %v1249, %v1245
  %v1516 = vpack.c.bf16 %v1259, %v1255
  %v1517 = vpack.c.bf16 %v1269, %v1265
  %v1518 = vpack.c.bf16 %v1279, %v1275
  %v1519 = vpack.c.bf16 %v1289, %v1285
  %v1520 = vpack.c.bf16 %v1299, %v1295
  %v1521 = vpack.c.bf16 %v1309, %v1305
  %v1522 = vpack.c.bf16 %v1319, %v1315
  %v1523 = vpack.c.bf16 %v1329, %v1325
  %v1524 = vpack.c.bf16 %v1369, %v1366
  %v1525 = vpack.c.bf16 %v1377, %v1374
  %v1526 = vpack.c.bf16 %v1385, %v1382
  %v1527 = vpack.c.bf16 %v1393, %v1390
  %v1528 = vpack.c.bf16 %v1401, %v1398
  %v1529 = vpack.c.bf16 %v1409, %v1406
  %v1530 = vpack.c.bf16 %v1417, %v1414
  %v1531 = vpack.c.bf16 %v1425, %v1422
  %v1532 = vpack.c.bf16 %v1433, %v1430
  %v1533 = vpack.c.bf16 %v1441, %v1438
  %v1534 = vpack.c.bf16 %v1449, %v1446
  %v1535 = vpack.c.bf16 %v1457, %v1454
  %v1536 = vpack.c.bf16 %v1465, %v1462
  %v1537 = vpack.c.bf16 %v1473, %v1470
  %v1538 = vpack.c.bf16 %v1481, %v1478
  %v1539 = vpack.c.bf16 %v1489, %v1486
  %1540 = vmatprep.subr.bf16.mxu0 0
  %1541 = vmatpush1.bf16.xpose.msra.mxu0 %v1508
  %1542 = vmatprep.subr.bf16.mxu0 0
  %1543 = vmatpush1.bf16.xpose.msra.mxu0 %v1509
  %1544 = vmatprep.subr.bf16.mxu0 0
  %1545 = vmatpush1.bf16.xpose.msra.mxu0 0
  %1546 = vmatprep.subr.bf16.mxu0 0
  %1547 = vmatpush1.bf16.xpose.msra.mxu0 0
  %1548 = vmatprep.subr.bf16.mxu0 0
  %1549 = vmatpush1.bf16.xpose.msra.mxu0 0
  %1550 = vmatprep.subr.bf16.mxu0 0
  %1551 = vmatpush1.bf16.xpose.msra.mxu0 0
  %1552 = vmatprep.subr.bf16.mxu0 0
  %1553 = vmatpush1.bf16.xpose.msra.mxu0 0
  %1554 = vmatprep.subr.bf16.mxu0 0
  %1555 = vmatpush1.bf16.xpose.msra.mxu0 0
  %1556 = vmatprep.subr.bf16.mxu0 0
  %1557 = vmatpush1.bf16.xpose.msra.mxu0 0
  %1558 = vmatprep.subr.bf16.mxu0 0
  %1559 = vmatpush1.bf16.xpose.msra.mxu0 0
  %1560 = vmatprep.subr.bf16.mxu0 0
  %1561 = vmatpush1.bf16.xpose.msra.mxu0 0
  %1562 = vmatprep.subr.bf16.mxu0 0
  %1563 = vmatpush1.bf16.xpose.msra.mxu0 0
  %1564 = vmatprep.subr.bf16.mxu0 0
  %1565 = vmatpush1.bf16.xpose.msra.mxu0 0
  %1566 = vmatprep.subr.bf16.mxu0 0
  %1567 = vmatpush1.bf16.xpose.msra.mxu0 0
  %1568 = vmatprep.subr.bf16.mxu0 0
  %1569 = vmatpush1.bf16.xpose.msra.mxu0 0
  %1570 = vmatprep.subr.bf16.mxu0 0
  %1571 = vmatpush1.bf16.xpose.msra.mxu0 0
  %1572 = vmatprep.mubr.bf16.mxu0 0
  %1573 = vmatmul.mubr.bf16.gmra.mrb[0].mxu0 %v1492
  %v1574 = vpop.f32.mrb[0].mxu0
  %v1575 = vadd.f32 0.0, %v1574
  %v1576 = vpop.f32.mrb[0].mxu0
  %v1577 = vpop.f32.mrb[0].mxu0
  %v1578 = vadd.f32 0.0, %v1577
  %v1579 = vpop.f32.mrb[0].mxu0
  %1580 = vmatprep.mubr.bf16.mxu0 0
  %1581 = vmatmul.mubr.bf16.gmra.mrb[0].mxu0 %v1493
  %v1582 = vpop.f32.mrb[0].mxu0
  %v1583 = vadd.f32 0.0, %v1582
  %v1584 = vpop.f32.mrb[0].mxu0
  %v1585 = vpop.f32.mrb[0].mxu0
  %v1586 = vadd.f32 0.0, %v1585
  %v1587 = vpop.f32.mrb[0].mxu0
  %1588 = vdwg.mxu0
  %1589 = vmatprep.subr.bf16.mxu0 0
  %1590 = vmatpush1.bf16.xpose.msra.mxu0 %v1510
  %1591 = vmatprep.subr.bf16.mxu0 0
  %1592 = vmatpush1.bf16.xpose.msra.mxu0 %v1511
  %1593 = vmatprep.subr.bf16.mxu0 0
  %1594 = vmatpush1.bf16.xpose.msra.mxu0 0
  %1595 = vmatprep.subr.bf16.mxu0 0
  %1596 = vmatpush1.bf16.xpose.msra.mxu0 0
  %1597 = vmatprep.subr.bf16.mxu0 0
  %1598 = vmatpush1.bf16.xpose.msra.mxu0 0
  %1599 = vmatprep.subr.bf16.mxu0 0
  %1600 = vmatpush1.bf16.xpose.msra.mxu0 0
  %1601 = vmatprep.subr.bf16.mxu0 0
  %1602 = vmatpush1.bf16.xpose.msra.mxu0 0
  %1603 = vmatprep.subr.bf16.mxu0 0
  %1604 = vmatpush1.bf16.xpose.msra.mxu0 0
  %1605 = vmatprep.subr.bf16.mxu0 0
  %1606 = vmatpush1.bf16.xpose.msra.mxu0 0
  %1607 = vmatprep.subr.bf16.mxu0 0
  %1608 = vmatpush1.bf16.xpose.msra.mxu0 0
  %1609 = vmatprep.subr.bf16.mxu0 0
  %1610 = vmatpush1.bf16.xpose.msra.mxu0 0
  %1611 = vmatprep.subr.bf16.mxu0 0
  %1612 = vmatpush1.bf16.xpose.msra.mxu0 0
  %1613 = vmatprep.subr.bf16.mxu0 0
  %1614 = vmatpush1.bf16.xpose.msra.mxu0 0
  %1615 = vmatprep.subr.bf16.mxu0 0
  %1616 = vmatpush1.bf16.xpose.msra.mxu0 0
  %1617 = vmatprep.subr.bf16.mxu0 0
  %1618 = vmatpush1.bf16.xpose.msra.mxu0 0
  %1619 = vmatprep.subr.bf16.mxu0 0
  %1620 = vmatpush1.bf16.xpose.msra.mxu0 0
  %1621 = vmatprep.mubr.bf16.mxu0 0
  %1622 = vmatmul.mubr.bf16.gmra.mrb[0].mxu0 %v1494
  %v1623 = vpop.f32.mrb[0].mxu0
  %v1624 = vadd.f32 0.0, %v1623
  %v1625 = vpop.f32.mrb[0].mxu0
  %v1626 = vpop.f32.mrb[0].mxu0
  %v1627 = vadd.f32 0.0, %v1626
  %v1628 = vpop.f32.mrb[0].mxu0
  %1629 = vmatprep.mubr.bf16.mxu0 0
  %1630 = vmatmul.mubr.bf16.gmra.mrb[0].mxu0 %v1495
  %v1631 = vpop.f32.mrb[0].mxu0
  %v1632 = vadd.f32 0.0, %v1631
  %v1633 = vpop.f32.mrb[0].mxu0
  %v1634 = vpop.f32.mrb[0].mxu0
  %v1635 = vadd.f32 0.0, %v1634
  %v1636 = vpop.f32.mrb[0].mxu0
  %1637 = vdwg.mxu0
  %1638 = vmatprep.subr.bf16.mxu0 0
  %1639 = vmatpush1.bf16.xpose.msra.mxu0 %v1512
  %1640 = vmatprep.subr.bf16.mxu0 0
  %1641 = vmatpush1.bf16.xpose.msra.mxu0 %v1513
  %1642 = vmatprep.subr.bf16.mxu0 0
  %1643 = vmatpush1.bf16.xpose.msra.mxu0 0
  %1644 = vmatprep.subr.bf16.mxu0 0
  %1645 = vmatpush1.bf16.xpose.msra.mxu0 0
  %1646 = vmatprep.subr.bf16.mxu0 0
  %1647 = vmatpush1.bf16.xpose.msra.mxu0 0
  %1648 = vmatprep.subr.bf16.mxu0 0
  %1649 = vmatpush1.bf16.xpose.msra.mxu0 0
  %1650 = vmatprep.subr.bf16.mxu0 0
  %1651 = vmatpush1.bf16.xpose.msra.mxu0 0
  %1652 = vmatprep.subr.bf16.mxu0 0
  %1653 = vmatpush1.bf16.xpose.msra.mxu0 0
  %1654 = vmatprep.subr.bf16.mxu0 0
  %1655 = vmatpush1.bf16.xpose.msra.mxu0 0
  %1656 = vmatprep.subr.bf16.mxu0 0
  %1657 = vmatpush1.bf16.xpose.msra.mxu0 0
  %1658 = vmatprep.subr.bf16.mxu0 0
  %1659 = vmatpush1.bf16.xpose.msra.mxu0 0
  %1660 = vmatprep.subr.bf16.mxu0 0
  %1661 = vmatpush1.bf16.xpose.msra.mxu0 0
  %1662 = vmatprep.subr.bf16.mxu0 0
  %1663 = vmatpush1.bf16.xpose.msra.mxu0 0
  %1664 = vmatprep.subr.bf16.mxu0 0
  %1665 = vmatpush1.bf16.xpose.msra.mxu0 0
  %1666 = vmatprep.subr.bf16.mxu0 0
  %1667 = vmatpush1.bf16.xpose.msra.mxu0 0
  %1668 = vmatprep.subr.bf16.mxu0 0
  %1669 = vmatpush1.bf16.xpose.msra.mxu0 0
  %1670 = vmatprep.mubr.bf16.mxu0 0
  %1671 = vmatmul.mubr.bf16.gmra.mrb[0].mxu0 %v1496
  %v1672 = vpop.f32.mrb[0].mxu0
  %v1673 = vadd.f32 0.0, %v1672
  %v1674 = vpop.f32.mrb[0].mxu0
  %v1675 = vpop.f32.mrb[0].mxu0
  %v1676 = vadd.f32 0.0, %v1675
  %v1677 = vpop.f32.mrb[0].mxu0
  %1678 = vmatprep.mubr.bf16.mxu0 0
  %1679 = vmatmul.mubr.bf16.gmra.mrb[0].mxu0 %v1497
  %v1680 = vpop.f32.mrb[0].mxu0
  %v1681 = vadd.f32 0.0, %v1680
  %v1682 = vpop.f32.mrb[0].mxu0
  %v1683 = vpop.f32.mrb[0].mxu0
  %v1684 = vadd.f32 0.0, %v1683
  %v1685 = vpop.f32.mrb[0].mxu0
  %1686 = vdwg.mxu0
  %1687 = vmatprep.subr.bf16.mxu0 0
  %1688 = vmatpush1.bf16.xpose.msra.mxu0 %v1514
  %1689 = vmatprep.subr.bf16.mxu0 0
  %1690 = vmatpush1.bf16.xpose.msra.mxu0 %v1515
  %1691 = vmatprep.subr.bf16.mxu0 0
  %1692 = vmatpush1.bf16.xpose.msra.mxu0 0
  %1693 = vmatprep.subr.bf16.mxu0 0
  %1694 = vmatpush1.bf16.xpose.msra.mxu0 0
  %1695 = vmatprep.subr.bf16.mxu0 0
  %1696 = vmatpush1.bf16.xpose.msra.mxu0 0
  %1697 = vmatprep.subr.bf16.mxu0 0
  %1698 = vmatpush1.bf16.xpose.msra.mxu0 0
  %1699 = vmatprep.subr.bf16.mxu0 0
  %1700 = vmatpush1.bf16.xpose.msra.mxu0 0
  %1701 = vmatprep.subr.bf16.mxu0 0
  %1702 = vmatpush1.bf16.xpose.msra.mxu0 0
  %1703 = vmatprep.subr.bf16.mxu0 0
  %1704 = vmatpush1.bf16.xpose.msra.mxu0 0
  %1705 = vmatprep.subr.bf16.mxu0 0
  %1706 = vmatpush1.bf16.xpose.msra.mxu0 0
  %1707 = vmatprep.subr.bf16.mxu0 0
  %1708 = vmatpush1.bf16.xpose.msra.mxu0 0
  %1709 = vmatprep.subr.bf16.mxu0 0
  %1710 = vmatpush1.bf16.xpose.msra.mxu0 0
  %1711 = vmatprep.subr.bf16.mxu0 0
  %1712 = vmatpush1.bf16.xpose.msra.mxu0 0
  %1713 = vmatprep.subr.bf16.mxu0 0
  %1714 = vmatpush1.bf16.xpose.msra.mxu0 0
  %1715 = vmatprep.subr.bf16.mxu0 0
  %1716 = vmatpush1.bf16.xpose.msra.mxu0 0
  %1717 = vmatprep.subr.bf16.mxu0 0
  %1718 = vmatpush1.bf16.xpose.msra.mxu0 0
  %1719 = vmatprep.mubr.bf16.mxu0 0
  %1720 = vmatmul.mubr.bf16.gmra.mrb[0].mxu0 %v1498
  %v1721 = vpop.f32.mrb[0].mxu0
  %v1722 = vadd.f32 0.0, %v1721
  %v1723 = vpop.f32.mrb[0].mxu0
  %v1724 = vpop.f32.mrb[0].mxu0
  %v1725 = vadd.f32 0.0, %v1724
  %v1726 = vpop.f32.mrb[0].mxu0
  %1727 = vmatprep.mubr.bf16.mxu0 0
  %1728 = vmatmul.mubr.bf16.gmra.mrb[0].mxu0 %v1499
  %v1729 = vpop.f32.mrb[0].mxu0
  %v1730 = vadd.f32 0.0, %v1729
  %v1731 = vpop.f32.mrb[0].mxu0
  %v1732 = vpop.f32.mrb[0].mxu0
  %v1733 = vadd.f32 0.0, %v1732
  %v1734 = vpop.f32.mrb[0].mxu0
  %1735 = vdwg.mxu0
  %1736 = vmatprep.subr.bf16.mxu0 0
  %1737 = vmatpush1.bf16.xpose.msra.mxu0 %v1516
  %1738 = vmatprep.subr.bf16.mxu0 0
  %1739 = vmatpush1.bf16.xpose.msra.mxu0 %v1517
  %1740 = vmatprep.subr.bf16.mxu0 0
  %1741 = vmatpush1.bf16.xpose.msra.mxu0 0
  %1742 = vmatprep.subr.bf16.mxu0 0
  %1743 = vmatpush1.bf16.xpose.msra.mxu0 0
  %1744 = vmatprep.subr.bf16.mxu0 0
  %1745 = vmatpush1.bf16.xpose.msra.mxu0 0
  %1746 = vmatprep.subr.bf16.mxu0 0
  %1747 = vmatpush1.bf16.xpose.msra.mxu0 0
  %1748 = vmatprep.subr.bf16.mxu0 0
  %1749 = vmatpush1.bf16.xpose.msra.mxu0 0
  %1750 = vmatprep.subr.bf16.mxu0 0
  %1751 = vmatpush1.bf16.xpose.msra.mxu0 0
  %1752 = vmatprep.subr.bf16.mxu0 0
  %1753 = vmatpush1.bf16.xpose.msra.mxu0 0
  %1754 = vmatprep.subr.bf16.mxu0 0
  %1755 = vmatpush1.bf16.xpose.msra.mxu0 0
  %1756 = vmatprep.subr.bf16.mxu0 0
  %1757 = vmatpush1.bf16.xpose.msra.mxu0 0
  %1758 = vmatprep.subr.bf16.mxu0 0
  %1759 = vmatpush1.bf16.xpose.msra.mxu0 0
  %1760 = vmatprep.subr.bf16.mxu0 0
  %1761 = vmatpush1.bf16.xpose.msra.mxu0 0
  %1762 = vmatprep.subr.bf16.mxu0 0
  %1763 = vmatpush1.bf16.xpose.msra.mxu0 0
  %1764 = vmatprep.subr.bf16.mxu0 0
  %1765 = vmatpush1.bf16.xpose.msra.mxu0 0
  %1766 = vmatprep.subr.bf16.mxu0 0
  %1767 = vmatpush1.bf16.xpose.msra.mxu0 0
  %1768 = vmatprep.mubr.bf16.mxu0 0
  %1769 = vmatmul.mubr.bf16.gmra.mrb[0].mxu0 %v1500
  %v1770 = vpop.f32.mrb[0].mxu0
  %v1771 = vadd.f32 0.0, %v1770
  %v1772 = vpop.f32.mrb[0].mxu0
  %v1773 = vpop.f32.mrb[0].mxu0
  %v1774 = vadd.f32 0.0, %v1773
  %v1775 = vpop.f32.mrb[0].mxu0
  %1776 = vmatprep.mubr.bf16.mxu0 0
  %1777 = vmatmul.mubr.bf16.gmra.mrb[0].mxu0 %v1501
  %v1778 = vpop.f32.mrb[0].mxu0
  %v1779 = vadd.f32 0.0, %v1778
  %v1780 = vpop.f32.mrb[0].mxu0
  %v1781 = vpop.f32.mrb[0].mxu0
  %v1782 = vadd.f32 0.0, %v1781
  %v1783 = vpop.f32.mrb[0].mxu0
  %1784 = vdwg.mxu0
  %1785 = vmatprep.subr.bf16.mxu0 0
  %1786 = vmatpush1.bf16.xpose.msra.mxu0 %v1518
  %1787 = vmatprep.subr.bf16.mxu0 0
  %1788 = vmatpush1.bf16.xpose.msra.mxu0 %v1519
  %1789 = vmatprep.subr.bf16.mxu0 0
  %1790 = vmatpush1.bf16.xpose.msra.mxu0 0
  %1791 = vmatprep.subr.bf16.mxu0 0
  %1792 = vmatpush1.bf16.xpose.msra.mxu0 0
  %1793 = vmatprep.subr.bf16.mxu0 0
  %1794 = vmatpush1.bf16.xpose.msra.mxu0 0
  %1795 = vmatprep.subr.bf16.mxu0 0
  %1796 = vmatpush1.bf16.xpose.msra.mxu0 0
  %1797 = vmatprep.subr.bf16.mxu0 0
  %1798 = vmatpush1.bf16.xpose.msra.mxu0 0
  %1799 = vmatprep.subr.bf16.mxu0 0
  %1800 = vmatpush1.bf16.xpose.msra.mxu0 0
  %1801 = vmatprep.subr.bf16.mxu0 0
  %1802 = vmatpush1.bf16.xpose.msra.mxu0 0
  %1803 = vmatprep.subr.bf16.mxu0 0
  %1804 = vmatpush1.bf16.xpose.msra.mxu0 0
  %1805 = vmatprep.subr.bf16.mxu0 0
  %1806 = vmatpush1.bf16.xpose.msra.mxu0 0
  %1807 = vmatprep.subr.bf16.mxu0 0
  %1808 = vmatpush1.bf16.xpose.msra.mxu0 0
  %1809 = vmatprep.subr.bf16.mxu0 0
  %1810 = vmatpush1.bf16.xpose.msra.mxu0 0
  %1811 = vmatprep.subr.bf16.mxu0 0
  %1812 = vmatpush1.bf16.xpose.msra.mxu0 0
  %1813 = vmatprep.subr.bf16.mxu0 0
  %1814 = vmatpush1.bf16.xpose.msra.mxu0 0
  %1815 = vmatprep.subr.bf16.mxu0 0
  %1816 = vmatpush1.bf16.xpose.msra.mxu0 0
  %1817 = vmatprep.mubr.bf16.mxu0 0
  %1818 = vmatmul.mubr.bf16.gmra.mrb[0].mxu0 %v1502
  %v1819 = vpop.f32.mrb[0].mxu0
  %v1820 = vadd.f32 0.0, %v1819
  %v1821 = vpop.f32.mrb[0].mxu0
  %v1822 = vpop.f32.mrb[0].mxu0
  %v1823 = vadd.f32 0.0, %v1822
  %v1824 = vpop.f32.mrb[0].mxu0
  %1825 = vmatprep.mubr.bf16.mxu0 0
  %1826 = vmatmul.mubr.bf16.gmra.mrb[0].mxu0 %v1503
  %v1827 = vpop.f32.mrb[0].mxu0
  %v1828 = vadd.f32 0.0, %v1827
  %v1829 = vpop.f32.mrb[0].mxu0
  %v1830 = vpop.f32.mrb[0].mxu0
  %v1831 = vadd.f32 0.0, %v1830
  %v1832 = vpop.f32.mrb[0].mxu0
  %1833 = vdwg.mxu0
  %1834 = vmatprep.subr.bf16.mxu0 0
  %1835 = vmatpush1.bf16.xpose.msra.mxu0 %v1520
  %1836 = vmatprep.subr.bf16.mxu0 0
  %1837 = vmatpush1.bf16.xpose.msra.mxu0 %v1521
  %1838 = vmatprep.subr.bf16.mxu0 0
  %1839 = vmatpush1.bf16.xpose.msra.mxu0 0
  %1840 = vmatprep.subr.bf16.mxu0 0
  %1841 = vmatpush1.bf16.xpose.msra.mxu0 0
  %1842 = vmatprep.subr.bf16.mxu0 0
  %1843 = vmatpush1.bf16.xpose.msra.mxu0 0
  %1844 = vmatprep.subr.bf16.mxu0 0
  %1845 = vmatpush1.bf16.xpose.msra.mxu0 0
  %1846 = vmatprep.subr.bf16.mxu0 0
  %1847 = vmatpush1.bf16.xpose.msra.mxu0 0
  %1848 = vmatprep.subr.bf16.mxu0 0
  %1849 = vmatpush1.bf16.xpose.msra.mxu0 0
  %1850 = vmatprep.subr.bf16.mxu0 0
  %1851 = vmatpush1.bf16.xpose.msra.mxu0 0
  %1852 = vmatprep.subr.bf16.mxu0 0
  %1853 = vmatpush1.bf16.xpose.msra.mxu0 0
  %1854 = vmatprep.subr.bf16.mxu0 0
  %1855 = vmatpush1.bf16.xpose.msra.mxu0 0
  %1856 = vmatprep.subr.bf16.mxu0 0
  %1857 = vmatpush1.bf16.xpose.msra.mxu0 0
  %1858 = vmatprep.subr.bf16.mxu0 0
  %1859 = vmatpush1.bf16.xpose.msra.mxu0 0
  %1860 = vmatprep.subr.bf16.mxu0 0
  %1861 = vmatpush1.bf16.xpose.msra.mxu0 0
  %1862 = vmatprep.subr.bf16.mxu0 0
  %1863 = vmatpush1.bf16.xpose.msra.mxu0 0
  %1864 = vmatprep.subr.bf16.mxu0 0
  %1865 = vmatpush1.bf16.xpose.msra.mxu0 0
  %1866 = vmatprep.mubr.bf16.mxu0 0
  %1867 = vmatmul.mubr.bf16.gmra.mrb[0].mxu0 %v1504
  %v1868 = vpop.f32.mrb[0].mxu0
  %v1869 = vadd.f32 0.0, %v1868
  %v1870 = vpop.f32.mrb[0].mxu0
  %v1871 = vpop.f32.mrb[0].mxu0
  %v1872 = vadd.f32 0.0, %v1871
  %v1873 = vpop.f32.mrb[0].mxu0
  %1874 = vmatprep.mubr.bf16.mxu0 0
  %1875 = vmatmul.mubr.bf16.gmra.mrb[0].mxu0 %v1505
  %v1876 = vpop.f32.mrb[0].mxu0
  %v1877 = vadd.f32 0.0, %v1876
  %v1878 = vpop.f32.mrb[0].mxu0
  %v1879 = vpop.f32.mrb[0].mxu0
  %v1880 = vadd.f32 0.0, %v1879
  %v1881 = vpop.f32.mrb[0].mxu0
  %1882 = vdwg.mxu0
  %1883 = vmatprep.subr.bf16.mxu0 0
  %1884 = vmatpush1.bf16.xpose.msra.mxu0 %v1522
  %1885 = vmatprep.subr.bf16.mxu0 0
  %1886 = vmatpush1.bf16.xpose.msra.mxu0 %v1523
  %1887 = vmatprep.subr.bf16.mxu0 0
  %1888 = vmatpush1.bf16.xpose.msra.mxu0 0
  %1889 = vmatprep.subr.bf16.mxu0 0
  %1890 = vmatpush1.bf16.xpose.msra.mxu0 0
  %1891 = vmatprep.subr.bf16.mxu0 0
  %1892 = vmatpush1.bf16.xpose.msra.mxu0 0
  %1893 = vmatprep.subr.bf16.mxu0 0
  %1894 = vmatpush1.bf16.xpose.msra.mxu0 0
  %1895 = vmatprep.subr.bf16.mxu0 0
  %1896 = vmatpush1.bf16.xpose.msra.mxu0 0
  %1897 = vmatprep.subr.bf16.mxu0 0
  %1898 = vmatpush1.bf16.xpose.msra.mxu0 0
  %1899 = vmatprep.subr.bf16.mxu0 0
  %1900 = vmatpush1.bf16.xpose.msra.mxu0 0
  %1901 = vmatprep.subr.bf16.mxu0 0
  %1902 = vmatpush1.bf16.xpose.msra.mxu0 0
  %1903 = vmatprep.subr.bf16.mxu0 0
  %1904 = vmatpush1.bf16.xpose.msra.mxu0 0
  %1905 = vmatprep.subr.bf16.mxu0 0
  %1906 = vmatpush1.bf16.xpose.msra.mxu0 0
  %1907 = vmatprep.subr.bf16.mxu0 0
  %1908 = vmatpush1.bf16.xpose.msra.mxu0 0
  %1909 = vmatprep.subr.bf16.mxu0 0
  %1910 = vmatpush1.bf16.xpose.msra.mxu0 0
  %1911 = vmatprep.subr.bf16.mxu0 0
  %1912 = vmatpush1.bf16.xpose.msra.mxu0 0
  %1913 = vmatprep.subr.bf16.mxu0 0
  %1914 = vmatpush1.bf16.xpose.msra.mxu0 0
  %1915 = vmatprep.mubr.bf16.mxu0 0
  %1916 = vmatmul.mubr.bf16.gmra.mrb[0].mxu0 %v1506
  %v1917 = vpop.f32.mrb[0].mxu0
  %v1918 = vadd.f32 0.0, %v1917
  %v1919 = vpop.f32.mrb[0].mxu0
  %v1920 = vpop.f32.mrb[0].mxu0
  %v1921 = vadd.f32 0.0, %v1920
  %v1922 = vpop.f32.mrb[0].mxu0
  %1923 = vmatprep.mubr.bf16.mxu0 0
  %1924 = vmatmul.mubr.bf16.gmra.mrb[0].mxu0 %v1507
  %v1925 = vpop.f32.mrb[0].mxu0
  %v1926 = vadd.f32 0.0, %v1925
  %v1927 = vpop.f32.mrb[0].mxu0
  %v1928 = vpop.f32.mrb[0].mxu0
  %v1929 = vadd.f32 0.0, %v1928
  %v1930 = vpop.f32.mrb[0].mxu0
  %1931 = vdwg.mxu0
  %v1932 = vmul.f32 %v1575, 0.088388346
  %v1933 = vmul.f32 %v1578, 0.088388346
  %v1934 = vmul.f32 %v1583, 0.088388346
  %v1935 = vmul.f32 %v1586, 0.088388346
  %v1936 = vmul.f32 %v1624, 0.088388346
  %v1937 = vmul.f32 %v1627, 0.088388346
  %v1938 = vmul.f32 %v1632, 0.088388346
  %v1939 = vmul.f32 %v1635, 0.088388346
  %v1940 = vmul.f32 %v1673, 0.088388346
  %v1941 = vmul.f32 %v1676, 0.088388346
  %v1942 = vmul.f32 %v1681, 0.088388346
  %v1943 = vmul.f32 %v1684, 0.088388346
  %v1944 = vmul.f32 %v1722, 0.088388346
  %v1945 = vmul.f32 %v1725, 0.088388346
  %v1946 = vmul.f32 %v1730, 0.088388346
  %v1947 = vmul.f32 %v1733, 0.088388346
  %v1948 = vmul.f32 %v1771, 0.088388346
  %v1949 = vmul.f32 %v1774, 0.088388346
  %v1950 = vmul.f32 %v1779, 0.088388346
  %v1951 = vmul.f32 %v1782, 0.088388346
  %v1952 = vmul.f32 %v1820, 0.088388346
  %v1953 = vmul.f32 %v1823, 0.088388346
  %v1954 = vmul.f32 %v1828, 0.088388346
  %v1955 = vmul.f32 %v1831, 0.088388346
  %v1956 = vmul.f32 %v1869, 0.088388346
  %v1957 = vmul.f32 %v1872, 0.088388346
  %v1958 = vmul.f32 %v1877, 0.088388346
  %v1959 = vmul.f32 %v1880, 0.088388346
  %v1960 = vmul.f32 %v1918, 0.088388346
  %v1961 = vmul.f32 %v1921, 0.088388346
  %v1962 = vmul.f32 %v1926, 0.088388346
  %v1963 = vmul.f32 %v1929, 0.088388346
  %v1964 = vld [vmem:[%s2] sm:$0x1]
  %v1965 = vld [vmem:[%s2 + $0x1] sm:$0x1]
  %v1966 = vld [vmem:[%s2 + $0x2] sm:$0x1]
  %v1967 = vld [vmem:[%s2 + $0x3] sm:$0x1]
  %v1968 = vld [vmem:[%s2 + $0x4] sm:$0x1]
  %v1969 = vld [vmem:[%s2 + $0x5] sm:$0x1]
  %v1970 = vld [vmem:[%s2 + $0x6] sm:$0x1]
  %v1971 = vld [vmem:[%s2 + $0x7] sm:$0x1]
  %v1972 = vlaneseq
  %v1973 = vshrl.u32 %v1972, 7
  %v1974 = vadd.s32 %v1973, 8
  %v1975 = vadd.s32 %v1973, 16
  %v1976 = vadd.s32 %v1973, 24
  %vm1977 = vcmp.le.s32.totalorder %v93, %v1973
  %vm1978 = vcmp.le.s32.totalorder %v93, %v1974
  %vm1979 = vcmp.le.s32.totalorder %v93, %v1975
  %vm1980 = vcmp.le.s32.totalorder %v93, %v1976
  %v1981 = vlaneseq
  %v1982 = vshrl.u32 %v1981, 7
  %v1983 = vsub.s32 0, %v1982
  %v1984 = vrot.slane %v1964, %v1983
  %v1985 = vlaneseq
  %v1986 = vshrl.u32 %v1985, 7
  %v1987 = vsub.s32 0, %v1986
  %v1988 = vrot.slane %v1965, %v1987
  %v1989 = vlaneseq
  %v1990 = vshrl.u32 %v1989, 7
  %v1991 = vsub.s32 0, %v1990
  %v1992 = vrot.slane %v1966, %v1991
  %v1993 = vlaneseq
  %v1994 = vshrl.u32 %v1993, 7
  %v1995 = vsub.s32 0, %v1994
  %v1996 = vrot.slane %v1967, %v1995
  %v1997 = vlaneseq
  %v1998 = vshrl.u32 %v1997, 7
  %v1999 = vsub.s32 0, %v1998
  %v2000 = vrot.slane %v1968, %v1999
  %v2001 = vlaneseq
  %v2002 = vshrl.u32 %v2001, 7
  %v2003 = vsub.s32 0, %v2002
  %v2004 = vrot.slane %v1969, %v2003
  %v2005 = vlaneseq
  %v2006 = vshrl.u32 %v2005, 7
  %v2007 = vsub.s32 0, %v2006
  %v2008 = vrot.slane %v1970, %v2007
  %v2009 = vlaneseq
  %v2010 = vshrl.u32 %v2009, 7
  %v2011 = vsub.s32 0, %v2010
  %v2012 = vrot.slane %v1971, %v2011
  %2013 = vset.pattern.permute.xlu0 0
  %2014 = vperm.xlu0 %2013, %v1984
  %v2015 = vpop.permute.xlu0 %2014
  %2016 = vset.pattern.permute.xlu0 0
  %2017 = vperm.xlu0 %2016, %v1988
  %v2018 = vpop.permute.xlu0 %2017
  %2019 = vset.pattern.permute.xlu0 0
  %2020 = vperm.xlu0 %2019, %v1992
  %v2021 = vpop.permute.xlu0 %2020
  %2022 = vset.pattern.permute.xlu0 0
  %2023 = vperm.xlu0 %2022, %v1996
  %v2024 = vpop.permute.xlu0 %2023
  %2025 = vset.pattern.permute.xlu0 0
  %2026 = vperm.xlu0 %2025, %v2000
  %v2027 = vpop.permute.xlu0 %2026
  %2028 = vset.pattern.permute.xlu0 0
  %2029 = vperm.xlu0 %2028, %v2004
  %v2030 = vpop.permute.xlu0 %2029
  %2031 = vset.pattern.permute.xlu0 0
  %2032 = vperm.xlu0 %2031, %v2008
  %v2033 = vpop.permute.xlu0 %2032
  %2034 = vset.pattern.permute.xlu0 0
  %2035 = vperm.xlu0 %2034, %v2012
  %v2036 = vpop.permute.xlu0 %2035
  %vm2037 = vcmp.lt.s32.totalorder %v93, %v2015
  %vm2038 = vcmp.lt.s32.totalorder %v93, %v2018
  %vm2039 = vcmp.lt.s32.totalorder %v93, %v2021
  %vm2040 = vcmp.lt.s32.totalorder %v93, %v2024
  %vm2041 = vcmp.lt.s32.totalorder %v93, %v2027
  %vm2042 = vcmp.lt.s32.totalorder %v93, %v2030
  %vm2043 = vcmp.lt.s32.totalorder %v93, %v2033
  %vm2044 = vcmp.lt.s32.totalorder %v93, %v2036
  %vm2045 = vmand %vm1977, %vm2037
  %vm2046 = vmand %vm1978, %vm2037
  %vm2047 = vmand %vm1979, %vm2037
  %vm2048 = vmand %vm1980, %vm2037
  %vm2049 = vmand %vm1977, %vm2038
  %vm2050 = vmand %vm1978, %vm2038
  %vm2051 = vmand %vm1979, %vm2038
  %vm2052 = vmand %vm1980, %vm2038
  %vm2053 = vmand %vm1977, %vm2039
  %vm2054 = vmand %vm1978, %vm2039
  %vm2055 = vmand %vm1979, %vm2039
  %vm2056 = vmand %vm1980, %vm2039
  %vm2057 = vmand %vm1977, %vm2040
  %vm2058 = vmand %vm1978, %vm2040
  %vm2059 = vmand %vm1979, %vm2040
  %vm2060 = vmand %vm1980, %vm2040
  %vm2061 = vmand %vm1977, %vm2041
  %vm2062 = vmand %vm1978, %vm2041
  %vm2063 = vmand %vm1979, %vm2041
  %vm2064 = vmand %vm1980, %vm2041
  %vm2065 = vmand %vm1977, %vm2042
  %vm2066 = vmand %vm1978, %vm2042
  %vm2067 = vmand %vm1979, %vm2042
  %vm2068 = vmand %vm1980, %vm2042
  %vm2069 = vmand %vm1977, %vm2043
  %vm2070 = vmand %vm1978, %vm2043
  %vm2071 = vmand %vm1979, %vm2043
  %vm2072 = vmand %vm1980, %vm2043
  %vm2073 = vmand %vm1977, %vm2044
  %vm2074 = vmand %vm1978, %vm2044
  %vm2075 = vmand %vm1979, %vm2044
  %vm2076 = vmand %vm1980, %vm2044
  %v2077 = vsel %vm2045, %v1932, -1e+30
  %v2078 = vsel %vm2046, %v1933, -1e+30
  %v2079 = vsel %vm2047, %v1934, -1e+30
  %v2080 = vsel %vm2048, %v1935, -1e+30
  %v2081 = vsel %vm2049, %v1936, -1e+30
  %v2082 = vsel %vm2050, %v1937, -1e+30
  %v2083 = vsel %vm2051, %v1938, -1e+30
  %v2084 = vsel %vm2052, %v1939, -1e+30
  %v2085 = vsel %vm2053, %v1940, -1e+30
  %v2086 = vsel %vm2054, %v1941, -1e+30
  %v2087 = vsel %vm2055, %v1942, -1e+30
  %v2088 = vsel %vm2056, %v1943, -1e+30
  %v2089 = vsel %vm2057, %v1944, -1e+30
  %v2090 = vsel %vm2058, %v1945, -1e+30
  %v2091 = vsel %vm2059, %v1946, -1e+30
  %v2092 = vsel %vm2060, %v1947, -1e+30
  %v2093 = vsel %vm2061, %v1948, -1e+30
  %v2094 = vsel %vm2062, %v1949, -1e+30
  %v2095 = vsel %vm2063, %v1950, -1e+30
  %v2096 = vsel %vm2064, %v1951, -1e+30
  %v2097 = vsel %vm2065, %v1952, -1e+30
  %v2098 = vsel %vm2066, %v1953, -1e+30
  %v2099 = vsel %vm2067, %v1954, -1e+30
  %v2100 = vsel %vm2068, %v1955, -1e+30
  %v2101 = vsel %vm2069, %v1956, -1e+30
  %v2102 = vsel %vm2070, %v1957, -1e+30
  %v2103 = vsel %vm2071, %v1958, -1e+30
  %v2104 = vsel %vm2072, %v1959, -1e+30
  %v2105 = vsel %vm2073, %v1960, -1e+30
  %v2106 = vsel %vm2074, %v1961, -1e+30
  %v2107 = vsel %vm2075, %v1962, -1e+30
  %v2108 = vsel %vm2076, %v1963, -1e+30
  %vm2109 = vcmask 261120
  %v2110 = vsel %vm2109, %v2077, -inf
  %2111 = vmax.xlane.f32.xlu0 %v2110
  %v2112 = vpop.xlane.xlu0 %2111
  %v2113 = vsel %vm2109, %v2078, -inf
  %2114 = vmax.xlane.f32.xlu0 %v2113
  %v2115 = vpop.xlane.xlu0 %2114
  %v2116 = vsel %vm2109, %v2079, -inf
  %2117 = vmax.xlane.f32.xlu0 %v2116
  %v2118 = vpop.xlane.xlu0 %2117
  %v2119 = vsel %vm2109, %v2080, -inf
  %2120 = vmax.xlane.f32.xlu0 %v2119
  %v2121 = vpop.xlane.xlu0 %2120
  %v2122 = vsel %vm2109, %v2081, -inf
  %2123 = vmax.xlane.f32.xlu0 %v2122
  %v2124 = vpop.xlane.xlu0 %2123
  %v2125 = vsel %vm2109, %v2082, -inf
  %2126 = vmax.xlane.f32.xlu0 %v2125
  %v2127 = vpop.xlane.xlu0 %2126
  %v2128 = vsel %vm2109, %v2083, -inf
  %2129 = vmax.xlane.f32.xlu0 %v2128
  %v2130 = vpop.xlane.xlu0 %2129
  %v2131 = vsel %vm2109, %v2084, -inf
  %2132 = vmax.xlane.f32.xlu0 %v2131
  %v2133 = vpop.xlane.xlu0 %2132
  %v2134 = vsel %vm2109, %v2085, -inf
  %2135 = vmax.xlane.f32.xlu0 %v2134
  %v2136 = vpop.xlane.xlu0 %2135
  %v2137 = vsel %vm2109, %v2086, -inf
  %2138 = vmax.xlane.f32.xlu0 %v2137
  %v2139 = vpop.xlane.xlu0 %2138
  %v2140 = vsel %vm2109, %v2087, -inf
  %2141 = vmax.xlane.f32.xlu0 %v2140
  %v2142 = vpop.xlane.xlu0 %2141
  %v2143 = vsel %vm2109, %v2088, -inf
  %2144 = vmax.xlane.f32.xlu0 %v2143
  %v2145 = vpop.xlane.xlu0 %2144
  %v2146 = vsel %vm2109, %v2089, -inf
  %2147 = vmax.xlane.f32.xlu0 %v2146
  %v2148 = vpop.xlane.xlu0 %2147
  %v2149 = vsel %vm2109, %v2090, -inf
  %2150 = vmax.xlane.f32.xlu0 %v2149
  %v2151 = vpop.xlane.xlu0 %2150
  %v2152 = vsel %vm2109, %v2091, -inf
  %2153 = vmax.xlane.f32.xlu0 %v2152
  %v2154 = vpop.xlane.xlu0 %2153
  %v2155 = vsel %vm2109, %v2092, -inf
  %2156 = vmax.xlane.f32.xlu0 %v2155
  %v2157 = vpop.xlane.xlu0 %2156
  %v2158 = vsel %vm2109, %v2093, -inf
  %2159 = vmax.xlane.f32.xlu0 %v2158
  %v2160 = vpop.xlane.xlu0 %2159
  %v2161 = vsel %vm2109, %v2094, -inf
  %2162 = vmax.xlane.f32.xlu0 %v2161
  %v2163 = vpop.xlane.xlu0 %2162
  %v2164 = vsel %vm2109, %v2095, -inf
  %2165 = vmax.xlane.f32.xlu0 %v2164
  %v2166 = vpop.xlane.xlu0 %2165
  %v2167 = vsel %vm2109, %v2096, -inf
  %2168 = vmax.xlane.f32.xlu0 %v2167
  %v2169 = vpop.xlane.xlu0 %2168
  %v2170 = vsel %vm2109, %v2097, -inf
  %2171 = vmax.xlane.f32.xlu0 %v2170
  %v2172 = vpop.xlane.xlu0 %2171
  %v2173 = vsel %vm2109, %v2098, -inf
  %2174 = vmax.xlane.f32.xlu0 %v2173
  %v2175 = vpop.xlane.xlu0 %2174
  %v2176 = vsel %vm2109, %v2099, -inf
  %2177 = vmax.xlane.f32.xlu0 %v2176
  %v2178 = vpop.xlane.xlu0 %2177
  %v2179 = vsel %vm2109, %v2100, -inf
  %2180 = vmax.xlane.f32.xlu0 %v2179
  %v2181 = vpop.xlane.xlu0 %2180
  %v2182 = vsel %vm2109, %v2101, -inf
  %2183 = vmax.xlane.f32.xlu0 %v2182
  %v2184 = vpop.xlane.xlu0 %2183
  %v2185 = vsel %vm2109, %v2102, -inf
  %2186 = vmax.xlane.f32.xlu0 %v2185
  %v2187 = vpop.xlane.xlu0 %2186
  %v2188 = vsel %vm2109, %v2103, -inf
  %2189 = vmax.xlane.f32.xlu0 %v2188
  %v2190 = vpop.xlane.xlu0 %2189
  %v2191 = vsel %vm2109, %v2104, -inf
  %2192 = vmax.xlane.f32.xlu0 %v2191
  %v2193 = vpop.xlane.xlu0 %2192
  %v2194 = vsel %vm2109, %v2105, -inf
  %2195 = vmax.xlane.f32.xlu0 %v2194
  %v2196 = vpop.xlane.xlu0 %2195
  %v2197 = vsel %vm2109, %v2106, -inf
  %2198 = vmax.xlane.f32.xlu0 %v2197
  %v2199 = vpop.xlane.xlu0 %2198
  %v2200 = vsel %vm2109, %v2107, -inf
  %2201 = vmax.xlane.f32.xlu0 %v2200
  %v2202 = vpop.xlane.xlu0 %2201
  %v2203 = vsel %vm2109, %v2108, -inf
  %2204 = vmax.xlane.f32.xlu0 %v2203
  %v2205 = vpop.xlane.xlu0 %2204
  %v2206 = vsub.f32 %v2077, %v2112
  %v2207 = vsub.f32 %v2078, %v2115
  %v2208 = vsub.f32 %v2079, %v2118
  %v2209 = vsub.f32 %v2080, %v2121
  %v2210 = vsub.f32 %v2081, %v2124
  %v2211 = vsub.f32 %v2082, %v2127
  %v2212 = vsub.f32 %v2083, %v2130
  %v2213 = vsub.f32 %v2084, %v2133
  %v2214 = vsub.f32 %v2085, %v2136
  %v2215 = vsub.f32 %v2086, %v2139
  %v2216 = vsub.f32 %v2087, %v2142
  %v2217 = vsub.f32 %v2088, %v2145
  %v2218 = vsub.f32 %v2089, %v2148
  %v2219 = vsub.f32 %v2090, %v2151
  %v2220 = vsub.f32 %v2091, %v2154
  %v2221 = vsub.f32 %v2092, %v2157
  %v2222 = vsub.f32 %v2093, %v2160
  %v2223 = vsub.f32 %v2094, %v2163
  %v2224 = vsub.f32 %v2095, %v2166
  %v2225 = vsub.f32 %v2096, %v2169
  %v2226 = vsub.f32 %v2097, %v2172
  %v2227 = vsub.f32 %v2098, %v2175
  %v2228 = vsub.f32 %v2099, %v2178
  %v2229 = vsub.f32 %v2100, %v2181
  %v2230 = vsub.f32 %v2101, %v2184
  %v2231 = vsub.f32 %v2102, %v2187
  %v2232 = vsub.f32 %v2103, %v2190
  %v2233 = vsub.f32 %v2104, %v2193
  %v2234 = vsub.f32 %v2105, %v2196
  %v2235 = vsub.f32 %v2106, %v2199
  %v2236 = vsub.f32 %v2107, %v2202
  %v2237 = vsub.f32 %v2108, %v2205
  %v2238 = vmul.f32 %v2206, 1.442695
  %v2239 = vpow.pop %v2238
  %v2240 = vmul.f32 %v2207, 1.442695
  %v2241 = vpow.pop %v2240
  %v2242 = vmul.f32 %v2208, 1.442695
  %v2243 = vpow.pop %v2242
  %v2244 = vmul.f32 %v2209, 1.442695
  %v2245 = vpow.pop %v2244
  %v2246 = vmul.f32 %v2210, 1.442695
  %v2247 = vpow.pop %v2246
  %v2248 = vmul.f32 %v2211, 1.442695
  %v2249 = vpow.pop %v2248
  %v2250 = vmul.f32 %v2212, 1.442695
  %v2251 = vpow.pop %v2250
  %v2252 = vmul.f32 %v2213, 1.442695
  %v2253 = vpow.pop %v2252
  %v2254 = vmul.f32 %v2214, 1.442695
  %v2255 = vpow.pop %v2254
  %v2256 = vmul.f32 %v2215, 1.442695
  %v2257 = vpow.pop %v2256
  %v2258 = vmul.f32 %v2216, 1.442695
  %v2259 = vpow.pop %v2258
  %v2260 = vmul.f32 %v2217, 1.442695
  %v2261 = vpow.pop %v2260
  %v2262 = vmul.f32 %v2218, 1.442695
  %v2263 = vpow.pop %v2262
  %v2264 = vmul.f32 %v2219, 1.442695
  %v2265 = vpow.pop %v2264
  %v2266 = vmul.f32 %v2220, 1.442695
  %v2267 = vpow.pop %v2266
  %v2268 = vmul.f32 %v2221, 1.442695
  %v2269 = vpow.pop %v2268
  %v2270 = vmul.f32 %v2222, 1.442695
  %v2271 = vpow.pop %v2270
  %v2272 = vmul.f32 %v2223, 1.442695
  %v2273 = vpow.pop %v2272
  %v2274 = vmul.f32 %v2224, 1.442695
  %v2275 = vpow.pop %v2274
  %v2276 = vmul.f32 %v2225, 1.442695
  %v2277 = vpow.pop %v2276
  %v2278 = vmul.f32 %v2226, 1.442695
  %v2279 = vpow.pop %v2278
  %v2280 = vmul.f32 %v2227, 1.442695
  %v2281 = vpow.pop %v2280
  %v2282 = vmul.f32 %v2228, 1.442695
  %v2283 = vpow.pop %v2282
  %v2284 = vmul.f32 %v2229, 1.442695
  %v2285 = vpow.pop %v2284
  %v2286 = vmul.f32 %v2230, 1.442695
  %v2287 = vpow.pop %v2286
  %v2288 = vmul.f32 %v2231, 1.442695
  %v2289 = vpow.pop %v2288
  %v2290 = vmul.f32 %v2232, 1.442695
  %v2291 = vpow.pop %v2290
  %v2292 = vmul.f32 %v2233, 1.442695
  %v2293 = vpow.pop %v2292
  %v2294 = vmul.f32 %v2234, 1.442695
  %v2295 = vpow.pop %v2294
  %v2296 = vmul.f32 %v2235, 1.442695
  %v2297 = vpow.pop %v2296
  %v2298 = vmul.f32 %v2236, 1.442695
  %v2299 = vpow.pop %v2298
  %v2300 = vmul.f32 %v2237, 1.442695
  %v2301 = vpow.pop %v2300
  %v2302 = vsel %vm2109, %v2239, 0.0
  %2303 = vadd.xlane.f32.xlu0 %v2302
  %v2304 = vpop.xlane.xlu0 %2303
  %v2305 = vsel %vm2109, %v2241, 0.0
  %2306 = vadd.xlane.f32.xlu0 %v2305
  %v2307 = vpop.xlane.xlu0 %2306
  %v2308 = vsel %vm2109, %v2243, 0.0
  %2309 = vadd.xlane.f32.xlu0 %v2308
  %v2310 = vpop.xlane.xlu0 %2309
  %v2311 = vsel %vm2109, %v2245, 0.0
  %2312 = vadd.xlane.f32.xlu0 %v2311
  %v2313 = vpop.xlane.xlu0 %2312
  %v2314 = vsel %vm2109, %v2247, 0.0
  %2315 = vadd.xlane.f32.xlu0 %v2314
  %v2316 = vpop.xlane.xlu0 %2315
  %v2317 = vsel %vm2109, %v2249, 0.0
  %2318 = vadd.xlane.f32.xlu0 %v2317
  %v2319 = vpop.xlane.xlu0 %2318
  %v2320 = vsel %vm2109, %v2251, 0.0
  %2321 = vadd.xlane.f32.xlu0 %v2320
  %v2322 = vpop.xlane.xlu0 %2321
  %v2323 = vsel %vm2109, %v2253, 0.0
  %2324 = vadd.xlane.f32.xlu0 %v2323
  %v2325 = vpop.xlane.xlu0 %2324
  %v2326 = vsel %vm2109, %v2255, 0.0
  %2327 = vadd.xlane.f32.xlu0 %v2326
  %v2328 = vpop.xlane.xlu0 %2327
  %v2329 = vsel %vm2109, %v2257, 0.0
  %2330 = vadd.xlane.f32.xlu0 %v2329
  %v2331 = vpop.xlane.xlu0 %2330
  %v2332 = vsel %vm2109, %v2259, 0.0
  %2333 = vadd.xlane.f32.xlu0 %v2332
  %v2334 = vpop.xlane.xlu0 %2333
  %v2335 = vsel %vm2109, %v2261, 0.0
  %2336 = vadd.xlane.f32.xlu0 %v2335
  %v2337 = vpop.xlane.xlu0 %2336
  %v2338 = vsel %vm2109, %v2263, 0.0
  %2339 = vadd.xlane.f32.xlu0 %v2338
  %v2340 = vpop.xlane.xlu0 %2339
  %v2341 = vsel %vm2109, %v2265, 0.0
  %2342 = vadd.xlane.f32.xlu0 %v2341
  %v2343 = vpop.xlane.xlu0 %2342
  %v2344 = vsel %vm2109, %v2267, 0.0
  %2345 = vadd.xlane.f32.xlu0 %v2344
  %v2346 = vpop.xlane.xlu0 %2345
  %v2347 = vsel %vm2109, %v2269, 0.0
  %2348 = vadd.xlane.f32.xlu0 %v2347
  %v2349 = vpop.xlane.xlu0 %2348
  %v2350 = vsel %vm2109, %v2271, 0.0
  %2351 = vadd.xlane.f32.xlu0 %v2350
  %v2352 = vpop.xlane.xlu0 %2351
  %v2353 = vsel %vm2109, %v2273, 0.0
  %2354 = vadd.xlane.f32.xlu0 %v2353
  %v2355 = vpop.xlane.xlu0 %2354
  %v2356 = vsel %vm2109, %v2275, 0.0
  %2357 = vadd.xlane.f32.xlu0 %v2356
  %v2358 = vpop.xlane.xlu0 %2357
  %v2359 = vsel %vm2109, %v2277, 0.0
  %2360 = vadd.xlane.f32.xlu0 %v2359
  %v2361 = vpop.xlane.xlu0 %2360
  %v2362 = vsel %vm2109, %v2279, 0.0
  %2363 = vadd.xlane.f32.xlu0 %v2362
  %v2364 = vpop.xlane.xlu0 %2363
  %v2365 = vsel %vm2109, %v2281, 0.0
  %2366 = vadd.xlane.f32.xlu0 %v2365
  %v2367 = vpop.xlane.xlu0 %2366
  %v2368 = vsel %vm2109, %v2283, 0.0
  %2369 = vadd.xlane.f32.xlu0 %v2368
  %v2370 = vpop.xlane.xlu0 %2369
  %v2371 = vsel %vm2109, %v2285, 0.0
  %2372 = vadd.xlane.f32.xlu0 %v2371
  %v2373 = vpop.xlane.xlu0 %2372
  %v2374 = vsel %vm2109, %v2287, 0.0
  %2375 = vadd.xlane.f32.xlu0 %v2374
  %v2376 = vpop.xlane.xlu0 %2375
  %v2377 = vsel %vm2109, %v2289, 0.0
  %2378 = vadd.xlane.f32.xlu0 %v2377
  %v2379 = vpop.xlane.xlu0 %2378
  %v2380 = vsel %vm2109, %v2291, 0.0
  %2381 = vadd.xlane.f32.xlu0 %v2380
  %v2382 = vpop.xlane.xlu0 %2381
  %v2383 = vsel %vm2109, %v2293, 0.0
  %2384 = vadd.xlane.f32.xlu0 %v2383
  %v2385 = vpop.xlane.xlu0 %2384
  %v2386 = vsel %vm2109, %v2295, 0.0
  %2387 = vadd.xlane.f32.xlu0 %v2386
  %v2388 = vpop.xlane.xlu0 %2387
  %v2389 = vsel %vm2109, %v2297, 0.0
  %2390 = vadd.xlane.f32.xlu0 %v2389
  %v2391 = vpop.xlane.xlu0 %2390
  %v2392 = vsel %vm2109, %v2299, 0.0
  %2393 = vadd.xlane.f32.xlu0 %v2392
  %v2394 = vpop.xlane.xlu0 %2393
  %v2395 = vsel %vm2109, %v2301, 0.0
  %2396 = vadd.xlane.f32.xlu0 %v2395
  %v2397 = vpop.xlane.xlu0 %2396
  %v2398 = vpack.c.bf16 %v2241, %v2239
  %v2399 = vpack.c.bf16 %v2245, %v2243
  %v2400 = vpack.c.bf16 %v2249, %v2247
  %v2401 = vpack.c.bf16 %v2253, %v2251
  %v2402 = vpack.c.bf16 %v2257, %v2255
  %v2403 = vpack.c.bf16 %v2261, %v2259
  %v2404 = vpack.c.bf16 %v2265, %v2263
  %v2405 = vpack.c.bf16 %v2269, %v2267
  %v2406 = vpack.c.bf16 %v2273, %v2271
  %v2407 = vpack.c.bf16 %v2277, %v2275
  %v2408 = vpack.c.bf16 %v2281, %v2279
  %v2409 = vpack.c.bf16 %v2285, %v2283
  %v2410 = vpack.c.bf16 %v2289, %v2287
  %v2411 = vpack.c.bf16 %v2293, %v2291
  %v2412 = vpack.c.bf16 %v2297, %v2295
  %v2413 = vpack.c.bf16 %v2301, %v2299
  %v2415 = vsel %vm2109, %v2398, 0
  %v2418 = vsel %vm2109, %v2399, 0
  %2420 = vmatprep.subr.bf16.mxu0 0
  %2421 = vmatpush1.bf16.msra.mxu0 %v1524
  %2422 = vmatprep.subr.bf16.mxu0 0
  %2423 = vmatpush1.bf16.msra.mxu0 %v1525
  %2424 = vmatprep.subr.bf16.mxu0 0
  %2425 = vmatpush1.bf16.msra.mxu0 0
  %2426 = vmatprep.subr.bf16.mxu0 0
  %2427 = vmatpush1.bf16.msra.mxu0 0
  %2428 = vmatprep.subr.bf16.mxu0 0
  %2429 = vmatpush1.bf16.msra.mxu0 0
  %2430 = vmatprep.subr.bf16.mxu0 0
  %2431 = vmatpush1.bf16.msra.mxu0 0
  %2432 = vmatprep.subr.bf16.mxu0 0
  %2433 = vmatpush1.bf16.msra.mxu0 0
  %2434 = vmatprep.subr.bf16.mxu0 0
  %2435 = vmatpush1.bf16.msra.mxu0 0
  %2436 = vmatprep.subr.bf16.mxu0 0
  %2437 = vmatpush1.bf16.msra.mxu0 0
  %2438 = vmatprep.subr.bf16.mxu0 0
  %2439 = vmatpush1.bf16.msra.mxu0 0
  %2440 = vmatprep.subr.bf16.mxu0 0
  %2441 = vmatpush1.bf16.msra.mxu0 0
  %2442 = vmatprep.subr.bf16.mxu0 0
  %2443 = vmatpush1.bf16.msra.mxu0 0
  %2444 = vmatprep.subr.bf16.mxu0 0
  %2445 = vmatpush1.bf16.msra.mxu0 0
  %2446 = vmatprep.subr.bf16.mxu0 0
  %2447 = vmatpush1.bf16.msra.mxu0 0
  %2448 = vmatprep.subr.bf16.mxu0 0
  %2449 = vmatpush1.bf16.msra.mxu0 0
  %2450 = vmatprep.subr.bf16.mxu0 0
  %2451 = vmatpush1.bf16.msra.mxu0 0
  %2452 = vmatprep.mubr.bf16.mxu0 0
  %2453 = vmatmul.mubr.bf16.gmra.mrb[0].mxu0 %v2415
  %v2454 = vpop.f32.mrb[0].mxu0
  %v2455 = vadd.f32 0.0, %v2454
  %v2456 = vpop.f32.mrb[0].mxu0
  %v2457 = vpop.f32.mrb[0].mxu0
  %v2458 = vadd.f32 0.0, %v2457
  %v2459 = vpop.f32.mrb[0].mxu0
  %2460 = vmatprep.mubr.bf16.mxu0 0
  %2461 = vmatmul.mubr.bf16.gmra.mrb[0].mxu0 %v2418
  %v2462 = vpop.f32.mrb[0].mxu0
  %v2463 = vadd.f32 0.0, %v2462
  %v2464 = vpop.f32.mrb[0].mxu0
  %v2465 = vpop.f32.mrb[0].mxu0
  %v2466 = vadd.f32 0.0, %v2465
  %v2467 = vpop.f32.mrb[0].mxu0
  %2468 = vdwg.mxu0
  %v2470 = vsel %vm2109, %v2400, 0
  %v2473 = vsel %vm2109, %v2401, 0
  %2475 = vmatprep.subr.bf16.mxu0 0
  %2476 = vmatpush1.bf16.msra.mxu0 %v1526
  %2477 = vmatprep.subr.bf16.mxu0 0
  %2478 = vmatpush1.bf16.msra.mxu0 %v1527
  %2479 = vmatprep.subr.bf16.mxu0 0
  %2480 = vmatpush1.bf16.msra.mxu0 0
  %2481 = vmatprep.subr.bf16.mxu0 0
  %2482 = vmatpush1.bf16.msra.mxu0 0
  %2483 = vmatprep.subr.bf16.mxu0 0
  %2484 = vmatpush1.bf16.msra.mxu0 0
  %2485 = vmatprep.subr.bf16.mxu0 0
  %2486 = vmatpush1.bf16.msra.mxu0 0
  %2487 = vmatprep.subr.bf16.mxu0 0
  %2488 = vmatpush1.bf16.msra.mxu0 0
  %2489 = vmatprep.subr.bf16.mxu0 0
  %2490 = vmatpush1.bf16.msra.mxu0 0
  %2491 = vmatprep.subr.bf16.mxu0 0
  %2492 = vmatpush1.bf16.msra.mxu0 0
  %2493 = vmatprep.subr.bf16.mxu0 0
  %2494 = vmatpush1.bf16.msra.mxu0 0
  %2495 = vmatprep.subr.bf16.mxu0 0
  %2496 = vmatpush1.bf16.msra.mxu0 0
  %2497 = vmatprep.subr.bf16.mxu0 0
  %2498 = vmatpush1.bf16.msra.mxu0 0
  %2499 = vmatprep.subr.bf16.mxu0 0
  %2500 = vmatpush1.bf16.msra.mxu0 0
  %2501 = vmatprep.subr.bf16.mxu0 0
  %2502 = vmatpush1.bf16.msra.mxu0 0
  %2503 = vmatprep.subr.bf16.mxu0 0
  %2504 = vmatpush1.bf16.msra.mxu0 0
  %2505 = vmatprep.subr.bf16.mxu0 0
  %2506 = vmatpush1.bf16.msra.mxu0 0
  %2507 = vmatprep.mubr.bf16.mxu0 0
  %2508 = vmatmul.mubr.bf16.gmra.mrb[0].mxu0 %v2470
  %v2509 = vpop.f32.mrb[0].mxu0
  %v2510 = vadd.f32 0.0, %v2509
  %v2511 = vpop.f32.mrb[0].mxu0
  %v2512 = vpop.f32.mrb[0].mxu0
  %v2513 = vadd.f32 0.0, %v2512
  %v2514 = vpop.f32.mrb[0].mxu0
  %2515 = vmatprep.mubr.bf16.mxu0 0
  %2516 = vmatmul.mubr.bf16.gmra.mrb[0].mxu0 %v2473
  %v2517 = vpop.f32.mrb[0].mxu0
  %v2518 = vadd.f32 0.0, %v2517
  %v2519 = vpop.f32.mrb[0].mxu0
  %v2520 = vpop.f32.mrb[0].mxu0
  %v2521 = vadd.f32 0.0, %v2520
  %v2522 = vpop.f32.mrb[0].mxu0
  %2523 = vdwg.mxu0
  %v2525 = vsel %vm2109, %v2402, 0
  %v2528 = vsel %vm2109, %v2403, 0
  %2530 = vmatprep.subr.bf16.mxu0 0
  %2531 = vmatpush1.bf16.msra.mxu0 %v1528
  %2532 = vmatprep.subr.bf16.mxu0 0
  %2533 = vmatpush1.bf16.msra.mxu0 %v1529
  %2534 = vmatprep.subr.bf16.mxu0 0
  %2535 = vmatpush1.bf16.msra.mxu0 0
  %2536 = vmatprep.subr.bf16.mxu0 0
  %2537 = vmatpush1.bf16.msra.mxu0 0
  %2538 = vmatprep.subr.bf16.mxu0 0
  %2539 = vmatpush1.bf16.msra.mxu0 0
  %2540 = vmatprep.subr.bf16.mxu0 0
  %2541 = vmatpush1.bf16.msra.mxu0 0
  %2542 = vmatprep.subr.bf16.mxu0 0
  %2543 = vmatpush1.bf16.msra.mxu0 0
  %2544 = vmatprep.subr.bf16.mxu0 0
  %2545 = vmatpush1.bf16.msra.mxu0 0
  %2546 = vmatprep.subr.bf16.mxu0 0
  %2547 = vmatpush1.bf16.msra.mxu0 0
  %2548 = vmatprep.subr.bf16.mxu0 0
  %2549 = vmatpush1.bf16.msra.mxu0 0
  %2550 = vmatprep.subr.bf16.mxu0 0
  %2551 = vmatpush1.bf16.msra.mxu0 0
  %2552 = vmatprep.subr.bf16.mxu0 0
  %2553 = vmatpush1.bf16.msra.mxu0 0
  %2554 = vmatprep.subr.bf16.mxu0 0
  %2555 = vmatpush1.bf16.msra.mxu0 0
  %2556 = vmatprep.subr.bf16.mxu0 0
  %2557 = vmatpush1.bf16.msra.mxu0 0
  %2558 = vmatprep.subr.bf16.mxu0 0
  %2559 = vmatpush1.bf16.msra.mxu0 0
  %2560 = vmatprep.subr.bf16.mxu0 0
  %2561 = vmatpush1.bf16.msra.mxu0 0
  %2562 = vmatprep.mubr.bf16.mxu0 0
  %2563 = vmatmul.mubr.bf16.gmra.mrb[0].mxu0 %v2525
  %v2564 = vpop.f32.mrb[0].mxu0
  %v2565 = vadd.f32 0.0, %v2564
  %v2566 = vpop.f32.mrb[0].mxu0
  %v2567 = vpop.f32.mrb[0].mxu0
  %v2568 = vadd.f32 0.0, %v2567
  %v2569 = vpop.f32.mrb[0].mxu0
  %2570 = vmatprep.mubr.bf16.mxu0 0
  %2571 = vmatmul.mubr.bf16.gmra.mrb[0].mxu0 %v2528
  %v2572 = vpop.f32.mrb[0].mxu0
  %v2573 = vadd.f32 0.0, %v2572
  %v2574 = vpop.f32.mrb[0].mxu0
  %v2575 = vpop.f32.mrb[0].mxu0
  %v2576 = vadd.f32 0.0, %v2575
  %v2577 = vpop.f32.mrb[0].mxu0
  %2578 = vdwg.mxu0
  %v2580 = vsel %vm2109, %v2404, 0
  %v2583 = vsel %vm2109, %v2405, 0
  %2585 = vmatprep.subr.bf16.mxu0 0
  %2586 = vmatpush1.bf16.msra.mxu0 %v1530
  %2587 = vmatprep.subr.bf16.mxu0 0
  %2588 = vmatpush1.bf16.msra.mxu0 %v1531
  %2589 = vmatprep.subr.bf16.mxu0 0
  %2590 = vmatpush1.bf16.msra.mxu0 0
  %2591 = vmatprep.subr.bf16.mxu0 0
  %2592 = vmatpush1.bf16.msra.mxu0 0
  %2593 = vmatprep.subr.bf16.mxu0 0
  %2594 = vmatpush1.bf16.msra.mxu0 0
  %2595 = vmatprep.subr.bf16.mxu0 0
  %2596 = vmatpush1.bf16.msra.mxu0 0
  %2597 = vmatprep.subr.bf16.mxu0 0
  %2598 = vmatpush1.bf16.msra.mxu0 0
  %2599 = vmatprep.subr.bf16.mxu0 0
  %2600 = vmatpush1.bf16.msra.mxu0 0
  %2601 = vmatprep.subr.bf16.mxu0 0
  %2602 = vmatpush1.bf16.msra.mxu0 0
  %2603 = vmatprep.subr.bf16.mxu0 0
  %2604 = vmatpush1.bf16.msra.mxu0 0
  %2605 = vmatprep.subr.bf16.mxu0 0
  %2606 = vmatpush1.bf16.msra.mxu0 0
  %2607 = vmatprep.subr.bf16.mxu0 0
  %2608 = vmatpush1.bf16.msra.mxu0 0
  %2609 = vmatprep.subr.bf16.mxu0 0
  %2610 = vmatpush1.bf16.msra.mxu0 0
  %2611 = vmatprep.subr.bf16.mxu0 0
  %2612 = vmatpush1.bf16.msra.mxu0 0
  %2613 = vmatprep.subr.bf16.mxu0 0
  %2614 = vmatpush1.bf16.msra.mxu0 0
  %2615 = vmatprep.subr.bf16.mxu0 0
  %2616 = vmatpush1.bf16.msra.mxu0 0
  %2617 = vmatprep.mubr.bf16.mxu0 0
  %2618 = vmatmul.mubr.bf16.gmra.mrb[0].mxu0 %v2580
  %v2619 = vpop.f32.mrb[0].mxu0
  %v2620 = vadd.f32 0.0, %v2619
  %v2621 = vpop.f32.mrb[0].mxu0
  %v2622 = vpop.f32.mrb[0].mxu0
  %v2623 = vadd.f32 0.0, %v2622
  %v2624 = vpop.f32.mrb[0].mxu0
  %2625 = vmatprep.mubr.bf16.mxu0 0
  %2626 = vmatmul.mubr.bf16.gmra.mrb[0].mxu0 %v2583
  %v2627 = vpop.f32.mrb[0].mxu0
  %v2628 = vadd.f32 0.0, %v2627
  %v2629 = vpop.f32.mrb[0].mxu0
  %v2630 = vpop.f32.mrb[0].mxu0
  %v2631 = vadd.f32 0.0, %v2630
  %v2632 = vpop.f32.mrb[0].mxu0
  %2633 = vdwg.mxu0
  %v2635 = vsel %vm2109, %v2406, 0
  %v2638 = vsel %vm2109, %v2407, 0
  %2640 = vmatprep.subr.bf16.mxu0 0
  %2641 = vmatpush1.bf16.msra.mxu0 %v1532
  %2642 = vmatprep.subr.bf16.mxu0 0
  %2643 = vmatpush1.bf16.msra.mxu0 %v1533
  %2644 = vmatprep.subr.bf16.mxu0 0
  %2645 = vmatpush1.bf16.msra.mxu0 0
  %2646 = vmatprep.subr.bf16.mxu0 0
  %2647 = vmatpush1.bf16.msra.mxu0 0
  %2648 = vmatprep.subr.bf16.mxu0 0
  %2649 = vmatpush1.bf16.msra.mxu0 0
  %2650 = vmatprep.subr.bf16.mxu0 0
  %2651 = vmatpush1.bf16.msra.mxu0 0
  %2652 = vmatprep.subr.bf16.mxu0 0
  %2653 = vmatpush1.bf16.msra.mxu0 0
  %2654 = vmatprep.subr.bf16.mxu0 0
  %2655 = vmatpush1.bf16.msra.mxu0 0
  %2656 = vmatprep.subr.bf16.mxu0 0
  %2657 = vmatpush1.bf16.msra.mxu0 0
  %2658 = vmatprep.subr.bf16.mxu0 0
  %2659 = vmatpush1.bf16.msra.mxu0 0
  %2660 = vmatprep.subr.bf16.mxu0 0
  %2661 = vmatpush1.bf16.msra.mxu0 0
  %2662 = vmatprep.subr.bf16.mxu0 0
  %2663 = vmatpush1.bf16.msra.mxu0 0
  %2664 = vmatprep.subr.bf16.mxu0 0
  %2665 = vmatpush1.bf16.msra.mxu0 0
  %2666 = vmatprep.subr.bf16.mxu0 0
  %2667 = vmatpush1.bf16.msra.mxu0 0
  %2668 = vmatprep.subr.bf16.mxu0 0
  %2669 = vmatpush1.bf16.msra.mxu0 0
  %2670 = vmatprep.subr.bf16.mxu0 0
  %2671 = vmatpush1.bf16.msra.mxu0 0
  %2672 = vmatprep.mubr.bf16.mxu0 0
  %2673 = vmatmul.mubr.bf16.gmra.mrb[0].mxu0 %v2635
  %v2674 = vpop.f32.mrb[0].mxu0
  %v2675 = vadd.f32 0.0, %v2674
  %v2676 = vpop.f32.mrb[0].mxu0
  %v2677 = vpop.f32.mrb[0].mxu0
  %v2678 = vadd.f32 0.0, %v2677
  %v2679 = vpop.f32.mrb[0].mxu0
  %2680 = vmatprep.mubr.bf16.mxu0 0
  %2681 = vmatmul.mubr.bf16.gmra.mrb[0].mxu0 %v2638
  %v2682 = vpop.f32.mrb[0].mxu0
  %v2683 = vadd.f32 0.0, %v2682
  %v2684 = vpop.f32.mrb[0].mxu0
  %v2685 = vpop.f32.mrb[0].mxu0
  %v2686 = vadd.f32 0.0, %v2685
  %v2687 = vpop.f32.mrb[0].mxu0
  %2688 = vdwg.mxu0
  %v2690 = vsel %vm2109, %v2408, 0
  %v2693 = vsel %vm2109, %v2409, 0
  %2695 = vmatprep.subr.bf16.mxu0 0
  %2696 = vmatpush1.bf16.msra.mxu0 %v1534
  %2697 = vmatprep.subr.bf16.mxu0 0
  %2698 = vmatpush1.bf16.msra.mxu0 %v1535
  %2699 = vmatprep.subr.bf16.mxu0 0
  %2700 = vmatpush1.bf16.msra.mxu0 0
  %2701 = vmatprep.subr.bf16.mxu0 0
  %2702 = vmatpush1.bf16.msra.mxu0 0
  %2703 = vmatprep.subr.bf16.mxu0 0
  %2704 = vmatpush1.bf16.msra.mxu0 0
  %2705 = vmatprep.subr.bf16.mxu0 0
  %2706 = vmatpush1.bf16.msra.mxu0 0
  %2707 = vmatprep.subr.bf16.mxu0 0
  %2708 = vmatpush1.bf16.msra.mxu0 0
  %2709 = vmatprep.subr.bf16.mxu0 0
  %2710 = vmatpush1.bf16.msra.mxu0 0
  %2711 = vmatprep.subr.bf16.mxu0 0
  %2712 = vmatpush1.bf16.msra.mxu0 0
  %2713 = vmatprep.subr.bf16.mxu0 0
  %2714 = vmatpush1.bf16.msra.mxu0 0
  %2715 = vmatprep.subr.bf16.mxu0 0
  %2716 = vmatpush1.bf16.msra.mxu0 0
  %2717 = vmatprep.subr.bf16.mxu0 0
  %2718 = vmatpush1.bf16.msra.mxu0 0
  %2719 = vmatprep.subr.bf16.mxu0 0
  %2720 = vmatpush1.bf16.msra.mxu0 0
  %2721 = vmatprep.subr.bf16.mxu0 0
  %2722 = vmatpush1.bf16.msra.mxu0 0
  %2723 = vmatprep.subr.bf16.mxu0 0
  %2724 = vmatpush1.bf16.msra.mxu0 0
  %2725 = vmatprep.subr.bf16.mxu0 0
  %2726 = vmatpush1.bf16.msra.mxu0 0
  %2727 = vmatprep.mubr.bf16.mxu0 0
  %2728 = vmatmul.mubr.bf16.gmra.mrb[0].mxu0 %v2690
  %v2729 = vpop.f32.mrb[0].mxu0
  %v2730 = vadd.f32 0.0, %v2729
  %v2731 = vpop.f32.mrb[0].mxu0
  %v2732 = vpop.f32.mrb[0].mxu0
  %v2733 = vadd.f32 0.0, %v2732
  %v2734 = vpop.f32.mrb[0].mxu0
  %2735 = vmatprep.mubr.bf16.mxu0 0
  %2736 = vmatmul.mubr.bf16.gmra.mrb[0].mxu0 %v2693
  %v2737 = vpop.f32.mrb[0].mxu0
  %v2738 = vadd.f32 0.0, %v2737
  %v2739 = vpop.f32.mrb[0].mxu0
  %v2740 = vpop.f32.mrb[0].mxu0
  %v2741 = vadd.f32 0.0, %v2740
  %v2742 = vpop.f32.mrb[0].mxu0
  %2743 = vdwg.mxu0
  %v2745 = vsel %vm2109, %v2410, 0
  %v2748 = vsel %vm2109, %v2411, 0
  %2750 = vmatprep.subr.bf16.mxu0 0
  %2751 = vmatpush1.bf16.msra.mxu0 %v1536
  %2752 = vmatprep.subr.bf16.mxu0 0
  %2753 = vmatpush1.bf16.msra.mxu0 %v1537
  %2754 = vmatprep.subr.bf16.mxu0 0
  %2755 = vmatpush1.bf16.msra.mxu0 0
  %2756 = vmatprep.subr.bf16.mxu0 0
  %2757 = vmatpush1.bf16.msra.mxu0 0
  %2758 = vmatprep.subr.bf16.mxu0 0
  %2759 = vmatpush1.bf16.msra.mxu0 0
  %2760 = vmatprep.subr.bf16.mxu0 0
  %2761 = vmatpush1.bf16.msra.mxu0 0
  %2762 = vmatprep.subr.bf16.mxu0 0
  %2763 = vmatpush1.bf16.msra.mxu0 0
  %2764 = vmatprep.subr.bf16.mxu0 0
  %2765 = vmatpush1.bf16.msra.mxu0 0
  %2766 = vmatprep.subr.bf16.mxu0 0
  %2767 = vmatpush1.bf16.msra.mxu0 0
  %2768 = vmatprep.subr.bf16.mxu0 0
  %2769 = vmatpush1.bf16.msra.mxu0 0
  %2770 = vmatprep.subr.bf16.mxu0 0
  %2771 = vmatpush1.bf16.msra.mxu0 0
  %2772 = vmatprep.subr.bf16.mxu0 0
  %2773 = vmatpush1.bf16.msra.mxu0 0
  %2774 = vmatprep.subr.bf16.mxu0 0
  %2775 = vmatpush1.bf16.msra.mxu0 0
  %2776 = vmatprep.subr.bf16.mxu0 0
  %2777 = vmatpush1.bf16.msra.mxu0 0
  %2778 = vmatprep.subr.bf16.mxu0 0
  %2779 = vmatpush1.bf16.msra.mxu0 0
  %2780 = vmatprep.subr.bf16.mxu0 0
  %2781 = vmatpush1.bf16.msra.mxu0 0
  %2782 = vmatprep.mubr.bf16.mxu0 0
  %2783 = vmatmul.mubr.bf16.gmra.mrb[0].mxu0 %v2745
  %v2784 = vpop.f32.mrb[0].mxu0
  %v2785 = vadd.f32 0.0, %v2784
  %v2786 = vpop.f32.mrb[0].mxu0
  %v2787 = vpop.f32.mrb[0].mxu0
  %v2788 = vadd.f32 0.0, %v2787
  %v2789 = vpop.f32.mrb[0].mxu0
  %2790 = vmatprep.mubr.bf16.mxu0 0
  %2791 = vmatmul.mubr.bf16.gmra.mrb[0].mxu0 %v2748
  %v2792 = vpop.f32.mrb[0].mxu0
  %v2793 = vadd.f32 0.0, %v2792
  %v2794 = vpop.f32.mrb[0].mxu0
  %v2795 = vpop.f32.mrb[0].mxu0
  %v2796 = vadd.f32 0.0, %v2795
  %v2797 = vpop.f32.mrb[0].mxu0
  %2798 = vdwg.mxu0
  %v2800 = vsel %vm2109, %v2412, 0
  %v2803 = vsel %vm2109, %v2413, 0
  %2805 = vmatprep.subr.bf16.mxu0 0
  %2806 = vmatpush1.bf16.msra.mxu0 %v1538
  %2807 = vmatprep.subr.bf16.mxu0 0
  %2808 = vmatpush1.bf16.msra.mxu0 %v1539
  %2809 = vmatprep.subr.bf16.mxu0 0
  %2810 = vmatpush1.bf16.msra.mxu0 0
  %2811 = vmatprep.subr.bf16.mxu0 0
  %2812 = vmatpush1.bf16.msra.mxu0 0
  %2813 = vmatprep.subr.bf16.mxu0 0
  %2814 = vmatpush1.bf16.msra.mxu0 0
  %2815 = vmatprep.subr.bf16.mxu0 0
  %2816 = vmatpush1.bf16.msra.mxu0 0
  %2817 = vmatprep.subr.bf16.mxu0 0
  %2818 = vmatpush1.bf16.msra.mxu0 0
  %2819 = vmatprep.subr.bf16.mxu0 0
  %2820 = vmatpush1.bf16.msra.mxu0 0
  %2821 = vmatprep.subr.bf16.mxu0 0
  %2822 = vmatpush1.bf16.msra.mxu0 0
  %2823 = vmatprep.subr.bf16.mxu0 0
  %2824 = vmatpush1.bf16.msra.mxu0 0
  %2825 = vmatprep.subr.bf16.mxu0 0
  %2826 = vmatpush1.bf16.msra.mxu0 0
  %2827 = vmatprep.subr.bf16.mxu0 0
  %2828 = vmatpush1.bf16.msra.mxu0 0
  %2829 = vmatprep.subr.bf16.mxu0 0
  %2830 = vmatpush1.bf16.msra.mxu0 0
  %2831 = vmatprep.subr.bf16.mxu0 0
  %2832 = vmatpush1.bf16.msra.mxu0 0
  %2833 = vmatprep.subr.bf16.mxu0 0
  %2834 = vmatpush1.bf16.msra.mxu0 0
  %2835 = vmatprep.subr.bf16.mxu0 0
  %2836 = vmatpush1.bf16.msra.mxu0 0
  %2837 = vmatprep.mubr.bf16.mxu0 0
  %2838 = vmatmul.mubr.bf16.gmra.mrb[0].mxu0 %v2800
  %v2839 = vpop.f32.mrb[0].mxu0
  %v2840 = vadd.f32 0.0, %v2839
  %v2841 = vpop.f32.mrb[0].mxu0
  %v2842 = vpop.f32.mrb[0].mxu0
  %v2843 = vadd.f32 0.0, %v2842
  %v2844 = vpop.f32.mrb[0].mxu0
  %2845 = vmatprep.mubr.bf16.mxu0 0
  %2846 = vmatmul.mubr.bf16.gmra.mrb[0].mxu0 %v2803
  %v2847 = vpop.f32.mrb[0].mxu0
  %v2848 = vadd.f32 0.0, %v2847
  %v2849 = vpop.f32.mrb[0].mxu0
  %v2850 = vpop.f32.mrb[0].mxu0
  %v2851 = vadd.f32 0.0, %v2850
  %v2852 = vpop.f32.mrb[0].mxu0
  %2853 = vdwg.mxu0
  %v2854 = vrcp.pop %v2304
  %v2855 = vmul.f32 %v2455, %v2854
  %v2856 = vrcp.pop %v2307
  %v2857 = vmul.f32 %v2458, %v2856
  %v2858 = vrcp.pop %v2310
  %v2859 = vmul.f32 %v2463, %v2858
  %v2860 = vrcp.pop %v2313
  %v2861 = vmul.f32 %v2466, %v2860
  %v2862 = vrcp.pop %v2316
  %v2863 = vmul.f32 %v2510, %v2862
  %v2864 = vrcp.pop %v2319
  %v2865 = vmul.f32 %v2513, %v2864
  %v2866 = vrcp.pop %v2322
  %v2867 = vmul.f32 %v2518, %v2866
  %v2868 = vrcp.pop %v2325
  %v2869 = vmul.f32 %v2521, %v2868
  %v2870 = vrcp.pop %v2328
  %v2871 = vmul.f32 %v2565, %v2870
  %v2872 = vrcp.pop %v2331
  %v2873 = vmul.f32 %v2568, %v2872
  %v2874 = vrcp.pop %v2334
  %v2875 = vmul.f32 %v2573, %v2874
  %v2876 = vrcp.pop %v2337
  %v2877 = vmul.f32 %v2576, %v2876
  %v2878 = vrcp.pop %v2340
  %v2879 = vmul.f32 %v2620, %v2878
  %v2880 = vrcp.pop %v2343
  %v2881 = vmul.f32 %v2623, %v2880
  %v2882 = vrcp.pop %v2346
  %v2883 = vmul.f32 %v2628, %v2882
  %v2884 = vrcp.pop %v2349
  %v2885 = vmul.f32 %v2631, %v2884
  %v2886 = vrcp.pop %v2352
  %v2887 = vmul.f32 %v2675, %v2886
  %v2888 = vrcp.pop %v2355
  %v2889 = vmul.f32 %v2678, %v2888
  %v2890 = vrcp.pop %v2358
  %v2891 = vmul.f32 %v2683, %v2890
  %v2892 = vrcp.pop %v2361
  %v2893 = vmul.f32 %v2686, %v2892
  %v2894 = vrcp.pop %v2364
  %v2895 = vmul.f32 %v2730, %v2894
  %v2896 = vrcp.pop %v2367
  %v2897 = vmul.f32 %v2733, %v2896
  %v2898 = vrcp.pop %v2370
  %v2899 = vmul.f32 %v2738, %v2898
  %v2900 = vrcp.pop %v2373
  %v2901 = vmul.f32 %v2741, %v2900
  %v2902 = vrcp.pop %v2376
  %v2903 = vmul.f32 %v2785, %v2902
  %v2904 = vrcp.pop %v2379
  %v2905 = vmul.f32 %v2788, %v2904
  %v2906 = vrcp.pop %v2382
  %v2907 = vmul.f32 %v2793, %v2906
  %v2908 = vrcp.pop %v2385
  %v2909 = vmul.f32 %v2796, %v2908
  %v2910 = vrcp.pop %v2388
  %v2911 = vmul.f32 %v2840, %v2910
  %v2912 = vrcp.pop %v2391
  %v2913 = vmul.f32 %v2843, %v2912
  %v2914 = vrcp.pop %v2394
  %v2915 = vmul.f32 %v2848, %v2914
  %v2916 = vrcp.pop %v2397
  %v2917 = vmul.f32 %v2851, %v2916
  %v2918 = vpack.c.bf16 %v2857, %v2855
  %v2919 = vpack.c.bf16 %v2861, %v2859
  %v2920 = vpack.c.bf16 %v2865, %v2863
  %v2921 = vpack.c.bf16 %v2869, %v2867
  %v2922 = vpack.c.bf16 %v2873, %v2871
  %v2923 = vpack.c.bf16 %v2877, %v2875
  %v2924 = vpack.c.bf16 %v2881, %v2879
  %v2925 = vpack.c.bf16 %v2885, %v2883
  %v2926 = vpack.c.bf16 %v2889, %v2887
  %v2927 = vpack.c.bf16 %v2893, %v2891
  %v2928 = vpack.c.bf16 %v2897, %v2895
  %v2929 = vpack.c.bf16 %v2901, %v2899
  %v2930 = vpack.c.bf16 %v2905, %v2903
  %v2931 = vpack.c.bf16 %v2909, %v2907
  %v2932 = vpack.c.bf16 %v2913, %v2911
  %v2933 = vpack.c.bf16 %v2917, %v2915
  %v2934 = vld [vmem:[%s6] sm:$0xf]
  %v2935 = vld [vmem:[%s6 + $0x4] sm:$0xf]
  %v2936 = vld [vmem:[%s6 + $0x8] sm:$0xf]
  %v2937 = vld [vmem:[%s6 + $0xc] sm:$0xf]
  %v2938 = vld [vmem:[%s6 + $0x10] sm:$0xf]
  %v2939 = vld [vmem:[%s6 + $0x14] sm:$0xf]
  %v2940 = vld [vmem:[%s6 + $0x18] sm:$0xf]
  %v2941 = vld [vmem:[%s6 + $0x1c] sm:$0xf]
  %v2942 = vld [vmem:[%s6 + $0x20] sm:$0xf]
  %v2943 = vld [vmem:[%s6 + $0x24] sm:$0xf]
  %v2944 = vld [vmem:[%s6 + $0x28] sm:$0xf]
  %v2945 = vld [vmem:[%s6 + $0x2c] sm:$0xf]
  %v2946 = vld [vmem:[%s6 + $0x30] sm:$0xf]
  %v2947 = vld [vmem:[%s6 + $0x34] sm:$0xf]
  %v2948 = vld [vmem:[%s6 + $0x38] sm:$0xf]
  %v2949 = vld [vmem:[%s6 + $0x3c] sm:$0xf]
  %v2966 = vunpack.c.l.b16 %v2934
  %v2967 = vunpack.c.l.b16 %v2935
  %v2968 = vunpack.c.l.b16 %v2936
  %v2969 = vunpack.c.l.b16 %v2937
  %v2970 = vunpack.c.l.b16 %v2938
  %v2971 = vunpack.c.l.b16 %v2939
  %v2972 = vunpack.c.l.b16 %v2940
  %v2973 = vunpack.c.l.b16 %v2941
  %v2974 = vunpack.c.l.b16 %v2942
  %v2975 = vunpack.c.l.b16 %v2943
  %v2976 = vunpack.c.l.b16 %v2944
  %v2977 = vunpack.c.l.b16 %v2945
  %v2978 = vunpack.c.l.b16 %v2946
  %v2979 = vunpack.c.l.b16 %v2947
  %v2980 = vunpack.c.l.b16 %v2948
  %v2981 = vunpack.c.l.b16 %v2949
  %v2982 = vpack.c.b16 %v2967, %v2966
  %v2983 = vpack.c.b16 %v2969, %v2968
  %v2984 = vpack.c.b16 %v2971, %v2970
  %v2985 = vpack.c.b16 %v2973, %v2972
  %v2986 = vpack.c.b16 %v2975, %v2974
  %v2987 = vpack.c.b16 %v2977, %v2976
  %v2988 = vpack.c.b16 %v2979, %v2978
  %v2989 = vpack.c.b16 %v2981, %v2980
  %2998 = vmatprep.subr.bf16.mxu0 0
  %2999 = vmatpush1.bf16.msra.mxu0 %v2982
  %3000 = vmatprep.subr.bf16.mxu0 0
  %3001 = vmatpush1.bf16.msra.mxu0 %v2983
  %3002 = vmatprep.subr.bf16.mxu0 0
  %3003 = vmatpush1.bf16.msra.mxu0 %v2984
  %3004 = vmatprep.subr.bf16.mxu0 0
  %3005 = vmatpush1.bf16.msra.mxu0 %v2985
  %3006 = vmatprep.subr.bf16.mxu0 0
  %3007 = vmatpush1.bf16.msra.mxu0 %v2986
  %3008 = vmatprep.subr.bf16.mxu0 0
  %3009 = vmatpush1.bf16.msra.mxu0 %v2987
  %3010 = vmatprep.subr.bf16.mxu0 0
  %3011 = vmatpush1.bf16.msra.mxu0 %v2988
  %3012 = vmatprep.subr.bf16.mxu0 0
  %3013 = vmatpush1.bf16.msra.mxu0 %v2989
  %3014 = vmatprep.subr.bf16.mxu0 0
  %3015 = vmatpush1.bf16.msra.mxu0 0
  %3016 = vmatprep.subr.bf16.mxu0 0
  %3017 = vmatpush1.bf16.msra.mxu0 0
  %3018 = vmatprep.subr.bf16.mxu0 0
  %3019 = vmatpush1.bf16.msra.mxu0 0
  %3020 = vmatprep.subr.bf16.mxu0 0
  %3021 = vmatpush1.bf16.msra.mxu0 0
  %3022 = vmatprep.subr.bf16.mxu0 0
  %3023 = vmatpush1.bf16.msra.mxu0 0
  %3024 = vmatprep.subr.bf16.mxu0 0
  %3025 = vmatpush1.bf16.msra.mxu0 0
  %3026 = vmatprep.subr.bf16.mxu0 0
  %3027 = vmatpush1.bf16.msra.mxu0 0
  %3028 = vmatprep.subr.bf16.mxu0 0
  %3029 = vmatpush1.bf16.msra.mxu0 0
  %3030 = vmatprep.mubr.bf16.mxu0 0
  %3031 = vmatmul.mubr.bf16.gmra.mrb[0].mxu0 %v2918
  %v3032 = vpop.f32.mrb[0].mxu0
  %v3033 = vadd.f32 0.0, %v3032
  %v3034 = vpop.f32.mrb[0].mxu0
  %v3035 = vpop.f32.mrb[0].mxu0
  %v3036 = vadd.f32 0.0, %v3035
  %v3037 = vpop.f32.mrb[0].mxu0
  %3038 = vmatprep.mubr.bf16.mxu0 0
  %3039 = vmatmul.mubr.bf16.gmra.mrb[0].mxu0 %v2919
  %v3040 = vpop.f32.mrb[0].mxu0
  %v3041 = vadd.f32 0.0, %v3040
  %v3042 = vpop.f32.mrb[0].mxu0
  %v3043 = vpop.f32.mrb[0].mxu0
  %v3044 = vadd.f32 0.0, %v3043
  %v3045 = vpop.f32.mrb[0].mxu0
  %3046 = vmatprep.mubr.bf16.mxu0 0
  %3047 = vmatmul.mubr.bf16.gmra.mrb[0].mxu0 %v2920
  %v3048 = vpop.f32.mrb[0].mxu0
  %v3049 = vadd.f32 0.0, %v3048
  %v3050 = vpop.f32.mrb[0].mxu0
  %v3051 = vpop.f32.mrb[0].mxu0
  %v3052 = vadd.f32 0.0, %v3051
  %v3053 = vpop.f32.mrb[0].mxu0
  %3054 = vmatprep.mubr.bf16.mxu0 0
  %3055 = vmatmul.mubr.bf16.gmra.mrb[0].mxu0 %v2921
  %v3056 = vpop.f32.mrb[0].mxu0
  %v3057 = vadd.f32 0.0, %v3056
  %v3058 = vpop.f32.mrb[0].mxu0
  %v3059 = vpop.f32.mrb[0].mxu0
  %v3060 = vadd.f32 0.0, %v3059
  %v3061 = vpop.f32.mrb[0].mxu0
  %3062 = vmatprep.mubr.bf16.mxu0 0
  %3063 = vmatmul.mubr.bf16.gmra.mrb[0].mxu0 %v2922
  %v3064 = vpop.f32.mrb[0].mxu0
  %v3065 = vadd.f32 0.0, %v3064
  %v3066 = vpop.f32.mrb[0].mxu0
  %v3067 = vpop.f32.mrb[0].mxu0
  %v3068 = vadd.f32 0.0, %v3067
  %v3069 = vpop.f32.mrb[0].mxu0
  %3070 = vmatprep.mubr.bf16.mxu0 0
  %3071 = vmatmul.mubr.bf16.gmra.mrb[0].mxu0 %v2923
  %v3072 = vpop.f32.mrb[0].mxu0
  %v3073 = vadd.f32 0.0, %v3072
  %v3074 = vpop.f32.mrb[0].mxu0
  %v3075 = vpop.f32.mrb[0].mxu0
  %v3076 = vadd.f32 0.0, %v3075
  %v3077 = vpop.f32.mrb[0].mxu0
  %3078 = vmatprep.mubr.bf16.mxu0 0
  %3079 = vmatmul.mubr.bf16.gmra.mrb[0].mxu0 %v2924
  %v3080 = vpop.f32.mrb[0].mxu0
  %v3081 = vadd.f32 0.0, %v3080
  %v3082 = vpop.f32.mrb[0].mxu0
  %v3083 = vpop.f32.mrb[0].mxu0
  %v3084 = vadd.f32 0.0, %v3083
  %v3085 = vpop.f32.mrb[0].mxu0
  %3086 = vmatprep.mubr.bf16.mxu0 0
  %3087 = vmatmul.mubr.bf16.gmra.mrb[0].mxu0 %v2925
  %v3088 = vpop.f32.mrb[0].mxu0
  %v3089 = vadd.f32 0.0, %v3088
  %v3090 = vpop.f32.mrb[0].mxu0
  %v3091 = vpop.f32.mrb[0].mxu0
  %v3092 = vadd.f32 0.0, %v3091
  %v3093 = vpop.f32.mrb[0].mxu0
  %3094 = vmatprep.mubr.bf16.mxu0 0
  %3095 = vmatmul.mubr.bf16.gmra.mrb[0].mxu0 %v2926
  %v3096 = vpop.f32.mrb[0].mxu0
  %v3097 = vadd.f32 0.0, %v3096
  %v3098 = vpop.f32.mrb[0].mxu0
  %v3099 = vpop.f32.mrb[0].mxu0
  %v3100 = vadd.f32 0.0, %v3099
  %v3101 = vpop.f32.mrb[0].mxu0
  %3102 = vmatprep.mubr.bf16.mxu0 0
  %3103 = vmatmul.mubr.bf16.gmra.mrb[0].mxu0 %v2927
  %v3104 = vpop.f32.mrb[0].mxu0
  %v3105 = vadd.f32 0.0, %v3104
  %v3106 = vpop.f32.mrb[0].mxu0
  %v3107 = vpop.f32.mrb[0].mxu0
  %v3108 = vadd.f32 0.0, %v3107
  %v3109 = vpop.f32.mrb[0].mxu0
  %3110 = vmatprep.mubr.bf16.mxu0 0
  %3111 = vmatmul.mubr.bf16.gmra.mrb[0].mxu0 %v2928
  %v3112 = vpop.f32.mrb[0].mxu0
  %v3113 = vadd.f32 0.0, %v3112
  %v3114 = vpop.f32.mrb[0].mxu0
  %v3115 = vpop.f32.mrb[0].mxu0
  %v3116 = vadd.f32 0.0, %v3115
  %v3117 = vpop.f32.mrb[0].mxu0
  %3118 = vmatprep.mubr.bf16.mxu0 0
  %3119 = vmatmul.mubr.bf16.gmra.mrb[0].mxu0 %v2929
  %v3120 = vpop.f32.mrb[0].mxu0
  %v3121 = vadd.f32 0.0, %v3120
  %v3122 = vpop.f32.mrb[0].mxu0
  %v3123 = vpop.f32.mrb[0].mxu0
  %v3124 = vadd.f32 0.0, %v3123
  %v3125 = vpop.f32.mrb[0].mxu0
  %3126 = vmatprep.mubr.bf16.mxu0 0
  %3127 = vmatmul.mubr.bf16.gmra.mrb[0].mxu0 %v2930
  %v3128 = vpop.f32.mrb[0].mxu0
  %v3129 = vadd.f32 0.0, %v3128
  %v3130 = vpop.f32.mrb[0].mxu0
  %v3131 = vpop.f32.mrb[0].mxu0
  %v3132 = vadd.f32 0.0, %v3131
  %v3133 = vpop.f32.mrb[0].mxu0
  %3134 = vmatprep.mubr.bf16.mxu0 0
  %3135 = vmatmul.mubr.bf16.gmra.mrb[0].mxu0 %v2931
  %v3136 = vpop.f32.mrb[0].mxu0
  %v3137 = vadd.f32 0.0, %v3136
  %v3138 = vpop.f32.mrb[0].mxu0
  %v3139 = vpop.f32.mrb[0].mxu0
  %v3140 = vadd.f32 0.0, %v3139
  %v3141 = vpop.f32.mrb[0].mxu0
  %3142 = vmatprep.mubr.bf16.mxu0 0
  %3143 = vmatmul.mubr.bf16.gmra.mrb[0].mxu0 %v2932
  %v3144 = vpop.f32.mrb[0].mxu0
  %v3145 = vadd.f32 0.0, %v3144
  %v3146 = vpop.f32.mrb[0].mxu0
  %v3147 = vpop.f32.mrb[0].mxu0
  %v3148 = vadd.f32 0.0, %v3147
  %v3149 = vpop.f32.mrb[0].mxu0
  %3150 = vmatprep.mubr.bf16.mxu0 0
  %3151 = vmatmul.mubr.bf16.gmra.mrb[0].mxu0 %v2933
  %v3152 = vpop.f32.mrb[0].mxu0
  %v3153 = vadd.f32 0.0, %v3152
  %v3154 = vpop.f32.mrb[0].mxu0
  %v3155 = vpop.f32.mrb[0].mxu0
  %v3156 = vadd.f32 0.0, %v3155
  %v3157 = vpop.f32.mrb[0].mxu0
  %3158 = vdwg.mxu0
  %v3159 = vadd.f32 %v405, %v3033
  %v3160 = vadd.f32 %v408, %v3036
  %v3161 = vadd.f32 %v413, %v3041
  %v3162 = vadd.f32 %v416, %v3044
  %v3163 = vadd.f32 %v421, %v3049
  %v3164 = vadd.f32 %v424, %v3052
  %v3165 = vadd.f32 %v429, %v3057
  %v3166 = vadd.f32 %v432, %v3060
  %v3167 = vadd.f32 %v437, %v3065
  %v3168 = vadd.f32 %v440, %v3068
  %v3169 = vadd.f32 %v445, %v3073
  %v3170 = vadd.f32 %v448, %v3076
  %v3171 = vadd.f32 %v453, %v3081
  %v3172 = vadd.f32 %v456, %v3084
  %v3173 = vadd.f32 %v461, %v3089
  %v3174 = vadd.f32 %v464, %v3092
  %v3175 = vadd.f32 %v469, %v3097
  %v3176 = vadd.f32 %v472, %v3100
  %v3177 = vadd.f32 %v477, %v3105
  %v3178 = vadd.f32 %v480, %v3108
  %v3179 = vadd.f32 %v485, %v3113
  %v3180 = vadd.f32 %v488, %v3116
  %v3181 = vadd.f32 %v493, %v3121
  %v3182 = vadd.f32 %v496, %v3124
  %v3183 = vadd.f32 %v501, %v3129
  %v3184 = vadd.f32 %v504, %v3132
  %v3185 = vadd.f32 %v509, %v3137
  %v3186 = vadd.f32 %v512, %v3140
  %v3187 = vadd.f32 %v517, %v3145
  %v3188 = vadd.f32 %v520, %v3148
  %v3189 = vadd.f32 %v525, %v3153
  %v3190 = vadd.f32 %v528, %v3156
  %v3191 = vld [vmem:[%s13] sm:$0x1]
  %v3192 = vld [vmem:[%s14] sm:$0x1]
  %3193 = vadd.xlane.f32.xlu0 %v3159
  %v3194 = vpop.xlane.xlu0 %3193
  %3195 = vadd.xlane.f32.xlu0 %v3160
  %v3196 = vpop.xlane.xlu0 %3195
  %3197 = vadd.xlane.f32.xlu0 %v3161
  %v3198 = vpop.xlane.xlu0 %3197
  %3199 = vadd.xlane.f32.xlu0 %v3162
  %v3200 = vpop.xlane.xlu0 %3199
  %3201 = vadd.xlane.f32.xlu0 %v3163
  %v3202 = vpop.xlane.xlu0 %3201
  %3203 = vadd.xlane.f32.xlu0 %v3164
  %v3204 = vpop.xlane.xlu0 %3203
  %3205 = vadd.xlane.f32.xlu0 %v3165
  %v3206 = vpop.xlane.xlu0 %3205
  %3207 = vadd.xlane.f32.xlu0 %v3166
  %v3208 = vpop.xlane.xlu0 %3207
  %3209 = vadd.xlane.f32.xlu0 %v3167
  %v3210 = vpop.xlane.xlu0 %3209
  %3211 = vadd.xlane.f32.xlu0 %v3168
  %v3212 = vpop.xlane.xlu0 %3211
  %3213 = vadd.xlane.f32.xlu0 %v3169
  %v3214 = vpop.xlane.xlu0 %3213
  %3215 = vadd.xlane.f32.xlu0 %v3170
  %v3216 = vpop.xlane.xlu0 %3215
  %3217 = vadd.xlane.f32.xlu0 %v3171
  %v3218 = vpop.xlane.xlu0 %3217
  %3219 = vadd.xlane.f32.xlu0 %v3172
  %v3220 = vpop.xlane.xlu0 %3219
  %3221 = vadd.xlane.f32.xlu0 %v3173
  %v3222 = vpop.xlane.xlu0 %3221
  %3223 = vadd.xlane.f32.xlu0 %v3174
  %v3224 = vpop.xlane.xlu0 %3223
  %3225 = vadd.xlane.f32.xlu0 %v3175
  %v3226 = vpop.xlane.xlu0 %3225
  %3227 = vadd.xlane.f32.xlu0 %v3176
  %v3228 = vpop.xlane.xlu0 %3227
  %3229 = vadd.xlane.f32.xlu0 %v3177
  %v3230 = vpop.xlane.xlu0 %3229
  %3231 = vadd.xlane.f32.xlu0 %v3178
  %v3232 = vpop.xlane.xlu0 %3231
  %3233 = vadd.xlane.f32.xlu0 %v3179
  %v3234 = vpop.xlane.xlu0 %3233
  %3235 = vadd.xlane.f32.xlu0 %v3180
  %v3236 = vpop.xlane.xlu0 %3235
  %3237 = vadd.xlane.f32.xlu0 %v3181
  %v3238 = vpop.xlane.xlu0 %3237
  %3239 = vadd.xlane.f32.xlu0 %v3182
  %v3240 = vpop.xlane.xlu0 %3239
  %3241 = vadd.xlane.f32.xlu0 %v3183
  %v3242 = vpop.xlane.xlu0 %3241
  %3243 = vadd.xlane.f32.xlu0 %v3184
  %v3244 = vpop.xlane.xlu0 %3243
  %3245 = vadd.xlane.f32.xlu0 %v3185
  %v3246 = vpop.xlane.xlu0 %3245
  %3247 = vadd.xlane.f32.xlu0 %v3186
  %v3248 = vpop.xlane.xlu0 %3247
  %3249 = vadd.xlane.f32.xlu0 %v3187
  %v3250 = vpop.xlane.xlu0 %3249
  %3251 = vadd.xlane.f32.xlu0 %v3188
  %v3252 = vpop.xlane.xlu0 %3251
  %3253 = vadd.xlane.f32.xlu0 %v3189
  %v3254 = vpop.xlane.xlu0 %3253
  %3255 = vadd.xlane.f32.xlu0 %v3190
  %v3256 = vpop.xlane.xlu0 %3255
  %v3257 = vmul.f32 %v3194, %v597
  %v3258 = vmul.f32 %v3196, %v597
  %v3259 = vmul.f32 %v3198, %v597
  %v3260 = vmul.f32 %v3200, %v597
  %v3261 = vmul.f32 %v3202, %v597
  %v3262 = vmul.f32 %v3204, %v597
  %v3263 = vmul.f32 %v3206, %v597
  %v3264 = vmul.f32 %v3208, %v597
  %v3265 = vmul.f32 %v3210, %v597
  %v3266 = vmul.f32 %v3212, %v597
  %v3267 = vmul.f32 %v3214, %v597
  %v3268 = vmul.f32 %v3216, %v597
  %v3269 = vmul.f32 %v3218, %v597
  %v3270 = vmul.f32 %v3220, %v597
  %v3271 = vmul.f32 %v3222, %v597
  %v3272 = vmul.f32 %v3224, %v597
  %v3273 = vmul.f32 %v3226, %v597
  %v3274 = vmul.f32 %v3228, %v597
  %v3275 = vmul.f32 %v3230, %v597
  %v3276 = vmul.f32 %v3232, %v597
  %v3277 = vmul.f32 %v3234, %v597
  %v3278 = vmul.f32 %v3236, %v597
  %v3279 = vmul.f32 %v3238, %v597
  %v3280 = vmul.f32 %v3240, %v597
  %v3281 = vmul.f32 %v3242, %v597
  %v3282 = vmul.f32 %v3244, %v597
  %v3283 = vmul.f32 %v3246, %v597
  %v3284 = vmul.f32 %v3248, %v597
  %v3285 = vmul.f32 %v3250, %v597
  %v3286 = vmul.f32 %v3252, %v597
  %v3287 = vmul.f32 %v3254, %v597
  %v3288 = vmul.f32 %v3256, %v597
  %v3289 = vsub.f32 %v3159, %v3257
  %v3290 = vsub.f32 %v3160, %v3258
  %v3291 = vsub.f32 %v3161, %v3259
  %v3292 = vsub.f32 %v3162, %v3260
  %v3293 = vsub.f32 %v3163, %v3261
  %v3294 = vsub.f32 %v3164, %v3262
  %v3295 = vsub.f32 %v3165, %v3263
  %v3296 = vsub.f32 %v3166, %v3264
  %v3297 = vsub.f32 %v3167, %v3265
  %v3298 = vsub.f32 %v3168, %v3266
  %v3299 = vsub.f32 %v3169, %v3267
  %v3300 = vsub.f32 %v3170, %v3268
  %v3301 = vsub.f32 %v3171, %v3269
  %v3302 = vsub.f32 %v3172, %v3270
  %v3303 = vsub.f32 %v3173, %v3271
  %v3304 = vsub.f32 %v3174, %v3272
  %v3305 = vsub.f32 %v3175, %v3273
  %v3306 = vsub.f32 %v3176, %v3274
  %v3307 = vsub.f32 %v3177, %v3275
  %v3308 = vsub.f32 %v3178, %v3276
  %v3309 = vsub.f32 %v3179, %v3277
  %v3310 = vsub.f32 %v3180, %v3278
  %v3311 = vsub.f32 %v3181, %v3279
  %v3312 = vsub.f32 %v3182, %v3280
  %v3313 = vsub.f32 %v3183, %v3281
  %v3314 = vsub.f32 %v3184, %v3282
  %v3315 = vsub.f32 %v3185, %v3283
  %v3316 = vsub.f32 %v3186, %v3284
  %v3317 = vsub.f32 %v3187, %v3285
  %v3318 = vsub.f32 %v3188, %v3286
  %v3319 = vsub.f32 %v3189, %v3287
  %v3320 = vsub.f32 %v3190, %v3288
  %v3321 = vmul.f32 %v3289, %v3289
  %v3322 = vmul.f32 %v3290, %v3290
  %v3323 = vmul.f32 %v3291, %v3291
  %v3324 = vmul.f32 %v3292, %v3292
  %v3325 = vmul.f32 %v3293, %v3293
  %v3326 = vmul.f32 %v3294, %v3294
  %v3327 = vmul.f32 %v3295, %v3295
  %v3328 = vmul.f32 %v3296, %v3296
  %v3329 = vmul.f32 %v3297, %v3297
  %v3330 = vmul.f32 %v3298, %v3298
  %v3331 = vmul.f32 %v3299, %v3299
  %v3332 = vmul.f32 %v3300, %v3300
  %v3333 = vmul.f32 %v3301, %v3301
  %v3334 = vmul.f32 %v3302, %v3302
  %v3335 = vmul.f32 %v3303, %v3303
  %v3336 = vmul.f32 %v3304, %v3304
  %v3337 = vmul.f32 %v3305, %v3305
  %v3338 = vmul.f32 %v3306, %v3306
  %v3339 = vmul.f32 %v3307, %v3307
  %v3340 = vmul.f32 %v3308, %v3308
  %v3341 = vmul.f32 %v3309, %v3309
  %v3342 = vmul.f32 %v3310, %v3310
  %v3343 = vmul.f32 %v3311, %v3311
  %v3344 = vmul.f32 %v3312, %v3312
  %v3345 = vmul.f32 %v3313, %v3313
  %v3346 = vmul.f32 %v3314, %v3314
  %v3347 = vmul.f32 %v3315, %v3315
  %v3348 = vmul.f32 %v3316, %v3316
  %v3349 = vmul.f32 %v3317, %v3317
  %v3350 = vmul.f32 %v3318, %v3318
  %v3351 = vmul.f32 %v3319, %v3319
  %v3352 = vmul.f32 %v3320, %v3320
  %3353 = vadd.xlane.f32.xlu0 %v3321
  %v3354 = vpop.xlane.xlu0 %3353
  %3355 = vadd.xlane.f32.xlu0 %v3322
  %v3356 = vpop.xlane.xlu0 %3355
  %3357 = vadd.xlane.f32.xlu0 %v3323
  %v3358 = vpop.xlane.xlu0 %3357
  %3359 = vadd.xlane.f32.xlu0 %v3324
  %v3360 = vpop.xlane.xlu0 %3359
  %3361 = vadd.xlane.f32.xlu0 %v3325
  %v3362 = vpop.xlane.xlu0 %3361
  %3363 = vadd.xlane.f32.xlu0 %v3326
  %v3364 = vpop.xlane.xlu0 %3363
  %3365 = vadd.xlane.f32.xlu0 %v3327
  %v3366 = vpop.xlane.xlu0 %3365
  %3367 = vadd.xlane.f32.xlu0 %v3328
  %v3368 = vpop.xlane.xlu0 %3367
  %3369 = vadd.xlane.f32.xlu0 %v3329
  %v3370 = vpop.xlane.xlu0 %3369
  %3371 = vadd.xlane.f32.xlu0 %v3330
  %v3372 = vpop.xlane.xlu0 %3371
  %3373 = vadd.xlane.f32.xlu0 %v3331
  %v3374 = vpop.xlane.xlu0 %3373
  %3375 = vadd.xlane.f32.xlu0 %v3332
  %v3376 = vpop.xlane.xlu0 %3375
  %3377 = vadd.xlane.f32.xlu0 %v3333
  %v3378 = vpop.xlane.xlu0 %3377
  %3379 = vadd.xlane.f32.xlu0 %v3334
  %v3380 = vpop.xlane.xlu0 %3379
  %3381 = vadd.xlane.f32.xlu0 %v3335
  %v3382 = vpop.xlane.xlu0 %3381
  %3383 = vadd.xlane.f32.xlu0 %v3336
  %v3384 = vpop.xlane.xlu0 %3383
  %3385 = vadd.xlane.f32.xlu0 %v3337
  %v3386 = vpop.xlane.xlu0 %3385
  %3387 = vadd.xlane.f32.xlu0 %v3338
  %v3388 = vpop.xlane.xlu0 %3387
  %3389 = vadd.xlane.f32.xlu0 %v3339
  %v3390 = vpop.xlane.xlu0 %3389
  %3391 = vadd.xlane.f32.xlu0 %v3340
  %v3392 = vpop.xlane.xlu0 %3391
  %3393 = vadd.xlane.f32.xlu0 %v3341
  %v3394 = vpop.xlane.xlu0 %3393
  %3395 = vadd.xlane.f32.xlu0 %v3342
  %v3396 = vpop.xlane.xlu0 %3395
  %3397 = vadd.xlane.f32.xlu0 %v3343
  %v3398 = vpop.xlane.xlu0 %3397
  %3399 = vadd.xlane.f32.xlu0 %v3344
  %v3400 = vpop.xlane.xlu0 %3399
  %3401 = vadd.xlane.f32.xlu0 %v3345
  %v3402 = vpop.xlane.xlu0 %3401
  %3403 = vadd.xlane.f32.xlu0 %v3346
  %v3404 = vpop.xlane.xlu0 %3403
  %3405 = vadd.xlane.f32.xlu0 %v3347
  %v3406 = vpop.xlane.xlu0 %3405
  %3407 = vadd.xlane.f32.xlu0 %v3348
  %v3408 = vpop.xlane.xlu0 %3407
  %3409 = vadd.xlane.f32.xlu0 %v3349
  %v3410 = vpop.xlane.xlu0 %3409
  %3411 = vadd.xlane.f32.xlu0 %v3350
  %v3412 = vpop.xlane.xlu0 %3411
  %3413 = vadd.xlane.f32.xlu0 %v3351
  %v3414 = vpop.xlane.xlu0 %3413
  %3415 = vadd.xlane.f32.xlu0 %v3352
  %v3416 = vpop.xlane.xlu0 %3415
  %v3417 = vmul.f32 %v3354, %v597
  %v3418 = vmul.f32 %v3356, %v597
  %v3419 = vmul.f32 %v3358, %v597
  %v3420 = vmul.f32 %v3360, %v597
  %v3421 = vmul.f32 %v3362, %v597
  %v3422 = vmul.f32 %v3364, %v597
  %v3423 = vmul.f32 %v3366, %v597
  %v3424 = vmul.f32 %v3368, %v597
  %v3425 = vmul.f32 %v3370, %v597
  %v3426 = vmul.f32 %v3372, %v597
  %v3427 = vmul.f32 %v3374, %v597
  %v3428 = vmul.f32 %v3376, %v597
  %v3429 = vmul.f32 %v3378, %v597
  %v3430 = vmul.f32 %v3380, %v597
  %v3431 = vmul.f32 %v3382, %v597
  %v3432 = vmul.f32 %v3384, %v597
  %v3433 = vmul.f32 %v3386, %v597
  %v3434 = vmul.f32 %v3388, %v597
  %v3435 = vmul.f32 %v3390, %v597
  %v3436 = vmul.f32 %v3392, %v597
  %v3437 = vmul.f32 %v3394, %v597
  %v3438 = vmul.f32 %v3396, %v597
  %v3439 = vmul.f32 %v3398, %v597
  %v3440 = vmul.f32 %v3400, %v597
  %v3441 = vmul.f32 %v3402, %v597
  %v3442 = vmul.f32 %v3404, %v597
  %v3443 = vmul.f32 %v3406, %v597
  %v3444 = vmul.f32 %v3408, %v597
  %v3445 = vmul.f32 %v3410, %v597
  %v3446 = vmul.f32 %v3412, %v597
  %v3447 = vmul.f32 %v3414, %v597
  %v3448 = vmul.f32 %v3416, %v597
  %v3449 = vadd.f32 %v3417, 1e-05
  %v3450 = vadd.f32 %v3418, 1e-05
  %v3451 = vadd.f32 %v3419, 1e-05
  %v3452 = vadd.f32 %v3420, 1e-05
  %v3453 = vadd.f32 %v3421, 1e-05
  %v3454 = vadd.f32 %v3422, 1e-05
  %v3455 = vadd.f32 %v3423, 1e-05
  %v3456 = vadd.f32 %v3424, 1e-05
  %v3457 = vadd.f32 %v3425, 1e-05
  %v3458 = vadd.f32 %v3426, 1e-05
  %v3459 = vadd.f32 %v3427, 1e-05
  %v3460 = vadd.f32 %v3428, 1e-05
  %v3461 = vadd.f32 %v3429, 1e-05
  %v3462 = vadd.f32 %v3430, 1e-05
  %v3463 = vadd.f32 %v3431, 1e-05
  %v3464 = vadd.f32 %v3432, 1e-05
  %v3465 = vadd.f32 %v3433, 1e-05
  %v3466 = vadd.f32 %v3434, 1e-05
  %v3467 = vadd.f32 %v3435, 1e-05
  %v3468 = vadd.f32 %v3436, 1e-05
  %v3469 = vadd.f32 %v3437, 1e-05
  %v3470 = vadd.f32 %v3438, 1e-05
  %v3471 = vadd.f32 %v3439, 1e-05
  %v3472 = vadd.f32 %v3440, 1e-05
  %v3473 = vadd.f32 %v3441, 1e-05
  %v3474 = vadd.f32 %v3442, 1e-05
  %v3475 = vadd.f32 %v3443, 1e-05
  %v3476 = vadd.f32 %v3444, 1e-05
  %v3477 = vadd.f32 %v3445, 1e-05
  %v3478 = vadd.f32 %v3446, 1e-05
  %v3479 = vadd.f32 %v3447, 1e-05
  %v3480 = vadd.f32 %v3448, 1e-05
  %v3481 = vrsqrt.pop %v3449
  %v3482 = vrsqrt.pop %v3450
  %v3483 = vrsqrt.pop %v3451
  %v3484 = vrsqrt.pop %v3452
  %v3485 = vrsqrt.pop %v3453
  %v3486 = vrsqrt.pop %v3454
  %v3487 = vrsqrt.pop %v3455
  %v3488 = vrsqrt.pop %v3456
  %v3489 = vrsqrt.pop %v3457
  %v3490 = vrsqrt.pop %v3458
  %v3491 = vrsqrt.pop %v3459
  %v3492 = vrsqrt.pop %v3460
  %v3493 = vrsqrt.pop %v3461
  %v3494 = vrsqrt.pop %v3462
  %v3495 = vrsqrt.pop %v3463
  %v3496 = vrsqrt.pop %v3464
  %v3497 = vrsqrt.pop %v3465
  %v3498 = vrsqrt.pop %v3466
  %v3499 = vrsqrt.pop %v3467
  %v3500 = vrsqrt.pop %v3468
  %v3501 = vrsqrt.pop %v3469
  %v3502 = vrsqrt.pop %v3470
  %v3503 = vrsqrt.pop %v3471
  %v3504 = vrsqrt.pop %v3472
  %v3505 = vrsqrt.pop %v3473
  %v3506 = vrsqrt.pop %v3474
  %v3507 = vrsqrt.pop %v3475
  %v3508 = vrsqrt.pop %v3476
  %v3509 = vrsqrt.pop %v3477
  %v3510 = vrsqrt.pop %v3478
  %v3511 = vrsqrt.pop %v3479
  %v3512 = vrsqrt.pop %v3480
  %v3513 = vmul.f32 %v3289, %v3481
  %v3514 = vmul.f32 %v3290, %v3482
  %v3515 = vmul.f32 %v3291, %v3483
  %v3516 = vmul.f32 %v3292, %v3484
  %v3517 = vmul.f32 %v3293, %v3485
  %v3518 = vmul.f32 %v3294, %v3486
  %v3519 = vmul.f32 %v3295, %v3487
  %v3520 = vmul.f32 %v3296, %v3488
  %v3521 = vmul.f32 %v3297, %v3489
  %v3522 = vmul.f32 %v3298, %v3490
  %v3523 = vmul.f32 %v3299, %v3491
  %v3524 = vmul.f32 %v3300, %v3492
  %v3525 = vmul.f32 %v3301, %v3493
  %v3526 = vmul.f32 %v3302, %v3494
  %v3527 = vmul.f32 %v3303, %v3495
  %v3528 = vmul.f32 %v3304, %v3496
  %v3529 = vmul.f32 %v3305, %v3497
  %v3530 = vmul.f32 %v3306, %v3498
  %v3531 = vmul.f32 %v3307, %v3499
  %v3532 = vmul.f32 %v3308, %v3500
  %v3533 = vmul.f32 %v3309, %v3501
  %v3534 = vmul.f32 %v3310, %v3502
  %v3535 = vmul.f32 %v3311, %v3503
  %v3536 = vmul.f32 %v3312, %v3504
  %v3537 = vmul.f32 %v3313, %v3505
  %v3538 = vmul.f32 %v3314, %v3506
  %v3539 = vmul.f32 %v3315, %v3507
  %v3540 = vmul.f32 %v3316, %v3508
  %v3541 = vmul.f32 %v3317, %v3509
  %v3542 = vmul.f32 %v3318, %v3510
  %v3543 = vmul.f32 %v3319, %v3511
  %v3544 = vmul.f32 %v3320, %v3512
  %v3546 = vlaneseq
  %v3547 = vshrl.u32 %v3546, 7
  %v3548 = vsub.s32 0, %v3547
  %v3549 = vrot.slane %v3191, %v3548
  %v3551 = vmul.f32 %v3513, %v3549
  %v3552 = vmul.f32 %v3514, %v3549
  %v3553 = vmul.f32 %v3515, %v3549
  %v3554 = vmul.f32 %v3516, %v3549
  %v3555 = vmul.f32 %v3517, %v3549
  %v3556 = vmul.f32 %v3518, %v3549
  %v3557 = vmul.f32 %v3519, %v3549
  %v3558 = vmul.f32 %v3520, %v3549
  %v3559 = vmul.f32 %v3521, %v3549
  %v3560 = vmul.f32 %v3522, %v3549
  %v3561 = vmul.f32 %v3523, %v3549
  %v3562 = vmul.f32 %v3524, %v3549
  %v3563 = vmul.f32 %v3525, %v3549
  %v3564 = vmul.f32 %v3526, %v3549
  %v3565 = vmul.f32 %v3527, %v3549
  %v3566 = vmul.f32 %v3528, %v3549
  %v3567 = vmul.f32 %v3529, %v3549
  %v3568 = vmul.f32 %v3530, %v3549
  %v3569 = vmul.f32 %v3531, %v3549
  %v3570 = vmul.f32 %v3532, %v3549
  %v3571 = vmul.f32 %v3533, %v3549
  %v3572 = vmul.f32 %v3534, %v3549
  %v3573 = vmul.f32 %v3535, %v3549
  %v3574 = vmul.f32 %v3536, %v3549
  %v3575 = vmul.f32 %v3537, %v3549
  %v3576 = vmul.f32 %v3538, %v3549
  %v3577 = vmul.f32 %v3539, %v3549
  %v3578 = vmul.f32 %v3540, %v3549
  %v3579 = vmul.f32 %v3541, %v3549
  %v3580 = vmul.f32 %v3542, %v3549
  %v3581 = vmul.f32 %v3543, %v3549
  %v3582 = vmul.f32 %v3544, %v3549
  %v3584 = vlaneseq
  %v3585 = vshrl.u32 %v3584, 7
  %v3586 = vsub.s32 0, %v3585
  %v3587 = vrot.slane %v3192, %v3586
  %v3589 = vadd.f32 %v3551, %v3587
  %v3590 = vadd.f32 %v3552, %v3587
  %v3591 = vadd.f32 %v3553, %v3587
  %v3592 = vadd.f32 %v3554, %v3587
  %v3593 = vadd.f32 %v3555, %v3587
  %v3594 = vadd.f32 %v3556, %v3587
  %v3595 = vadd.f32 %v3557, %v3587
  %v3596 = vadd.f32 %v3558, %v3587
  %v3597 = vadd.f32 %v3559, %v3587
  %v3598 = vadd.f32 %v3560, %v3587
  %v3599 = vadd.f32 %v3561, %v3587
  %v3600 = vadd.f32 %v3562, %v3587
  %v3601 = vadd.f32 %v3563, %v3587
  %v3602 = vadd.f32 %v3564, %v3587
  %v3603 = vadd.f32 %v3565, %v3587
  %v3604 = vadd.f32 %v3566, %v3587
  %v3605 = vadd.f32 %v3567, %v3587
  %v3606 = vadd.f32 %v3568, %v3587
  %v3607 = vadd.f32 %v3569, %v3587
  %v3608 = vadd.f32 %v3570, %v3587
  %v3609 = vadd.f32 %v3571, %v3587
  %v3610 = vadd.f32 %v3572, %v3587
  %v3611 = vadd.f32 %v3573, %v3587
  %v3612 = vadd.f32 %v3574, %v3587
  %v3613 = vadd.f32 %v3575, %v3587
  %v3614 = vadd.f32 %v3576, %v3587
  %v3615 = vadd.f32 %v3577, %v3587
  %v3616 = vadd.f32 %v3578, %v3587
  %v3617 = vadd.f32 %v3579, %v3587
  %v3618 = vadd.f32 %v3580, %v3587
  %v3619 = vadd.f32 %v3581, %v3587
  %v3620 = vadd.f32 %v3582, %v3587
  %v3621 = vpack.c.bf16 %v3590, %v3589
  %v3622 = vpack.c.bf16 %v3592, %v3591
  %v3623 = vpack.c.bf16 %v3594, %v3593
  %v3624 = vpack.c.bf16 %v3596, %v3595
  %v3625 = vpack.c.bf16 %v3598, %v3597
  %v3626 = vpack.c.bf16 %v3600, %v3599
  %v3627 = vpack.c.bf16 %v3602, %v3601
  %v3628 = vpack.c.bf16 %v3604, %v3603
  %v3629 = vpack.c.bf16 %v3606, %v3605
  %v3630 = vpack.c.bf16 %v3608, %v3607
  %v3631 = vpack.c.bf16 %v3610, %v3609
  %v3632 = vpack.c.bf16 %v3612, %v3611
  %v3633 = vpack.c.bf16 %v3614, %v3613
  %v3634 = vpack.c.bf16 %v3616, %v3615
  %v3635 = vpack.c.bf16 %v3618, %v3617
  %v3636 = vpack.c.bf16 %v3620, %v3619
  %v3637 = vld [vmem:[%s7] sm:$0xff]
  %v3638 = vld [vmem:[%s7 + $0x10] sm:$0xff]
  %v3639 = vld [vmem:[%s7 + $0x20] sm:$0xff]
  %v3640 = vld [vmem:[%s7 + $0x30] sm:$0xff]
  %v3641 = vld [vmem:[%s7 + $0x40] sm:$0xff]
  %v3642 = vld [vmem:[%s7 + $0x50] sm:$0xff]
  %v3643 = vld [vmem:[%s7 + $0x60] sm:$0xff]
  %v3644 = vld [vmem:[%s7 + $0x70] sm:$0xff]
  %v3645 = vld [vmem:[%s7 + $0x80] sm:$0xff]
  %v3646 = vld [vmem:[%s7 + $0x90] sm:$0xff]
  %v3647 = vld [vmem:[%s7 + $0xa0] sm:$0xff]
  %v3648 = vld [vmem:[%s7 + $0xb0] sm:$0xff]
  %v3649 = vld [vmem:[%s7 + $0xc0] sm:$0xff]
  %v3650 = vld [vmem:[%s7 + $0xd0] sm:$0xff]
  %v3651 = vld [vmem:[%s7 + $0xe0] sm:$0xff]
  %v3652 = vld [vmem:[%s7 + $0xf0] sm:$0xff]
  %v3653 = vld [vmem:[%s8] sm:$0x3]
  %v3655 = vlaneseq
  %v3656 = vshrl.u32 %v3655, 7
  %v3657 = vsub.s32 0, %v3656
  %v3658 = vrot.slane %v3653, %v3657
  %v3659 = vlaneseq
  %v3660 = vshrl.u32 %v3659, 7
  %v3661 = vsub.s32 1, %v3660
  %v3662 = vrot.slane %v3653, %v3661
  %v3681 = vunpack.c.l.b16 %v3637
  %v3682 = vunpack.c.h.b16 %v3637
  %v3683 = vunpack.c.l.b16 %v3638
  %v3684 = vunpack.c.h.b16 %v3638
  %v3685 = vunpack.c.l.b16 %v3639
  %v3686 = vunpack.c.h.b16 %v3639
  %v3687 = vunpack.c.l.b16 %v3640
  %v3688 = vunpack.c.h.b16 %v3640
  %v3689 = vunpack.c.l.b16 %v3641
  %v3690 = vunpack.c.h.b16 %v3641
  %v3691 = vunpack.c.l.b16 %v3642
  %v3692 = vunpack.c.h.b16 %v3642
  %v3693 = vunpack.c.l.b16 %v3643
  %v3694 = vunpack.c.h.b16 %v3643
  %v3695 = vunpack.c.l.b16 %v3644
  %v3696 = vunpack.c.h.b16 %v3644
  %v3697 = vunpack.c.l.b16 %v3645
  %v3698 = vunpack.c.h.b16 %v3645
  %v3699 = vunpack.c.l.b16 %v3646
  %v3700 = vunpack.c.h.b16 %v3646
  %v3701 = vunpack.c.l.b16 %v3647
  %v3702 = vunpack.c.h.b16 %v3647
  %v3703 = vunpack.c.l.b16 %v3648
  %v3704 = vunpack.c.h.b16 %v3648
  %v3705 = vunpack.c.l.b16 %v3649
  %v3706 = vunpack.c.h.b16 %v3649
  %v3707 = vunpack.c.l.b16 %v3650
  %v3708 = vunpack.c.h.b16 %v3650
  %v3709 = vunpack.c.l.b16 %v3651
  %v3710 = vunpack.c.h.b16 %v3651
  %v3711 = vunpack.c.l.b16 %v3652
  %v3712 = vunpack.c.h.b16 %v3652
  %v3713 = vpack.c.b16 %v3683, %v3681
  %v3714 = vpack.c.b16 %v3684, %v3682
  %v3715 = vpack.c.b16 %v3687, %v3685
  %v3716 = vpack.c.b16 %v3688, %v3686
  %v3717 = vpack.c.b16 %v3691, %v3689
  %v3718 = vpack.c.b16 %v3692, %v3690
  %v3719 = vpack.c.b16 %v3695, %v3693
  %v3720 = vpack.c.b16 %v3696, %v3694
  %v3721 = vpack.c.b16 %v3699, %v3697
  %v3722 = vpack.c.b16 %v3700, %v3698
  %v3723 = vpack.c.b16 %v3703, %v3701
  %v3724 = vpack.c.b16 %v3704, %v3702
  %v3725 = vpack.c.b16 %v3707, %v3705
  %v3726 = vpack.c.b16 %v3708, %v3706
  %v3727 = vpack.c.b16 %v3711, %v3709
  %v3728 = vpack.c.b16 %v3712, %v3710
  %3745 = vmatprep.subr.bf16.mxu0 %v3714
  %3746 = vmatpush1.bf16.msra.mxu0 %v3713
  %3747 = vmatprep.subr.bf16.mxu0 %v3716
  %3748 = vmatpush1.bf16.msra.mxu0 %v3715
  %3749 = vmatprep.subr.bf16.mxu0 %v3718
  %3750 = vmatpush1.bf16.msra.mxu0 %v3717
  %3751 = vmatprep.subr.bf16.mxu0 %v3720
  %3752 = vmatpush1.bf16.msra.mxu0 %v3719
  %3753 = vmatprep.subr.bf16.mxu0 %v3722
  %3754 = vmatpush1.bf16.msra.mxu0 %v3721
  %3755 = vmatprep.subr.bf16.mxu0 %v3724
  %3756 = vmatpush1.bf16.msra.mxu0 %v3723
  %3757 = vmatprep.subr.bf16.mxu0 %v3726
  %3758 = vmatpush1.bf16.msra.mxu0 %v3725
  %3759 = vmatprep.subr.bf16.mxu0 %v3728
  %3760 = vmatpush1.bf16.msra.mxu0 %v3727
  %3761 = vmatprep.subr.bf16.mxu0 0
  %3762 = vmatpush1.bf16.msra.mxu0 0
  %3763 = vmatprep.subr.bf16.mxu0 0
  %3764 = vmatpush1.bf16.msra.mxu0 0
  %3765 = vmatprep.subr.bf16.mxu0 0
  %3766 = vmatpush1.bf16.msra.mxu0 0
  %3767 = vmatprep.subr.bf16.mxu0 0
  %3768 = vmatpush1.bf16.msra.mxu0 0
  %3769 = vmatprep.subr.bf16.mxu0 0
  %3770 = vmatpush1.bf16.msra.mxu0 0
  %3771 = vmatprep.subr.bf16.mxu0 0
  %3772 = vmatpush1.bf16.msra.mxu0 0
  %3773 = vmatprep.subr.bf16.mxu0 0
  %3774 = vmatpush1.bf16.msra.mxu0 0
  %3775 = vmatprep.subr.bf16.mxu0 0
  %3776 = vmatpush1.bf16.msra.mxu0 0
  %3777 = vmatprep.mubr.bf16.mxu0 0
  %3778 = vmatmul.mubr.bf16.gmra.mrb[0].mxu0 %v3621
  %v3779 = vpop.f32.mrb[0].mxu0
  %v3780 = vadd.f32 %v3658, %v3779
  %v3781 = vpop.f32.mrb[0].mxu0
  %v3782 = vadd.f32 %v3662, %v3781
  %v3783 = vpop.f32.mrb[0].mxu0
  %v3784 = vadd.f32 %v3658, %v3783
  %v3785 = vpop.f32.mrb[0].mxu0
  %v3786 = vadd.f32 %v3662, %v3785
  %3787 = vmatprep.mubr.bf16.mxu0 0
  %3788 = vmatmul.mubr.bf16.gmra.mrb[0].mxu0 %v3622
  %v3789 = vpop.f32.mrb[0].mxu0
  %v3790 = vadd.f32 %v3658, %v3789
  %v3791 = vpop.f32.mrb[0].mxu0
  %v3792 = vadd.f32 %v3662, %v3791
  %v3793 = vpop.f32.mrb[0].mxu0
  %v3794 = vadd.f32 %v3658, %v3793
  %v3795 = vpop.f32.mrb[0].mxu0
  %v3796 = vadd.f32 %v3662, %v3795
  %3797 = vmatprep.mubr.bf16.mxu0 0
  %3798 = vmatmul.mubr.bf16.gmra.mrb[0].mxu0 %v3623
  %v3799 = vpop.f32.mrb[0].mxu0
  %v3800 = vadd.f32 %v3658, %v3799
  %v3801 = vpop.f32.mrb[0].mxu0
  %v3802 = vadd.f32 %v3662, %v3801
  %v3803 = vpop.f32.mrb[0].mxu0
  %v3804 = vadd.f32 %v3658, %v3803
  %v3805 = vpop.f32.mrb[0].mxu0
  %v3806 = vadd.f32 %v3662, %v3805
  %3807 = vmatprep.mubr.bf16.mxu0 0
  %3808 = vmatmul.mubr.bf16.gmra.mrb[0].mxu0 %v3624
  %v3809 = vpop.f32.mrb[0].mxu0
  %v3810 = vadd.f32 %v3658, %v3809
  %v3811 = vpop.f32.mrb[0].mxu0
  %v3812 = vadd.f32 %v3662, %v3811
  %v3813 = vpop.f32.mrb[0].mxu0
  %v3814 = vadd.f32 %v3658, %v3813
  %v3815 = vpop.f32.mrb[0].mxu0
  %v3816 = vadd.f32 %v3662, %v3815
  %3817 = vmatprep.mubr.bf16.mxu0 0
  %3818 = vmatmul.mubr.bf16.gmra.mrb[0].mxu0 %v3625
  %v3819 = vpop.f32.mrb[0].mxu0
  %v3820 = vadd.f32 %v3658, %v3819
  %v3821 = vpop.f32.mrb[0].mxu0
  %v3822 = vadd.f32 %v3662, %v3821
  %v3823 = vpop.f32.mrb[0].mxu0
  %v3824 = vadd.f32 %v3658, %v3823
  %v3825 = vpop.f32.mrb[0].mxu0
  %v3826 = vadd.f32 %v3662, %v3825
  %3827 = vmatprep.mubr.bf16.mxu0 0
  %3828 = vmatmul.mubr.bf16.gmra.mrb[0].mxu0 %v3626
  %v3829 = vpop.f32.mrb[0].mxu0
  %v3830 = vadd.f32 %v3658, %v3829
  %v3831 = vpop.f32.mrb[0].mxu0
  %v3832 = vadd.f32 %v3662, %v3831
  %v3833 = vpop.f32.mrb[0].mxu0
  %v3834 = vadd.f32 %v3658, %v3833
  %v3835 = vpop.f32.mrb[0].mxu0
  %v3836 = vadd.f32 %v3662, %v3835
  %3837 = vmatprep.mubr.bf16.mxu0 0
  %3838 = vmatmul.mubr.bf16.gmra.mrb[0].mxu0 %v3627
  %v3839 = vpop.f32.mrb[0].mxu0
  %v3840 = vadd.f32 %v3658, %v3839
  %v3841 = vpop.f32.mrb[0].mxu0
  %v3842 = vadd.f32 %v3662, %v3841
  %v3843 = vpop.f32.mrb[0].mxu0
  %v3844 = vadd.f32 %v3658, %v3843
  %v3845 = vpop.f32.mrb[0].mxu0
  %v3846 = vadd.f32 %v3662, %v3845
  %3847 = vmatprep.mubr.bf16.mxu0 0
  %3848 = vmatmul.mubr.bf16.gmra.mrb[0].mxu0 %v3628
  %v3849 = vpop.f32.mrb[0].mxu0
  %v3850 = vadd.f32 %v3658, %v3849
  %v3851 = vpop.f32.mrb[0].mxu0
  %v3852 = vadd.f32 %v3662, %v3851
  %v3853 = vpop.f32.mrb[0].mxu0
  %v3854 = vadd.f32 %v3658, %v3853
  %v3855 = vpop.f32.mrb[0].mxu0
  %v3856 = vadd.f32 %v3662, %v3855
  %3857 = vmatprep.mubr.bf16.mxu0 0
  %3858 = vmatmul.mubr.bf16.gmra.mrb[0].mxu0 %v3629
  %v3859 = vpop.f32.mrb[0].mxu0
  %v3860 = vadd.f32 %v3658, %v3859
  %v3861 = vpop.f32.mrb[0].mxu0
  %v3862 = vadd.f32 %v3662, %v3861
  %v3863 = vpop.f32.mrb[0].mxu0
  %v3864 = vadd.f32 %v3658, %v3863
  %v3865 = vpop.f32.mrb[0].mxu0
  %v3866 = vadd.f32 %v3662, %v3865
  %3867 = vmatprep.mubr.bf16.mxu0 0
  %3868 = vmatmul.mubr.bf16.gmra.mrb[0].mxu0 %v3630
  %v3869 = vpop.f32.mrb[0].mxu0
  %v3870 = vadd.f32 %v3658, %v3869
  %v3871 = vpop.f32.mrb[0].mxu0
  %v3872 = vadd.f32 %v3662, %v3871
  %v3873 = vpop.f32.mrb[0].mxu0
  %v3874 = vadd.f32 %v3658, %v3873
  %v3875 = vpop.f32.mrb[0].mxu0
  %v3876 = vadd.f32 %v3662, %v3875
  %3877 = vmatprep.mubr.bf16.mxu0 0
  %3878 = vmatmul.mubr.bf16.gmra.mrb[0].mxu0 %v3631
  %v3879 = vpop.f32.mrb[0].mxu0
  %v3880 = vadd.f32 %v3658, %v3879
  %v3881 = vpop.f32.mrb[0].mxu0
  %v3882 = vadd.f32 %v3662, %v3881
  %v3883 = vpop.f32.mrb[0].mxu0
  %v3884 = vadd.f32 %v3658, %v3883
  %v3885 = vpop.f32.mrb[0].mxu0
  %v3886 = vadd.f32 %v3662, %v3885
  %3887 = vmatprep.mubr.bf16.mxu0 0
  %3888 = vmatmul.mubr.bf16.gmra.mrb[0].mxu0 %v3632
  %v3889 = vpop.f32.mrb[0].mxu0
  %v3890 = vadd.f32 %v3658, %v3889
  %v3891 = vpop.f32.mrb[0].mxu0
  %v3892 = vadd.f32 %v3662, %v3891
  %v3893 = vpop.f32.mrb[0].mxu0
  %v3894 = vadd.f32 %v3658, %v3893
  %v3895 = vpop.f32.mrb[0].mxu0
  %v3896 = vadd.f32 %v3662, %v3895
  %3897 = vmatprep.mubr.bf16.mxu0 0
  %3898 = vmatmul.mubr.bf16.gmra.mrb[0].mxu0 %v3633
  %v3899 = vpop.f32.mrb[0].mxu0
  %v3900 = vadd.f32 %v3658, %v3899
  %v3901 = vpop.f32.mrb[0].mxu0
  %v3902 = vadd.f32 %v3662, %v3901
  %v3903 = vpop.f32.mrb[0].mxu0
  %v3904 = vadd.f32 %v3658, %v3903
  %v3905 = vpop.f32.mrb[0].mxu0
  %v3906 = vadd.f32 %v3662, %v3905
  %3907 = vmatprep.mubr.bf16.mxu0 0
  %3908 = vmatmul.mubr.bf16.gmra.mrb[0].mxu0 %v3634
  %v3909 = vpop.f32.mrb[0].mxu0
  %v3910 = vadd.f32 %v3658, %v3909
  %v3911 = vpop.f32.mrb[0].mxu0
  %v3912 = vadd.f32 %v3662, %v3911
  %v3913 = vpop.f32.mrb[0].mxu0
  %v3914 = vadd.f32 %v3658, %v3913
  %v3915 = vpop.f32.mrb[0].mxu0
  %v3916 = vadd.f32 %v3662, %v3915
  %3917 = vmatprep.mubr.bf16.mxu0 0
  %3918 = vmatmul.mubr.bf16.gmra.mrb[0].mxu0 %v3635
  %v3919 = vpop.f32.mrb[0].mxu0
  %v3920 = vadd.f32 %v3658, %v3919
  %v3921 = vpop.f32.mrb[0].mxu0
  %v3922 = vadd.f32 %v3662, %v3921
  %v3923 = vpop.f32.mrb[0].mxu0
  %v3924 = vadd.f32 %v3658, %v3923
  %v3925 = vpop.f32.mrb[0].mxu0
  %v3926 = vadd.f32 %v3662, %v3925
  %3927 = vmatprep.mubr.bf16.mxu0 0
  %3928 = vmatmul.mubr.bf16.gmra.mrb[0].mxu0 %v3636
  %v3929 = vpop.f32.mrb[0].mxu0
  %v3930 = vadd.f32 %v3658, %v3929
  %v3931 = vpop.f32.mrb[0].mxu0
  %v3932 = vadd.f32 %v3662, %v3931
  %v3933 = vpop.f32.mrb[0].mxu0
  %v3934 = vadd.f32 %v3658, %v3933
  %v3935 = vpop.f32.mrb[0].mxu0
  %v3936 = vadd.f32 %v3662, %v3935
  %3937 = vdwg.mxu0
  %v3938 = vmul.f32 %v3780, 0.5
  %v3939 = vmul.f32 %v3782, 0.5
  %v3940 = vmul.f32 %v3784, 0.5
  %v3941 = vmul.f32 %v3786, 0.5
  %v3942 = vmul.f32 %v3790, 0.5
  %v3943 = vmul.f32 %v3792, 0.5
  %v3944 = vmul.f32 %v3794, 0.5
  %v3945 = vmul.f32 %v3796, 0.5
  %v3946 = vmul.f32 %v3800, 0.5
  %v3947 = vmul.f32 %v3802, 0.5
  %v3948 = vmul.f32 %v3804, 0.5
  %v3949 = vmul.f32 %v3806, 0.5
  %v3950 = vmul.f32 %v3810, 0.5
  %v3951 = vmul.f32 %v3812, 0.5
  %v3952 = vmul.f32 %v3814, 0.5
  %v3953 = vmul.f32 %v3816, 0.5
  %v3954 = vmul.f32 %v3820, 0.5
  %v3955 = vmul.f32 %v3822, 0.5
  %v3956 = vmul.f32 %v3824, 0.5
  %v3957 = vmul.f32 %v3826, 0.5
  %v3958 = vmul.f32 %v3830, 0.5
  %v3959 = vmul.f32 %v3832, 0.5
  %v3960 = vmul.f32 %v3834, 0.5
  %v3961 = vmul.f32 %v3836, 0.5
  %v3962 = vmul.f32 %v3840, 0.5
  %v3963 = vmul.f32 %v3842, 0.5
  %v3964 = vmul.f32 %v3844, 0.5
  %v3965 = vmul.f32 %v3846, 0.5
  %v3966 = vmul.f32 %v3850, 0.5
  %v3967 = vmul.f32 %v3852, 0.5
  %v3968 = vmul.f32 %v3854, 0.5
  %v3969 = vmul.f32 %v3856, 0.5
  %v3970 = vmul.f32 %v3860, 0.5
  %v3971 = vmul.f32 %v3862, 0.5
  %v3972 = vmul.f32 %v3864, 0.5
  %v3973 = vmul.f32 %v3866, 0.5
  %v3974 = vmul.f32 %v3870, 0.5
  %v3975 = vmul.f32 %v3872, 0.5
  %v3976 = vmul.f32 %v3874, 0.5
  %v3977 = vmul.f32 %v3876, 0.5
  %v3978 = vmul.f32 %v3880, 0.5
  %v3979 = vmul.f32 %v3882, 0.5
  %v3980 = vmul.f32 %v3884, 0.5
  %v3981 = vmul.f32 %v3886, 0.5
  %v3982 = vmul.f32 %v3890, 0.5
  %v3983 = vmul.f32 %v3892, 0.5
  %v3984 = vmul.f32 %v3894, 0.5
  %v3985 = vmul.f32 %v3896, 0.5
  %v3986 = vmul.f32 %v3900, 0.5
  %v3987 = vmul.f32 %v3902, 0.5
  %v3988 = vmul.f32 %v3904, 0.5
  %v3989 = vmul.f32 %v3906, 0.5
  %v3990 = vmul.f32 %v3910, 0.5
  %v3991 = vmul.f32 %v3912, 0.5
  %v3992 = vmul.f32 %v3914, 0.5
  %v3993 = vmul.f32 %v3916, 0.5
  %v3994 = vmul.f32 %v3920, 0.5
  %v3995 = vmul.f32 %v3922, 0.5
  %v3996 = vmul.f32 %v3924, 0.5
  %v3997 = vmul.f32 %v3926, 0.5
  %v3998 = vmul.f32 %v3930, 0.5
  %v3999 = vmul.f32 %v3932, 0.5
  %v4000 = vmul.f32 %v3934, 0.5
  %v4001 = vmul.f32 %v3936, 0.5
  %v4002 = vmul.f32 %v3780, 0.044715
  %v4003 = vmul.f32 %v3782, 0.044715
  %v4004 = vmul.f32 %v3784, 0.044715
  %v4005 = vmul.f32 %v3786, 0.044715
  %v4006 = vmul.f32 %v3790, 0.044715
  %v4007 = vmul.f32 %v3792, 0.044715
  %v4008 = vmul.f32 %v3794, 0.044715
  %v4009 = vmul.f32 %v3796, 0.044715
  %v4010 = vmul.f32 %v3800, 0.044715
  %v4011 = vmul.f32 %v3802, 0.044715
  %v4012 = vmul.f32 %v3804, 0.044715
  %v4013 = vmul.f32 %v3806, 0.044715
  %v4014 = vmul.f32 %v3810, 0.044715
  %v4015 = vmul.f32 %v3812, 0.044715
  %v4016 = vmul.f32 %v3814, 0.044715
  %v4017 = vmul.f32 %v3816, 0.044715
  %v4018 = vmul.f32 %v3820, 0.044715
  %v4019 = vmul.f32 %v3822, 0.044715
  %v4020 = vmul.f32 %v3824, 0.044715
  %v4021 = vmul.f32 %v3826, 0.044715
  %v4022 = vmul.f32 %v3830, 0.044715
  %v4023 = vmul.f32 %v3832, 0.044715
  %v4024 = vmul.f32 %v3834, 0.044715
  %v4025 = vmul.f32 %v3836, 0.044715
  %v4026 = vmul.f32 %v3840, 0.044715
  %v4027 = vmul.f32 %v3842, 0.044715
  %v4028 = vmul.f32 %v3844, 0.044715
  %v4029 = vmul.f32 %v3846, 0.044715
  %v4030 = vmul.f32 %v3850, 0.044715
  %v4031 = vmul.f32 %v3852, 0.044715
  %v4032 = vmul.f32 %v3854, 0.044715
  %v4033 = vmul.f32 %v3856, 0.044715
  %v4034 = vmul.f32 %v3860, 0.044715
  %v4035 = vmul.f32 %v3862, 0.044715
  %v4036 = vmul.f32 %v3864, 0.044715
  %v4037 = vmul.f32 %v3866, 0.044715
  %v4038 = vmul.f32 %v3870, 0.044715
  %v4039 = vmul.f32 %v3872, 0.044715
  %v4040 = vmul.f32 %v3874, 0.044715
  %v4041 = vmul.f32 %v3876, 0.044715
  %v4042 = vmul.f32 %v3880, 0.044715
  %v4043 = vmul.f32 %v3882, 0.044715
  %v4044 = vmul.f32 %v3884, 0.044715
  %v4045 = vmul.f32 %v3886, 0.044715
  %v4046 = vmul.f32 %v3890, 0.044715
  %v4047 = vmul.f32 %v3892, 0.044715
  %v4048 = vmul.f32 %v3894, 0.044715
  %v4049 = vmul.f32 %v3896, 0.044715
  %v4050 = vmul.f32 %v3900, 0.044715
  %v4051 = vmul.f32 %v3902, 0.044715
  %v4052 = vmul.f32 %v3904, 0.044715
  %v4053 = vmul.f32 %v3906, 0.044715
  %v4054 = vmul.f32 %v3910, 0.044715
  %v4055 = vmul.f32 %v3912, 0.044715
  %v4056 = vmul.f32 %v3914, 0.044715
  %v4057 = vmul.f32 %v3916, 0.044715
  %v4058 = vmul.f32 %v3920, 0.044715
  %v4059 = vmul.f32 %v3922, 0.044715
  %v4060 = vmul.f32 %v3924, 0.044715
  %v4061 = vmul.f32 %v3926, 0.044715
  %v4062 = vmul.f32 %v3930, 0.044715
  %v4063 = vmul.f32 %v3932, 0.044715
  %v4064 = vmul.f32 %v3934, 0.044715
  %v4065 = vmul.f32 %v3936, 0.044715
  %v4066 = vmul.f32 %v4002, %v3780
  %v4067 = vmul.f32 %v4003, %v3782
  %v4068 = vmul.f32 %v4004, %v3784
  %v4069 = vmul.f32 %v4005, %v3786
  %v4070 = vmul.f32 %v4006, %v3790
  %v4071 = vmul.f32 %v4007, %v3792
  %v4072 = vmul.f32 %v4008, %v3794
  %v4073 = vmul.f32 %v4009, %v3796
  %v4074 = vmul.f32 %v4010, %v3800
  %v4075 = vmul.f32 %v4011, %v3802
  %v4076 = vmul.f32 %v4012, %v3804
  %v4077 = vmul.f32 %v4013, %v3806
  %v4078 = vmul.f32 %v4014, %v3810
  %v4079 = vmul.f32 %v4015, %v3812
  %v4080 = vmul.f32 %v4016, %v3814
  %v4081 = vmul.f32 %v4017, %v3816
  %v4082 = vmul.f32 %v4018, %v3820
  %v4083 = vmul.f32 %v4019, %v3822
  %v4084 = vmul.f32 %v4020, %v3824
  %v4085 = vmul.f32 %v4021, %v3826
  %v4086 = vmul.f32 %v4022, %v3830
  %v4087 = vmul.f32 %v4023, %v3832
  %v4088 = vmul.f32 %v4024, %v3834
  %v4089 = vmul.f32 %v4025, %v3836
  %v4090 = vmul.f32 %v4026, %v3840
  %v4091 = vmul.f32 %v4027, %v3842
  %v4092 = vmul.f32 %v4028, %v3844
  %v4093 = vmul.f32 %v4029, %v3846
  %v4094 = vmul.f32 %v4030, %v3850
  %v4095 = vmul.f32 %v4031, %v3852
  %v4096 = vmul.f32 %v4032, %v3854
  %v4097 = vmul.f32 %v4033, %v3856
  %v4098 = vmul.f32 %v4034, %v3860
  %v4099 = vmul.f32 %v4035, %v3862
  %v4100 = vmul.f32 %v4036, %v3864
  %v4101 = vmul.f32 %v4037, %v3866
  %v4102 = vmul.f32 %v4038, %v3870
  %v4103 = vmul.f32 %v4039, %v3872
  %v4104 = vmul.f32 %v4040, %v3874
  %v4105 = vmul.f32 %v4041, %v3876
  %v4106 = vmul.f32 %v4042, %v3880
  %v4107 = vmul.f32 %v4043, %v3882
  %v4108 = vmul.f32 %v4044, %v3884
  %v4109 = vmul.f32 %v4045, %v3886
  %v4110 = vmul.f32 %v4046, %v3890
  %v4111 = vmul.f32 %v4047, %v3892
  %v4112 = vmul.f32 %v4048, %v3894
  %v4113 = vmul.f32 %v4049, %v3896
  %v4114 = vmul.f32 %v4050, %v3900
  %v4115 = vmul.f32 %v4051, %v3902
  %v4116 = vmul.f32 %v4052, %v3904
  %v4117 = vmul.f32 %v4053, %v3906
  %v4118 = vmul.f32 %v4054, %v3910
  %v4119 = vmul.f32 %v4055, %v3912
  %v4120 = vmul.f32 %v4056, %v3914
  %v4121 = vmul.f32 %v4057, %v3916
  %v4122 = vmul.f32 %v4058, %v3920
  %v4123 = vmul.f32 %v4059, %v3922
  %v4124 = vmul.f32 %v4060, %v3924
  %v4125 = vmul.f32 %v4061, %v3926
  %v4126 = vmul.f32 %v4062, %v3930
  %v4127 = vmul.f32 %v4063, %v3932
  %v4128 = vmul.f32 %v4064, %v3934
  %v4129 = vmul.f32 %v4065, %v3936
  %v4130 = vmul.f32 %v4066, %v3780
  %v4131 = vmul.f32 %v4067, %v3782
  %v4132 = vmul.f32 %v4068, %v3784
  %v4133 = vmul.f32 %v4069, %v3786
  %v4134 = vmul.f32 %v4070, %v3790
  %v4135 = vmul.f32 %v4071, %v3792
  %v4136 = vmul.f32 %v4072, %v3794
  %v4137 = vmul.f32 %v4073, %v3796
  %v4138 = vmul.f32 %v4074, %v3800
  %v4139 = vmul.f32 %v4075, %v3802
  %v4140 = vmul.f32 %v4076, %v3804
  %v4141 = vmul.f32 %v4077, %v3806
  %v4142 = vmul.f32 %v4078, %v3810
  %v4143 = vmul.f32 %v4079, %v3812
  %v4144 = vmul.f32 %v4080, %v3814
  %v4145 = vmul.f32 %v4081, %v3816
  %v4146 = vmul.f32 %v4082, %v3820
  %v4147 = vmul.f32 %v4083, %v3822
  %v4148 = vmul.f32 %v4084, %v3824
  %v4149 = vmul.f32 %v4085, %v3826
  %v4150 = vmul.f32 %v4086, %v3830
  %v4151 = vmul.f32 %v4087, %v3832
  %v4152 = vmul.f32 %v4088, %v3834
  %v4153 = vmul.f32 %v4089, %v3836
  %v4154 = vmul.f32 %v4090, %v3840
  %v4155 = vmul.f32 %v4091, %v3842
  %v4156 = vmul.f32 %v4092, %v3844
  %v4157 = vmul.f32 %v4093, %v3846
  %v4158 = vmul.f32 %v4094, %v3850
  %v4159 = vmul.f32 %v4095, %v3852
  %v4160 = vmul.f32 %v4096, %v3854
  %v4161 = vmul.f32 %v4097, %v3856
  %v4162 = vmul.f32 %v4098, %v3860
  %v4163 = vmul.f32 %v4099, %v3862
  %v4164 = vmul.f32 %v4100, %v3864
  %v4165 = vmul.f32 %v4101, %v3866
  %v4166 = vmul.f32 %v4102, %v3870
  %v4167 = vmul.f32 %v4103, %v3872
  %v4168 = vmul.f32 %v4104, %v3874
  %v4169 = vmul.f32 %v4105, %v3876
  %v4170 = vmul.f32 %v4106, %v3880
  %v4171 = vmul.f32 %v4107, %v3882
  %v4172 = vmul.f32 %v4108, %v3884
  %v4173 = vmul.f32 %v4109, %v3886
  %v4174 = vmul.f32 %v4110, %v3890
  %v4175 = vmul.f32 %v4111, %v3892
  %v4176 = vmul.f32 %v4112, %v3894
  %v4177 = vmul.f32 %v4113, %v3896
  %v4178 = vmul.f32 %v4114, %v3900
  %v4179 = vmul.f32 %v4115, %v3902
  %v4180 = vmul.f32 %v4116, %v3904
  %v4181 = vmul.f32 %v4117, %v3906
  %v4182 = vmul.f32 %v4118, %v3910
  %v4183 = vmul.f32 %v4119, %v3912
  %v4184 = vmul.f32 %v4120, %v3914
  %v4185 = vmul.f32 %v4121, %v3916
  %v4186 = vmul.f32 %v4122, %v3920
  %v4187 = vmul.f32 %v4123, %v3922
  %v4188 = vmul.f32 %v4124, %v3924
  %v4189 = vmul.f32 %v4125, %v3926
  %v4190 = vmul.f32 %v4126, %v3930
  %v4191 = vmul.f32 %v4127, %v3932
  %v4192 = vmul.f32 %v4128, %v3934
  %v4193 = vmul.f32 %v4129, %v3936
  %v4194 = vadd.f32 %v3780, %v4130
  %v4195 = vadd.f32 %v3782, %v4131
  %v4196 = vadd.f32 %v3784, %v4132
  %v4197 = vadd.f32 %v3786, %v4133
  %v4198 = vadd.f32 %v3790, %v4134
  %v4199 = vadd.f32 %v3792, %v4135
  %v4200 = vadd.f32 %v3794, %v4136
  %v4201 = vadd.f32 %v3796, %v4137
  %v4202 = vadd.f32 %v3800, %v4138
  %v4203 = vadd.f32 %v3802, %v4139
  %v4204 = vadd.f32 %v3804, %v4140
  %v4205 = vadd.f32 %v3806, %v4141
  %v4206 = vadd.f32 %v3810, %v4142
  %v4207 = vadd.f32 %v3812, %v4143
  %v4208 = vadd.f32 %v3814, %v4144
  %v4209 = vadd.f32 %v3816, %v4145
  %v4210 = vadd.f32 %v3820, %v4146
  %v4211 = vadd.f32 %v3822, %v4147
  %v4212 = vadd.f32 %v3824, %v4148
  %v4213 = vadd.f32 %v3826, %v4149
  %v4214 = vadd.f32 %v3830, %v4150
  %v4215 = vadd.f32 %v3832, %v4151
  %v4216 = vadd.f32 %v3834, %v4152
  %v4217 = vadd.f32 %v3836, %v4153
  %v4218 = vadd.f32 %v3840, %v4154
  %v4219 = vadd.f32 %v3842, %v4155
  %v4220 = vadd.f32 %v3844, %v4156
  %v4221 = vadd.f32 %v3846, %v4157
  %v4222 = vadd.f32 %v3850, %v4158
  %v4223 = vadd.f32 %v3852, %v4159
  %v4224 = vadd.f32 %v3854, %v4160
  %v4225 = vadd.f32 %v3856, %v4161
  %v4226 = vadd.f32 %v3860, %v4162
  %v4227 = vadd.f32 %v3862, %v4163
  %v4228 = vadd.f32 %v3864, %v4164
  %v4229 = vadd.f32 %v3866, %v4165
  %v4230 = vadd.f32 %v3870, %v4166
  %v4231 = vadd.f32 %v3872, %v4167
  %v4232 = vadd.f32 %v3874, %v4168
  %v4233 = vadd.f32 %v3876, %v4169
  %v4234 = vadd.f32 %v3880, %v4170
  %v4235 = vadd.f32 %v3882, %v4171
  %v4236 = vadd.f32 %v3884, %v4172
  %v4237 = vadd.f32 %v3886, %v4173
  %v4238 = vadd.f32 %v3890, %v4174
  %v4239 = vadd.f32 %v3892, %v4175
  %v4240 = vadd.f32 %v3894, %v4176
  %v4241 = vadd.f32 %v3896, %v4177
  %v4242 = vadd.f32 %v3900, %v4178
  %v4243 = vadd.f32 %v3902, %v4179
  %v4244 = vadd.f32 %v3904, %v4180
  %v4245 = vadd.f32 %v3906, %v4181
  %v4246 = vadd.f32 %v3910, %v4182
  %v4247 = vadd.f32 %v3912, %v4183
  %v4248 = vadd.f32 %v3914, %v4184
  %v4249 = vadd.f32 %v3916, %v4185
  %v4250 = vadd.f32 %v3920, %v4186
  %v4251 = vadd.f32 %v3922, %v4187
  %v4252 = vadd.f32 %v3924, %v4188
  %v4253 = vadd.f32 %v3926, %v4189
  %v4254 = vadd.f32 %v3930, %v4190
  %v4255 = vadd.f32 %v3932, %v4191
  %v4256 = vadd.f32 %v3934, %v4192
  %v4257 = vadd.f32 %v3936, %v4193
  %v4258 = vmul.f32 %v4194, 0.7978846
  %v4259 = vmul.f32 %v4195, 0.7978846
  %v4260 = vmul.f32 %v4196, 0.7978846
  %v4261 = vmul.f32 %v4197, 0.7978846
  %v4262 = vmul.f32 %v4198, 0.7978846
  %v4263 = vmul.f32 %v4199, 0.7978846
  %v4264 = vmul.f32 %v4200, 0.7978846
  %v4265 = vmul.f32 %v4201, 0.7978846
  %v4266 = vmul.f32 %v4202, 0.7978846
  %v4267 = vmul.f32 %v4203, 0.7978846
  %v4268 = vmul.f32 %v4204, 0.7978846
  %v4269 = vmul.f32 %v4205, 0.7978846
  %v4270 = vmul.f32 %v4206, 0.7978846
  %v4271 = vmul.f32 %v4207, 0.7978846
  %v4272 = vmul.f32 %v4208, 0.7978846
  %v4273 = vmul.f32 %v4209, 0.7978846
  %v4274 = vmul.f32 %v4210, 0.7978846
  %v4275 = vmul.f32 %v4211, 0.7978846
  %v4276 = vmul.f32 %v4212, 0.7978846
  %v4277 = vmul.f32 %v4213, 0.7978846
  %v4278 = vmul.f32 %v4214, 0.7978846
  %v4279 = vmul.f32 %v4215, 0.7978846
  %v4280 = vmul.f32 %v4216, 0.7978846
  %v4281 = vmul.f32 %v4217, 0.7978846
  %v4282 = vmul.f32 %v4218, 0.7978846
  %v4283 = vmul.f32 %v4219, 0.7978846
  %v4284 = vmul.f32 %v4220, 0.7978846
  %v4285 = vmul.f32 %v4221, 0.7978846
  %v4286 = vmul.f32 %v4222, 0.7978846
  %v4287 = vmul.f32 %v4223, 0.7978846
  %v4288 = vmul.f32 %v4224, 0.7978846
  %v4289 = vmul.f32 %v4225, 0.7978846
  %v4290 = vmul.f32 %v4226, 0.7978846
  %v4291 = vmul.f32 %v4227, 0.7978846
  %v4292 = vmul.f32 %v4228, 0.7978846
  %v4293 = vmul.f32 %v4229, 0.7978846
  %v4294 = vmul.f32 %v4230, 0.7978846
  %v4295 = vmul.f32 %v4231, 0.7978846
  %v4296 = vmul.f32 %v4232, 0.7978846
  %v4297 = vmul.f32 %v4233, 0.7978846
  %v4298 = vmul.f32 %v4234, 0.7978846
  %v4299 = vmul.f32 %v4235, 0.7978846
  %v4300 = vmul.f32 %v4236, 0.7978846
  %v4301 = vmul.f32 %v4237, 0.7978846
  %v4302 = vmul.f32 %v4238, 0.7978846
  %v4303 = vmul.f32 %v4239, 0.7978846
  %v4304 = vmul.f32 %v4240, 0.7978846
  %v4305 = vmul.f32 %v4241, 0.7978846
  %v4306 = vmul.f32 %v4242, 0.7978846
  %v4307 = vmul.f32 %v4243, 0.7978846
  %v4308 = vmul.f32 %v4244, 0.7978846
  %v4309 = vmul.f32 %v4245, 0.7978846
  %v4310 = vmul.f32 %v4246, 0.7978846
  %v4311 = vmul.f32 %v4247, 0.7978846
  %v4312 = vmul.f32 %v4248, 0.7978846
  %v4313 = vmul.f32 %v4249, 0.7978846
  %v4314 = vmul.f32 %v4250, 0.7978846
  %v4315 = vmul.f32 %v4251, 0.7978846
  %v4316 = vmul.f32 %v4252, 0.7978846
  %v4317 = vmul.f32 %v4253, 0.7978846
  %v4318 = vmul.f32 %v4254, 0.7978846
  %v4319 = vmul.f32 %v4255, 0.7978846
  %v4320 = vmul.f32 %v4256, 0.7978846
  %v4321 = vmul.f32 %v4257, 0.7978846
  %v4322 = vtanh.pop %v4258
  %v4323 = vtanh.pop %v4259
  %v4324 = vtanh.pop %v4260
  %v4325 = vtanh.pop %v4261
  %v4326 = vtanh.pop %v4262
  %v4327 = vtanh.pop %v4263
  %v4328 = vtanh.pop %v4264
  %v4329 = vtanh.pop %v4265
  %v4330 = vtanh.pop %v4266
  %v4331 = vtanh.pop %v4267
  %v4332 = vtanh.pop %v4268
  %v4333 = vtanh.pop %v4269
  %v4334 = vtanh.pop %v4270
  %v4335 = vtanh.pop %v4271
  %v4336 = vtanh.pop %v4272
  %v4337 = vtanh.pop %v4273
  %v4338 = vtanh.pop %v4274
  %v4339 = vtanh.pop %v4275
  %v4340 = vtanh.pop %v4276
  %v4341 = vtanh.pop %v4277
  %v4342 = vtanh.pop %v4278
  %v4343 = vtanh.pop %v4279
  %v4344 = vtanh.pop %v4280
  %v4345 = vtanh.pop %v4281
  %v4346 = vtanh.pop %v4282
  %v4347 = vtanh.pop %v4283
  %v4348 = vtanh.pop %v4284
  %v4349 = vtanh.pop %v4285
  %v4350 = vtanh.pop %v4286
  %v4351 = vtanh.pop %v4287
  %v4352 = vtanh.pop %v4288
  %v4353 = vtanh.pop %v4289
  %v4354 = vtanh.pop %v4290
  %v4355 = vtanh.pop %v4291
  %v4356 = vtanh.pop %v4292
  %v4357 = vtanh.pop %v4293
  %v4358 = vtanh.pop %v4294
  %v4359 = vtanh.pop %v4295
  %v4360 = vtanh.pop %v4296
  %v4361 = vtanh.pop %v4297
  %v4362 = vtanh.pop %v4298
  %v4363 = vtanh.pop %v4299
  %v4364 = vtanh.pop %v4300
  %v4365 = vtanh.pop %v4301
  %v4366 = vtanh.pop %v4302
  %v4367 = vtanh.pop %v4303
  %v4368 = vtanh.pop %v4304
  %v4369 = vtanh.pop %v4305
  %v4370 = vtanh.pop %v4306
  %v4371 = vtanh.pop %v4307
  %v4372 = vtanh.pop %v4308
  %v4373 = vtanh.pop %v4309
  %v4374 = vtanh.pop %v4310
  %v4375 = vtanh.pop %v4311
  %v4376 = vtanh.pop %v4312
  %v4377 = vtanh.pop %v4313
  %v4378 = vtanh.pop %v4314
  %v4379 = vtanh.pop %v4315
  %v4380 = vtanh.pop %v4316
  %v4381 = vtanh.pop %v4317
  %v4382 = vtanh.pop %v4318
  %v4383 = vtanh.pop %v4319
  %v4384 = vtanh.pop %v4320
  %v4385 = vtanh.pop %v4321
  %v4386 = vadd.f32 %v4322, 1.0
  %v4387 = vadd.f32 %v4323, 1.0
  %v4388 = vadd.f32 %v4324, 1.0
  %v4389 = vadd.f32 %v4325, 1.0
  %v4390 = vadd.f32 %v4326, 1.0
  %v4391 = vadd.f32 %v4327, 1.0
  %v4392 = vadd.f32 %v4328, 1.0
  %v4393 = vadd.f32 %v4329, 1.0
  %v4394 = vadd.f32 %v4330, 1.0
  %v4395 = vadd.f32 %v4331, 1.0
  %v4396 = vadd.f32 %v4332, 1.0
  %v4397 = vadd.f32 %v4333, 1.0
  %v4398 = vadd.f32 %v4334, 1.0
  %v4399 = vadd.f32 %v4335, 1.0
  %v4400 = vadd.f32 %v4336, 1.0
  %v4401 = vadd.f32 %v4337, 1.0
  %v4402 = vadd.f32 %v4338, 1.0
  %v4403 = vadd.f32 %v4339, 1.0
  %v4404 = vadd.f32 %v4340, 1.0
  %v4405 = vadd.f32 %v4341, 1.0
  %v4406 = vadd.f32 %v4342, 1.0
  %v4407 = vadd.f32 %v4343, 1.0
  %v4408 = vadd.f32 %v4344, 1.0
  %v4409 = vadd.f32 %v4345, 1.0
  %v4410 = vadd.f32 %v4346, 1.0
  %v4411 = vadd.f32 %v4347, 1.0
  %v4412 = vadd.f32 %v4348, 1.0
  %v4413 = vadd.f32 %v4349, 1.0
  %v4414 = vadd.f32 %v4350, 1.0
  %v4415 = vadd.f32 %v4351, 1.0
  %v4416 = vadd.f32 %v4352, 1.0
  %v4417 = vadd.f32 %v4353, 1.0
  %v4418 = vadd.f32 %v4354, 1.0
  %v4419 = vadd.f32 %v4355, 1.0
  %v4420 = vadd.f32 %v4356, 1.0
  %v4421 = vadd.f32 %v4357, 1.0
  %v4422 = vadd.f32 %v4358, 1.0
  %v4423 = vadd.f32 %v4359, 1.0
  %v4424 = vadd.f32 %v4360, 1.0
  %v4425 = vadd.f32 %v4361, 1.0
  %v4426 = vadd.f32 %v4362, 1.0
  %v4427 = vadd.f32 %v4363, 1.0
  %v4428 = vadd.f32 %v4364, 1.0
  %v4429 = vadd.f32 %v4365, 1.0
  %v4430 = vadd.f32 %v4366, 1.0
  %v4431 = vadd.f32 %v4367, 1.0
  %v4432 = vadd.f32 %v4368, 1.0
  %v4433 = vadd.f32 %v4369, 1.0
  %v4434 = vadd.f32 %v4370, 1.0
  %v4435 = vadd.f32 %v4371, 1.0
  %v4436 = vadd.f32 %v4372, 1.0
  %v4437 = vadd.f32 %v4373, 1.0
  %v4438 = vadd.f32 %v4374, 1.0
  %v4439 = vadd.f32 %v4375, 1.0
  %v4440 = vadd.f32 %v4376, 1.0
  %v4441 = vadd.f32 %v4377, 1.0
  %v4442 = vadd.f32 %v4378, 1.0
  %v4443 = vadd.f32 %v4379, 1.0
  %v4444 = vadd.f32 %v4380, 1.0
  %v4445 = vadd.f32 %v4381, 1.0
  %v4446 = vadd.f32 %v4382, 1.0
  %v4447 = vadd.f32 %v4383, 1.0
  %v4448 = vadd.f32 %v4384, 1.0
  %v4449 = vadd.f32 %v4385, 1.0
  %v4450 = vmul.f32 %v3938, %v4386
  %v4451 = vmul.f32 %v3939, %v4387
  %v4452 = vmul.f32 %v3940, %v4388
  %v4453 = vmul.f32 %v3941, %v4389
  %v4454 = vmul.f32 %v3942, %v4390
  %v4455 = vmul.f32 %v3943, %v4391
  %v4456 = vmul.f32 %v3944, %v4392
  %v4457 = vmul.f32 %v3945, %v4393
  %v4458 = vmul.f32 %v3946, %v4394
  %v4459 = vmul.f32 %v3947, %v4395
  %v4460 = vmul.f32 %v3948, %v4396
  %v4461 = vmul.f32 %v3949, %v4397
  %v4462 = vmul.f32 %v3950, %v4398
  %v4463 = vmul.f32 %v3951, %v4399
  %v4464 = vmul.f32 %v3952, %v4400
  %v4465 = vmul.f32 %v3953, %v4401
  %v4466 = vmul.f32 %v3954, %v4402
  %v4467 = vmul.f32 %v3955, %v4403
  %v4468 = vmul.f32 %v3956, %v4404
  %v4469 = vmul.f32 %v3957, %v4405
  %v4470 = vmul.f32 %v3958, %v4406
  %v4471 = vmul.f32 %v3959, %v4407
  %v4472 = vmul.f32 %v3960, %v4408
  %v4473 = vmul.f32 %v3961, %v4409
  %v4474 = vmul.f32 %v3962, %v4410
  %v4475 = vmul.f32 %v3963, %v4411
  %v4476 = vmul.f32 %v3964, %v4412
  %v4477 = vmul.f32 %v3965, %v4413
  %v4478 = vmul.f32 %v3966, %v4414
  %v4479 = vmul.f32 %v3967, %v4415
  %v4480 = vmul.f32 %v3968, %v4416
  %v4481 = vmul.f32 %v3969, %v4417
  %v4482 = vmul.f32 %v3970, %v4418
  %v4483 = vmul.f32 %v3971, %v4419
  %v4484 = vmul.f32 %v3972, %v4420
  %v4485 = vmul.f32 %v3973, %v4421
  %v4486 = vmul.f32 %v3974, %v4422
  %v4487 = vmul.f32 %v3975, %v4423
  %v4488 = vmul.f32 %v3976, %v4424
  %v4489 = vmul.f32 %v3977, %v4425
  %v4490 = vmul.f32 %v3978, %v4426
  %v4491 = vmul.f32 %v3979, %v4427
  %v4492 = vmul.f32 %v3980, %v4428
  %v4493 = vmul.f32 %v3981, %v4429
  %v4494 = vmul.f32 %v3982, %v4430
  %v4495 = vmul.f32 %v3983, %v4431
  %v4496 = vmul.f32 %v3984, %v4432
  %v4497 = vmul.f32 %v3985, %v4433
  %v4498 = vmul.f32 %v3986, %v4434
  %v4499 = vmul.f32 %v3987, %v4435
  %v4500 = vmul.f32 %v3988, %v4436
  %v4501 = vmul.f32 %v3989, %v4437
  %v4502 = vmul.f32 %v3990, %v4438
  %v4503 = vmul.f32 %v3991, %v4439
  %v4504 = vmul.f32 %v3992, %v4440
  %v4505 = vmul.f32 %v3993, %v4441
  %v4506 = vmul.f32 %v3994, %v4442
  %v4507 = vmul.f32 %v3995, %v4443
  %v4508 = vmul.f32 %v3996, %v4444
  %v4509 = vmul.f32 %v3997, %v4445
  %v4510 = vmul.f32 %v3998, %v4446
  %v4511 = vmul.f32 %v3999, %v4447
  %v4512 = vmul.f32 %v4000, %v4448
  %v4513 = vmul.f32 %v4001, %v4449
  %v4514 = vpack.c.bf16 %v4452, %v4450
  %v4515 = vpack.c.bf16 %v4453, %v4451
  %v4516 = vpack.c.bf16 %v4456, %v4454
  %v4517 = vpack.c.bf16 %v4457, %v4455
  %v4518 = vpack.c.bf16 %v4460, %v4458
  %v4519 = vpack.c.bf16 %v4461, %v4459
  %v4520 = vpack.c.bf16 %v4464, %v4462
  %v4521 = vpack.c.bf16 %v4465, %v4463
  %v4522 = vpack.c.bf16 %v4468, %v4466
  %v4523 = vpack.c.bf16 %v4469, %v4467
  %v4524 = vpack.c.bf16 %v4472, %v4470
  %v4525 = vpack.c.bf16 %v4473, %v4471
  %v4526 = vpack.c.bf16 %v4476, %v4474
  %v4527 = vpack.c.bf16 %v4477, %v4475
  %v4528 = vpack.c.bf16 %v4480, %v4478
  %v4529 = vpack.c.bf16 %v4481, %v4479
  %v4530 = vpack.c.bf16 %v4484, %v4482
  %v4531 = vpack.c.bf16 %v4485, %v4483
  %v4532 = vpack.c.bf16 %v4488, %v4486
  %v4533 = vpack.c.bf16 %v4489, %v4487
  %v4534 = vpack.c.bf16 %v4492, %v4490
  %v4535 = vpack.c.bf16 %v4493, %v4491
  %v4536 = vpack.c.bf16 %v4496, %v4494
  %v4537 = vpack.c.bf16 %v4497, %v4495
  %v4538 = vpack.c.bf16 %v4500, %v4498
  %v4539 = vpack.c.bf16 %v4501, %v4499
  %v4540 = vpack.c.bf16 %v4504, %v4502
  %v4541 = vpack.c.bf16 %v4505, %v4503
  %v4542 = vpack.c.bf16 %v4508, %v4506
  %v4543 = vpack.c.bf16 %v4509, %v4507
  %v4544 = vpack.c.bf16 %v4512, %v4510
  %v4545 = vpack.c.bf16 %v4513, %v4511
  %v4546 = vld [vmem:[%s9] sm:$0xf]
  %v4547 = vld [vmem:[%s9 + $0x4] sm:$0xf]
  %v4548 = vld [vmem:[%s9 + $0x8] sm:$0xf]
  %v4549 = vld [vmem:[%s9 + $0xc] sm:$0xf]
  %v4550 = vld [vmem:[%s9 + $0x10] sm:$0xf]
  %v4551 = vld [vmem:[%s9 + $0x14] sm:$0xf]
  %v4552 = vld [vmem:[%s9 + $0x18] sm:$0xf]
  %v4553 = vld [vmem:[%s9 + $0x1c] sm:$0xf]
  %v4554 = vld [vmem:[%s9 + $0x20] sm:$0xf]
  %v4555 = vld [vmem:[%s9 + $0x24] sm:$0xf]
  %v4556 = vld [vmem:[%s9 + $0x28] sm:$0xf]
  %v4557 = vld [vmem:[%s9 + $0x2c] sm:$0xf]
  %v4558 = vld [vmem:[%s9 + $0x30] sm:$0xf]
  %v4559 = vld [vmem:[%s9 + $0x34] sm:$0xf]
  %v4560 = vld [vmem:[%s9 + $0x38] sm:$0xf]
  %v4561 = vld [vmem:[%s9 + $0x3c] sm:$0xf]
  %v4562 = vld [vmem:[%s9 + $0x40] sm:$0xf]
  %v4563 = vld [vmem:[%s9 + $0x44] sm:$0xf]
  %v4564 = vld [vmem:[%s9 + $0x48] sm:$0xf]
  %v4565 = vld [vmem:[%s9 + $0x4c] sm:$0xf]
  %v4566 = vld [vmem:[%s9 + $0x50] sm:$0xf]
  %v4567 = vld [vmem:[%s9 + $0x54] sm:$0xf]
  %v4568 = vld [vmem:[%s9 + $0x58] sm:$0xf]
  %v4569 = vld [vmem:[%s9 + $0x5c] sm:$0xf]
  %v4570 = vld [vmem:[%s9 + $0x60] sm:$0xf]
  %v4571 = vld [vmem:[%s9 + $0x64] sm:$0xf]
  %v4572 = vld [vmem:[%s9 + $0x68] sm:$0xf]
  %v4573 = vld [vmem:[%s9 + $0x6c] sm:$0xf]
  %v4574 = vld [vmem:[%s9 + $0x70] sm:$0xf]
  %v4575 = vld [vmem:[%s9 + $0x74] sm:$0xf]
  %v4576 = vld [vmem:[%s9 + $0x78] sm:$0xf]
  %v4577 = vld [vmem:[%s9 + $0x7c] sm:$0xf]
  %v4578 = vld [vmem:[%s7 + $0x8] sm:$0xff]
  %v4579 = vld [vmem:[%s7 + $0x18] sm:$0xff]
  %v4580 = vld [vmem:[%s7 + $0x28] sm:$0xff]
  %v4581 = vld [vmem:[%s7 + $0x38] sm:$0xff]
  %v4582 = vld [vmem:[%s7 + $0x48] sm:$0xff]
  %v4583 = vld [vmem:[%s7 + $0x58] sm:$0xff]
  %v4584 = vld [vmem:[%s7 + $0x68] sm:$0xff]
  %v4585 = vld [vmem:[%s7 + $0x78] sm:$0xff]
  %v4586 = vld [vmem:[%s7 + $0x88] sm:$0xff]
  %v4587 = vld [vmem:[%s7 + $0x98] sm:$0xff]
  %v4588 = vld [vmem:[%s7 + $0xa8] sm:$0xff]
  %v4589 = vld [vmem:[%s7 + $0xb8] sm:$0xff]
  %v4590 = vld [vmem:[%s7 + $0xc8] sm:$0xff]
  %v4591 = vld [vmem:[%s7 + $0xd8] sm:$0xff]
  %v4592 = vld [vmem:[%s7 + $0xe8] sm:$0xff]
  %v4593 = vld [vmem:[%s7 + $0xf8] sm:$0xff]
  %v4594 = vld [vmem:[%s8 + $0x2] sm:$0x3]
  %v4596 = vlaneseq
  %v4597 = vshrl.u32 %v4596, 7
  %v4598 = vsub.s32 0, %v4597
  %v4599 = vrot.slane %v4594, %v4598
  %v4600 = vlaneseq
  %v4601 = vshrl.u32 %v4600, 7
  %v4602 = vsub.s32 1, %v4601
  %v4603 = vrot.slane %v4594, %v4602
  %v4622 = vunpack.c.l.b16 %v4578
  %v4623 = vunpack.c.h.b16 %v4578
  %v4624 = vunpack.c.l.b16 %v4579
  %v4625 = vunpack.c.h.b16 %v4579
  %v4626 = vunpack.c.l.b16 %v4580
  %v4627 = vunpack.c.h.b16 %v4580
  %v4628 = vunpack.c.l.b16 %v4581
  %v4629 = vunpack.c.h.b16 %v4581
  %v4630 = vunpack.c.l.b16 %v4582
  %v4631 = vunpack.c.h.b16 %v4582
  %v4632 = vunpack.c.l.b16 %v4583
  %v4633 = vunpack.c.h.b16 %v4583
  %v4634 = vunpack.c.l.b16 %v4584
  %v4635 = vunpack.c.h.b16 %v4584
  %v4636 = vunpack.c.l.b16 %v4585
  %v4637 = vunpack.c.h.b16 %v4585
  %v4638 = vunpack.c.l.b16 %v4586
  %v4639 = vunpack.c.h.b16 %v4586
  %v4640 = vunpack.c.l.b16 %v4587
  %v4641 = vunpack.c.h.b16 %v4587
  %v4642 = vunpack.c.l.b16 %v4588
  %v4643 = vunpack.c.h.b16 %v4588
  %v4644 = vunpack.c.l.b16 %v4589
  %v4645 = vunpack.c.h.b16 %v4589
  %v4646 = vunpack.c.l.b16 %v4590
  %v4647 = vunpack.c.h.b16 %v4590
  %v4648 = vunpack.c.l.b16 %v4591
  %v4649 = vunpack.c.h.b16 %v4591
  %v4650 = vunpack.c.l.b16 %v4592
  %v4651 = vunpack.c.h.b16 %v4592
  %v4652 = vunpack.c.l.b16 %v4593
  %v4653 = vunpack.c.h.b16 %v4593
  %v4654 = vpack.c.b16 %v4624, %v4622
  %v4655 = vpack.c.b16 %v4625, %v4623
  %v4656 = vpack.c.b16 %v4628, %v4626
  %v4657 = vpack.c.b16 %v4629, %v4627
  %v4658 = vpack.c.b16 %v4632, %v4630
  %v4659 = vpack.c.b16 %v4633, %v4631
  %v4660 = vpack.c.b16 %v4636, %v4634
  %v4661 = vpack.c.b16 %v4637, %v4635
  %v4662 = vpack.c.b16 %v4640, %v4638
  %v4663 = vpack.c.b16 %v4641, %v4639
  %v4664 = vpack.c.b16 %v4644, %v4642
  %v4665 = vpack.c.b16 %v4645, %v4643
  %v4666 = vpack.c.b16 %v4648, %v4646
  %v4667 = vpack.c.b16 %v4649, %v4647
  %v4668 = vpack.c.b16 %v4652, %v4650
  %v4669 = vpack.c.b16 %v4653, %v4651
  %4686 = vmatprep.subr.bf16.mxu0 %v4655
  %4687 = vmatpush1.bf16.msra.mxu0 %v4654
  %4688 = vmatprep.subr.bf16.mxu0 %v4657
  %4689 = vmatpush1.bf16.msra.mxu0 %v4656
  %4690 = vmatprep.subr.bf16.mxu0 %v4659
  %4691 = vmatpush1.bf16.msra.mxu0 %v4658
  %4692 = vmatprep.subr.bf16.mxu0 %v4661
  %4693 = vmatpush1.bf16.msra.mxu0 %v4660
  %4694 = vmatprep.subr.bf16.mxu0 %v4663
  %4695 = vmatpush1.bf16.msra.mxu0 %v4662
  %4696 = vmatprep.subr.bf16.mxu0 %v4665
  %4697 = vmatpush1.bf16.msra.mxu0 %v4664
  %4698 = vmatprep.subr.bf16.mxu0 %v4667
  %4699 = vmatpush1.bf16.msra.mxu0 %v4666
  %4700 = vmatprep.subr.bf16.mxu0 %v4669
  %4701 = vmatpush1.bf16.msra.mxu0 %v4668
  %4702 = vmatprep.subr.bf16.mxu0 0
  %4703 = vmatpush1.bf16.msra.mxu0 0
  %4704 = vmatprep.subr.bf16.mxu0 0
  %4705 = vmatpush1.bf16.msra.mxu0 0
  %4706 = vmatprep.subr.bf16.mxu0 0
  %4707 = vmatpush1.bf16.msra.mxu0 0
  %4708 = vmatprep.subr.bf16.mxu0 0
  %4709 = vmatpush1.bf16.msra.mxu0 0
  %4710 = vmatprep.subr.bf16.mxu0 0
  %4711 = vmatpush1.bf16.msra.mxu0 0
  %4712 = vmatprep.subr.bf16.mxu0 0
  %4713 = vmatpush1.bf16.msra.mxu0 0
  %4714 = vmatprep.subr.bf16.mxu0 0
  %4715 = vmatpush1.bf16.msra.mxu0 0
  %4716 = vmatprep.subr.bf16.mxu0 0
  %4717 = vmatpush1.bf16.msra.mxu0 0
  %4718 = vmatprep.mubr.bf16.mxu0 0
  %4719 = vmatmul.mubr.bf16.gmra.mrb[0].mxu0 %v3621
  %v4720 = vpop.f32.mrb[0].mxu0
  %v4721 = vadd.f32 %v4599, %v4720
  %v4722 = vpop.f32.mrb[0].mxu0
  %v4723 = vadd.f32 %v4603, %v4722
  %v4724 = vpop.f32.mrb[0].mxu0
  %v4725 = vadd.f32 %v4599, %v4724
  %v4726 = vpop.f32.mrb[0].mxu0
  %v4727 = vadd.f32 %v4603, %v4726
  %4728 = vmatprep.mubr.bf16.mxu0 0
  %4729 = vmatmul.mubr.bf16.gmra.mrb[0].mxu0 %v3622
  %v4730 = vpop.f32.mrb[0].mxu0
  %v4731 = vadd.f32 %v4599, %v4730
  %v4732 = vpop.f32.mrb[0].mxu0
  %v4733 = vadd.f32 %v4603, %v4732
  %v4734 = vpop.f32.mrb[0].mxu0
  %v4735 = vadd.f32 %v4599, %v4734
  %v4736 = vpop.f32.mrb[0].mxu0
  %v4737 = vadd.f32 %v4603, %v4736
  %4738 = vmatprep.mubr.bf16.mxu0 0
  %4739 = vmatmul.mubr.bf16.gmra.mrb[0].mxu0 %v3623
  %v4740 = vpop.f32.mrb[0].mxu0
  %v4741 = vadd.f32 %v4599, %v4740
  %v4742 = vpop.f32.mrb[0].mxu0
  %v4743 = vadd.f32 %v4603, %v4742
  %v4744 = vpop.f32.mrb[0].mxu0
  %v4745 = vadd.f32 %v4599, %v4744
  %v4746 = vpop.f32.mrb[0].mxu0
  %v4747 = vadd.f32 %v4603, %v4746
  %4748 = vmatprep.mubr.bf16.mxu0 0
  %4749 = vmatmul.mubr.bf16.gmra.mrb[0].mxu0 %v3624
  %v4750 = vpop.f32.mrb[0].mxu0
  %v4751 = vadd.f32 %v4599, %v4750
  %v4752 = vpop.f32.mrb[0].mxu0
  %v4753 = vadd.f32 %v4603, %v4752
  %v4754 = vpop.f32.mrb[0].mxu0
  %v4755 = vadd.f32 %v4599, %v4754
  %v4756 = vpop.f32.mrb[0].mxu0
  %v4757 = vadd.f32 %v4603, %v4756
  %4758 = vmatprep.mubr.bf16.mxu0 0
  %4759 = vmatmul.mubr.bf16.gmra.mrb[0].mxu0 %v3625
  %v4760 = vpop.f32.mrb[0].mxu0
  %v4761 = vadd.f32 %v4599, %v4760
  %v4762 = vpop.f32.mrb[0].mxu0
  %v4763 = vadd.f32 %v4603, %v4762
  %v4764 = vpop.f32.mrb[0].mxu0
  %v4765 = vadd.f32 %v4599, %v4764
  %v4766 = vpop.f32.mrb[0].mxu0
  %v4767 = vadd.f32 %v4603, %v4766
  %4768 = vmatprep.mubr.bf16.mxu0 0
  %4769 = vmatmul.mubr.bf16.gmra.mrb[0].mxu0 %v3626
  %v4770 = vpop.f32.mrb[0].mxu0
  %v4771 = vadd.f32 %v4599, %v4770
  %v4772 = vpop.f32.mrb[0].mxu0
  %v4773 = vadd.f32 %v4603, %v4772
  %v4774 = vpop.f32.mrb[0].mxu0
  %v4775 = vadd.f32 %v4599, %v4774
  %v4776 = vpop.f32.mrb[0].mxu0
  %v4777 = vadd.f32 %v4603, %v4776
  %4778 = vmatprep.mubr.bf16.mxu0 0
  %4779 = vmatmul.mubr.bf16.gmra.mrb[0].mxu0 %v3627
  %v4780 = vpop.f32.mrb[0].mxu0
  %v4781 = vadd.f32 %v4599, %v4780
  %v4782 = vpop.f32.mrb[0].mxu0
  %v4783 = vadd.f32 %v4603, %v4782
  %v4784 = vpop.f32.mrb[0].mxu0
  %v4785 = vadd.f32 %v4599, %v4784
  %v4786 = vpop.f32.mrb[0].mxu0
  %v4787 = vadd.f32 %v4603, %v4786
  %4788 = vmatprep.mubr.bf16.mxu0 0
  %4789 = vmatmul.mubr.bf16.gmra.mrb[0].mxu0 %v3628
  %v4790 = vpop.f32.mrb[0].mxu0
  %v4791 = vadd.f32 %v4599, %v4790
  %v4792 = vpop.f32.mrb[0].mxu0
  %v4793 = vadd.f32 %v4603, %v4792
  %v4794 = vpop.f32.mrb[0].mxu0
  %v4795 = vadd.f32 %v4599, %v4794
  %v4796 = vpop.f32.mrb[0].mxu0
  %v4797 = vadd.f32 %v4603, %v4796
  %4798 = vmatprep.mubr.bf16.mxu0 0
  %4799 = vmatmul.mubr.bf16.gmra.mrb[0].mxu0 %v3629
  %v4800 = vpop.f32.mrb[0].mxu0
  %v4801 = vadd.f32 %v4599, %v4800
  %v4802 = vpop.f32.mrb[0].mxu0
  %v4803 = vadd.f32 %v4603, %v4802
  %v4804 = vpop.f32.mrb[0].mxu0
  %v4805 = vadd.f32 %v4599, %v4804
  %v4806 = vpop.f32.mrb[0].mxu0
  %v4807 = vadd.f32 %v4603, %v4806
  %4808 = vmatprep.mubr.bf16.mxu0 0
  %4809 = vmatmul.mubr.bf16.gmra.mrb[0].mxu0 %v3630
  %v4810 = vpop.f32.mrb[0].mxu0
  %v4811 = vadd.f32 %v4599, %v4810
  %v4812 = vpop.f32.mrb[0].mxu0
  %v4813 = vadd.f32 %v4603, %v4812
  %v4814 = vpop.f32.mrb[0].mxu0
  %v4815 = vadd.f32 %v4599, %v4814
  %v4816 = vpop.f32.mrb[0].mxu0
  %v4817 = vadd.f32 %v4603, %v4816
  %4818 = vmatprep.mubr.bf16.mxu0 0
  %4819 = vmatmul.mubr.bf16.gmra.mrb[0].mxu0 %v3631
  %v4820 = vpop.f32.mrb[0].mxu0
  %v4821 = vadd.f32 %v4599, %v4820
  %v4822 = vpop.f32.mrb[0].mxu0
  %v4823 = vadd.f32 %v4603, %v4822
  %v4824 = vpop.f32.mrb[0].mxu0
  %v4825 = vadd.f32 %v4599, %v4824
  %v4826 = vpop.f32.mrb[0].mxu0
  %v4827 = vadd.f32 %v4603, %v4826
  %4828 = vmatprep.mubr.bf16.mxu0 0
  %4829 = vmatmul.mubr.bf16.gmra.mrb[0].mxu0 %v3632
  %v4830 = vpop.f32.mrb[0].mxu0
  %v4831 = vadd.f32 %v4599, %v4830
  %v4832 = vpop.f32.mrb[0].mxu0
  %v4833 = vadd.f32 %v4603, %v4832
  %v4834 = vpop.f32.mrb[0].mxu0
  %v4835 = vadd.f32 %v4599, %v4834
  %v4836 = vpop.f32.mrb[0].mxu0
  %v4837 = vadd.f32 %v4603, %v4836
  %4838 = vmatprep.mubr.bf16.mxu0 0
  %4839 = vmatmul.mubr.bf16.gmra.mrb[0].mxu0 %v3633
  %v4840 = vpop.f32.mrb[0].mxu0
  %v4841 = vadd.f32 %v4599, %v4840
  %v4842 = vpop.f32.mrb[0].mxu0
  %v4843 = vadd.f32 %v4603, %v4842
  %v4844 = vpop.f32.mrb[0].mxu0
  %v4845 = vadd.f32 %v4599, %v4844
  %v4846 = vpop.f32.mrb[0].mxu0
  %v4847 = vadd.f32 %v4603, %v4846
  %4848 = vmatprep.mubr.bf16.mxu0 0
  %4849 = vmatmul.mubr.bf16.gmra.mrb[0].mxu0 %v3634
  %v4850 = vpop.f32.mrb[0].mxu0
  %v4851 = vadd.f32 %v4599, %v4850
  %v4852 = vpop.f32.mrb[0].mxu0
  %v4853 = vadd.f32 %v4603, %v4852
  %v4854 = vpop.f32.mrb[0].mxu0
  %v4855 = vadd.f32 %v4599, %v4854
  %v4856 = vpop.f32.mrb[0].mxu0
  %v4857 = vadd.f32 %v4603, %v4856
  %4858 = vmatprep.mubr.bf16.mxu0 0
  %4859 = vmatmul.mubr.bf16.gmra.mrb[0].mxu0 %v3635
  %v4860 = vpop.f32.mrb[0].mxu0
  %v4861 = vadd.f32 %v4599, %v4860
  %v4862 = vpop.f32.mrb[0].mxu0
  %v4863 = vadd.f32 %v4603, %v4862
  %v4864 = vpop.f32.mrb[0].mxu0
  %v4865 = vadd.f32 %v4599, %v4864
  %v4866 = vpop.f32.mrb[0].mxu0
  %v4867 = vadd.f32 %v4603, %v4866
  %4868 = vmatprep.mubr.bf16.mxu0 0
  %4869 = vmatmul.mubr.bf16.gmra.mrb[0].mxu0 %v3636
  %v4870 = vpop.f32.mrb[0].mxu0
  %v4871 = vadd.f32 %v4599, %v4870
  %v4872 = vpop.f32.mrb[0].mxu0
  %v4873 = vadd.f32 %v4603, %v4872
  %v4874 = vpop.f32.mrb[0].mxu0
  %v4875 = vadd.f32 %v4599, %v4874
  %v4876 = vpop.f32.mrb[0].mxu0
  %v4877 = vadd.f32 %v4603, %v4876
  %4878 = vdwg.mxu0
  %v4879 = vmul.f32 %v4721, 0.5
  %v4880 = vmul.f32 %v4723, 0.5
  %v4881 = vmul.f32 %v4725, 0.5
  %v4882 = vmul.f32 %v4727, 0.5
  %v4883 = vmul.f32 %v4731, 0.5
  %v4884 = vmul.f32 %v4733, 0.5
  %v4885 = vmul.f32 %v4735, 0.5
  %v4886 = vmul.f32 %v4737, 0.5
  %v4887 = vmul.f32 %v4741, 0.5
  %v4888 = vmul.f32 %v4743, 0.5
  %v4889 = vmul.f32 %v4745, 0.5
  %v4890 = vmul.f32 %v4747, 0.5
  %v4891 = vmul.f32 %v4751, 0.5
  %v4892 = vmul.f32 %v4753, 0.5
  %v4893 = vmul.f32 %v4755, 0.5
  %v4894 = vmul.f32 %v4757, 0.5
  %v4895 = vmul.f32 %v4761, 0.5
  %v4896 = vmul.f32 %v4763, 0.5
  %v4897 = vmul.f32 %v4765, 0.5
  %v4898 = vmul.f32 %v4767, 0.5
  %v4899 = vmul.f32 %v4771, 0.5
  %v4900 = vmul.f32 %v4773, 0.5
  %v4901 = vmul.f32 %v4775, 0.5
  %v4902 = vmul.f32 %v4777, 0.5
  %v4903 = vmul.f32 %v4781, 0.5
  %v4904 = vmul.f32 %v4783, 0.5
  %v4905 = vmul.f32 %v4785, 0.5
  %v4906 = vmul.f32 %v4787, 0.5
  %v4907 = vmul.f32 %v4791, 0.5
  %v4908 = vmul.f32 %v4793, 0.5
  %v4909 = vmul.f32 %v4795, 0.5
  %v4910 = vmul.f32 %v4797, 0.5
  %v4911 = vmul.f32 %v4801, 0.5
  %v4912 = vmul.f32 %v4803, 0.5
  %v4913 = vmul.f32 %v4805, 0.5
  %v4914 = vmul.f32 %v4807, 0.5
  %v4915 = vmul.f32 %v4811, 0.5
  %v4916 = vmul.f32 %v4813, 0.5
  %v4917 = vmul.f32 %v4815, 0.5
  %v4918 = vmul.f32 %v4817, 0.5
  %v4919 = vmul.f32 %v4821, 0.5
  %v4920 = vmul.f32 %v4823, 0.5
  %v4921 = vmul.f32 %v4825, 0.5
  %v4922 = vmul.f32 %v4827, 0.5
  %v4923 = vmul.f32 %v4831, 0.5
  %v4924 = vmul.f32 %v4833, 0.5
  %v4925 = vmul.f32 %v4835, 0.5
  %v4926 = vmul.f32 %v4837, 0.5
  %v4927 = vmul.f32 %v4841, 0.5
  %v4928 = vmul.f32 %v4843, 0.5
  %v4929 = vmul.f32 %v4845, 0.5
  %v4930 = vmul.f32 %v4847, 0.5
  %v4931 = vmul.f32 %v4851, 0.5
  %v4932 = vmul.f32 %v4853, 0.5
  %v4933 = vmul.f32 %v4855, 0.5
  %v4934 = vmul.f32 %v4857, 0.5
  %v4935 = vmul.f32 %v4861, 0.5
  %v4936 = vmul.f32 %v4863, 0.5
  %v4937 = vmul.f32 %v4865, 0.5
  %v4938 = vmul.f32 %v4867, 0.5
  %v4939 = vmul.f32 %v4871, 0.5
  %v4940 = vmul.f32 %v4873, 0.5
  %v4941 = vmul.f32 %v4875, 0.5
  %v4942 = vmul.f32 %v4877, 0.5
  %v4943 = vmul.f32 %v4721, 0.044715
  %v4944 = vmul.f32 %v4723, 0.044715
  %v4945 = vmul.f32 %v4725, 0.044715
  %v4946 = vmul.f32 %v4727, 0.044715
  %v4947 = vmul.f32 %v4731, 0.044715
  %v4948 = vmul.f32 %v4733, 0.044715
  %v4949 = vmul.f32 %v4735, 0.044715
  %v4950 = vmul.f32 %v4737, 0.044715
  %v4951 = vmul.f32 %v4741, 0.044715
  %v4952 = vmul.f32 %v4743, 0.044715
  %v4953 = vmul.f32 %v4745, 0.044715
  %v4954 = vmul.f32 %v4747, 0.044715
  %v4955 = vmul.f32 %v4751, 0.044715
  %v4956 = vmul.f32 %v4753, 0.044715
  %v4957 = vmul.f32 %v4755, 0.044715
  %v4958 = vmul.f32 %v4757, 0.044715
  %v4959 = vmul.f32 %v4761, 0.044715
  %v4960 = vmul.f32 %v4763, 0.044715
  %v4961 = vmul.f32 %v4765, 0.044715
  %v4962 = vmul.f32 %v4767, 0.044715
  %v4963 = vmul.f32 %v4771, 0.044715
  %v4964 = vmul.f32 %v4773, 0.044715
  %v4965 = vmul.f32 %v4775, 0.044715
  %v4966 = vmul.f32 %v4777, 0.044715
  %v4967 = vmul.f32 %v4781, 0.044715
  %v4968 = vmul.f32 %v4783, 0.044715
  %v4969 = vmul.f32 %v4785, 0.044715
  %v4970 = vmul.f32 %v4787, 0.044715
  %v4971 = vmul.f32 %v4791, 0.044715
  %v4972 = vmul.f32 %v4793, 0.044715
  %v4973 = vmul.f32 %v4795, 0.044715
  %v4974 = vmul.f32 %v4797, 0.044715
  %v4975 = vmul.f32 %v4801, 0.044715
  %v4976 = vmul.f32 %v4803, 0.044715
  %v4977 = vmul.f32 %v4805, 0.044715
  %v4978 = vmul.f32 %v4807, 0.044715
  %v4979 = vmul.f32 %v4811, 0.044715
  %v4980 = vmul.f32 %v4813, 0.044715
  %v4981 = vmul.f32 %v4815, 0.044715
  %v4982 = vmul.f32 %v4817, 0.044715
  %v4983 = vmul.f32 %v4821, 0.044715
  %v4984 = vmul.f32 %v4823, 0.044715
  %v4985 = vmul.f32 %v4825, 0.044715
  %v4986 = vmul.f32 %v4827, 0.044715
  %v4987 = vmul.f32 %v4831, 0.044715
  %v4988 = vmul.f32 %v4833, 0.044715
  %v4989 = vmul.f32 %v4835, 0.044715
  %v4990 = vmul.f32 %v4837, 0.044715
  %v4991 = vmul.f32 %v4841, 0.044715
  %v4992 = vmul.f32 %v4843, 0.044715
  %v4993 = vmul.f32 %v4845, 0.044715
  %v4994 = vmul.f32 %v4847, 0.044715
  %v4995 = vmul.f32 %v4851, 0.044715
  %v4996 = vmul.f32 %v4853, 0.044715
  %v4997 = vmul.f32 %v4855, 0.044715
  %v4998 = vmul.f32 %v4857, 0.044715
  %v4999 = vmul.f32 %v4861, 0.044715
  %v5000 = vmul.f32 %v4863, 0.044715
  %v5001 = vmul.f32 %v4865, 0.044715
  %v5002 = vmul.f32 %v4867, 0.044715
  %v5003 = vmul.f32 %v4871, 0.044715
  %v5004 = vmul.f32 %v4873, 0.044715
  %v5005 = vmul.f32 %v4875, 0.044715
  %v5006 = vmul.f32 %v4877, 0.044715
  %v5007 = vmul.f32 %v4943, %v4721
  %v5008 = vmul.f32 %v4944, %v4723
  %v5009 = vmul.f32 %v4945, %v4725
  %v5010 = vmul.f32 %v4946, %v4727
  %v5011 = vmul.f32 %v4947, %v4731
  %v5012 = vmul.f32 %v4948, %v4733
  %v5013 = vmul.f32 %v4949, %v4735
  %v5014 = vmul.f32 %v4950, %v4737
  %v5015 = vmul.f32 %v4951, %v4741
  %v5016 = vmul.f32 %v4952, %v4743
  %v5017 = vmul.f32 %v4953, %v4745
  %v5018 = vmul.f32 %v4954, %v4747
  %v5019 = vmul.f32 %v4955, %v4751
  %v5020 = vmul.f32 %v4956, %v4753
  %v5021 = vmul.f32 %v4957, %v4755
  %v5022 = vmul.f32 %v4958, %v4757
  %v5023 = vmul.f32 %v4959, %v4761
  %v5024 = vmul.f32 %v4960, %v4763
  %v5025 = vmul.f32 %v4961, %v4765
  %v5026 = vmul.f32 %v4962, %v4767
  %v5027 = vmul.f32 %v4963, %v4771
  %v5028 = vmul.f32 %v4964, %v4773
  %v5029 = vmul.f32 %v4965, %v4775
  %v5030 = vmul.f32 %v4966, %v4777
  %v5031 = vmul.f32 %v4967, %v4781
  %v5032 = vmul.f32 %v4968, %v4783
  %v5033 = vmul.f32 %v4969, %v4785
  %v5034 = vmul.f32 %v4970, %v4787
  %v5035 = vmul.f32 %v4971, %v4791
  %v5036 = vmul.f32 %v4972, %v4793
  %v5037 = vmul.f32 %v4973, %v4795
  %v5038 = vmul.f32 %v4974, %v4797
  %v5039 = vmul.f32 %v4975, %v4801
  %v5040 = vmul.f32 %v4976, %v4803
  %v5041 = vmul.f32 %v4977, %v4805
  %v5042 = vmul.f32 %v4978, %v4807
  %v5043 = vmul.f32 %v4979, %v4811
  %v5044 = vmul.f32 %v4980, %v4813
  %v5045 = vmul.f32 %v4981, %v4815
  %v5046 = vmul.f32 %v4982, %v4817
  %v5047 = vmul.f32 %v4983, %v4821
  %v5048 = vmul.f32 %v4984, %v4823
  %v5049 = vmul.f32 %v4985, %v4825
  %v5050 = vmul.f32 %v4986, %v4827
  %v5051 = vmul.f32 %v4987, %v4831
  %v5052 = vmul.f32 %v4988, %v4833
  %v5053 = vmul.f32 %v4989, %v4835
  %v5054 = vmul.f32 %v4990, %v4837
  %v5055 = vmul.f32 %v4991, %v4841
  %v5056 = vmul.f32 %v4992, %v4843
  %v5057 = vmul.f32 %v4993, %v4845
  %v5058 = vmul.f32 %v4994, %v4847
  %v5059 = vmul.f32 %v4995, %v4851
  %v5060 = vmul.f32 %v4996, %v4853
  %v5061 = vmul.f32 %v4997, %v4855
  %v5062 = vmul.f32 %v4998, %v4857
  %v5063 = vmul.f32 %v4999, %v4861
  %v5064 = vmul.f32 %v5000, %v4863
  %v5065 = vmul.f32 %v5001, %v4865
  %v5066 = vmul.f32 %v5002, %v4867
  %v5067 = vmul.f32 %v5003, %v4871
  %v5068 = vmul.f32 %v5004, %v4873
  %v5069 = vmul.f32 %v5005, %v4875
  %v5070 = vmul.f32 %v5006, %v4877
  %v5071 = vmul.f32 %v5007, %v4721
  %v5072 = vmul.f32 %v5008, %v4723
  %v5073 = vmul.f32 %v5009, %v4725
  %v5074 = vmul.f32 %v5010, %v4727
  %v5075 = vmul.f32 %v5011, %v4731
  %v5076 = vmul.f32 %v5012, %v4733
  %v5077 = vmul.f32 %v5013, %v4735
  %v5078 = vmul.f32 %v5014, %v4737
  %v5079 = vmul.f32 %v5015, %v4741
  %v5080 = vmul.f32 %v5016, %v4743
  %v5081 = vmul.f32 %v5017, %v4745
  %v5082 = vmul.f32 %v5018, %v4747
  %v5083 = vmul.f32 %v5019, %v4751
  %v5084 = vmul.f32 %v5020, %v4753
  %v5085 = vmul.f32 %v5021, %v4755
  %v5086 = vmul.f32 %v5022, %v4757
  %v5087 = vmul.f32 %v5023, %v4761
  %v5088 = vmul.f32 %v5024, %v4763
  %v5089 = vmul.f32 %v5025, %v4765
  %v5090 = vmul.f32 %v5026, %v4767
  %v5091 = vmul.f32 %v5027, %v4771
  %v5092 = vmul.f32 %v5028, %v4773
  %v5093 = vmul.f32 %v5029, %v4775
  %v5094 = vmul.f32 %v5030, %v4777
  %v5095 = vmul.f32 %v5031, %v4781
  %v5096 = vmul.f32 %v5032, %v4783
  %v5097 = vmul.f32 %v5033, %v4785
  %v5098 = vmul.f32 %v5034, %v4787
  %v5099 = vmul.f32 %v5035, %v4791
  %v5100 = vmul.f32 %v5036, %v4793
  %v5101 = vmul.f32 %v5037, %v4795
  %v5102 = vmul.f32 %v5038, %v4797
  %v5103 = vmul.f32 %v5039, %v4801
  %v5104 = vmul.f32 %v5040, %v4803
  %v5105 = vmul.f32 %v5041, %v4805
  %v5106 = vmul.f32 %v5042, %v4807
  %v5107 = vmul.f32 %v5043, %v4811
  %v5108 = vmul.f32 %v5044, %v4813
  %v5109 = vmul.f32 %v5045, %v4815
  %v5110 = vmul.f32 %v5046, %v4817
  %v5111 = vmul.f32 %v5047, %v4821
  %v5112 = vmul.f32 %v5048, %v4823
  %v5113 = vmul.f32 %v5049, %v4825
  %v5114 = vmul.f32 %v5050, %v4827
  %v5115 = vmul.f32 %v5051, %v4831
  %v5116 = vmul.f32 %v5052, %v4833
  %v5117 = vmul.f32 %v5053, %v4835
  %v5118 = vmul.f32 %v5054, %v4837
  %v5119 = vmul.f32 %v5055, %v4841
  %v5120 = vmul.f32 %v5056, %v4843
  %v5121 = vmul.f32 %v5057, %v4845
  %v5122 = vmul.f32 %v5058, %v4847
  %v5123 = vmul.f32 %v5059, %v4851
  %v5124 = vmul.f32 %v5060, %v4853
  %v5125 = vmul.f32 %v5061, %v4855
  %v5126 = vmul.f32 %v5062, %v4857
  %v5127 = vmul.f32 %v5063, %v4861
  %v5128 = vmul.f32 %v5064, %v4863
  %v5129 = vmul.f32 %v5065, %v4865
  %v5130 = vmul.f32 %v5066, %v4867
  %v5131 = vmul.f32 %v5067, %v4871
  %v5132 = vmul.f32 %v5068, %v4873
  %v5133 = vmul.f32 %v5069, %v4875
  %v5134 = vmul.f32 %v5070, %v4877
  %v5135 = vadd.f32 %v4721, %v5071
  %v5136 = vadd.f32 %v4723, %v5072
  %v5137 = vadd.f32 %v4725, %v5073
  %v5138 = vadd.f32 %v4727, %v5074
  %v5139 = vadd.f32 %v4731, %v5075
  %v5140 = vadd.f32 %v4733, %v5076
  %v5141 = vadd.f32 %v4735, %v5077
  %v5142 = vadd.f32 %v4737, %v5078
  %v5143 = vadd.f32 %v4741, %v5079
  %v5144 = vadd.f32 %v4743, %v5080
  %v5145 = vadd.f32 %v4745, %v5081
  %v5146 = vadd.f32 %v4747, %v5082
  %v5147 = vadd.f32 %v4751, %v5083
  %v5148 = vadd.f32 %v4753, %v5084
  %v5149 = vadd.f32 %v4755, %v5085
  %v5150 = vadd.f32 %v4757, %v5086
  %v5151 = vadd.f32 %v4761, %v5087
  %v5152 = vadd.f32 %v4763, %v5088
  %v5153 = vadd.f32 %v4765, %v5089
  %v5154 = vadd.f32 %v4767, %v5090
  %v5155 = vadd.f32 %v4771, %v5091
  %v5156 = vadd.f32 %v4773, %v5092
  %v5157 = vadd.f32 %v4775, %v5093
  %v5158 = vadd.f32 %v4777, %v5094
  %v5159 = vadd.f32 %v4781, %v5095
  %v5160 = vadd.f32 %v4783, %v5096
  %v5161 = vadd.f32 %v4785, %v5097
  %v5162 = vadd.f32 %v4787, %v5098
  %v5163 = vadd.f32 %v4791, %v5099
  %v5164 = vadd.f32 %v4793, %v5100
  %v5165 = vadd.f32 %v4795, %v5101
  %v5166 = vadd.f32 %v4797, %v5102
  %v5167 = vadd.f32 %v4801, %v5103
  %v5168 = vadd.f32 %v4803, %v5104
  %v5169 = vadd.f32 %v4805, %v5105
  %v5170 = vadd.f32 %v4807, %v5106
  %v5171 = vadd.f32 %v4811, %v5107
  %v5172 = vadd.f32 %v4813, %v5108
  %v5173 = vadd.f32 %v4815, %v5109
  %v5174 = vadd.f32 %v4817, %v5110
  %v5175 = vadd.f32 %v4821, %v5111
  %v5176 = vadd.f32 %v4823, %v5112
  %v5177 = vadd.f32 %v4825, %v5113
  %v5178 = vadd.f32 %v4827, %v5114
  %v5179 = vadd.f32 %v4831, %v5115
  %v5180 = vadd.f32 %v4833, %v5116
  %v5181 = vadd.f32 %v4835, %v5117
  %v5182 = vadd.f32 %v4837, %v5118
  %v5183 = vadd.f32 %v4841, %v5119
  %v5184 = vadd.f32 %v4843, %v5120
  %v5185 = vadd.f32 %v4845, %v5121
  %v5186 = vadd.f32 %v4847, %v5122
  %v5187 = vadd.f32 %v4851, %v5123
  %v5188 = vadd.f32 %v4853, %v5124
  %v5189 = vadd.f32 %v4855, %v5125
  %v5190 = vadd.f32 %v4857, %v5126
  %v5191 = vadd.f32 %v4861, %v5127
  %v5192 = vadd.f32 %v4863, %v5128
  %v5193 = vadd.f32 %v4865, %v5129
  %v5194 = vadd.f32 %v4867, %v5130
  %v5195 = vadd.f32 %v4871, %v5131
  %v5196 = vadd.f32 %v4873, %v5132
  %v5197 = vadd.f32 %v4875, %v5133
  %v5198 = vadd.f32 %v4877, %v5134
  %v5199 = vmul.f32 %v5135, 0.7978846
  %v5200 = vmul.f32 %v5136, 0.7978846
  %v5201 = vmul.f32 %v5137, 0.7978846
  %v5202 = vmul.f32 %v5138, 0.7978846
  %v5203 = vmul.f32 %v5139, 0.7978846
  %v5204 = vmul.f32 %v5140, 0.7978846
  %v5205 = vmul.f32 %v5141, 0.7978846
  %v5206 = vmul.f32 %v5142, 0.7978846
  %v5207 = vmul.f32 %v5143, 0.7978846
  %v5208 = vmul.f32 %v5144, 0.7978846
  %v5209 = vmul.f32 %v5145, 0.7978846
  %v5210 = vmul.f32 %v5146, 0.7978846
  %v5211 = vmul.f32 %v5147, 0.7978846
  %v5212 = vmul.f32 %v5148, 0.7978846
  %v5213 = vmul.f32 %v5149, 0.7978846
  %v5214 = vmul.f32 %v5150, 0.7978846
  %v5215 = vmul.f32 %v5151, 0.7978846
  %v5216 = vmul.f32 %v5152, 0.7978846
  %v5217 = vmul.f32 %v5153, 0.7978846
  %v5218 = vmul.f32 %v5154, 0.7978846
  %v5219 = vmul.f32 %v5155, 0.7978846
  %v5220 = vmul.f32 %v5156, 0.7978846
  %v5221 = vmul.f32 %v5157, 0.7978846
  %v5222 = vmul.f32 %v5158, 0.7978846
  %v5223 = vmul.f32 %v5159, 0.7978846
  %v5224 = vmul.f32 %v5160, 0.7978846
  %v5225 = vmul.f32 %v5161, 0.7978846
  %v5226 = vmul.f32 %v5162, 0.7978846
  %v5227 = vmul.f32 %v5163, 0.7978846
  %v5228 = vmul.f32 %v5164, 0.7978846
  %v5229 = vmul.f32 %v5165, 0.7978846
  %v5230 = vmul.f32 %v5166, 0.7978846
  %v5231 = vmul.f32 %v5167, 0.7978846
  %v5232 = vmul.f32 %v5168, 0.7978846
  %v5233 = vmul.f32 %v5169, 0.7978846
  %v5234 = vmul.f32 %v5170, 0.7978846
  %v5235 = vmul.f32 %v5171, 0.7978846
  %v5236 = vmul.f32 %v5172, 0.7978846
  %v5237 = vmul.f32 %v5173, 0.7978846
  %v5238 = vmul.f32 %v5174, 0.7978846
  %v5239 = vmul.f32 %v5175, 0.7978846
  %v5240 = vmul.f32 %v5176, 0.7978846
  %v5241 = vmul.f32 %v5177, 0.7978846
  %v5242 = vmul.f32 %v5178, 0.7978846
  %v5243 = vmul.f32 %v5179, 0.7978846
  %v5244 = vmul.f32 %v5180, 0.7978846
  %v5245 = vmul.f32 %v5181, 0.7978846
  %v5246 = vmul.f32 %v5182, 0.7978846
  %v5247 = vmul.f32 %v5183, 0.7978846
  %v5248 = vmul.f32 %v5184, 0.7978846
  %v5249 = vmul.f32 %v5185, 0.7978846
  %v5250 = vmul.f32 %v5186, 0.7978846
  %v5251 = vmul.f32 %v5187, 0.7978846
  %v5252 = vmul.f32 %v5188, 0.7978846
  %v5253 = vmul.f32 %v5189, 0.7978846
  %v5254 = vmul.f32 %v5190, 0.7978846
  %v5255 = vmul.f32 %v5191, 0.7978846
  %v5256 = vmul.f32 %v5192, 0.7978846
  %v5257 = vmul.f32 %v5193, 0.7978846
  %v5258 = vmul.f32 %v5194, 0.7978846
  %v5259 = vmul.f32 %v5195, 0.7978846
  %v5260 = vmul.f32 %v5196, 0.7978846
  %v5261 = vmul.f32 %v5197, 0.7978846
  %v5262 = vmul.f32 %v5198, 0.7978846
  %v5263 = vtanh.pop %v5199
  %v5264 = vtanh.pop %v5200
  %v5265 = vtanh.pop %v5201
  %v5266 = vtanh.pop %v5202
  %v5267 = vtanh.pop %v5203
  %v5268 = vtanh.pop %v5204
  %v5269 = vtanh.pop %v5205
  %v5270 = vtanh.pop %v5206
  %v5271 = vtanh.pop %v5207
  %v5272 = vtanh.pop %v5208
  %v5273 = vtanh.pop %v5209
  %v5274 = vtanh.pop %v5210
  %v5275 = vtanh.pop %v5211
  %v5276 = vtanh.pop %v5212
  %v5277 = vtanh.pop %v5213
  %v5278 = vtanh.pop %v5214
  %v5279 = vtanh.pop %v5215
  %v5280 = vtanh.pop %v5216
  %v5281 = vtanh.pop %v5217
  %v5282 = vtanh.pop %v5218
  %v5283 = vtanh.pop %v5219
  %v5284 = vtanh.pop %v5220
  %v5285 = vtanh.pop %v5221
  %v5286 = vtanh.pop %v5222
  %v5287 = vtanh.pop %v5223
  %v5288 = vtanh.pop %v5224
  %v5289 = vtanh.pop %v5225
  %v5290 = vtanh.pop %v5226
  %v5291 = vtanh.pop %v5227
  %v5292 = vtanh.pop %v5228
  %v5293 = vtanh.pop %v5229
  %v5294 = vtanh.pop %v5230
  %v5295 = vtanh.pop %v5231
  %v5296 = vtanh.pop %v5232
  %v5297 = vtanh.pop %v5233
  %v5298 = vtanh.pop %v5234
  %v5299 = vtanh.pop %v5235
  %v5300 = vtanh.pop %v5236
  %v5301 = vtanh.pop %v5237
  %v5302 = vtanh.pop %v5238
  %v5303 = vtanh.pop %v5239
  %v5304 = vtanh.pop %v5240
  %v5305 = vtanh.pop %v5241
  %v5306 = vtanh.pop %v5242
  %v5307 = vtanh.pop %v5243
  %v5308 = vtanh.pop %v5244
  %v5309 = vtanh.pop %v5245
  %v5310 = vtanh.pop %v5246
  %v5311 = vtanh.pop %v5247
  %v5312 = vtanh.pop %v5248
  %v5313 = vtanh.pop %v5249
  %v5314 = vtanh.pop %v5250
  %v5315 = vtanh.pop %v5251
  %v5316 = vtanh.pop %v5252
  %v5317 = vtanh.pop %v5253
  %v5318 = vtanh.pop %v5254
  %v5319 = vtanh.pop %v5255
  %v5320 = vtanh.pop %v5256
  %v5321 = vtanh.pop %v5257
  %v5322 = vtanh.pop %v5258
  %v5323 = vtanh.pop %v5259
  %v5324 = vtanh.pop %v5260
  %v5325 = vtanh.pop %v5261
  %v5326 = vtanh.pop %v5262
  %v5327 = vadd.f32 %v5263, 1.0
  %v5328 = vadd.f32 %v5264, 1.0
  %v5329 = vadd.f32 %v5265, 1.0
  %v5330 = vadd.f32 %v5266, 1.0
  %v5331 = vadd.f32 %v5267, 1.0
  %v5332 = vadd.f32 %v5268, 1.0
  %v5333 = vadd.f32 %v5269, 1.0
  %v5334 = vadd.f32 %v5270, 1.0
  %v5335 = vadd.f32 %v5271, 1.0
  %v5336 = vadd.f32 %v5272, 1.0
  %v5337 = vadd.f32 %v5273, 1.0
  %v5338 = vadd.f32 %v5274, 1.0
  %v5339 = vadd.f32 %v5275, 1.0
  %v5340 = vadd.f32 %v5276, 1.0
  %v5341 = vadd.f32 %v5277, 1.0
  %v5342 = vadd.f32 %v5278, 1.0
  %v5343 = vadd.f32 %v5279, 1.0
  %v5344 = vadd.f32 %v5280, 1.0
  %v5345 = vadd.f32 %v5281, 1.0
  %v5346 = vadd.f32 %v5282, 1.0
  %v5347 = vadd.f32 %v5283, 1.0
  %v5348 = vadd.f32 %v5284, 1.0
  %v5349 = vadd.f32 %v5285, 1.0
  %v5350 = vadd.f32 %v5286, 1.0
  %v5351 = vadd.f32 %v5287, 1.0
  %v5352 = vadd.f32 %v5288, 1.0
  %v5353 = vadd.f32 %v5289, 1.0
  %v5354 = vadd.f32 %v5290, 1.0
  %v5355 = vadd.f32 %v5291, 1.0
  %v5356 = vadd.f32 %v5292, 1.0
  %v5357 = vadd.f32 %v5293, 1.0
  %v5358 = vadd.f32 %v5294, 1.0
  %v5359 = vadd.f32 %v5295, 1.0
  %v5360 = vadd.f32 %v5296, 1.0
  %v5361 = vadd.f32 %v5297, 1.0
  %v5362 = vadd.f32 %v5298, 1.0
  %v5363 = vadd.f32 %v5299, 1.0
  %v5364 = vadd.f32 %v5300, 1.0
  %v5365 = vadd.f32 %v5301, 1.0
  %v5366 = vadd.f32 %v5302, 1.0
  %v5367 = vadd.f32 %v5303, 1.0
  %v5368 = vadd.f32 %v5304, 1.0
  %v5369 = vadd.f32 %v5305, 1.0
  %v5370 = vadd.f32 %v5306, 1.0
  %v5371 = vadd.f32 %v5307, 1.0
  %v5372 = vadd.f32 %v5308, 1.0
  %v5373 = vadd.f32 %v5309, 1.0
  %v5374 = vadd.f32 %v5310, 1.0
  %v5375 = vadd.f32 %v5311, 1.0
  %v5376 = vadd.f32 %v5312, 1.0
  %v5377 = vadd.f32 %v5313, 1.0
  %v5378 = vadd.f32 %v5314, 1.0
  %v5379 = vadd.f32 %v5315, 1.0
  %v5380 = vadd.f32 %v5316, 1.0
  %v5381 = vadd.f32 %v5317, 1.0
  %v5382 = vadd.f32 %v5318, 1.0
  %v5383 = vadd.f32 %v5319, 1.0
  %v5384 = vadd.f32 %v5320, 1.0
  %v5385 = vadd.f32 %v5321, 1.0
  %v5386 = vadd.f32 %v5322, 1.0
  %v5387 = vadd.f32 %v5323, 1.0
  %v5388 = vadd.f32 %v5324, 1.0
  %v5389 = vadd.f32 %v5325, 1.0
  %v5390 = vadd.f32 %v5326, 1.0
  %v5391 = vmul.f32 %v4879, %v5327
  %v5392 = vmul.f32 %v4880, %v5328
  %v5393 = vmul.f32 %v4881, %v5329
  %v5394 = vmul.f32 %v4882, %v5330
  %v5395 = vmul.f32 %v4883, %v5331
  %v5396 = vmul.f32 %v4884, %v5332
  %v5397 = vmul.f32 %v4885, %v5333
  %v5398 = vmul.f32 %v4886, %v5334
  %v5399 = vmul.f32 %v4887, %v5335
  %v5400 = vmul.f32 %v4888, %v5336
  %v5401 = vmul.f32 %v4889, %v5337
  %v5402 = vmul.f32 %v4890, %v5338
  %v5403 = vmul.f32 %v4891, %v5339
  %v5404 = vmul.f32 %v4892, %v5340
  %v5405 = vmul.f32 %v4893, %v5341
  %v5406 = vmul.f32 %v4894, %v5342
  %v5407 = vmul.f32 %v4895, %v5343
  %v5408 = vmul.f32 %v4896, %v5344
  %v5409 = vmul.f32 %v4897, %v5345
  %v5410 = vmul.f32 %v4898, %v5346
  %v5411 = vmul.f32 %v4899, %v5347
  %v5412 = vmul.f32 %v4900, %v5348
  %v5413 = vmul.f32 %v4901, %v5349
  %v5414 = vmul.f32 %v4902, %v5350
  %v5415 = vmul.f32 %v4903, %v5351
  %v5416 = vmul.f32 %v4904, %v5352
  %v5417 = vmul.f32 %v4905, %v5353
  %v5418 = vmul.f32 %v4906, %v5354
  %v5419 = vmul.f32 %v4907, %v5355
  %v5420 = vmul.f32 %v4908, %v5356
  %v5421 = vmul.f32 %v4909, %v5357
  %v5422 = vmul.f32 %v4910, %v5358
  %v5423 = vmul.f32 %v4911, %v5359
  %v5424 = vmul.f32 %v4912, %v5360
  %v5425 = vmul.f32 %v4913, %v5361
  %v5426 = vmul.f32 %v4914, %v5362
  %v5427 = vmul.f32 %v4915, %v5363
  %v5428 = vmul.f32 %v4916, %v5364
  %v5429 = vmul.f32 %v4917, %v5365
  %v5430 = vmul.f32 %v4918, %v5366
  %v5431 = vmul.f32 %v4919, %v5367
  %v5432 = vmul.f32 %v4920, %v5368
  %v5433 = vmul.f32 %v4921, %v5369
  %v5434 = vmul.f32 %v4922, %v5370
  %v5435 = vmul.f32 %v4923, %v5371
  %v5436 = vmul.f32 %v4924, %v5372
  %v5437 = vmul.f32 %v4925, %v5373
  %v5438 = vmul.f32 %v4926, %v5374
  %v5439 = vmul.f32 %v4927, %v5375
  %v5440 = vmul.f32 %v4928, %v5376
  %v5441 = vmul.f32 %v4929, %v5377
  %v5442 = vmul.f32 %v4930, %v5378
  %v5443 = vmul.f32 %v4931, %v5379
  %v5444 = vmul.f32 %v4932, %v5380
  %v5445 = vmul.f32 %v4933, %v5381
  %v5446 = vmul.f32 %v4934, %v5382
  %v5447 = vmul.f32 %v4935, %v5383
  %v5448 = vmul.f32 %v4936, %v5384
  %v5449 = vmul.f32 %v4937, %v5385
  %v5450 = vmul.f32 %v4938, %v5386
  %v5451 = vmul.f32 %v4939, %v5387
  %v5452 = vmul.f32 %v4940, %v5388
  %v5453 = vmul.f32 %v4941, %v5389
  %v5454 = vmul.f32 %v4942, %v5390
  %v5455 = vpack.c.bf16 %v5393, %v5391
  %v5456 = vpack.c.bf16 %v5394, %v5392
  %v5457 = vpack.c.bf16 %v5397, %v5395
  %v5458 = vpack.c.bf16 %v5398, %v5396
  %v5459 = vpack.c.bf16 %v5401, %v5399
  %v5460 = vpack.c.bf16 %v5402, %v5400
  %v5461 = vpack.c.bf16 %v5405, %v5403
  %v5462 = vpack.c.bf16 %v5406, %v5404
  %v5463 = vpack.c.bf16 %v5409, %v5407
  %v5464 = vpack.c.bf16 %v5410, %v5408
  %v5465 = vpack.c.bf16 %v5413, %v5411
  %v5466 = vpack.c.bf16 %v5414, %v5412
  %v5467 = vpack.c.bf16 %v5417, %v5415
  %v5468 = vpack.c.bf16 %v5418, %v5416
  %v5469 = vpack.c.bf16 %v5421, %v5419
  %v5470 = vpack.c.bf16 %v5422, %v5420
  %v5471 = vpack.c.bf16 %v5425, %v5423
  %v5472 = vpack.c.bf16 %v5426, %v5424
  %v5473 = vpack.c.bf16 %v5429, %v5427
  %v5474 = vpack.c.bf16 %v5430, %v5428
  %v5475 = vpack.c.bf16 %v5433, %v5431
  %v5476 = vpack.c.bf16 %v5434, %v5432
  %v5477 = vpack.c.bf16 %v5437, %v5435
  %v5478 = vpack.c.bf16 %v5438, %v5436
  %v5479 = vpack.c.bf16 %v5441, %v5439
  %v5480 = vpack.c.bf16 %v5442, %v5440
  %v5481 = vpack.c.bf16 %v5445, %v5443
  %v5482 = vpack.c.bf16 %v5446, %v5444
  %v5483 = vpack.c.bf16 %v5449, %v5447
  %v5484 = vpack.c.bf16 %v5450, %v5448
  %v5485 = vpack.c.bf16 %v5453, %v5451
  %v5486 = vpack.c.bf16 %v5454, %v5452
  %v5487 = vld [vmem:[%s9 + $0x80] sm:$0xf]
  %v5488 = vld [vmem:[%s9 + $0x84] sm:$0xf]
  %v5489 = vld [vmem:[%s9 + $0x88] sm:$0xf]
  %v5490 = vld [vmem:[%s9 + $0x8c] sm:$0xf]
  %v5491 = vld [vmem:[%s9 + $0x90] sm:$0xf]
  %v5492 = vld [vmem:[%s9 + $0x94] sm:$0xf]
  %v5493 = vld [vmem:[%s9 + $0x98] sm:$0xf]
  %v5494 = vld [vmem:[%s9 + $0x9c] sm:$0xf]
  %v5495 = vld [vmem:[%s9 + $0xa0] sm:$0xf]
  %v5496 = vld [vmem:[%s9 + $0xa4] sm:$0xf]
  %v5497 = vld [vmem:[%s9 + $0xa8] sm:$0xf]
  %v5498 = vld [vmem:[%s9 + $0xac] sm:$0xf]
  %v5499 = vld [vmem:[%s9 + $0xb0] sm:$0xf]
  %v5500 = vld [vmem:[%s9 + $0xb4] sm:$0xf]
  %v5501 = vld [vmem:[%s9 + $0xb8] sm:$0xf]
  %v5502 = vld [vmem:[%s9 + $0xbc] sm:$0xf]
  %v5503 = vld [vmem:[%s9 + $0xc0] sm:$0xf]
  %v5504 = vld [vmem:[%s9 + $0xc4] sm:$0xf]
  %v5505 = vld [vmem:[%s9 + $0xc8] sm:$0xf]
  %v5506 = vld [vmem:[%s9 + $0xcc] sm:$0xf]
  %v5507 = vld [vmem:[%s9 + $0xd0] sm:$0xf]
  %v5508 = vld [vmem:[%s9 + $0xd4] sm:$0xf]
  %v5509 = vld [vmem:[%s9 + $0xd8] sm:$0xf]
  %v5510 = vld [vmem:[%s9 + $0xdc] sm:$0xf]
  %v5511 = vld [vmem:[%s9 + $0xe0] sm:$0xf]
  %v5512 = vld [vmem:[%s9 + $0xe4] sm:$0xf]
  %v5513 = vld [vmem:[%s9 + $0xe8] sm:$0xf]
  %v5514 = vld [vmem:[%s9 + $0xec] sm:$0xf]
  %v5515 = vld [vmem:[%s9 + $0xf0] sm:$0xf]
  %v5516 = vld [vmem:[%s9 + $0xf4] sm:$0xf]
  %v5517 = vld [vmem:[%s9 + $0xf8] sm:$0xf]
  %v5518 = vld [vmem:[%s9 + $0xfc] sm:$0xf]
  %v5551 = vunpack.c.l.b16 %v5487
  %v5552 = vunpack.c.l.b16 %v5488
  %v5553 = vunpack.c.l.b16 %v5489
  %v5554 = vunpack.c.l.b16 %v5490
  %v5555 = vunpack.c.l.b16 %v5491
  %v5556 = vunpack.c.l.b16 %v5492
  %v5557 = vunpack.c.l.b16 %v5493
  %v5558 = vunpack.c.l.b16 %v5494
  %v5559 = vunpack.c.l.b16 %v5495
  %v5560 = vunpack.c.l.b16 %v5496
  %v5561 = vunpack.c.l.b16 %v5497
  %v5562 = vunpack.c.l.b16 %v5498
  %v5563 = vunpack.c.l.b16 %v5499
  %v5564 = vunpack.c.l.b16 %v5500
  %v5565 = vunpack.c.l.b16 %v5501
  %v5566 = vunpack.c.l.b16 %v5502
  %v5567 = vunpack.c.l.b16 %v5503
  %v5568 = vunpack.c.l.b16 %v5504
  %v5569 = vunpack.c.l.b16 %v5505
  %v5570 = vunpack.c.l.b16 %v5506
  %v5571 = vunpack.c.l.b16 %v5507
  %v5572 = vunpack.c.l.b16 %v5508
  %v5573 = vunpack.c.l.b16 %v5509
  %v5574 = vunpack.c.l.b16 %v5510
  %v5575 = vunpack.c.l.b16 %v5511
  %v5576 = vunpack.c.l.b16 %v5512
  %v5577 = vunpack.c.l.b16 %v5513
  %v5578 = vunpack.c.l.b16 %v5514
  %v5579 = vunpack.c.l.b16 %v5515
  %v5580 = vunpack.c.l.b16 %v5516
  %v5581 = vunpack.c.l.b16 %v5517
  %v5582 = vunpack.c.l.b16 %v5518
  %v5583 = vpack.c.b16 %v5552, %v5551
  %v5584 = vpack.c.b16 %v5554, %v5553
  %v5585 = vpack.c.b16 %v5556, %v5555
  %v5586 = vpack.c.b16 %v5558, %v5557
  %v5587 = vpack.c.b16 %v5560, %v5559
  %v5588 = vpack.c.b16 %v5562, %v5561
  %v5589 = vpack.c.b16 %v5564, %v5563
  %v5590 = vpack.c.b16 %v5566, %v5565
  %v5591 = vpack.c.b16 %v5568, %v5567
  %v5592 = vpack.c.b16 %v5570, %v5569
  %v5593 = vpack.c.b16 %v5572, %v5571
  %v5594 = vpack.c.b16 %v5574, %v5573
  %v5595 = vpack.c.b16 %v5576, %v5575
  %v5596 = vpack.c.b16 %v5578, %v5577
  %v5597 = vpack.c.b16 %v5580, %v5579
  %v5598 = vpack.c.b16 %v5582, %v5581
  %5615 = vmatprep.subr.bf16.mxu0 0
  %5616 = vmatpush1.bf16.msra.mxu0 %v5583
  %5617 = vmatprep.subr.bf16.mxu0 0
  %5618 = vmatpush1.bf16.msra.mxu0 %v5584
  %5619 = vmatprep.subr.bf16.mxu0 0
  %5620 = vmatpush1.bf16.msra.mxu0 %v5585
  %5621 = vmatprep.subr.bf16.mxu0 0
  %5622 = vmatpush1.bf16.msra.mxu0 %v5586
  %5623 = vmatprep.subr.bf16.mxu0 0
  %5624 = vmatpush1.bf16.msra.mxu0 %v5587
  %5625 = vmatprep.subr.bf16.mxu0 0
  %5626 = vmatpush1.bf16.msra.mxu0 %v5588
  %5627 = vmatprep.subr.bf16.mxu0 0
  %5628 = vmatpush1.bf16.msra.mxu0 %v5589
  %5629 = vmatprep.subr.bf16.mxu0 0
  %5630 = vmatpush1.bf16.msra.mxu0 %v5590
  %5631 = vmatprep.subr.bf16.mxu0 0
  %5632 = vmatpush1.bf16.msra.mxu0 %v5591
  %5633 = vmatprep.subr.bf16.mxu0 0
  %5634 = vmatpush1.bf16.msra.mxu0 %v5592
  %5635 = vmatprep.subr.bf16.mxu0 0
  %5636 = vmatpush1.bf16.msra.mxu0 %v5593
  %5637 = vmatprep.subr.bf16.mxu0 0
  %5638 = vmatpush1.bf16.msra.mxu0 %v5594
  %5639 = vmatprep.subr.bf16.mxu0 0
  %5640 = vmatpush1.bf16.msra.mxu0 %v5595
  %5641 = vmatprep.subr.bf16.mxu0 0
  %5642 = vmatpush1.bf16.msra.mxu0 %v5596
  %5643 = vmatprep.subr.bf16.mxu0 0
  %5644 = vmatpush1.bf16.msra.mxu0 %v5597
  %5645 = vmatprep.subr.bf16.mxu0 0
  %5646 = vmatpush1.bf16.msra.mxu0 %v5598
  %5647 = vmatprep.mubr.bf16.mxu0 %v5456
  %5648 = vmatmul.mubr.bf16.gmra.mrb[0].mxu0 %v5455
  %v5649 = vpop.f32.mrb[0].mxu0
  %v5650 = vadd.f32 0.0, %v5649
  %v5651 = vpop.f32.mrb[0].mxu0
  %v5652 = vpop.f32.mrb[0].mxu0
  %v5653 = vadd.f32 0.0, %v5652
  %v5654 = vpop.f32.mrb[0].mxu0
  %5655 = vmatprep.mubr.bf16.mxu0 %v5458
  %5656 = vmatmul.mubr.bf16.gmra.mrb[0].mxu0 %v5457
  %v5657 = vpop.f32.mrb[0].mxu0
  %v5658 = vadd.f32 0.0, %v5657
  %v5659 = vpop.f32.mrb[0].mxu0
  %v5660 = vpop.f32.mrb[0].mxu0
  %v5661 = vadd.f32 0.0, %v5660
  %v5662 = vpop.f32.mrb[0].mxu0
  %5663 = vmatprep.mubr.bf16.mxu0 %v5460
  %5664 = vmatmul.mubr.bf16.gmra.mrb[0].mxu0 %v5459
  %v5665 = vpop.f32.mrb[0].mxu0
  %v5666 = vadd.f32 0.0, %v5665
  %v5667 = vpop.f32.mrb[0].mxu0
  %v5668 = vpop.f32.mrb[0].mxu0
  %v5669 = vadd.f32 0.0, %v5668
  %v5670 = vpop.f32.mrb[0].mxu0
  %5671 = vmatprep.mubr.bf16.mxu0 %v5462
  %5672 = vmatmul.mubr.bf16.gmra.mrb[0].mxu0 %v5461
  %v5673 = vpop.f32.mrb[0].mxu0
  %v5674 = vadd.f32 0.0, %v5673
  %v5675 = vpop.f32.mrb[0].mxu0
  %v5676 = vpop.f32.mrb[0].mxu0
  %v5677 = vadd.f32 0.0, %v5676
  %v5678 = vpop.f32.mrb[0].mxu0
  %5679 = vmatprep.mubr.bf16.mxu0 %v5464
  %5680 = vmatmul.mubr.bf16.gmra.mrb[0].mxu0 %v5463
  %v5681 = vpop.f32.mrb[0].mxu0
  %v5682 = vadd.f32 0.0, %v5681
  %v5683 = vpop.f32.mrb[0].mxu0
  %v5684 = vpop.f32.mrb[0].mxu0
  %v5685 = vadd.f32 0.0, %v5684
  %v5686 = vpop.f32.mrb[0].mxu0
  %5687 = vmatprep.mubr.bf16.mxu0 %v5466
  %5688 = vmatmul.mubr.bf16.gmra.mrb[0].mxu0 %v5465
  %v5689 = vpop.f32.mrb[0].mxu0
  %v5690 = vadd.f32 0.0, %v5689
  %v5691 = vpop.f32.mrb[0].mxu0
  %v5692 = vpop.f32.mrb[0].mxu0
  %v5693 = vadd.f32 0.0, %v5692
  %v5694 = vpop.f32.mrb[0].mxu0
  %5695 = vmatprep.mubr.bf16.mxu0 %v5468
  %5696 = vmatmul.mubr.bf16.gmra.mrb[0].mxu0 %v5467
  %v5697 = vpop.f32.mrb[0].mxu0
  %v5698 = vadd.f32 0.0, %v5697
  %v5699 = vpop.f32.mrb[0].mxu0
  %v5700 = vpop.f32.mrb[0].mxu0
  %v5701 = vadd.f32 0.0, %v5700
  %v5702 = vpop.f32.mrb[0].mxu0
  %5703 = vmatprep.mubr.bf16.mxu0 %v5470
  %5704 = vmatmul.mubr.bf16.gmra.mrb[0].mxu0 %v5469
  %v5705 = vpop.f32.mrb[0].mxu0
  %v5706 = vadd.f32 0.0, %v5705
  %v5707 = vpop.f32.mrb[0].mxu0
  %v5708 = vpop.f32.mrb[0].mxu0
  %v5709 = vadd.f32 0.0, %v5708
  %v5710 = vpop.f32.mrb[0].mxu0
  %5711 = vmatprep.mubr.bf16.mxu0 %v5472
  %5712 = vmatmul.mubr.bf16.gmra.mrb[0].mxu0 %v5471
  %v5713 = vpop.f32.mrb[0].mxu0
  %v5714 = vadd.f32 0.0, %v5713
  %v5715 = vpop.f32.mrb[0].mxu0
  %v5716 = vpop.f32.mrb[0].mxu0
  %v5717 = vadd.f32 0.0, %v5716
  %v5718 = vpop.f32.mrb[0].mxu0
  %5719 = vmatprep.mubr.bf16.mxu0 %v5474
  %5720 = vmatmul.mubr.bf16.gmra.mrb[0].mxu0 %v5473
  %v5721 = vpop.f32.mrb[0].mxu0
  %v5722 = vadd.f32 0.0, %v5721
  %v5723 = vpop.f32.mrb[0].mxu0
  %v5724 = vpop.f32.mrb[0].mxu0
  %v5725 = vadd.f32 0.0, %v5724
  %v5726 = vpop.f32.mrb[0].mxu0
  %5727 = vmatprep.mubr.bf16.mxu0 %v5476
  %5728 = vmatmul.mubr.bf16.gmra.mrb[0].mxu0 %v5475
  %v5729 = vpop.f32.mrb[0].mxu0
  %v5730 = vadd.f32 0.0, %v5729
  %v5731 = vpop.f32.mrb[0].mxu0
  %v5732 = vpop.f32.mrb[0].mxu0
  %v5733 = vadd.f32 0.0, %v5732
  %v5734 = vpop.f32.mrb[0].mxu0
  %5735 = vmatprep.mubr.bf16.mxu0 %v5478
  %5736 = vmatmul.mubr.bf16.gmra.mrb[0].mxu0 %v5477
  %v5737 = vpop.f32.mrb[0].mxu0
  %v5738 = vadd.f32 0.0, %v5737
  %v5739 = vpop.f32.mrb[0].mxu0
  %v5740 = vpop.f32.mrb[0].mxu0
  %v5741 = vadd.f32 0.0, %v5740
  %v5742 = vpop.f32.mrb[0].mxu0
  %5743 = vmatprep.mubr.bf16.mxu0 %v5480
  %5744 = vmatmul.mubr.bf16.gmra.mrb[0].mxu0 %v5479
  %v5745 = vpop.f32.mrb[0].mxu0
  %v5746 = vadd.f32 0.0, %v5745
  %v5747 = vpop.f32.mrb[0].mxu0
  %v5748 = vpop.f32.mrb[0].mxu0
  %v5749 = vadd.f32 0.0, %v5748
  %v5750 = vpop.f32.mrb[0].mxu0
  %5751 = vmatprep.mubr.bf16.mxu0 %v5482
  %5752 = vmatmul.mubr.bf16.gmra.mrb[0].mxu0 %v5481
  %v5753 = vpop.f32.mrb[0].mxu0
  %v5754 = vadd.f32 0.0, %v5753
  %v5755 = vpop.f32.mrb[0].mxu0
  %v5756 = vpop.f32.mrb[0].mxu0
  %v5757 = vadd.f32 0.0, %v5756
  %v5758 = vpop.f32.mrb[0].mxu0
  %5759 = vmatprep.mubr.bf16.mxu0 %v5484
  %5760 = vmatmul.mubr.bf16.gmra.mrb[0].mxu0 %v5483
  %v5761 = vpop.f32.mrb[0].mxu0
  %v5762 = vadd.f32 0.0, %v5761
  %v5763 = vpop.f32.mrb[0].mxu0
  %v5764 = vpop.f32.mrb[0].mxu0
  %v5765 = vadd.f32 0.0, %v5764
  %v5766 = vpop.f32.mrb[0].mxu0
  %5767 = vmatprep.mubr.bf16.mxu0 %v5486
  %5768 = vmatmul.mubr.bf16.gmra.mrb[0].mxu0 %v5485
  %v5769 = vpop.f32.mrb[0].mxu0
  %v5770 = vadd.f32 0.0, %v5769
  %v5771 = vpop.f32.mrb[0].mxu0
  %v5772 = vpop.f32.mrb[0].mxu0
  %v5773 = vadd.f32 0.0, %v5772
  %v5774 = vpop.f32.mrb[0].mxu0
  %5775 = vdwg.mxu0
  %v5808 = vunpack.c.l.b16 %v4546
  %v5809 = vunpack.c.l.b16 %v4547
  %v5810 = vunpack.c.l.b16 %v4548
  %v5811 = vunpack.c.l.b16 %v4549
  %v5812 = vunpack.c.l.b16 %v4550
  %v5813 = vunpack.c.l.b16 %v4551
  %v5814 = vunpack.c.l.b16 %v4552
  %v5815 = vunpack.c.l.b16 %v4553
  %v5816 = vunpack.c.l.b16 %v4554
  %v5817 = vunpack.c.l.b16 %v4555
  %v5818 = vunpack.c.l.b16 %v4556
  %v5819 = vunpack.c.l.b16 %v4557
  %v5820 = vunpack.c.l.b16 %v4558
  %v5821 = vunpack.c.l.b16 %v4559
  %v5822 = vunpack.c.l.b16 %v4560
  %v5823 = vunpack.c.l.b16 %v4561
  %v5824 = vunpack.c.l.b16 %v4562
  %v5825 = vunpack.c.l.b16 %v4563
  %v5826 = vunpack.c.l.b16 %v4564
  %v5827 = vunpack.c.l.b16 %v4565
  %v5828 = vunpack.c.l.b16 %v4566
  %v5829 = vunpack.c.l.b16 %v4567
  %v5830 = vunpack.c.l.b16 %v4568
  %v5831 = vunpack.c.l.b16 %v4569
  %v5832 = vunpack.c.l.b16 %v4570
  %v5833 = vunpack.c.l.b16 %v4571
  %v5834 = vunpack.c.l.b16 %v4572
  %v5835 = vunpack.c.l.b16 %v4573
  %v5836 = vunpack.c.l.b16 %v4574
  %v5837 = vunpack.c.l.b16 %v4575
  %v5838 = vunpack.c.l.b16 %v4576
  %v5839 = vunpack.c.l.b16 %v4577
  %v5840 = vpack.c.b16 %v5809, %v5808
  %v5841 = vpack.c.b16 %v5811, %v5810
  %v5842 = vpack.c.b16 %v5813, %v5812
  %v5843 = vpack.c.b16 %v5815, %v5814
  %v5844 = vpack.c.b16 %v5817, %v5816
  %v5845 = vpack.c.b16 %v5819, %v5818
  %v5846 = vpack.c.b16 %v5821, %v5820
  %v5847 = vpack.c.b16 %v5823, %v5822
  %v5848 = vpack.c.b16 %v5825, %v5824
  %v5849 = vpack.c.b16 %v5827, %v5826
  %v5850 = vpack.c.b16 %v5829, %v5828
  %v5851 = vpack.c.b16 %v5831, %v5830
  %v5852 = vpack.c.b16 %v5833, %v5832
  %v5853 = vpack.c.b16 %v5835, %v5834
  %v5854 = vpack.c.b16 %v5837, %v5836
  %v5855 = vpack.c.b16 %v5839, %v5838
  %5872 = vmatprep.subr.bf16.mxu0 0
  %5873 = vmatpush1.bf16.msra.mxu0 %v5840
  %5874 = vmatprep.subr.bf16.mxu0 0
  %5875 = vmatpush1.bf16.msra.mxu0 %v5841
  %5876 = vmatprep.subr.bf16.mxu0 0
  %5877 = vmatpush1.bf16.msra.mxu0 %v5842
  %5878 = vmatprep.subr.bf16.mxu0 0
  %5879 = vmatpush1.bf16.msra.mxu0 %v5843
  %5880 = vmatprep.subr.bf16.mxu0 0
  %5881 = vmatpush1.bf16.msra.mxu0 %v5844
  %5882 = vmatprep.subr.bf16.mxu0 0
  %5883 = vmatpush1.bf16.msra.mxu0 %v5845
  %5884 = vmatprep.subr.bf16.mxu0 0
  %5885 = vmatpush1.bf16.msra.mxu0 %v5846
  %5886 = vmatprep.subr.bf16.mxu0 0
  %5887 = vmatpush1.bf16.msra.mxu0 %v5847
  %5888 = vmatprep.subr.bf16.mxu0 0
  %5889 = vmatpush1.bf16.msra.mxu0 %v5848
  %5890 = vmatprep.subr.bf16.mxu0 0
  %5891 = vmatpush1.bf16.msra.mxu0 %v5849
  %5892 = vmatprep.subr.bf16.mxu0 0
  %5893 = vmatpush1.bf16.msra.mxu0 %v5850
  %5894 = vmatprep.subr.bf16.mxu0 0
  %5895 = vmatpush1.bf16.msra.mxu0 %v5851
  %5896 = vmatprep.subr.bf16.mxu0 0
  %5897 = vmatpush1.bf16.msra.mxu0 %v5852
  %5898 = vmatprep.subr.bf16.mxu0 0
  %5899 = vmatpush1.bf16.msra.mxu0 %v5853
  %5900 = vmatprep.subr.bf16.mxu0 0
  %5901 = vmatpush1.bf16.msra.mxu0 %v5854
  %5902 = vmatprep.subr.bf16.mxu0 0
  %5903 = vmatpush1.bf16.msra.mxu0 %v5855
  %5904 = vmatprep.mubr.bf16.mxu0 %v4515
  %5905 = vmatmul.mubr.bf16.gmra.mrb[0].mxu0 %v4514
  %v5906 = vpop.f32.mrb[0].mxu0
  %v5907 = vadd.f32 %v5650, %v5906
  %v5908 = vpop.f32.mrb[0].mxu0
  %v5909 = vpop.f32.mrb[0].mxu0
  %v5910 = vadd.f32 %v5653, %v5909
  %v5911 = vpop.f32.mrb[0].mxu0
  %5912 = vmatprep.mubr.bf16.mxu0 %v4517
  %5913 = vmatmul.mubr.bf16.gmra.mrb[0].mxu0 %v4516
  %v5914 = vpop.f32.mrb[0].mxu0
  %v5915 = vadd.f32 %v5658, %v5914
  %v5916 = vpop.f32.mrb[0].mxu0
  %v5917 = vpop.f32.mrb[0].mxu0
  %v5918 = vadd.f32 %v5661, %v5917
  %v5919 = vpop.f32.mrb[0].mxu0
  %5920 = vmatprep.mubr.bf16.mxu0 %v4519
  %5921 = vmatmul.mubr.bf16.gmra.mrb[0].mxu0 %v4518
  %v5922 = vpop.f32.mrb[0].mxu0
  %v5923 = vadd.f32 %v5666, %v5922
  %v5924 = vpop.f32.mrb[0].mxu0
  %v5925 = vpop.f32.mrb[0].mxu0
  %v5926 = vadd.f32 %v5669, %v5925
  %v5927 = vpop.f32.mrb[0].mxu0
  %5928 = vmatprep.mubr.bf16.mxu0 %v4521
  %5929 = vmatmul.mubr.bf16.gmra.mrb[0].mxu0 %v4520
  %v5930 = vpop.f32.mrb[0].mxu0
  %v5931 = vadd.f32 %v5674, %v5930
  %v5932 = vpop.f32.mrb[0].mxu0
  %v5933 = vpop.f32.mrb[0].mxu0
  %v5934 = vadd.f32 %v5677, %v5933
  %v5935 = vpop.f32.mrb[0].mxu0
  %5936 = vmatprep.mubr.bf16.mxu0 %v4523
  %5937 = vmatmul.mubr.bf16.gmra.mrb[0].mxu0 %v4522
  %v5938 = vpop.f32.mrb[0].mxu0
  %v5939 = vadd.f32 %v5682, %v5938
  %v5940 = vpop.f32.mrb[0].mxu0
  %v5941 = vpop.f32.mrb[0].mxu0
  %v5942 = vadd.f32 %v5685, %v5941
  %v5943 = vpop.f32.mrb[0].mxu0
  %5944 = vmatprep.mubr.bf16.mxu0 %v4525
  %5945 = vmatmul.mubr.bf16.gmra.mrb[0].mxu0 %v4524
  %v5946 = vpop.f32.mrb[0].mxu0
  %v5947 = vadd.f32 %v5690, %v5946
  %v5948 = vpop.f32.mrb[0].mxu0
  %v5949 = vpop.f32.mrb[0].mxu0
  %v5950 = vadd.f32 %v5693, %v5949
  %v5951 = vpop.f32.mrb[0].mxu0
  %5952 = vmatprep.mubr.bf16.mxu0 %v4527
  %5953 = vmatmul.mubr.bf16.gmra.mrb[0].mxu0 %v4526
  %v5954 = vpop.f32.mrb[0].mxu0
  %v5955 = vadd.f32 %v5698, %v5954
  %v5956 = vpop.f32.mrb[0].mxu0
  %v5957 = vpop.f32.mrb[0].mxu0
  %v5958 = vadd.f32 %v5701, %v5957
  %v5959 = vpop.f32.mrb[0].mxu0
  %5960 = vmatprep.mubr.bf16.mxu0 %v4529
  %5961 = vmatmul.mubr.bf16.gmra.mrb[0].mxu0 %v4528
  %v5962 = vpop.f32.mrb[0].mxu0
  %v5963 = vadd.f32 %v5706, %v5962
  %v5964 = vpop.f32.mrb[0].mxu0
  %v5965 = vpop.f32.mrb[0].mxu0
  %v5966 = vadd.f32 %v5709, %v5965
  %v5967 = vpop.f32.mrb[0].mxu0
  %5968 = vmatprep.mubr.bf16.mxu0 %v4531
  %5969 = vmatmul.mubr.bf16.gmra.mrb[0].mxu0 %v4530
  %v5970 = vpop.f32.mrb[0].mxu0
  %v5971 = vadd.f32 %v5714, %v5970
  %v5972 = vpop.f32.mrb[0].mxu0
  %v5973 = vpop.f32.mrb[0].mxu0
  %v5974 = vadd.f32 %v5717, %v5973
  %v5975 = vpop.f32.mrb[0].mxu0
  %5976 = vmatprep.mubr.bf16.mxu0 %v4533
  %5977 = vmatmul.mubr.bf16.gmra.mrb[0].mxu0 %v4532
  %v5978 = vpop.f32.mrb[0].mxu0
  %v5979 = vadd.f32 %v5722, %v5978
  %v5980 = vpop.f32.mrb[0].mxu0
  %v5981 = vpop.f32.mrb[0].mxu0
  %v5982 = vadd.f32 %v5725, %v5981
  %v5983 = vpop.f32.mrb[0].mxu0
  %5984 = vmatprep.mubr.bf16.mxu0 %v4535
  %5985 = vmatmul.mubr.bf16.gmra.mrb[0].mxu0 %v4534
  %v5986 = vpop.f32.mrb[0].mxu0
  %v5987 = vadd.f32 %v5730, %v5986
  %v5988 = vpop.f32.mrb[0].mxu0
  %v5989 = vpop.f32.mrb[0].mxu0
  %v5990 = vadd.f32 %v5733, %v5989
  %v5991 = vpop.f32.mrb[0].mxu0
  %5992 = vmatprep.mubr.bf16.mxu0 %v4537
  %5993 = vmatmul.mubr.bf16.gmra.mrb[0].mxu0 %v4536
  %v5994 = vpop.f32.mrb[0].mxu0
  %v5995 = vadd.f32 %v5738, %v5994
  %v5996 = vpop.f32.mrb[0].mxu0
  %v5997 = vpop.f32.mrb[0].mxu0
  %v5998 = vadd.f32 %v5741, %v5997
  %v5999 = vpop.f32.mrb[0].mxu0
  %6000 = vmatprep.mubr.bf16.mxu0 %v4539
  %6001 = vmatmul.mubr.bf16.gmra.mrb[0].mxu0 %v4538
  %v6002 = vpop.f32.mrb[0].mxu0
  %v6003 = vadd.f32 %v5746, %v6002
  %v6004 = vpop.f32.mrb[0].mxu0
  %v6005 = vpop.f32.mrb[0].mxu0
  %v6006 = vadd.f32 %v5749, %v6005
  %v6007 = vpop.f32.mrb[0].mxu0
  %6008 = vmatprep.mubr.bf16.mxu0 %v4541
  %6009 = vmatmul.mubr.bf16.gmra.mrb[0].mxu0 %v4540
  %v6010 = vpop.f32.mrb[0].mxu0
  %v6011 = vadd.f32 %v5754, %v6010
  %v6012 = vpop.f32.mrb[0].mxu0
  %v6013 = vpop.f32.mrb[0].mxu0
  %v6014 = vadd.f32 %v5757, %v6013
  %v6015 = vpop.f32.mrb[0].mxu0
  %6016 = vmatprep.mubr.bf16.mxu0 %v4543
  %6017 = vmatmul.mubr.bf16.gmra.mrb[0].mxu0 %v4542
  %v6018 = vpop.f32.mrb[0].mxu0
  %v6019 = vadd.f32 %v5762, %v6018
  %v6020 = vpop.f32.mrb[0].mxu0
  %v6021 = vpop.f32.mrb[0].mxu0
  %v6022 = vadd.f32 %v5765, %v6021
  %v6023 = vpop.f32.mrb[0].mxu0
  %6024 = vmatprep.mubr.bf16.mxu0 %v4545
  %6025 = vmatmul.mubr.bf16.gmra.mrb[0].mxu0 %v4544
  %v6026 = vpop.f32.mrb[0].mxu0
  %v6027 = vadd.f32 %v5770, %v6026
  %v6028 = vpop.f32.mrb[0].mxu0
  %v6029 = vpop.f32.mrb[0].mxu0
  %v6030 = vadd.f32 %v5773, %v6029
  %v6031 = vpop.f32.mrb[0].mxu0
  %6032 = vdwg.mxu0
  %v6033 = vadd.f32 %v3159, %v5907
  %v6034 = vadd.f32 %v3160, %v5910
  %v6035 = vadd.f32 %v3161, %v5915
  %v6036 = vadd.f32 %v3162, %v5918
  %v6037 = vadd.f32 %v3163, %v5923
  %v6038 = vadd.f32 %v3164, %v5926
  %v6039 = vadd.f32 %v3165, %v5931
  %v6040 = vadd.f32 %v3166, %v5934
  %v6041 = vadd.f32 %v3167, %v5939
  %v6042 = vadd.f32 %v3168, %v5942
  %v6043 = vadd.f32 %v3169, %v5947
  %v6044 = vadd.f32 %v3170, %v5950
  %v6045 = vadd.f32 %v3171, %v5955
  %v6046 = vadd.f32 %v3172, %v5958
  %v6047 = vadd.f32 %v3173, %v5963
  %v6048 = vadd.f32 %v3174, %v5966
  %v6049 = vadd.f32 %v3175, %v5971
  %v6050 = vadd.f32 %v3176, %v5974
  %v6051 = vadd.f32 %v3177, %v5979
  %v6052 = vadd.f32 %v3178, %v5982
  %v6053 = vadd.f32 %v3179, %v5987
  %v6054 = vadd.f32 %v3180, %v5990
  %v6055 = vadd.f32 %v3181, %v5995
  %v6056 = vadd.f32 %v3182, %v5998
  %v6057 = vadd.f32 %v3183, %v6003
  %v6058 = vadd.f32 %v3184, %v6006
  %v6059 = vadd.f32 %v3185, %v6011
  %v6060 = vadd.f32 %v3186, %v6014
  %v6061 = vadd.f32 %v3187, %v6019
  %v6062 = vadd.f32 %v3188, %v6022
  %v6063 = vadd.f32 %v3189, %v6027
  %v6064 = vadd.f32 %v3190, %v6030
  %v6065 = vld [vmem:[%s10] sm:$0x1]
  %v6067 = vlaneseq
  %v6068 = vshrl.u32 %v6067, 7
  %v6069 = vsub.s32 0, %v6068
  %v6070 = vrot.slane %v6065, %v6069
  %v6072 = vadd.f32 %v6033, %v6070
  %v6073 = vadd.f32 %v6034, %v6070
  %v6074 = vadd.f32 %v6035, %v6070
  %v6075 = vadd.f32 %v6036, %v6070
  %v6076 = vadd.f32 %v6037, %v6070
  %v6077 = vadd.f32 %v6038, %v6070
  %v6078 = vadd.f32 %v6039, %v6070
  %v6079 = vadd.f32 %v6040, %v6070
  %v6080 = vadd.f32 %v6041, %v6070
  %v6081 = vadd.f32 %v6042, %v6070
  %v6082 = vadd.f32 %v6043, %v6070
  %v6083 = vadd.f32 %v6044, %v6070
  %v6084 = vadd.f32 %v6045, %v6070
  %v6085 = vadd.f32 %v6046, %v6070
  %v6086 = vadd.f32 %v6047, %v6070
  %v6087 = vadd.f32 %v6048, %v6070
  %v6088 = vadd.f32 %v6049, %v6070
  %v6089 = vadd.f32 %v6050, %v6070
  %v6090 = vadd.f32 %v6051, %v6070
  %v6091 = vadd.f32 %v6052, %v6070
  %v6092 = vadd.f32 %v6053, %v6070
  %v6093 = vadd.f32 %v6054, %v6070
  %v6094 = vadd.f32 %v6055, %v6070
  %v6095 = vadd.f32 %v6056, %v6070
  %v6096 = vadd.f32 %v6057, %v6070
  %v6097 = vadd.f32 %v6058, %v6070
  %v6098 = vadd.f32 %v6059, %v6070
  %v6099 = vadd.f32 %v6060, %v6070
  %v6100 = vadd.f32 %v6061, %v6070
  %v6101 = vadd.f32 %v6062, %v6070
  %v6102 = vadd.f32 %v6063, %v6070
  %v6103 = vadd.f32 %v6064, %v6070
  %v6104 = vld [vmem:[%s15] sm:$0x1]
  %v6105 = vld [vmem:[%s16] sm:$0x1]
  %6106 = vadd.xlane.f32.xlu0 %v6072
  %v6107 = vpop.xlane.xlu0 %6106
  %6108 = vadd.xlane.f32.xlu0 %v6073
  %v6109 = vpop.xlane.xlu0 %6108
  %6110 = vadd.xlane.f32.xlu0 %v6074
  %v6111 = vpop.xlane.xlu0 %6110
  %6112 = vadd.xlane.f32.xlu0 %v6075
  %v6113 = vpop.xlane.xlu0 %6112
  %6114 = vadd.xlane.f32.xlu0 %v6076
  %v6115 = vpop.xlane.xlu0 %6114
  %6116 = vadd.xlane.f32.xlu0 %v6077
  %v6117 = vpop.xlane.xlu0 %6116
  %6118 = vadd.xlane.f32.xlu0 %v6078
  %v6119 = vpop.xlane.xlu0 %6118
  %6120 = vadd.xlane.f32.xlu0 %v6079
  %v6121 = vpop.xlane.xlu0 %6120
  %6122 = vadd.xlane.f32.xlu0 %v6080
  %v6123 = vpop.xlane.xlu0 %6122
  %6124 = vadd.xlane.f32.xlu0 %v6081
  %v6125 = vpop.xlane.xlu0 %6124
  %6126 = vadd.xlane.f32.xlu0 %v6082
  %v6127 = vpop.xlane.xlu0 %6126
  %6128 = vadd.xlane.f32.xlu0 %v6083
  %v6129 = vpop.xlane.xlu0 %6128
  %6130 = vadd.xlane.f32.xlu0 %v6084
  %v6131 = vpop.xlane.xlu0 %6130
  %6132 = vadd.xlane.f32.xlu0 %v6085
  %v6133 = vpop.xlane.xlu0 %6132
  %6134 = vadd.xlane.f32.xlu0 %v6086
  %v6135 = vpop.xlane.xlu0 %6134
  %6136 = vadd.xlane.f32.xlu0 %v6087
  %v6137 = vpop.xlane.xlu0 %6136
  %6138 = vadd.xlane.f32.xlu0 %v6088
  %v6139 = vpop.xlane.xlu0 %6138
  %6140 = vadd.xlane.f32.xlu0 %v6089
  %v6141 = vpop.xlane.xlu0 %6140
  %6142 = vadd.xlane.f32.xlu0 %v6090
  %v6143 = vpop.xlane.xlu0 %6142
  %6144 = vadd.xlane.f32.xlu0 %v6091
  %v6145 = vpop.xlane.xlu0 %6144
  %6146 = vadd.xlane.f32.xlu0 %v6092
  %v6147 = vpop.xlane.xlu0 %6146
  %6148 = vadd.xlane.f32.xlu0 %v6093
  %v6149 = vpop.xlane.xlu0 %6148
  %6150 = vadd.xlane.f32.xlu0 %v6094
  %v6151 = vpop.xlane.xlu0 %6150
  %6152 = vadd.xlane.f32.xlu0 %v6095
  %v6153 = vpop.xlane.xlu0 %6152
  %6154 = vadd.xlane.f32.xlu0 %v6096
  %v6155 = vpop.xlane.xlu0 %6154
  %6156 = vadd.xlane.f32.xlu0 %v6097
  %v6157 = vpop.xlane.xlu0 %6156
  %6158 = vadd.xlane.f32.xlu0 %v6098
  %v6159 = vpop.xlane.xlu0 %6158
  %6160 = vadd.xlane.f32.xlu0 %v6099
  %v6161 = vpop.xlane.xlu0 %6160
  %6162 = vadd.xlane.f32.xlu0 %v6100
  %v6163 = vpop.xlane.xlu0 %6162
  %6164 = vadd.xlane.f32.xlu0 %v6101
  %v6165 = vpop.xlane.xlu0 %6164
  %6166 = vadd.xlane.f32.xlu0 %v6102
  %v6167 = vpop.xlane.xlu0 %6166
  %6168 = vadd.xlane.f32.xlu0 %v6103
  %v6169 = vpop.xlane.xlu0 %6168
  %v6170 = vmul.f32 %v6107, %v597
  %v6171 = vmul.f32 %v6109, %v597
  %v6172 = vmul.f32 %v6111, %v597
  %v6173 = vmul.f32 %v6113, %v597
  %v6174 = vmul.f32 %v6115, %v597
  %v6175 = vmul.f32 %v6117, %v597
  %v6176 = vmul.f32 %v6119, %v597
  %v6177 = vmul.f32 %v6121, %v597
  %v6178 = vmul.f32 %v6123, %v597
  %v6179 = vmul.f32 %v6125, %v597
  %v6180 = vmul.f32 %v6127, %v597
  %v6181 = vmul.f32 %v6129, %v597
  %v6182 = vmul.f32 %v6131, %v597
  %v6183 = vmul.f32 %v6133, %v597
  %v6184 = vmul.f32 %v6135, %v597
  %v6185 = vmul.f32 %v6137, %v597
  %v6186 = vmul.f32 %v6139, %v597
  %v6187 = vmul.f32 %v6141, %v597
  %v6188 = vmul.f32 %v6143, %v597
  %v6189 = vmul.f32 %v6145, %v597
  %v6190 = vmul.f32 %v6147, %v597
  %v6191 = vmul.f32 %v6149, %v597
  %v6192 = vmul.f32 %v6151, %v597
  %v6193 = vmul.f32 %v6153, %v597
  %v6194 = vmul.f32 %v6155, %v597
  %v6195 = vmul.f32 %v6157, %v597
  %v6196 = vmul.f32 %v6159, %v597
  %v6197 = vmul.f32 %v6161, %v597
  %v6198 = vmul.f32 %v6163, %v597
  %v6199 = vmul.f32 %v6165, %v597
  %v6200 = vmul.f32 %v6167, %v597
  %v6201 = vmul.f32 %v6169, %v597
  %v6202 = vsub.f32 %v6072, %v6170
  %v6203 = vsub.f32 %v6073, %v6171
  %v6204 = vsub.f32 %v6074, %v6172
  %v6205 = vsub.f32 %v6075, %v6173
  %v6206 = vsub.f32 %v6076, %v6174
  %v6207 = vsub.f32 %v6077, %v6175
  %v6208 = vsub.f32 %v6078, %v6176
  %v6209 = vsub.f32 %v6079, %v6177
  %v6210 = vsub.f32 %v6080, %v6178
  %v6211 = vsub.f32 %v6081, %v6179
  %v6212 = vsub.f32 %v6082, %v6180
  %v6213 = vsub.f32 %v6083, %v6181
  %v6214 = vsub.f32 %v6084, %v6182
  %v6215 = vsub.f32 %v6085, %v6183
  %v6216 = vsub.f32 %v6086, %v6184
  %v6217 = vsub.f32 %v6087, %v6185
  %v6218 = vsub.f32 %v6088, %v6186
  %v6219 = vsub.f32 %v6089, %v6187
  %v6220 = vsub.f32 %v6090, %v6188
  %v6221 = vsub.f32 %v6091, %v6189
  %v6222 = vsub.f32 %v6092, %v6190
  %v6223 = vsub.f32 %v6093, %v6191
  %v6224 = vsub.f32 %v6094, %v6192
  %v6225 = vsub.f32 %v6095, %v6193
  %v6226 = vsub.f32 %v6096, %v6194
  %v6227 = vsub.f32 %v6097, %v6195
  %v6228 = vsub.f32 %v6098, %v6196
  %v6229 = vsub.f32 %v6099, %v6197
  %v6230 = vsub.f32 %v6100, %v6198
  %v6231 = vsub.f32 %v6101, %v6199
  %v6232 = vsub.f32 %v6102, %v6200
  %v6233 = vsub.f32 %v6103, %v6201
  %v6234 = vmul.f32 %v6202, %v6202
  %v6235 = vmul.f32 %v6203, %v6203
  %v6236 = vmul.f32 %v6204, %v6204
  %v6237 = vmul.f32 %v6205, %v6205
  %v6238 = vmul.f32 %v6206, %v6206
  %v6239 = vmul.f32 %v6207, %v6207
  %v6240 = vmul.f32 %v6208, %v6208
  %v6241 = vmul.f32 %v6209, %v6209
  %v6242 = vmul.f32 %v6210, %v6210
  %v6243 = vmul.f32 %v6211, %v6211
  %v6244 = vmul.f32 %v6212, %v6212
  %v6245 = vmul.f32 %v6213, %v6213
  %v6246 = vmul.f32 %v6214, %v6214
  %v6247 = vmul.f32 %v6215, %v6215
  %v6248 = vmul.f32 %v6216, %v6216
  %v6249 = vmul.f32 %v6217, %v6217
  %v6250 = vmul.f32 %v6218, %v6218
  %v6251 = vmul.f32 %v6219, %v6219
  %v6252 = vmul.f32 %v6220, %v6220
  %v6253 = vmul.f32 %v6221, %v6221
  %v6254 = vmul.f32 %v6222, %v6222
  %v6255 = vmul.f32 %v6223, %v6223
  %v6256 = vmul.f32 %v6224, %v6224
  %v6257 = vmul.f32 %v6225, %v6225
  %v6258 = vmul.f32 %v6226, %v6226
  %v6259 = vmul.f32 %v6227, %v6227
  %v6260 = vmul.f32 %v6228, %v6228
  %v6261 = vmul.f32 %v6229, %v6229
  %v6262 = vmul.f32 %v6230, %v6230
  %v6263 = vmul.f32 %v6231, %v6231
  %v6264 = vmul.f32 %v6232, %v6232
  %v6265 = vmul.f32 %v6233, %v6233
  %6266 = vadd.xlane.f32.xlu0 %v6234
  %v6267 = vpop.xlane.xlu0 %6266
  %6268 = vadd.xlane.f32.xlu0 %v6235
  %v6269 = vpop.xlane.xlu0 %6268
  %6270 = vadd.xlane.f32.xlu0 %v6236
  %v6271 = vpop.xlane.xlu0 %6270
  %6272 = vadd.xlane.f32.xlu0 %v6237
  %v6273 = vpop.xlane.xlu0 %6272
  %6274 = vadd.xlane.f32.xlu0 %v6238
  %v6275 = vpop.xlane.xlu0 %6274
  %6276 = vadd.xlane.f32.xlu0 %v6239
  %v6277 = vpop.xlane.xlu0 %6276
  %6278 = vadd.xlane.f32.xlu0 %v6240
  %v6279 = vpop.xlane.xlu0 %6278
  %6280 = vadd.xlane.f32.xlu0 %v6241
  %v6281 = vpop.xlane.xlu0 %6280
  %6282 = vadd.xlane.f32.xlu0 %v6242
  %v6283 = vpop.xlane.xlu0 %6282
  %6284 = vadd.xlane.f32.xlu0 %v6243
  %v6285 = vpop.xlane.xlu0 %6284
  %6286 = vadd.xlane.f32.xlu0 %v6244
  %v6287 = vpop.xlane.xlu0 %6286
  %6288 = vadd.xlane.f32.xlu0 %v6245
  %v6289 = vpop.xlane.xlu0 %6288
  %6290 = vadd.xlane.f32.xlu0 %v6246
  %v6291 = vpop.xlane.xlu0 %6290
  %6292 = vadd.xlane.f32.xlu0 %v6247
  %v6293 = vpop.xlane.xlu0 %6292
  %6294 = vadd.xlane.f32.xlu0 %v6248
  %v6295 = vpop.xlane.xlu0 %6294
  %6296 = vadd.xlane.f32.xlu0 %v6249
  %v6297 = vpop.xlane.xlu0 %6296
  %6298 = vadd.xlane.f32.xlu0 %v6250
  %v6299 = vpop.xlane.xlu0 %6298
  %6300 = vadd.xlane.f32.xlu0 %v6251
  %v6301 = vpop.xlane.xlu0 %6300
  %6302 = vadd.xlane.f32.xlu0 %v6252
  %v6303 = vpop.xlane.xlu0 %6302
  %6304 = vadd.xlane.f32.xlu0 %v6253
  %v6305 = vpop.xlane.xlu0 %6304
  %6306 = vadd.xlane.f32.xlu0 %v6254
  %v6307 = vpop.xlane.xlu0 %6306
  %6308 = vadd.xlane.f32.xlu0 %v6255
  %v6309 = vpop.xlane.xlu0 %6308
  %6310 = vadd.xlane.f32.xlu0 %v6256
  %v6311 = vpop.xlane.xlu0 %6310
  %6312 = vadd.xlane.f32.xlu0 %v6257
  %v6313 = vpop.xlane.xlu0 %6312
  %6314 = vadd.xlane.f32.xlu0 %v6258
  %v6315 = vpop.xlane.xlu0 %6314
  %6316 = vadd.xlane.f32.xlu0 %v6259
  %v6317 = vpop.xlane.xlu0 %6316
  %6318 = vadd.xlane.f32.xlu0 %v6260
  %v6319 = vpop.xlane.xlu0 %6318
  %6320 = vadd.xlane.f32.xlu0 %v6261
  %v6321 = vpop.xlane.xlu0 %6320
  %6322 = vadd.xlane.f32.xlu0 %v6262
  %v6323 = vpop.xlane.xlu0 %6322
  %6324 = vadd.xlane.f32.xlu0 %v6263
  %v6325 = vpop.xlane.xlu0 %6324
  %6326 = vadd.xlane.f32.xlu0 %v6264
  %v6327 = vpop.xlane.xlu0 %6326
  %6328 = vadd.xlane.f32.xlu0 %v6265
  %v6329 = vpop.xlane.xlu0 %6328
  %v6330 = vmul.f32 %v6267, %v597
  %v6331 = vmul.f32 %v6269, %v597
  %v6332 = vmul.f32 %v6271, %v597
  %v6333 = vmul.f32 %v6273, %v597
  %v6334 = vmul.f32 %v6275, %v597
  %v6335 = vmul.f32 %v6277, %v597
  %v6336 = vmul.f32 %v6279, %v597
  %v6337 = vmul.f32 %v6281, %v597
  %v6338 = vmul.f32 %v6283, %v597
  %v6339 = vmul.f32 %v6285, %v597
  %v6340 = vmul.f32 %v6287, %v597
  %v6341 = vmul.f32 %v6289, %v597
  %v6342 = vmul.f32 %v6291, %v597
  %v6343 = vmul.f32 %v6293, %v597
  %v6344 = vmul.f32 %v6295, %v597
  %v6345 = vmul.f32 %v6297, %v597
  %v6346 = vmul.f32 %v6299, %v597
  %v6347 = vmul.f32 %v6301, %v597
  %v6348 = vmul.f32 %v6303, %v597
  %v6349 = vmul.f32 %v6305, %v597
  %v6350 = vmul.f32 %v6307, %v597
  %v6351 = vmul.f32 %v6309, %v597
  %v6352 = vmul.f32 %v6311, %v597
  %v6353 = vmul.f32 %v6313, %v597
  %v6354 = vmul.f32 %v6315, %v597
  %v6355 = vmul.f32 %v6317, %v597
  %v6356 = vmul.f32 %v6319, %v597
  %v6357 = vmul.f32 %v6321, %v597
  %v6358 = vmul.f32 %v6323, %v597
  %v6359 = vmul.f32 %v6325, %v597
  %v6360 = vmul.f32 %v6327, %v597
  %v6361 = vmul.f32 %v6329, %v597
  %v6362 = vadd.f32 %v6330, 1e-05
  %v6363 = vadd.f32 %v6331, 1e-05
  %v6364 = vadd.f32 %v6332, 1e-05
  %v6365 = vadd.f32 %v6333, 1e-05
  %v6366 = vadd.f32 %v6334, 1e-05
  %v6367 = vadd.f32 %v6335, 1e-05
  %v6368 = vadd.f32 %v6336, 1e-05
  %v6369 = vadd.f32 %v6337, 1e-05
  %v6370 = vadd.f32 %v6338, 1e-05
  %v6371 = vadd.f32 %v6339, 1e-05
  %v6372 = vadd.f32 %v6340, 1e-05
  %v6373 = vadd.f32 %v6341, 1e-05
  %v6374 = vadd.f32 %v6342, 1e-05
  %v6375 = vadd.f32 %v6343, 1e-05
  %v6376 = vadd.f32 %v6344, 1e-05
  %v6377 = vadd.f32 %v6345, 1e-05
  %v6378 = vadd.f32 %v6346, 1e-05
  %v6379 = vadd.f32 %v6347, 1e-05
  %v6380 = vadd.f32 %v6348, 1e-05
  %v6381 = vadd.f32 %v6349, 1e-05
  %v6382 = vadd.f32 %v6350, 1e-05
  %v6383 = vadd.f32 %v6351, 1e-05
  %v6384 = vadd.f32 %v6352, 1e-05
  %v6385 = vadd.f32 %v6353, 1e-05
  %v6386 = vadd.f32 %v6354, 1e-05
  %v6387 = vadd.f32 %v6355, 1e-05
  %v6388 = vadd.f32 %v6356, 1e-05
  %v6389 = vadd.f32 %v6357, 1e-05
  %v6390 = vadd.f32 %v6358, 1e-05
  %v6391 = vadd.f32 %v6359, 1e-05
  %v6392 = vadd.f32 %v6360, 1e-05
  %v6393 = vadd.f32 %v6361, 1e-05
  %v6394 = vrsqrt.pop %v6362
  %v6395 = vrsqrt.pop %v6363
  %v6396 = vrsqrt.pop %v6364
  %v6397 = vrsqrt.pop %v6365
  %v6398 = vrsqrt.pop %v6366
  %v6399 = vrsqrt.pop %v6367
  %v6400 = vrsqrt.pop %v6368
  %v6401 = vrsqrt.pop %v6369
  %v6402 = vrsqrt.pop %v6370
  %v6403 = vrsqrt.pop %v6371
  %v6404 = vrsqrt.pop %v6372
  %v6405 = vrsqrt.pop %v6373
  %v6406 = vrsqrt.pop %v6374
  %v6407 = vrsqrt.pop %v6375
  %v6408 = vrsqrt.pop %v6376
  %v6409 = vrsqrt.pop %v6377
  %v6410 = vrsqrt.pop %v6378
  %v6411 = vrsqrt.pop %v6379
  %v6412 = vrsqrt.pop %v6380
  %v6413 = vrsqrt.pop %v6381
  %v6414 = vrsqrt.pop %v6382
  %v6415 = vrsqrt.pop %v6383
  %v6416 = vrsqrt.pop %v6384
  %v6417 = vrsqrt.pop %v6385
  %v6418 = vrsqrt.pop %v6386
  %v6419 = vrsqrt.pop %v6387
  %v6420 = vrsqrt.pop %v6388
  %v6421 = vrsqrt.pop %v6389
  %v6422 = vrsqrt.pop %v6390
  %v6423 = vrsqrt.pop %v6391
  %v6424 = vrsqrt.pop %v6392
  %v6425 = vrsqrt.pop %v6393
  %v6426 = vmul.f32 %v6202, %v6394
  %v6427 = vmul.f32 %v6203, %v6395
  %v6428 = vmul.f32 %v6204, %v6396
  %v6429 = vmul.f32 %v6205, %v6397
  %v6430 = vmul.f32 %v6206, %v6398
  %v6431 = vmul.f32 %v6207, %v6399
  %v6432 = vmul.f32 %v6208, %v6400
  %v6433 = vmul.f32 %v6209, %v6401
  %v6434 = vmul.f32 %v6210, %v6402
  %v6435 = vmul.f32 %v6211, %v6403
  %v6436 = vmul.f32 %v6212, %v6404
  %v6437 = vmul.f32 %v6213, %v6405
  %v6438 = vmul.f32 %v6214, %v6406
  %v6439 = vmul.f32 %v6215, %v6407
  %v6440 = vmul.f32 %v6216, %v6408
  %v6441 = vmul.f32 %v6217, %v6409
  %v6442 = vmul.f32 %v6218, %v6410
  %v6443 = vmul.f32 %v6219, %v6411
  %v6444 = vmul.f32 %v6220, %v6412
  %v6445 = vmul.f32 %v6221, %v6413
  %v6446 = vmul.f32 %v6222, %v6414
  %v6447 = vmul.f32 %v6223, %v6415
  %v6448 = vmul.f32 %v6224, %v6416
  %v6449 = vmul.f32 %v6225, %v6417
  %v6450 = vmul.f32 %v6226, %v6418
  %v6451 = vmul.f32 %v6227, %v6419
  %v6452 = vmul.f32 %v6228, %v6420
  %v6453 = vmul.f32 %v6229, %v6421
  %v6454 = vmul.f32 %v6230, %v6422
  %v6455 = vmul.f32 %v6231, %v6423
  %v6456 = vmul.f32 %v6232, %v6424
  %v6457 = vmul.f32 %v6233, %v6425
  %v6459 = vlaneseq
  %v6460 = vshrl.u32 %v6459, 7
  %v6461 = vsub.s32 0, %v6460
  %v6462 = vrot.slane %v6104, %v6461
  %v6464 = vmul.f32 %v6426, %v6462
  %v6465 = vmul.f32 %v6427, %v6462
  %v6466 = vmul.f32 %v6428, %v6462
  %v6467 = vmul.f32 %v6429, %v6462
  %v6468 = vmul.f32 %v6430, %v6462
  %v6469 = vmul.f32 %v6431, %v6462
  %v6470 = vmul.f32 %v6432, %v6462
  %v6471 = vmul.f32 %v6433, %v6462
  %v6472 = vmul.f32 %v6434, %v6462
  %v6473 = vmul.f32 %v6435, %v6462
  %v6474 = vmul.f32 %v6436, %v6462
  %v6475 = vmul.f32 %v6437, %v6462
  %v6476 = vmul.f32 %v6438, %v6462
  %v6477 = vmul.f32 %v6439, %v6462
  %v6478 = vmul.f32 %v6440, %v6462
  %v6479 = vmul.f32 %v6441, %v6462
  %v6480 = vmul.f32 %v6442, %v6462
  %v6481 = vmul.f32 %v6443, %v6462
  %v6482 = vmul.f32 %v6444, %v6462
  %v6483 = vmul.f32 %v6445, %v6462
  %v6484 = vmul.f32 %v6446, %v6462
  %v6485 = vmul.f32 %v6447, %v6462
  %v6486 = vmul.f32 %v6448, %v6462
  %v6487 = vmul.f32 %v6449, %v6462
  %v6488 = vmul.f32 %v6450, %v6462
  %v6489 = vmul.f32 %v6451, %v6462
  %v6490 = vmul.f32 %v6452, %v6462
  %v6491 = vmul.f32 %v6453, %v6462
  %v6492 = vmul.f32 %v6454, %v6462
  %v6493 = vmul.f32 %v6455, %v6462
  %v6494 = vmul.f32 %v6456, %v6462
  %v6495 = vmul.f32 %v6457, %v6462
  %v6497 = vlaneseq
  %v6498 = vshrl.u32 %v6497, 7
  %v6499 = vsub.s32 0, %v6498
  %v6500 = vrot.slane %v6105, %v6499
  %v6502 = vadd.f32 %v6464, %v6500
  %v6503 = vadd.f32 %v6465, %v6500
  %v6504 = vadd.f32 %v6466, %v6500
  %v6505 = vadd.f32 %v6467, %v6500
  %v6506 = vadd.f32 %v6468, %v6500
  %v6507 = vadd.f32 %v6469, %v6500
  %v6508 = vadd.f32 %v6470, %v6500
  %v6509 = vadd.f32 %v6471, %v6500
  %v6510 = vadd.f32 %v6472, %v6500
  %v6511 = vadd.f32 %v6473, %v6500
  %v6512 = vadd.f32 %v6474, %v6500
  %v6513 = vadd.f32 %v6475, %v6500
  %v6514 = vadd.f32 %v6476, %v6500
  %v6515 = vadd.f32 %v6477, %v6500
  %v6516 = vadd.f32 %v6478, %v6500
  %v6517 = vadd.f32 %v6479, %v6500
  %v6518 = vadd.f32 %v6480, %v6500
  %v6519 = vadd.f32 %v6481, %v6500
  %v6520 = vadd.f32 %v6482, %v6500
  %v6521 = vadd.f32 %v6483, %v6500
  %v6522 = vadd.f32 %v6484, %v6500
  %v6523 = vadd.f32 %v6485, %v6500
  %v6524 = vadd.f32 %v6486, %v6500
  %v6525 = vadd.f32 %v6487, %v6500
  %v6526 = vadd.f32 %v6488, %v6500
  %v6527 = vadd.f32 %v6489, %v6500
  %v6528 = vadd.f32 %v6490, %v6500
  %v6529 = vadd.f32 %v6491, %v6500
  %v6530 = vadd.f32 %v6492, %v6500
  %v6531 = vadd.f32 %v6493, %v6500
  %v6532 = vadd.f32 %v6494, %v6500
  %v6533 = vadd.f32 %v6495, %v6500
  %v6534 = vpack.c.bf16 %v6503, %v6502
  %v6535 = vpack.c.bf16 %v6505, %v6504
  %v6536 = vpack.c.bf16 %v6507, %v6506
  %v6537 = vpack.c.bf16 %v6509, %v6508
  %v6538 = vpack.c.bf16 %v6511, %v6510
  %v6539 = vpack.c.bf16 %v6513, %v6512
  %v6540 = vpack.c.bf16 %v6515, %v6514
  %v6541 = vpack.c.bf16 %v6517, %v6516
  %v6542 = vpack.c.bf16 %v6519, %v6518
  %v6543 = vpack.c.bf16 %v6521, %v6520
  %v6544 = vpack.c.bf16 %v6523, %v6522
  %v6545 = vpack.c.bf16 %v6525, %v6524
  %v6546 = vpack.c.bf16 %v6527, %v6526
  %v6547 = vpack.c.bf16 %v6529, %v6528
  %v6548 = vpack.c.bf16 %v6531, %v6530
  %v6549 = vpack.c.bf16 %v6533, %v6532
  %v6550 = vld [vmem:[%s17] sm:$0xf]
  %v6551 = vld [vmem:[%s17 + $0x4] sm:$0xf]
  %v6552 = vld [vmem:[%s17 + $0x8] sm:$0xf]
  %v6553 = vld [vmem:[%s17 + $0xc] sm:$0xf]
  %v6554 = vld [vmem:[%s17 + $0x10] sm:$0xf]
  %v6555 = vld [vmem:[%s17 + $0x14] sm:$0xf]
  %v6556 = vld [vmem:[%s17 + $0x18] sm:$0xf]
  %v6557 = vld [vmem:[%s17 + $0x1c] sm:$0xf]
  %v6558 = vld [vmem:[%s17 + $0x20] sm:$0xf]
  %v6559 = vld [vmem:[%s17 + $0x24] sm:$0xf]
  %v6560 = vld [vmem:[%s17 + $0x28] sm:$0xf]
  %v6561 = vld [vmem:[%s17 + $0x2c] sm:$0xf]
  %v6562 = vld [vmem:[%s17 + $0x30] sm:$0xf]
  %v6563 = vld [vmem:[%s17 + $0x34] sm:$0xf]
  %v6564 = vld [vmem:[%s17 + $0x38] sm:$0xf]
  %v6565 = vld [vmem:[%s17 + $0x3c] sm:$0xf]
  %v6582 = vunpack.c.l.b16 %v6550
  %v6583 = vunpack.c.l.b16 %v6551
  %v6584 = vunpack.c.l.b16 %v6552
  %v6585 = vunpack.c.l.b16 %v6553
  %v6586 = vunpack.c.l.b16 %v6554
  %v6587 = vunpack.c.l.b16 %v6555
  %v6588 = vunpack.c.l.b16 %v6556
  %v6589 = vunpack.c.l.b16 %v6557
  %v6590 = vunpack.c.l.b16 %v6558
  %v6591 = vunpack.c.l.b16 %v6559
  %v6592 = vunpack.c.l.b16 %v6560
  %v6593 = vunpack.c.l.b16 %v6561
  %v6594 = vunpack.c.l.b16 %v6562
  %v6595 = vunpack.c.l.b16 %v6563
  %v6596 = vunpack.c.l.b16 %v6564
  %v6597 = vunpack.c.l.b16 %v6565
  %v6598 = vpack.c.b16 %v6583, %v6582
  %v6599 = vpack.c.b16 %v6585, %v6584
  %v6600 = vpack.c.b16 %v6587, %v6586
  %v6601 = vpack.c.b16 %v6589, %v6588
  %v6602 = vpack.c.b16 %v6591, %v6590
  %v6603 = vpack.c.b16 %v6593, %v6592
  %v6604 = vpack.c.b16 %v6595, %v6594
  %v6605 = vpack.c.b16 %v6597, %v6596
  %6614 = vmatprep.subr.bf16.mxu0 0
  %6615 = vmatpush1.bf16.msra.mxu0 %v6598
  %6616 = vmatprep.subr.bf16.mxu0 0
  %6617 = vmatpush1.bf16.msra.mxu0 %v6599
  %6618 = vmatprep.subr.bf16.mxu0 0
  %6619 = vmatpush1.bf16.msra.mxu0 %v6600
  %6620 = vmatprep.subr.bf16.mxu0 0
  %6621 = vmatpush1.bf16.msra.mxu0 %v6601
  %6622 = vmatprep.subr.bf16.mxu0 0
  %6623 = vmatpush1.bf16.msra.mxu0 %v6602
  %6624 = vmatprep.subr.bf16.mxu0 0
  %6625 = vmatpush1.bf16.msra.mxu0 %v6603
  %6626 = vmatprep.subr.bf16.mxu0 0
  %6627 = vmatpush1.bf16.msra.mxu0 %v6604
  %6628 = vmatprep.subr.bf16.mxu0 0
  %6629 = vmatpush1.bf16.msra.mxu0 %v6605
  %6630 = vmatprep.subr.bf16.mxu0 0
  %6631 = vmatpush1.bf16.msra.mxu0 0
  %6632 = vmatprep.subr.bf16.mxu0 0
  %6633 = vmatpush1.bf16.msra.mxu0 0
  %6634 = vmatprep.subr.bf16.mxu0 0
  %6635 = vmatpush1.bf16.msra.mxu0 0
  %6636 = vmatprep.subr.bf16.mxu0 0
  %6637 = vmatpush1.bf16.msra.mxu0 0
  %6638 = vmatprep.subr.bf16.mxu0 0
  %6639 = vmatpush1.bf16.msra.mxu0 0
  %6640 = vmatprep.subr.bf16.mxu0 0
  %6641 = vmatpush1.bf16.msra.mxu0 0
  %6642 = vmatprep.subr.bf16.mxu0 0
  %6643 = vmatpush1.bf16.msra.mxu0 0
  %6644 = vmatprep.subr.bf16.mxu0 0
  %6645 = vmatpush1.bf16.msra.mxu0 0
  %6646 = vmatprep.mubr.bf16.mxu0 0
  %6647 = vmatmul.mubr.bf16.gmra.mrb[0].mxu0 %v6534
  %v6648 = vpop.f32.mrb[0].mxu0
  %v6649 = vadd.f32 0.0, %v6648
  %v6650 = vpop.f32.mrb[0].mxu0
  %v6651 = vpop.f32.mrb[0].mxu0
  %v6652 = vadd.f32 0.0, %v6651
  %v6653 = vpop.f32.mrb[0].mxu0
  %6654 = vmatprep.mubr.bf16.mxu0 0
  %6655 = vmatmul.mubr.bf16.gmra.mrb[0].mxu0 %v6535
  %v6656 = vpop.f32.mrb[0].mxu0
  %v6657 = vadd.f32 0.0, %v6656
  %v6658 = vpop.f32.mrb[0].mxu0
  %v6659 = vpop.f32.mrb[0].mxu0
  %v6660 = vadd.f32 0.0, %v6659
  %v6661 = vpop.f32.mrb[0].mxu0
  %6662 = vmatprep.mubr.bf16.mxu0 0
  %6663 = vmatmul.mubr.bf16.gmra.mrb[0].mxu0 %v6536
  %v6664 = vpop.f32.mrb[0].mxu0
  %v6665 = vadd.f32 0.0, %v6664
  %v6666 = vpop.f32.mrb[0].mxu0
  %v6667 = vpop.f32.mrb[0].mxu0
  %v6668 = vadd.f32 0.0, %v6667
  %v6669 = vpop.f32.mrb[0].mxu0
  %6670 = vmatprep.mubr.bf16.mxu0 0
  %6671 = vmatmul.mubr.bf16.gmra.mrb[0].mxu0 %v6537
  %v6672 = vpop.f32.mrb[0].mxu0
  %v6673 = vadd.f32 0.0, %v6672
  %v6674 = vpop.f32.mrb[0].mxu0
  %v6675 = vpop.f32.mrb[0].mxu0
  %v6676 = vadd.f32 0.0, %v6675
  %v6677 = vpop.f32.mrb[0].mxu0
  %6678 = vmatprep.mubr.bf16.mxu0 0
  %6679 = vmatmul.mubr.bf16.gmra.mrb[0].mxu0 %v6538
  %v6680 = vpop.f32.mrb[0].mxu0
  %v6681 = vadd.f32 0.0, %v6680
  %v6682 = vpop.f32.mrb[0].mxu0
  %v6683 = vpop.f32.mrb[0].mxu0
  %v6684 = vadd.f32 0.0, %v6683
  %v6685 = vpop.f32.mrb[0].mxu0
  %6686 = vmatprep.mubr.bf16.mxu0 0
  %6687 = vmatmul.mubr.bf16.gmra.mrb[0].mxu0 %v6539
  %v6688 = vpop.f32.mrb[0].mxu0
  %v6689 = vadd.f32 0.0, %v6688
  %v6690 = vpop.f32.mrb[0].mxu0
  %v6691 = vpop.f32.mrb[0].mxu0
  %v6692 = vadd.f32 0.0, %v6691
  %v6693 = vpop.f32.mrb[0].mxu0
  %6694 = vmatprep.mubr.bf16.mxu0 0
  %6695 = vmatmul.mubr.bf16.gmra.mrb[0].mxu0 %v6540
  %v6696 = vpop.f32.mrb[0].mxu0
  %v6697 = vadd.f32 0.0, %v6696
  %v6698 = vpop.f32.mrb[0].mxu0
  %v6699 = vpop.f32.mrb[0].mxu0
  %v6700 = vadd.f32 0.0, %v6699
  %v6701 = vpop.f32.mrb[0].mxu0
  %6702 = vmatprep.mubr.bf16.mxu0 0
  %6703 = vmatmul.mubr.bf16.gmra.mrb[0].mxu0 %v6541
  %v6704 = vpop.f32.mrb[0].mxu0
  %v6705 = vadd.f32 0.0, %v6704
  %v6706 = vpop.f32.mrb[0].mxu0
  %v6707 = vpop.f32.mrb[0].mxu0
  %v6708 = vadd.f32 0.0, %v6707
  %v6709 = vpop.f32.mrb[0].mxu0
  %6710 = vmatprep.mubr.bf16.mxu0 0
  %6711 = vmatmul.mubr.bf16.gmra.mrb[0].mxu0 %v6542
  %v6712 = vpop.f32.mrb[0].mxu0
  %v6713 = vadd.f32 0.0, %v6712
  %v6714 = vpop.f32.mrb[0].mxu0
  %v6715 = vpop.f32.mrb[0].mxu0
  %v6716 = vadd.f32 0.0, %v6715
  %v6717 = vpop.f32.mrb[0].mxu0
  %6718 = vmatprep.mubr.bf16.mxu0 0
  %6719 = vmatmul.mubr.bf16.gmra.mrb[0].mxu0 %v6543
  %v6720 = vpop.f32.mrb[0].mxu0
  %v6721 = vadd.f32 0.0, %v6720
  %v6722 = vpop.f32.mrb[0].mxu0
  %v6723 = vpop.f32.mrb[0].mxu0
  %v6724 = vadd.f32 0.0, %v6723
  %v6725 = vpop.f32.mrb[0].mxu0
  %6726 = vmatprep.mubr.bf16.mxu0 0
  %6727 = vmatmul.mubr.bf16.gmra.mrb[0].mxu0 %v6544
  %v6728 = vpop.f32.mrb[0].mxu0
  %v6729 = vadd.f32 0.0, %v6728
  %v6730 = vpop.f32.mrb[0].mxu0
  %v6731 = vpop.f32.mrb[0].mxu0
  %v6732 = vadd.f32 0.0, %v6731
  %v6733 = vpop.f32.mrb[0].mxu0
  %6734 = vmatprep.mubr.bf16.mxu0 0
  %6735 = vmatmul.mubr.bf16.gmra.mrb[0].mxu0 %v6545
  %v6736 = vpop.f32.mrb[0].mxu0
  %v6737 = vadd.f32 0.0, %v6736
  %v6738 = vpop.f32.mrb[0].mxu0
  %v6739 = vpop.f32.mrb[0].mxu0
  %v6740 = vadd.f32 0.0, %v6739
  %v6741 = vpop.f32.mrb[0].mxu0
  %6742 = vmatprep.mubr.bf16.mxu0 0
  %6743 = vmatmul.mubr.bf16.gmra.mrb[0].mxu0 %v6546
  %v6744 = vpop.f32.mrb[0].mxu0
  %v6745 = vadd.f32 0.0, %v6744
  %v6746 = vpop.f32.mrb[0].mxu0
  %v6747 = vpop.f32.mrb[0].mxu0
  %v6748 = vadd.f32 0.0, %v6747
  %v6749 = vpop.f32.mrb[0].mxu0
  %6750 = vmatprep.mubr.bf16.mxu0 0
  %6751 = vmatmul.mubr.bf16.gmra.mrb[0].mxu0 %v6547
  %v6752 = vpop.f32.mrb[0].mxu0
  %v6753 = vadd.f32 0.0, %v6752
  %v6754 = vpop.f32.mrb[0].mxu0
  %v6755 = vpop.f32.mrb[0].mxu0
  %v6756 = vadd.f32 0.0, %v6755
  %v6757 = vpop.f32.mrb[0].mxu0
  %6758 = vmatprep.mubr.bf16.mxu0 0
  %6759 = vmatmul.mubr.bf16.gmra.mrb[0].mxu0 %v6548
  %v6760 = vpop.f32.mrb[0].mxu0
  %v6761 = vadd.f32 0.0, %v6760
  %v6762 = vpop.f32.mrb[0].mxu0
  %v6763 = vpop.f32.mrb[0].mxu0
  %v6764 = vadd.f32 0.0, %v6763
  %v6765 = vpop.f32.mrb[0].mxu0
  %6766 = vmatprep.mubr.bf16.mxu0 0
  %6767 = vmatmul.mubr.bf16.gmra.mrb[0].mxu0 %v6549
  %v6768 = vpop.f32.mrb[0].mxu0
  %v6769 = vadd.f32 0.0, %v6768
  %v6770 = vpop.f32.mrb[0].mxu0
  %v6771 = vpop.f32.mrb[0].mxu0
  %v6772 = vadd.f32 0.0, %v6771
  %v6773 = vpop.f32.mrb[0].mxu0
  %6774 = vdwg.mxu0
  %6775 = vmax.xlane.f32.xlu0 %v6649
  %v6776 = vpop.xlane.xlu0 %6775
  %6777 = vmax.xlane.f32.xlu0 %v6652
  %v6778 = vpop.xlane.xlu0 %6777
  %6779 = vmax.xlane.f32.xlu0 %v6657
  %v6780 = vpop.xlane.xlu0 %6779
  %6781 = vmax.xlane.f32.xlu0 %v6660
  %v6782 = vpop.xlane.xlu0 %6781
  %6783 = vmax.xlane.f32.xlu0 %v6665
  %v6784 = vpop.xlane.xlu0 %6783
  %6785 = vmax.xlane.f32.xlu0 %v6668
  %v6786 = vpop.xlane.xlu0 %6785
  %6787 = vmax.xlane.f32.xlu0 %v6673
  %v6788 = vpop.xlane.xlu0 %6787
  %6789 = vmax.xlane.f32.xlu0 %v6676
  %v6790 = vpop.xlane.xlu0 %6789
  %6791 = vmax.xlane.f32.xlu0 %v6681
  %v6792 = vpop.xlane.xlu0 %6791
  %6793 = vmax.xlane.f32.xlu0 %v6684
  %v6794 = vpop.xlane.xlu0 %6793
  %6795 = vmax.xlane.f32.xlu0 %v6689
  %v6796 = vpop.xlane.xlu0 %6795
  %6797 = vmax.xlane.f32.xlu0 %v6692
  %v6798 = vpop.xlane.xlu0 %6797
  %6799 = vmax.xlane.f32.xlu0 %v6697
  %v6800 = vpop.xlane.xlu0 %6799
  %6801 = vmax.xlane.f32.xlu0 %v6700
  %v6802 = vpop.xlane.xlu0 %6801
  %6803 = vmax.xlane.f32.xlu0 %v6705
  %v6804 = vpop.xlane.xlu0 %6803
  %6805 = vmax.xlane.f32.xlu0 %v6708
  %v6806 = vpop.xlane.xlu0 %6805
  %6807 = vmax.xlane.f32.xlu0 %v6713
  %v6808 = vpop.xlane.xlu0 %6807
  %6809 = vmax.xlane.f32.xlu0 %v6716
  %v6810 = vpop.xlane.xlu0 %6809
  %6811 = vmax.xlane.f32.xlu0 %v6721
  %v6812 = vpop.xlane.xlu0 %6811
  %6813 = vmax.xlane.f32.xlu0 %v6724
  %v6814 = vpop.xlane.xlu0 %6813
  %6815 = vmax.xlane.f32.xlu0 %v6729
  %v6816 = vpop.xlane.xlu0 %6815
  %6817 = vmax.xlane.f32.xlu0 %v6732
  %v6818 = vpop.xlane.xlu0 %6817
  %6819 = vmax.xlane.f32.xlu0 %v6737
  %v6820 = vpop.xlane.xlu0 %6819
  %6821 = vmax.xlane.f32.xlu0 %v6740
  %v6822 = vpop.xlane.xlu0 %6821
  %6823 = vmax.xlane.f32.xlu0 %v6745
  %v6824 = vpop.xlane.xlu0 %6823
  %6825 = vmax.xlane.f32.xlu0 %v6748
  %v6826 = vpop.xlane.xlu0 %6825
  %6827 = vmax.xlane.f32.xlu0 %v6753
  %v6828 = vpop.xlane.xlu0 %6827
  %6829 = vmax.xlane.f32.xlu0 %v6756
  %v6830 = vpop.xlane.xlu0 %6829
  %6831 = vmax.xlane.f32.xlu0 %v6761
  %v6832 = vpop.xlane.xlu0 %6831
  %6833 = vmax.xlane.f32.xlu0 %v6764
  %v6834 = vpop.xlane.xlu0 %6833
  %6835 = vmax.xlane.f32.xlu0 %v6769
  %v6836 = vpop.xlane.xlu0 %6835
  %6837 = vmax.xlane.f32.xlu0 %v6772
  %v6838 = vpop.xlane.xlu0 %6837
  %v6839 = vsub.f32 %v6649, %v6776
  %v6840 = vsub.f32 %v6652, %v6778
  %v6841 = vsub.f32 %v6657, %v6780
  %v6842 = vsub.f32 %v6660, %v6782
  %v6843 = vsub.f32 %v6665, %v6784
  %v6844 = vsub.f32 %v6668, %v6786
  %v6845 = vsub.f32 %v6673, %v6788
  %v6846 = vsub.f32 %v6676, %v6790
  %v6847 = vsub.f32 %v6681, %v6792
  %v6848 = vsub.f32 %v6684, %v6794
  %v6849 = vsub.f32 %v6689, %v6796
  %v6850 = vsub.f32 %v6692, %v6798
  %v6851 = vsub.f32 %v6697, %v6800
  %v6852 = vsub.f32 %v6700, %v6802
  %v6853 = vsub.f32 %v6705, %v6804
  %v6854 = vsub.f32 %v6708, %v6806
  %v6855 = vsub.f32 %v6713, %v6808
  %v6856 = vsub.f32 %v6716, %v6810
  %v6857 = vsub.f32 %v6721, %v6812
  %v6858 = vsub.f32 %v6724, %v6814
  %v6859 = vsub.f32 %v6729, %v6816
  %v6860 = vsub.f32 %v6732, %v6818
  %v6861 = vsub.f32 %v6737, %v6820
  %v6862 = vsub.f32 %v6740, %v6822
  %v6863 = vsub.f32 %v6745, %v6824
  %v6864 = vsub.f32 %v6748, %v6826
  %v6865 = vsub.f32 %v6753, %v6828
  %v6866 = vsub.f32 %v6756, %v6830
  %v6867 = vsub.f32 %v6761, %v6832
  %v6868 = vsub.f32 %v6764, %v6834
  %v6869 = vsub.f32 %v6769, %v6836
  %v6870 = vsub.f32 %v6772, %v6838
  %v6871 = vmul.f32 %v6839, 1.442695
  %v6872 = vpow.pop %v6871
  %v6873 = vmul.f32 %v6840, 1.442695
  %v6874 = vpow.pop %v6873
  %v6875 = vmul.f32 %v6841, 1.442695
  %v6876 = vpow.pop %v6875
  %v6877 = vmul.f32 %v6842, 1.442695
  %v6878 = vpow.pop %v6877
  %v6879 = vmul.f32 %v6843, 1.442695
  %v6880 = vpow.pop %v6879
  %v6881 = vmul.f32 %v6844, 1.442695
  %v6882 = vpow.pop %v6881
  %v6883 = vmul.f32 %v6845, 1.442695
  %v6884 = vpow.pop %v6883
  %v6885 = vmul.f32 %v6846, 1.442695
  %v6886 = vpow.pop %v6885
  %v6887 = vmul.f32 %v6847, 1.442695
  %v6888 = vpow.pop %v6887
  %v6889 = vmul.f32 %v6848, 1.442695
  %v6890 = vpow.pop %v6889
  %v6891 = vmul.f32 %v6849, 1.442695
  %v6892 = vpow.pop %v6891
  %v6893 = vmul.f32 %v6850, 1.442695
  %v6894 = vpow.pop %v6893
  %v6895 = vmul.f32 %v6851, 1.442695
  %v6896 = vpow.pop %v6895
  %v6897 = vmul.f32 %v6852, 1.442695
  %v6898 = vpow.pop %v6897
  %v6899 = vmul.f32 %v6853, 1.442695
  %v6900 = vpow.pop %v6899
  %v6901 = vmul.f32 %v6854, 1.442695
  %v6902 = vpow.pop %v6901
  %v6903 = vmul.f32 %v6855, 1.442695
  %v6904 = vpow.pop %v6903
  %v6905 = vmul.f32 %v6856, 1.442695
  %v6906 = vpow.pop %v6905
  %v6907 = vmul.f32 %v6857, 1.442695
  %v6908 = vpow.pop %v6907
  %v6909 = vmul.f32 %v6858, 1.442695
  %v6910 = vpow.pop %v6909
  %v6911 = vmul.f32 %v6859, 1.442695
  %v6912 = vpow.pop %v6911
  %v6913 = vmul.f32 %v6860, 1.442695
  %v6914 = vpow.pop %v6913
  %v6915 = vmul.f32 %v6861, 1.442695
  %v6916 = vpow.pop %v6915
  %v6917 = vmul.f32 %v6862, 1.442695
  %v6918 = vpow.pop %v6917
  %v6919 = vmul.f32 %v6863, 1.442695
  %v6920 = vpow.pop %v6919
  %v6921 = vmul.f32 %v6864, 1.442695
  %v6922 = vpow.pop %v6921
  %v6923 = vmul.f32 %v6865, 1.442695
  %v6924 = vpow.pop %v6923
  %v6925 = vmul.f32 %v6866, 1.442695
  %v6926 = vpow.pop %v6925
  %v6927 = vmul.f32 %v6867, 1.442695
  %v6928 = vpow.pop %v6927
  %v6929 = vmul.f32 %v6868, 1.442695
  %v6930 = vpow.pop %v6929
  %v6931 = vmul.f32 %v6869, 1.442695
  %v6932 = vpow.pop %v6931
  %v6933 = vmul.f32 %v6870, 1.442695
  %v6934 = vpow.pop %v6933
  %6935 = vadd.xlane.f32.xlu0 %v6872
  %v6936 = vpop.xlane.xlu0 %6935
  %6937 = vadd.xlane.f32.xlu0 %v6874
  %v6938 = vpop.xlane.xlu0 %6937
  %6939 = vadd.xlane.f32.xlu0 %v6876
  %v6940 = vpop.xlane.xlu0 %6939
  %6941 = vadd.xlane.f32.xlu0 %v6878
  %v6942 = vpop.xlane.xlu0 %6941
  %6943 = vadd.xlane.f32.xlu0 %v6880
  %v6944 = vpop.xlane.xlu0 %6943
  %6945 = vadd.xlane.f32.xlu0 %v6882
  %v6946 = vpop.xlane.xlu0 %6945
  %6947 = vadd.xlane.f32.xlu0 %v6884
  %v6948 = vpop.xlane.xlu0 %6947
  %6949 = vadd.xlane.f32.xlu0 %v6886
  %v6950 = vpop.xlane.xlu0 %6949
  %6951 = vadd.xlane.f32.xlu0 %v6888
  %v6952 = vpop.xlane.xlu0 %6951
  %6953 = vadd.xlane.f32.xlu0 %v6890
  %v6954 = vpop.xlane.xlu0 %6953
  %6955 = vadd.xlane.f32.xlu0 %v6892
  %v6956 = vpop.xlane.xlu0 %6955
  %6957 = vadd.xlane.f32.xlu0 %v6894
  %v6958 = vpop.xlane.xlu0 %6957
  %6959 = vadd.xlane.f32.xlu0 %v6896
  %v6960 = vpop.xlane.xlu0 %6959
  %6961 = vadd.xlane.f32.xlu0 %v6898
  %v6962 = vpop.xlane.xlu0 %6961
  %6963 = vadd.xlane.f32.xlu0 %v6900
  %v6964 = vpop.xlane.xlu0 %6963
  %6965 = vadd.xlane.f32.xlu0 %v6902
  %v6966 = vpop.xlane.xlu0 %6965
  %6967 = vadd.xlane.f32.xlu0 %v6904
  %v6968 = vpop.xlane.xlu0 %6967
  %6969 = vadd.xlane.f32.xlu0 %v6906
  %v6970 = vpop.xlane.xlu0 %6969
  %6971 = vadd.xlane.f32.xlu0 %v6908
  %v6972 = vpop.xlane.xlu0 %6971
  %6973 = vadd.xlane.f32.xlu0 %v6910
  %v6974 = vpop.xlane.xlu0 %6973
  %6975 = vadd.xlane.f32.xlu0 %v6912
  %v6976 = vpop.xlane.xlu0 %6975
  %6977 = vadd.xlane.f32.xlu0 %v6914
  %v6978 = vpop.xlane.xlu0 %6977
  %6979 = vadd.xlane.f32.xlu0 %v6916
  %v6980 = vpop.xlane.xlu0 %6979
  %6981 = vadd.xlane.f32.xlu0 %v6918
  %v6982 = vpop.xlane.xlu0 %6981
  %6983 = vadd.xlane.f32.xlu0 %v6920
  %v6984 = vpop.xlane.xlu0 %6983
  %6985 = vadd.xlane.f32.xlu0 %v6922
  %v6986 = vpop.xlane.xlu0 %6985
  %6987 = vadd.xlane.f32.xlu0 %v6924
  %v6988 = vpop.xlane.xlu0 %6987
  %6989 = vadd.xlane.f32.xlu0 %v6926
  %v6990 = vpop.xlane.xlu0 %6989
  %6991 = vadd.xlane.f32.xlu0 %v6928
  %v6992 = vpop.xlane.xlu0 %6991
  %6993 = vadd.xlane.f32.xlu0 %v6930
  %v6994 = vpop.xlane.xlu0 %6993
  %6995 = vadd.xlane.f32.xlu0 %v6932
  %v6996 = vpop.xlane.xlu0 %6995
  %6997 = vadd.xlane.f32.xlu0 %v6934
  %v6998 = vpop.xlane.xlu0 %6997
  %v6999 = vlog2.pop %v6936
  %v7000 = vmul.f32 %v6999, 0.6931472
  %v7001 = vlog2.pop %v6938
  %v7002 = vmul.f32 %v7001, 0.6931472
  %v7003 = vlog2.pop %v6940
  %v7004 = vmul.f32 %v7003, 0.6931472
  %v7005 = vlog2.pop %v6942
  %v7006 = vmul.f32 %v7005, 0.6931472
  %v7007 = vlog2.pop %v6944
  %v7008 = vmul.f32 %v7007, 0.6931472
  %v7009 = vlog2.pop %v6946
  %v7010 = vmul.f32 %v7009, 0.6931472
  %v7011 = vlog2.pop %v6948
  %v7012 = vmul.f32 %v7011, 0.6931472
  %v7013 = vlog2.pop %v6950
  %v7014 = vmul.f32 %v7013, 0.6931472
  %v7015 = vlog2.pop %v6952
  %v7016 = vmul.f32 %v7015, 0.6931472
  %v7017 = vlog2.pop %v6954
  %v7018 = vmul.f32 %v7017, 0.6931472
  %v7019 = vlog2.pop %v6956
  %v7020 = vmul.f32 %v7019, 0.6931472
  %v7021 = vlog2.pop %v6958
  %v7022 = vmul.f32 %v7021, 0.6931472
  %v7023 = vlog2.pop %v6960
  %v7024 = vmul.f32 %v7023, 0.6931472
  %v7025 = vlog2.pop %v6962
  %v7026 = vmul.f32 %v7025, 0.6931472
  %v7027 = vlog2.pop %v6964
  %v7028 = vmul.f32 %v7027, 0.6931472
  %v7029 = vlog2.pop %v6966
  %v7030 = vmul.f32 %v7029, 0.6931472
  %v7031 = vlog2.pop %v6968
  %v7032 = vmul.f32 %v7031, 0.6931472
  %v7033 = vlog2.pop %v6970
  %v7034 = vmul.f32 %v7033, 0.6931472
  %v7035 = vlog2.pop %v6972
  %v7036 = vmul.f32 %v7035, 0.6931472
  %v7037 = vlog2.pop %v6974
  %v7038 = vmul.f32 %v7037, 0.6931472
  %v7039 = vlog2.pop %v6976
  %v7040 = vmul.f32 %v7039, 0.6931472
  %v7041 = vlog2.pop %v6978
  %v7042 = vmul.f32 %v7041, 0.6931472
  %v7043 = vlog2.pop %v6980
  %v7044 = vmul.f32 %v7043, 0.6931472
  %v7045 = vlog2.pop %v6982
  %v7046 = vmul.f32 %v7045, 0.6931472
  %v7047 = vlog2.pop %v6984
  %v7048 = vmul.f32 %v7047, 0.6931472
  %v7049 = vlog2.pop %v6986
  %v7050 = vmul.f32 %v7049, 0.6931472
  %v7051 = vlog2.pop %v6988
  %v7052 = vmul.f32 %v7051, 0.6931472
  %v7053 = vlog2.pop %v6990
  %v7054 = vmul.f32 %v7053, 0.6931472
  %v7055 = vlog2.pop %v6992
  %v7056 = vmul.f32 %v7055, 0.6931472
  %v7057 = vlog2.pop %v6994
  %v7058 = vmul.f32 %v7057, 0.6931472
  %v7059 = vlog2.pop %v6996
  %v7060 = vmul.f32 %v7059, 0.6931472
  %v7061 = vlog2.pop %v6998
  %v7062 = vmul.f32 %v7061, 0.6931472
  %v7063 = vadd.f32 %v6776, %v7000
  %v7064 = vadd.f32 %v6778, %v7002
  %v7065 = vadd.f32 %v6780, %v7004
  %v7066 = vadd.f32 %v6782, %v7006
  %v7067 = vadd.f32 %v6784, %v7008
  %v7068 = vadd.f32 %v6786, %v7010
  %v7069 = vadd.f32 %v6788, %v7012
  %v7070 = vadd.f32 %v6790, %v7014
  %v7071 = vadd.f32 %v6792, %v7016
  %v7072 = vadd.f32 %v6794, %v7018
  %v7073 = vadd.f32 %v6796, %v7020
  %v7074 = vadd.f32 %v6798, %v7022
  %v7075 = vadd.f32 %v6800, %v7024
  %v7076 = vadd.f32 %v6802, %v7026
  %v7077 = vadd.f32 %v6804, %v7028
  %v7078 = vadd.f32 %v6806, %v7030
  %v7079 = vadd.f32 %v6808, %v7032
  %v7080 = vadd.f32 %v6810, %v7034
  %v7081 = vadd.f32 %v6812, %v7036
  %v7082 = vadd.f32 %v6814, %v7038
  %v7083 = vadd.f32 %v6816, %v7040
  %v7084 = vadd.f32 %v6818, %v7042
  %v7085 = vadd.f32 %v6820, %v7044
  %v7086 = vadd.f32 %v6822, %v7046
  %v7087 = vadd.f32 %v6824, %v7048
  %v7088 = vadd.f32 %v6826, %v7050
  %v7089 = vadd.f32 %v6828, %v7052
  %v7090 = vadd.f32 %v6830, %v7054
  %v7091 = vadd.f32 %v6832, %v7056
  %v7092 = vadd.f32 %v6834, %v7058
  %v7093 = vadd.f32 %v6836, %v7060
  %v7094 = vadd.f32 %v6838, %v7062
  %v7095 = vld [vmem:[%s1] sm:$0xff]
  %v7096 = vld [vmem:[%s1 + $0x8] sm:$0xff]
  %v7097 = vld [vmem:[%s1 + $0x10] sm:$0xff]
  %v7098 = vld [vmem:[%s1 + $0x18] sm:$0xff]
  %v7099 = vld [vmem:[%s1 + $0x20] sm:$0xff]
  %v7100 = vld [vmem:[%s1 + $0x28] sm:$0xff]
  %v7101 = vld [vmem:[%s1 + $0x30] sm:$0xff]
  %v7102 = vld [vmem:[%s1 + $0x38] sm:$0xff]
  %v7103 = vld [vmem:[%s1 + $0x40] sm:$0xff]
  %v7104 = vld [vmem:[%s1 + $0x48] sm:$0xff]
  %v7105 = vld [vmem:[%s1 + $0x50] sm:$0xff]
  %v7106 = vld [vmem:[%s1 + $0x58] sm:$0xff]
  %v7107 = vld [vmem:[%s1 + $0x60] sm:$0xff]
  %v7108 = vld [vmem:[%s1 + $0x68] sm:$0xff]
  %v7109 = vld [vmem:[%s1 + $0x70] sm:$0xff]
  %v7110 = vld [vmem:[%s1 + $0x78] sm:$0xff]
  %v7111 = vld [vmem:[%s1 + $0x80] sm:$0xff]
  %v7112 = vld [vmem:[%s1 + $0x88] sm:$0xff]
  %v7113 = vld [vmem:[%s1 + $0x90] sm:$0xff]
  %v7114 = vld [vmem:[%s1 + $0x98] sm:$0xff]
  %v7115 = vld [vmem:[%s1 + $0xa0] sm:$0xff]
  %v7116 = vld [vmem:[%s1 + $0xa8] sm:$0xff]
  %v7117 = vld [vmem:[%s1 + $0xb0] sm:$0xff]
  %v7118 = vld [vmem:[%s1 + $0xb8] sm:$0xff]
  %v7119 = vld [vmem:[%s1 + $0xc0] sm:$0xff]
  %v7120 = vld [vmem:[%s1 + $0xc8] sm:$0xff]
  %v7121 = vld [vmem:[%s1 + $0xd0] sm:$0xff]
  %v7122 = vld [vmem:[%s1 + $0xd8] sm:$0xff]
  %v7123 = vld [vmem:[%s1 + $0xe0] sm:$0xff]
  %v7124 = vld [vmem:[%s1 + $0xe8] sm:$0xff]
  %v7125 = vld [vmem:[%s1 + $0xf0] sm:$0xff]
  %v7126 = vld [vmem:[%s1 + $0xf8] sm:$0xff]
  %7127 = vset.pattern.permute.xlu0 0
  %7128 = vperm.xlu0 %7127, %v7095
  %v7129 = vpop.permute.xlu0 %7128
  %7130 = vset.pattern.permute.xlu0 0
  %7131 = vperm.xlu0 %7130, %v7096
  %v7132 = vpop.permute.xlu0 %7131
  %7133 = vset.pattern.permute.xlu0 0
  %7134 = vperm.xlu0 %7133, %v7097
  %v7135 = vpop.permute.xlu0 %7134
  %7136 = vset.pattern.permute.xlu0 0
  %7137 = vperm.xlu0 %7136, %v7098
  %v7138 = vpop.permute.xlu0 %7137
  %7139 = vset.pattern.permute.xlu0 0
  %7140 = vperm.xlu0 %7139, %v7099
  %v7141 = vpop.permute.xlu0 %7140
  %7142 = vset.pattern.permute.xlu0 0
  %7143 = vperm.xlu0 %7142, %v7100
  %v7144 = vpop.permute.xlu0 %7143
  %7145 = vset.pattern.permute.xlu0 0
  %7146 = vperm.xlu0 %7145, %v7101
  %v7147 = vpop.permute.xlu0 %7146
  %7148 = vset.pattern.permute.xlu0 0
  %7149 = vperm.xlu0 %7148, %v7102
  %v7150 = vpop.permute.xlu0 %7149
  %7151 = vset.pattern.permute.xlu0 0
  %7152 = vperm.xlu0 %7151, %v7103
  %v7153 = vpop.permute.xlu0 %7152
  %7154 = vset.pattern.permute.xlu0 0
  %7155 = vperm.xlu0 %7154, %v7104
  %v7156 = vpop.permute.xlu0 %7155
  %7157 = vset.pattern.permute.xlu0 0
  %7158 = vperm.xlu0 %7157, %v7105
  %v7159 = vpop.permute.xlu0 %7158
  %7160 = vset.pattern.permute.xlu0 0
  %7161 = vperm.xlu0 %7160, %v7106
  %v7162 = vpop.permute.xlu0 %7161
  %7163 = vset.pattern.permute.xlu0 0
  %7164 = vperm.xlu0 %7163, %v7107
  %v7165 = vpop.permute.xlu0 %7164
  %7166 = vset.pattern.permute.xlu0 0
  %7167 = vperm.xlu0 %7166, %v7108
  %v7168 = vpop.permute.xlu0 %7167
  %7169 = vset.pattern.permute.xlu0 0
  %7170 = vperm.xlu0 %7169, %v7109
  %v7171 = vpop.permute.xlu0 %7170
  %7172 = vset.pattern.permute.xlu0 0
  %7173 = vperm.xlu0 %7172, %v7110
  %v7174 = vpop.permute.xlu0 %7173
  %7175 = vset.pattern.permute.xlu0 0
  %7176 = vperm.xlu0 %7175, %v7111
  %v7177 = vpop.permute.xlu0 %7176
  %7178 = vset.pattern.permute.xlu0 0
  %7179 = vperm.xlu0 %7178, %v7112
  %v7180 = vpop.permute.xlu0 %7179
  %7181 = vset.pattern.permute.xlu0 0
  %7182 = vperm.xlu0 %7181, %v7113
  %v7183 = vpop.permute.xlu0 %7182
  %7184 = vset.pattern.permute.xlu0 0
  %7185 = vperm.xlu0 %7184, %v7114
  %v7186 = vpop.permute.xlu0 %7185
  %7187 = vset.pattern.permute.xlu0 0
  %7188 = vperm.xlu0 %7187, %v7115
  %v7189 = vpop.permute.xlu0 %7188
  %7190 = vset.pattern.permute.xlu0 0
  %7191 = vperm.xlu0 %7190, %v7116
  %v7192 = vpop.permute.xlu0 %7191
  %7193 = vset.pattern.permute.xlu0 0
  %7194 = vperm.xlu0 %7193, %v7117
  %v7195 = vpop.permute.xlu0 %7194
  %7196 = vset.pattern.permute.xlu0 0
  %7197 = vperm.xlu0 %7196, %v7118
  %v7198 = vpop.permute.xlu0 %7197
  %7199 = vset.pattern.permute.xlu0 0
  %7200 = vperm.xlu0 %7199, %v7119
  %v7201 = vpop.permute.xlu0 %7200
  %7202 = vset.pattern.permute.xlu0 0
  %7203 = vperm.xlu0 %7202, %v7120
  %v7204 = vpop.permute.xlu0 %7203
  %7205 = vset.pattern.permute.xlu0 0
  %7206 = vperm.xlu0 %7205, %v7121
  %v7207 = vpop.permute.xlu0 %7206
  %7208 = vset.pattern.permute.xlu0 0
  %7209 = vperm.xlu0 %7208, %v7122
  %v7210 = vpop.permute.xlu0 %7209
  %7211 = vset.pattern.permute.xlu0 0
  %7212 = vperm.xlu0 %7211, %v7123
  %v7213 = vpop.permute.xlu0 %7212
  %7214 = vset.pattern.permute.xlu0 0
  %7215 = vperm.xlu0 %7214, %v7124
  %v7216 = vpop.permute.xlu0 %7215
  %7217 = vset.pattern.permute.xlu0 0
  %7218 = vperm.xlu0 %7217, %v7125
  %v7219 = vpop.permute.xlu0 %7218
  %7220 = vset.pattern.permute.xlu0 0
  %7221 = vperm.xlu0 %7220, %v7126
  %v7222 = vpop.permute.xlu0 %7221
  %vm7223 = vcmp.eq.s32.totalorder %v93, %v7129
  %vm7224 = vcmp.eq.s32.totalorder %v93, %v7132
  %vm7225 = vcmp.eq.s32.totalorder %v93, %v7135
  %vm7226 = vcmp.eq.s32.totalorder %v93, %v7138
  %vm7227 = vcmp.eq.s32.totalorder %v93, %v7141
  %vm7228 = vcmp.eq.s32.totalorder %v93, %v7144
  %vm7229 = vcmp.eq.s32.totalorder %v93, %v7147
  %vm7230 = vcmp.eq.s32.totalorder %v93, %v7150
  %vm7231 = vcmp.eq.s32.totalorder %v93, %v7153
  %vm7232 = vcmp.eq.s32.totalorder %v93, %v7156
  %vm7233 = vcmp.eq.s32.totalorder %v93, %v7159
  %vm7234 = vcmp.eq.s32.totalorder %v93, %v7162
  %vm7235 = vcmp.eq.s32.totalorder %v93, %v7165
  %vm7236 = vcmp.eq.s32.totalorder %v93, %v7168
  %vm7237 = vcmp.eq.s32.totalorder %v93, %v7171
  %vm7238 = vcmp.eq.s32.totalorder %v93, %v7174
  %vm7239 = vcmp.eq.s32.totalorder %v93, %v7177
  %vm7240 = vcmp.eq.s32.totalorder %v93, %v7180
  %vm7241 = vcmp.eq.s32.totalorder %v93, %v7183
  %vm7242 = vcmp.eq.s32.totalorder %v93, %v7186
  %vm7243 = vcmp.eq.s32.totalorder %v93, %v7189
  %vm7244 = vcmp.eq.s32.totalorder %v93, %v7192
  %vm7245 = vcmp.eq.s32.totalorder %v93, %v7195
  %vm7246 = vcmp.eq.s32.totalorder %v93, %v7198
  %vm7247 = vcmp.eq.s32.totalorder %v93, %v7201
  %vm7248 = vcmp.eq.s32.totalorder %v93, %v7204
  %vm7249 = vcmp.eq.s32.totalorder %v93, %v7207
  %vm7250 = vcmp.eq.s32.totalorder %v93, %v7210
  %vm7251 = vcmp.eq.s32.totalorder %v93, %v7213
  %vm7252 = vcmp.eq.s32.totalorder %v93, %v7216
  %vm7253 = vcmp.eq.s32.totalorder %v93, %v7219
  %vm7254 = vcmp.eq.s32.totalorder %v93, %v7222
  %v7255 = vsel %vm7223, %v6649, 0.0
  %v7256 = vsel %vm7224, %v6652, 0.0
  %v7257 = vsel %vm7225, %v6657, 0.0
  %v7258 = vsel %vm7226, %v6660, 0.0
  %v7259 = vsel %vm7227, %v6665, 0.0
  %v7260 = vsel %vm7228, %v6668, 0.0
  %v7261 = vsel %vm7229, %v6673, 0.0
  %v7262 = vsel %vm7230, %v6676, 0.0
  %v7263 = vsel %vm7231, %v6681, 0.0
  %v7264 = vsel %vm7232, %v6684, 0.0
  %v7265 = vsel %vm7233, %v6689, 0.0
  %v7266 = vsel %vm7234, %v6692, 0.0
  %v7267 = vsel %vm7235, %v6697, 0.0
  %v7268 = vsel %vm7236, %v6700, 0.0
  %v7269 = vsel %vm7237, %v6705, 0.0
  %v7270 = vsel %vm7238, %v6708, 0.0
  %v7271 = vsel %vm7239, %v6713, 0.0
  %v7272 = vsel %vm7240, %v6716, 0.0
  %v7273 = vsel %vm7241, %v6721, 0.0
  %v7274 = vsel %vm7242, %v6724, 0.0
  %v7275 = vsel %vm7243, %v6729, 0.0
  %v7276 = vsel %vm7244, %v6732, 0.0
  %v7277 = vsel %vm7245, %v6737, 0.0
  %v7278 = vsel %vm7246, %v6740, 0.0
  %v7279 = vsel %vm7247, %v6745, 0.0
  %v7280 = vsel %vm7248, %v6748, 0.0
  %v7281 = vsel %vm7249, %v6753, 0.0
  %v7282 = vsel %vm7250, %v6756, 0.0
  %v7283 = vsel %vm7251, %v6761, 0.0
  %v7284 = vsel %vm7252, %v6764, 0.0
  %v7285 = vsel %vm7253, %v6769, 0.0
  %v7286 = vsel %vm7254, %v6772, 0.0
  %7287 = vadd.xlane.f32.xlu0 %v7255
  %v7288 = vpop.xlane.xlu0 %7287
  %7289 = vadd.xlane.f32.xlu0 %v7256
  %v7290 = vpop.xlane.xlu0 %7289
  %7291 = vadd.xlane.f32.xlu0 %v7257
  %v7292 = vpop.xlane.xlu0 %7291
  %7293 = vadd.xlane.f32.xlu0 %v7258
  %v7294 = vpop.xlane.xlu0 %7293
  %7295 = vadd.xlane.f32.xlu0 %v7259
  %v7296 = vpop.xlane.xlu0 %7295
  %7297 = vadd.xlane.f32.xlu0 %v7260
  %v7298 = vpop.xlane.xlu0 %7297
  %7299 = vadd.xlane.f32.xlu0 %v7261
  %v7300 = vpop.xlane.xlu0 %7299
  %7301 = vadd.xlane.f32.xlu0 %v7262
  %v7302 = vpop.xlane.xlu0 %7301
  %7303 = vadd.xlane.f32.xlu0 %v7263
  %v7304 = vpop.xlane.xlu0 %7303
  %7305 = vadd.xlane.f32.xlu0 %v7264
  %v7306 = vpop.xlane.xlu0 %7305
  %7307 = vadd.xlane.f32.xlu0 %v7265
  %v7308 = vpop.xlane.xlu0 %7307
  %7309 = vadd.xlane.f32.xlu0 %v7266
  %v7310 = vpop.xlane.xlu0 %7309
  %7311 = vadd.xlane.f32.xlu0 %v7267
  %v7312 = vpop.xlane.xlu0 %7311
  %7313 = vadd.xlane.f32.xlu0 %v7268
  %v7314 = vpop.xlane.xlu0 %7313
  %7315 = vadd.xlane.f32.xlu0 %v7269
  %v7316 = vpop.xlane.xlu0 %7315
  %7317 = vadd.xlane.f32.xlu0 %v7270
  %v7318 = vpop.xlane.xlu0 %7317
  %7319 = vadd.xlane.f32.xlu0 %v7271
  %v7320 = vpop.xlane.xlu0 %7319
  %7321 = vadd.xlane.f32.xlu0 %v7272
  %v7322 = vpop.xlane.xlu0 %7321
  %7323 = vadd.xlane.f32.xlu0 %v7273
  %v7324 = vpop.xlane.xlu0 %7323
  %7325 = vadd.xlane.f32.xlu0 %v7274
  %v7326 = vpop.xlane.xlu0 %7325
  %7327 = vadd.xlane.f32.xlu0 %v7275
  %v7328 = vpop.xlane.xlu0 %7327
  %7329 = vadd.xlane.f32.xlu0 %v7276
  %v7330 = vpop.xlane.xlu0 %7329
  %7331 = vadd.xlane.f32.xlu0 %v7277
  %v7332 = vpop.xlane.xlu0 %7331
  %7333 = vadd.xlane.f32.xlu0 %v7278
  %v7334 = vpop.xlane.xlu0 %7333
  %7335 = vadd.xlane.f32.xlu0 %v7279
  %v7336 = vpop.xlane.xlu0 %7335
  %7337 = vadd.xlane.f32.xlu0 %v7280
  %v7338 = vpop.xlane.xlu0 %7337
  %7339 = vadd.xlane.f32.xlu0 %v7281
  %v7340 = vpop.xlane.xlu0 %7339
  %7341 = vadd.xlane.f32.xlu0 %v7282
  %v7342 = vpop.xlane.xlu0 %7341
  %7343 = vadd.xlane.f32.xlu0 %v7283
  %v7344 = vpop.xlane.xlu0 %7343
  %7345 = vadd.xlane.f32.xlu0 %v7284
  %v7346 = vpop.xlane.xlu0 %7345
  %7347 = vadd.xlane.f32.xlu0 %v7285
  %v7348 = vpop.xlane.xlu0 %7347
  %7349 = vadd.xlane.f32.xlu0 %v7286
  %v7350 = vpop.xlane.xlu0 %7349
  %v7351 = vsub.f32 %v7063, %v7288
  %v7352 = vsub.f32 %v7064, %v7290
  %v7353 = vsub.f32 %v7065, %v7292
  %v7354 = vsub.f32 %v7066, %v7294
  %v7355 = vsub.f32 %v7067, %v7296
  %v7356 = vsub.f32 %v7068, %v7298
  %v7357 = vsub.f32 %v7069, %v7300
  %v7358 = vsub.f32 %v7070, %v7302
  %v7359 = vsub.f32 %v7071, %v7304
  %v7360 = vsub.f32 %v7072, %v7306
  %v7361 = vsub.f32 %v7073, %v7308
  %v7362 = vsub.f32 %v7074, %v7310
  %v7363 = vsub.f32 %v7075, %v7312
  %v7364 = vsub.f32 %v7076, %v7314
  %v7365 = vsub.f32 %v7077, %v7316
  %v7366 = vsub.f32 %v7078, %v7318
  %v7367 = vsub.f32 %v7079, %v7320
  %v7368 = vsub.f32 %v7080, %v7322
  %v7369 = vsub.f32 %v7081, %v7324
  %v7370 = vsub.f32 %v7082, %v7326
  %v7371 = vsub.f32 %v7083, %v7328
  %v7372 = vsub.f32 %v7084, %v7330
  %v7373 = vsub.f32 %v7085, %v7332
  %v7374 = vsub.f32 %v7086, %v7334
  %v7375 = vsub.f32 %v7087, %v7336
  %v7376 = vsub.f32 %v7088, %v7338
  %v7377 = vsub.f32 %v7089, %v7340
  %v7378 = vsub.f32 %v7090, %v7342
  %v7379 = vsub.f32 %v7091, %v7344
  %v7380 = vsub.f32 %v7092, %v7346
  %v7381 = vsub.f32 %v7093, %v7348
  %v7382 = vsub.f32 %v7094, %v7350
  %v7383 = vsub.s32 %v1964, 1
  %v7384 = vsub.s32 %v1965, 1
  %v7385 = vsub.s32 %v1966, 1
  %v7386 = vsub.s32 %v1967, 1
  %v7387 = vsub.s32 %v1968, 1
  %v7388 = vsub.s32 %v1969, 1
  %v7389 = vsub.s32 %v1970, 1
  %v7390 = vsub.s32 %v1971, 1
  %v7391 = vlaneseq
  %v7392 = vshrl.u32 %v7391, 7
  %v7393 = vsub.s32 0, %v7392
  %v7394 = vrot.slane %v7383, %v7393
  %v7395 = vlaneseq
  %v7396 = vshrl.u32 %v7395, 7
  %v7397 = vsub.s32 0, %v7396
  %v7398 = vrot.slane %v7384, %v7397
  %v7399 = vlaneseq
  %v7400 = vshrl.u32 %v7399, 7
  %v7401 = vsub.s32 0, %v7400
  %v7402 = vrot.slane %v7385, %v7401
  %v7403 = vlaneseq
  %v7404 = vshrl.u32 %v7403, 7
  %v7405 = vsub.s32 0, %v7404
  %v7406 = vrot.slane %v7386, %v7405
  %v7407 = vlaneseq
  %v7408 = vshrl.u32 %v7407, 7
  %v7409 = vsub.s32 0, %v7408
  %v7410 = vrot.slane %v7387, %v7409
  %v7411 = vlaneseq
  %v7412 = vshrl.u32 %v7411, 7
  %v7413 = vsub.s32 0, %v7412
  %v7414 = vrot.slane %v7388, %v7413
  %v7415 = vlaneseq
  %v7416 = vshrl.u32 %v7415, 7
  %v7417 = vsub.s32 0, %v7416
  %v7418 = vrot.slane %v7389, %v7417
  %v7419 = vlaneseq
  %v7420 = vshrl.u32 %v7419, 7
  %v7421 = vsub.s32 0, %v7420
  %v7422 = vrot.slane %v7390, %v7421
  %vm7423 = vcmp.lt.s32.totalorder %v1973, %v7394
  %vm7424 = vcmp.lt.s32.totalorder %v1974, %v7394
  %vm7425 = vcmp.lt.s32.totalorder %v1975, %v7394
  %vm7426 = vcmp.lt.s32.totalorder %v1976, %v7394
  %vm7427 = vcmp.lt.s32.totalorder %v1973, %v7398
  %vm7428 = vcmp.lt.s32.totalorder %v1974, %v7398
  %vm7429 = vcmp.lt.s32.totalorder %v1975, %v7398
  %vm7430 = vcmp.lt.s32.totalorder %v1976, %v7398
  %vm7431 = vcmp.lt.s32.totalorder %v1973, %v7402
  %vm7432 = vcmp.lt.s32.totalorder %v1974, %v7402
  %vm7433 = vcmp.lt.s32.totalorder %v1975, %v7402
  %vm7434 = vcmp.lt.s32.totalorder %v1976, %v7402
  %vm7435 = vcmp.lt.s32.totalorder %v1973, %v7406
  %vm7436 = vcmp.lt.s32.totalorder %v1974, %v7406
  %vm7437 = vcmp.lt.s32.totalorder %v1975, %v7406
  %vm7438 = vcmp.lt.s32.totalorder %v1976, %v7406
  %vm7439 = vcmp.lt.s32.totalorder %v1973, %v7410
  %vm7440 = vcmp.lt.s32.totalorder %v1974, %v7410
  %vm7441 = vcmp.lt.s32.totalorder %v1975, %v7410
  %vm7442 = vcmp.lt.s32.totalorder %v1976, %v7410
  %vm7443 = vcmp.lt.s32.totalorder %v1973, %v7414
  %vm7444 = vcmp.lt.s32.totalorder %v1974, %v7414
  %vm7445 = vcmp.lt.s32.totalorder %v1975, %v7414
  %vm7446 = vcmp.lt.s32.totalorder %v1976, %v7414
  %vm7447 = vcmp.lt.s32.totalorder %v1973, %v7418
  %vm7448 = vcmp.lt.s32.totalorder %v1974, %v7418
  %vm7449 = vcmp.lt.s32.totalorder %v1975, %v7418
  %vm7450 = vcmp.lt.s32.totalorder %v1976, %v7418
  %vm7451 = vcmp.lt.s32.totalorder %v1973, %v7422
  %vm7452 = vcmp.lt.s32.totalorder %v1974, %v7422
  %vm7453 = vcmp.lt.s32.totalorder %v1975, %v7422
  %vm7454 = vcmp.lt.s32.totalorder %v1976, %v7422
  %v7455 = vsel %vm7423, %v7351, 0.0
  %v7456 = vsel %vm7424, %v7352, 0.0
  %v7457 = vsel %vm7425, %v7353, 0.0
  %v7458 = vsel %vm7426, %v7354, 0.0
  %v7459 = vsel %vm7427, %v7355, 0.0
  %v7460 = vsel %vm7428, %v7356, 0.0
  %v7461 = vsel %vm7429, %v7357, 0.0
  %v7462 = vsel %vm7430, %v7358, 0.0
  %v7463 = vsel %vm7431, %v7359, 0.0
  %v7464 = vsel %vm7432, %v7360, 0.0
  %v7465 = vsel %vm7433, %v7361, 0.0
  %v7466 = vsel %vm7434, %v7362, 0.0
  %v7467 = vsel %vm7435, %v7363, 0.0
  %v7468 = vsel %vm7436, %v7364, 0.0
  %v7469 = vsel %vm7437, %v7365, 0.0
  %v7470 = vsel %vm7438, %v7366, 0.0
  %v7471 = vsel %vm7439, %v7367, 0.0
  %v7472 = vsel %vm7440, %v7368, 0.0
  %v7473 = vsel %vm7441, %v7369, 0.0
  %v7474 = vsel %vm7442, %v7370, 0.0
  %v7475 = vsel %vm7443, %v7371, 0.0
  %v7476 = vsel %vm7444, %v7372, 0.0
  %v7477 = vsel %vm7445, %v7373, 0.0
  %v7478 = vsel %vm7446, %v7374, 0.0
  %v7479 = vsel %vm7447, %v7375, 0.0
  %v7480 = vsel %vm7448, %v7376, 0.0
  %v7481 = vsel %vm7449, %v7377, 0.0
  %v7482 = vsel %vm7450, %v7378, 0.0
  %v7483 = vsel %vm7451, %v7379, 0.0
  %v7484 = vsel %vm7452, %v7380, 0.0
  %v7485 = vsel %vm7453, %v7381, 0.0
  %v7486 = vsel %vm7454, %v7382, 0.0
  %vm7487 = vcmask 7168
  %v7488 = vsel %vm7487, %v7455, 0.0
  %v7489 = vsel %vm7487, %v7456, 0.0
  %v7490 = vadd.f32 %v7488, %v7489
  %v7491 = vsel %vm7487, %v7457, 0.0
  %v7492 = vadd.f32 %v7490, %v7491
  %v7493 = vsel %vm7487, %v7458, 0.0
  %v7494 = vadd.f32 %v7492, %v7493
  %v7495 = vrot.slane %v7494, 4
  %v7496 = vadd.f32 %v7494, %v7495
  %v7497 = vrot.slane %v7496, 2
  %v7498 = vadd.f32 %v7496, %v7497
  %v7499 = vrot.slane %v7498, 1
  %v7500 = vadd.f32 %v7498, %v7499
  %v7501 = vsel %vm7487, %v7459, 0.0
  %v7502 = vsel %vm7487, %v7460, 0.0
  %v7503 = vadd.f32 %v7501, %v7502
  %v7504 = vsel %vm7487, %v7461, 0.0
  %v7505 = vadd.f32 %v7503, %v7504
  %v7506 = vsel %vm7487, %v7462, 0.0
  %v7507 = vadd.f32 %v7505, %v7506
  %v7508 = vrot.slane %v7507, 4
  %v7509 = vadd.f32 %v7507, %v7508
  %v7510 = vrot.slane %v7509, 2
  %v7511 = vadd.f32 %v7509, %v7510
  %v7512 = vrot.slane %v7511, 1
  %v7513 = vadd.f32 %v7511, %v7512
  %v7514 = vsel %vm7487, %v7463, 0.0
  %v7515 = vsel %vm7487, %v7464, 0.0
  %v7516 = vadd.f32 %v7514, %v7515
  %v7517 = vsel %vm7487, %v7465, 0.0
  %v7518 = vadd.f32 %v7516, %v7517
  %v7519 = vsel %vm7487, %v7466, 0.0
  %v7520 = vadd.f32 %v7518, %v7519
  %v7521 = vrot.slane %v7520, 4
  %v7522 = vadd.f32 %v7520, %v7521
  %v7523 = vrot.slane %v7522, 2
  %v7524 = vadd.f32 %v7522, %v7523
  %v7525 = vrot.slane %v7524, 1
  %v7526 = vadd.f32 %v7524, %v7525
  %v7527 = vsel %vm7487, %v7467, 0.0
  %v7528 = vsel %vm7487, %v7468, 0.0
  %v7529 = vadd.f32 %v7527, %v7528
  %v7530 = vsel %vm7487, %v7469, 0.0
  %v7531 = vadd.f32 %v7529, %v7530
  %v7532 = vsel %vm7487, %v7470, 0.0
  %v7533 = vadd.f32 %v7531, %v7532
  %v7534 = vrot.slane %v7533, 4
  %v7535 = vadd.f32 %v7533, %v7534
  %v7536 = vrot.slane %v7535, 2
  %v7537 = vadd.f32 %v7535, %v7536
  %v7538 = vrot.slane %v7537, 1
  %v7539 = vadd.f32 %v7537, %v7538
  %v7540 = vsel %vm7487, %v7471, 0.0
  %v7541 = vsel %vm7487, %v7472, 0.0
  %v7542 = vadd.f32 %v7540, %v7541
  %v7543 = vsel %vm7487, %v7473, 0.0
  %v7544 = vadd.f32 %v7542, %v7543
  %v7545 = vsel %vm7487, %v7474, 0.0
  %v7546 = vadd.f32 %v7544, %v7545
  %v7547 = vrot.slane %v7546, 4
  %v7548 = vadd.f32 %v7546, %v7547
  %v7549 = vrot.slane %v7548, 2
  %v7550 = vadd.f32 %v7548, %v7549
  %v7551 = vrot.slane %v7550, 1
  %v7552 = vadd.f32 %v7550, %v7551
  %v7553 = vsel %vm7487, %v7475, 0.0
  %v7554 = vsel %vm7487, %v7476, 0.0
  %v7555 = vadd.f32 %v7553, %v7554
  %v7556 = vsel %vm7487, %v7477, 0.0
  %v7557 = vadd.f32 %v7555, %v7556
  %v7558 = vsel %vm7487, %v7478, 0.0
  %v7559 = vadd.f32 %v7557, %v7558
  %v7560 = vrot.slane %v7559, 4
  %v7561 = vadd.f32 %v7559, %v7560
  %v7562 = vrot.slane %v7561, 2
  %v7563 = vadd.f32 %v7561, %v7562
  %v7564 = vrot.slane %v7563, 1
  %v7565 = vadd.f32 %v7563, %v7564
  %v7566 = vsel %vm7487, %v7479, 0.0
  %v7567 = vsel %vm7487, %v7480, 0.0
  %v7568 = vadd.f32 %v7566, %v7567
  %v7569 = vsel %vm7487, %v7481, 0.0
  %v7570 = vadd.f32 %v7568, %v7569
  %v7571 = vsel %vm7487, %v7482, 0.0
  %v7572 = vadd.f32 %v7570, %v7571
  %v7573 = vrot.slane %v7572, 4
  %v7574 = vadd.f32 %v7572, %v7573
  %v7575 = vrot.slane %v7574, 2
  %v7576 = vadd.f32 %v7574, %v7575
  %v7577 = vrot.slane %v7576, 1
  %v7578 = vadd.f32 %v7576, %v7577
  %v7579 = vsel %vm7487, %v7483, 0.0
  %v7580 = vsel %vm7487, %v7484, 0.0
  %v7581 = vadd.f32 %v7579, %v7580
  %v7582 = vsel %vm7487, %v7485, 0.0
  %v7583 = vadd.f32 %v7581, %v7582
  %v7584 = vsel %vm7487, %v7486, 0.0
  %v7585 = vadd.f32 %v7583, %v7584
  %v7586 = vrot.slane %v7585, 4
  %v7587 = vadd.f32 %v7585, %v7586
  %v7588 = vrot.slane %v7587, 2
  %v7589 = vadd.f32 %v7587, %v7588
  %v7590 = vrot.slane %v7589, 1
  %v7591 = vadd.f32 %v7589, %v7590
  %vm7592 = vcmp.gt.s32.totalorder %v7383, 1
  %v7593 = vsel %vm7592, %v7383, 1
  %vm7594 = vcmp.gt.s32.totalorder %v7384, 1
  %v7595 = vsel %vm7594, %v7384, 1
  %vm7596 = vcmp.gt.s32.totalorder %v7385, 1
  %v7597 = vsel %vm7596, %v7385, 1
  %vm7598 = vcmp.gt.s32.totalorder %v7386, 1
  %v7599 = vsel %vm7598, %v7386, 1
  %vm7600 = vcmp.gt.s32.totalorder %v7387, 1
  %v7601 = vsel %vm7600, %v7387, 1
  %vm7602 = vcmp.gt.s32.totalorder %v7388, 1
  %v7603 = vsel %vm7602, %v7388, 1
  %vm7604 = vcmp.gt.s32.totalorder %v7389, 1
  %v7605 = vsel %vm7604, %v7389, 1
  %vm7606 = vcmp.gt.s32.totalorder %v7390, 1
  %v7607 = vsel %vm7606, %v7390, 1
  %v7608 = vcvt.s32.f32 %v7593
  %v7609 = vcvt.s32.f32 %v7595
  %v7610 = vcvt.s32.f32 %v7597
  %v7611 = vcvt.s32.f32 %v7599
  %v7612 = vcvt.s32.f32 %v7601
  %v7613 = vcvt.s32.f32 %v7603
  %v7614 = vcvt.s32.f32 %v7605
  %v7615 = vcvt.s32.f32 %v7607
  %v7616 = vrcp.pop %v7608
  %v7617 = vmul.f32 %v7500, %v7616
  %v7618 = vrcp.pop %v7609
  %v7619 = vmul.f32 %v7513, %v7618
  %v7620 = vrcp.pop %v7610
  %v7621 = vmul.f32 %v7526, %v7620
  %v7622 = vrcp.pop %v7611
  %v7623 = vmul.f32 %v7539, %v7622
  %v7624 = vrcp.pop %v7612
  %v7625 = vmul.f32 %v7552, %v7624
  %v7626 = vrcp.pop %v7613
  %v7627 = vmul.f32 %v7565, %v7626
  %v7628 = vrcp.pop %v7614
  %v7629 = vmul.f32 %v7578, %v7628
  %v7630 = vrcp.pop %v7615
  %v7631 = vmul.f32 %v7591, %v7630
  %7633 = vset.pattern.permute.xlu0 0
  %7634 = vperm.xlu0 %7633, %v7617
  %v7635 = vpop.permute.xlu0 %7634
  %7638 = vset.pattern.permute.xlu0 0
  %7639 = vperm.xlu0 %7638, %v7619
  %v7640 = vpop.permute.xlu0 %7639
  %7643 = vset.pattern.permute.xlu0 0
  %7644 = vperm.xlu0 %7643, %v7621
  %v7645 = vpop.permute.xlu0 %7644
  %7648 = vset.pattern.permute.xlu0 0
  %7649 = vperm.xlu0 %7648, %v7623
  %v7650 = vpop.permute.xlu0 %7649
  %7653 = vset.pattern.permute.xlu0 0
  %7654 = vperm.xlu0 %7653, %v7625
  %v7655 = vpop.permute.xlu0 %7654
  %7658 = vset.pattern.permute.xlu0 0
  %7659 = vperm.xlu0 %7658, %v7627
  %v7660 = vpop.permute.xlu0 %7659
  %7663 = vset.pattern.permute.xlu0 0
  %7664 = vperm.xlu0 %7663, %v7629
  %v7665 = vpop.permute.xlu0 %7664
  %7668 = vset.pattern.permute.xlu0 0
  %7669 = vperm.xlu0 %7668, %v7631
  %v7670 = vpop.permute.xlu0 %7669
  %7672 = vst [vmem:[%s18] sm:$0x1] %v7635
  %7673 = vst [vmem:[%s18 + $0x1] sm:$0x1] %v7640
  %7674 = vst [vmem:[%s18 + $0x2] sm:$0x1] %v7645
  %7675 = vst [vmem:[%s18 + $0x3] sm:$0x1] %v7650
  %7676 = vst [vmem:[%s18 + $0x4] sm:$0x1] %v7655
  %7677 = vst [vmem:[%s18 + $0x5] sm:$0x1] %v7660
  %7678 = vst [vmem:[%s18 + $0x6] sm:$0x1] %v7665
  %7679 = vst [vmem:[%s18 + $0x7] sm:$0x1] %v7670
  // Predicated region
  $region74: #{_forward_device.1} parent=0 // pred_check
    _
  $region75: #{_forward_device.1} parent=0 // pred_check_branch
    %7681 = sbr.rel (0) target = $region77
  $region76: #{_forward_device.1} parent=0 // pred_region
    _
  $region77: #{_forward_device.1} parent=0 // pred_fallthru
    _
  // Predicated region
  $region78: #{_forward_device.1} parent=0 // pred_check
    _
  $region79: #{_forward_device.1} parent=0 // pred_check_branch
    %7683 = sbr.rel (0) target = $region81
  $region80: #{_forward_device.1} parent=0 // pred_region
    _
  $region81: #{_forward_device.1} parent=0 // pred_fallthru
    _

</llo_original>
